<compile_context>
chip_gen: v7x
topology: tpu7x:2x2x1
jax: 0.10.0
libtpu: 0.0.40
codegen_flags: <defaults>
</compile_context>

<pallas_src>
import functools
import math

import jax
import jax.numpy as jnp
from jax import lax
from jax.experimental import pallas as pl
from jax.experimental.pallas import tpu as pltpu

# ----------------------------- configuration (small, synthetic) -----------------------------
B = 2            # batch
S = 8            # sequence length
M = B * S
VOCAB = 100
MAX_POS = 64
EMB_DIM = 32     # "bert hidden_size" (embedding_dim fed to the GRU)
N_BERT_LAYERS = 2
N_HEADS = 2
HEAD_DIM = EMB_DIM // N_HEADS
INTER_DIM = 64
HIDDEN_DIM = 16  # GRU hidden_dim
OUTPUT_DIM = 3
N_GRU_LAYERS = 2           # kernel below is specialized to exactly 2 layers
BIDIRECTIONAL = True       # kernel below is specialized to the bidirectional case
N_DIRS = 2
LN_EPS = 1e-12
G3 = 3 * HIDDEN_DIM


# ------------------------------------ small helpers -----------------------------------------
def _full_spec(shape):
    """Whole-array BlockSpec for a grid=(1,) kernel."""
    zeros = (0,) * len(shape)
    return pl.BlockSpec(shape, lambda i, z=zeros: z)


def _layer_norm(x, g, b):
    mu = jnp.mean(x, axis=-1, keepdims=True)
    var = jnp.mean((x - mu) * (x - mu), axis=-1, keepdims=True)
    return (x - mu) * lax.rsqrt(var + LN_EPS) * g + b


def _gelu_tanh(x):
    # tanh-approximation GELU, computed on the VPU/EUP.
    return 0.5 * x * (1.0 + jnp.tanh(0.7978845608028654 * (x + 0.044715 * x * x * x)))


def _gru_cell(g, h, w_hh, b_hh):
    """torch.nn.GRU cell. Gate order r, z, n; n = tanh(gx_n + r * (h @ W_hn + b_hn))."""
    hh = jnp.dot(h, w_hh, preferred_element_type=jnp.float32) + b_hh
    r = jax.nn.sigmoid(g[:, :HIDDEN_DIM] + hh[:, :HIDDEN_DIM])
    z = jax.nn.sigmoid(g[:, HIDDEN_DIM:2 * HIDDEN_DIM] + hh[:, HIDDEN_DIM:2 * HIDDEN_DIM])
    n = jnp.tanh(g[:, 2 * HIDDEN_DIM:] + r * hh[:, 2 * HIDDEN_DIM:])
    return (1.0 - z) * n + z * h


# --------------------------------- the single fused kernel ----------------------------------
def _fused_forward_kernel(ids_ref, mask_ref, wemb_ref, pt_ref, eg_ref, eb_ref,
                          wqkv_ref, bqkv_ref, wo_ref, bo_ref, g1_ref, bg1_ref,
                          w1_ref, b1_ref, w2_ref, b2_ref, g2_ref, bg2_ref,
                          wih0_ref, bih0_ref, whh0_ref, bhh0_ref,
                          wih1_ref, bih1_ref, whh1_ref, bhh1_ref,
                          outw_ref, outb_ref, o_ref):
    scale = 1.0 / math.sqrt(HEAD_DIM)

    # ---- BERT embeddings: in-kernel token lookup via one-hot MXU matmul --------------------
    ids = ids_ref[...]                                                        # (M, 1) int32
    onehot = (lax.broadcasted_iota(jnp.int32, (M, VOCAB), 1) == ids).astype(jnp.float32)
    x = jnp.dot(onehot, wemb_ref[...], preferred_element_type=jnp.float32) + pt_ref[...]
    x = _layer_norm(x, eg_ref[...], eb_ref[...])                              # (M, E)

    # additive key mask, (B, 1, S) broadcasts over the query rows of (B, S, S) scores
    bias = ((1.0 - mask_ref[...]) * -10000.0).reshape(B, 1, S)

    # ---- BERT encoder layers (unrolled, all activations in vregs) --------------------------
    for l in range(N_BERT_LAYERS):
        # fused Q|K|V projection (lane-dense N = 3*EMB_DIM)
        qkv = jnp.dot(x, wqkv_ref[l], preferred_element_type=jnp.float32) + bqkv_ref[l]
        qkv3 = qkv.reshape(B, S, 3 * EMB_DIM)
        heads = []
        for h in range(N_HEADS):                     # batched over B per head (3-D einsums)
            c0 = h * HEAD_DIM
            qh = qkv3[:, :, c0:c0 + HEAD_DIM]
            kh = qkv3[:, :, EMB_DIM + c0:EMB_DIM + c0 + HEAD_DIM]
            vh = qkv3[:, :, 2 * EMB_DIM + c0:2 * EMB_DIM + c0 + HEAD_DIM]
            s = jnp.einsum('bqd,bkd->bqk', qh, kh,
                           preferred_element_type=jnp.float32) * scale + bias
            s = s - jnp.max(s, axis=-1, keepdims=True)
            p = jnp.exp(s)
            p = p * pl.reciprocal(jnp.sum(p, axis=-1, keepdims=True), approx=True)
            heads.append(jnp.einsum('bqk,bkd->bqd', p, vh,
                                    preferred_element_type=jnp.float32))
        ctx = jnp.concatenate(heads, axis=-1).reshape(M, EMB_DIM)
        # attention output projection + residual + LN (fused epilogue)
        attn_out = jnp.dot(ctx, wo_ref[l], preferred_element_type=jnp.float32) + bo_ref[l]
        x = _layer_norm(attn_out + x, g1_ref[l], bg1_ref[l])
        # FFN (GELU) + residual + LN (fused epilogue)
        ffn = _gelu_tanh(jnp.dot(x, w1_ref[l], preferred_element_type=jnp.float32) + b1_ref[l])
        ffn = jnp.dot(ffn, w2_ref[l], preferred_element_type=jnp.float32) + b2_ref[l]
        x = _layer_norm(ffn + x, g2_ref[l], bg2_ref[l])

    # ---- GRU layer 0 (bidirectional; fwd/bwd latency chains interleaved) -------------------
    # Input rows ordered (batch, time). One batched input projection per direction, then
    # cheap static per-timestep slices inside the unrolled recurrence.
    gx_f = (jnp.dot(x, wih0_ref[0], preferred_element_type=jnp.float32)
            + bih0_ref[0]).reshape(B, S, G3)
    gx_b = (jnp.dot(x, wih0_ref[1], preferred_element_type=jnp.float32)
            + bih0_ref[1]).reshape(B, S, G3)
    whh_f, bhh_f = whh0_ref[0], bhh0_ref[0]          # hoisted out of the time loop
    whh_b, bhh_b = whh0_ref[1], bhh0_ref[1]
    h_f = jnp.zeros((B, HIDDEN_DIM), jnp.float32)    # h0 = 0 (PyTorch default)
    h_b = jnp.zeros((B, HIDDEN_DIM), jnp.float32)
    hs_f = [None] * S
    hs_b = [None] * S
    for step in range(S):                            # statically unrolled recurrence
        tf, tb = step, S - 1 - step
        h_f = _gru_cell(gx_f[:, tf, :], h_f, whh_f, bhh_f)
        h_b = _gru_cell(gx_b[:, tb, :], h_b, whh_b, bhh_b)
        hs_f[tf] = h_f
        hs_b[tb] = h_b
    # layer-0 output sequence, time-major rows (t, b), lanes = [fwd H | bwd H]
    x2 = jnp.concatenate([jnp.concatenate(hs_f, axis=0),
                          jnp.concatenate(hs_b, axis=0)], axis=-1)            # (S*B, 2H)
    # inter-layer GRU dropout: eval-mode identity

    # ---- GRU layer 1 (bidirectional; fwd/bwd interleaved) ----------------------------------
    gx2_f = jnp.dot(x2, wih1_ref[0], preferred_element_type=jnp.float32) + bih1_ref[0]
    gx2_b = jnp.dot(x2, wih1_ref[1], preferred_element_type=jnp.float32) + bih1_ref[1]
    whh_f, bhh_f = whh1_ref[0], bhh1_ref[0]
    whh_b, bhh_b = whh1_ref[1], bhh1_ref[1]
    h_f = jnp.zeros((B, HIDDEN_DIM), jnp.float32)
    h_b = jnp.zeros((B, HIDDEN_DIM), jnp.float32)
    for step in range(S):
        tf, tb = step, S - 1 - step
        h_f = _gru_cell(gx2_f[tf * B:(tf + 1) * B, :], h_f, whh_f, bhh_f)
        h_b = _gru_cell(gx2_b[tb * B:(tb + 1) * B, :], h_b, whh_b, bhh_b)
    # only the final hidden states of the last layer are needed (no hseq stores at all)

    # ---- classifier head (folded in): cat(hidden[-2], hidden[-1]) -> Linear ----------------
    hidden = jnp.concatenate([h_f, h_b], axis=-1)    # (B, 2H); classifier dropout = identity
    o_ref[...] = (jnp.dot(hidden, outw_ref[...], preferred_element_type=jnp.float32)
                  + outb_ref[...])


# ------------------------------------- parameter init ---------------------------------------
def init_params(key):
    keys = iter(jax.random.split(key, 256))

    def dense(in_dim, out_dim, scale=0.02):
        return jax.random.normal(next(keys), (in_dim, out_dim), jnp.float32) * scale

    p = {}
    # BERT embeddings
    p["word_emb"] = jax.random.normal(next(keys), (VOCAB, EMB_DIM), jnp.float32) * 0.02
    pos_emb = jax.random.normal(next(keys), (MAX_POS, EMB_DIM), jnp.float32) * 0.02
    type_emb = jax.random.normal(next(keys), (2, EMB_DIM), jnp.float32) * 0.02
    # positions 0..S-1 for each batch row + token-type 0, pre-summed into one (M, E) slab
    p["pos_type"] = jnp.tile(pos_emb[:S], (B, 1)) + type_emb[0][None, :]
    p["emb_ln_g"] = jnp.ones((1, EMB_DIM), jnp.float32)
    p["emb_ln_b"] = jnp.zeros((1, EMB_DIM), jnp.float32)

    # BERT encoder layers -- stacked along the layer axis, QKV weights fused
    wqkv, wo, w1, w2 = [], [], [], []
    for _ in range(N_BERT_LAYERS):
        wq = dense(EMB_DIM, EMB_DIM)
        wk = dense(EMB_DIM, EMB_DIM)
        wv = dense(EMB_DIM, EMB_DIM)
        wqkv.append(jnp.concatenate([wq, wk, wv], axis=1))         # (E, 3E)
        wo.append(dense(EMB_DIM, EMB_DIM))
        w1.append(dense(EMB_DIM, INTER_DIM))
        w2.append(dense(INTER_DIM, EMB_DIM))
    p["wqkv"] = jnp.stack(wqkv)                                    # (L, E, 3E)
    p["bqkv"] = jnp.zeros((N_BERT_LAYERS, 1, 3 * EMB_DIM), jnp.float32)
    p["wo"] = jnp.stack(wo)                                        # (L, E, E)
    p["bo"] = jnp.zeros((N_BERT_LAYERS, 1, EMB_DIM), jnp.float32)
    p["ln1_g"] = jnp.ones((N_BERT_LAYERS, 1, EMB_DIM), jnp.float32)
    p["ln1_b"] = jnp.zeros((N_BERT_LAYERS, 1, EMB_DIM), jnp.float32)
    p["w1"] = jnp.stack(w1)                                        # (L, E, I)
    p["b1"] = jnp.zeros((N_BERT_LAYERS, 1, INTER_DIM), jnp.float32)
    p["w2"] = jnp.stack(w2)                                        # (L, I, E)
    p["b2"] = jnp.zeros((N_BERT_LAYERS, 1, EMB_DIM), jnp.float32)
    p["ln2_g"] = jnp.ones((N_BERT_LAYERS, 1, EMB_DIM), jnp.float32)
    p["ln2_b"] = jnp.zeros((N_BERT_LAYERS, 1, EMB_DIM), jnp.float32)

    # GRU layers -- per layer, stacked along the direction axis (fwd, bwd)
    p["gru"] = []
    for layer in range(N_GRU_LAYERS):
        in_dim = EMB_DIM if layer == 0 else HIDDEN_DIM * N_DIRS
        w_ih = jnp.stack([dense(in_dim, 3 * HIDDEN_DIM, 0.1) for _ in range(N_DIRS)])
        w_hh = jnp.stack([dense(HIDDEN_DIM, 3 * HIDDEN_DIM, 0.1) for _ in range(N_DIRS)])
        p["gru"].append({
            "w_ih": w_ih,                                          # (D, in_dim, 3H)
            "b_ih": jnp.zeros((N_DIRS, 1, 3 * HIDDEN_DIM), jnp.float32),
            "w_hh": w_hh,                                          # (D, H, 3H)
            "b_hh": jnp.zeros((N_DIRS, 1, 3 * HIDDEN_DIM), jnp.float32),
        })

    # classifier head
    p["out_w"] = dense(HIDDEN_DIM * N_DIRS, OUTPUT_DIM, 0.1)
    p["out_b"] = jnp.zeros((1, OUTPUT_DIM), jnp.float32)
    return p


# -------------------------------------- forward pass ----------------------------------------
def bert_classifier_forward(params, text, attention_mask):
    ids = text.astype(jnp.int32).reshape(M, 1)
    mask_f = attention_mask.astype(jnp.float32)

    args = (ids, mask_f,
            params["word_emb"], params["pos_type"],
            params["emb_ln_g"], params["emb_ln_b"],
            params["wqkv"], params["bqkv"], params["wo"], params["bo"],
            params["ln1_g"], params["ln1_b"],
            params["w1"], params["b1"], params["w2"], params["b2"],
            params["ln2_g"], params["ln2_b"],
            params["gru"][0]["w_ih"], params["gru"][0]["b_ih"],
            params["gru"][0]["w_hh"], params["gru"][0]["b_hh"],
            params["gru"][1]["w_ih"], params["gru"][1]["b_ih"],
            params["gru"][1]["w_hh"], params["gru"][1]["b_hh"],
            params["out_w"], params["out_b"])

    return pl.pallas_call(
        _fused_forward_kernel,
        out_shape=jax.ShapeDtypeStruct((B, OUTPUT_DIM), jnp.float32),
        grid=(1,),
        in_specs=[_full_spec(a.shape) for a in args],
        out_specs=_full_spec((B, OUTPUT_DIM)),
        compiler_params=pltpu.CompilerParams(dimension_semantics=("arbitrary",)),
    )(*args)


# ------------------------------------------ main ---------------------------------------------
if __name__ == "__main__":
    key = jax.random.PRNGKey(0)
    k_param, k_ids = jax.random.split(key)
    params = init_params(k_param)

    text = jax.random.randint(k_ids, (B, S), 0, VOCAB, dtype=jnp.int32)
    attention_mask = jnp.array(
        [[1, 1, 1, 1, 1, 1, 0, 0],
         [1, 1, 1, 1, 1, 1, 1, 1]], dtype=jnp.int32)

    fwd = jax.jit(functools.partial(bert_classifier_forward, params))
    logits = fwd(text, attention_mask)
    jax.block_until_ready(logits)
    assert logits.shape == (B, OUTPUT_DIM) and logits.dtype == jnp.float32
    print("KERNEL_OK")
</pallas_src>

<mosaic_0001>
module attributes {stable_mosaic.version = 11 : i64} {
  func.func @_fused_forward_kernel(%arg0: i32, %arg1: memref<16x1xi32, #tpu.memory_space<vmem>>, %arg2: memref<2x8xf32, #tpu.memory_space<vmem>>, %arg3: memref<100x32xf32, #tpu.memory_space<vmem>>, %arg4: memref<16x32xf32, #tpu.memory_space<vmem>>, %arg5: memref<1x32xf32, #tpu.memory_space<vmem>>, %arg6: memref<1x32xf32, #tpu.memory_space<vmem>>, %arg7: memref<2x32x96xf32, #tpu.memory_space<vmem>>, %arg8: memref<2x1x96xf32, #tpu.memory_space<vmem>>, %arg9: memref<2x32x32xf32, #tpu.memory_space<vmem>>, %arg10: memref<2x1x32xf32, #tpu.memory_space<vmem>>, %arg11: memref<2x1x32xf32, #tpu.memory_space<vmem>>, %arg12: memref<2x1x32xf32, #tpu.memory_space<vmem>>, %arg13: memref<2x32x64xf32, #tpu.memory_space<vmem>>, %arg14: memref<2x1x64xf32, #tpu.memory_space<vmem>>, %arg15: memref<2x64x32xf32, #tpu.memory_space<vmem>>, %arg16: memref<2x1x32xf32, #tpu.memory_space<vmem>>, %arg17: memref<2x1x32xf32, #tpu.memory_space<vmem>>, %arg18: memref<2x1x32xf32, #tpu.memory_space<vmem>>, %arg19: memref<2x32x48xf32, #tpu.memory_space<vmem>>, %arg20: memref<2x1x48xf32, #tpu.memory_space<vmem>>, %arg21: memref<2x16x48xf32, #tpu.memory_space<vmem>>, %arg22: memref<2x1x48xf32, #tpu.memory_space<vmem>>, %arg23: memref<2x32x48xf32, #tpu.memory_space<vmem>>, %arg24: memref<2x1x48xf32, #tpu.memory_space<vmem>>, %arg25: memref<2x16x48xf32, #tpu.memory_space<vmem>>, %arg26: memref<2x1x48xf32, #tpu.memory_space<vmem>>, %arg27: memref<32x3xf32, #tpu.memory_space<vmem>>, %arg28: memref<1x3xf32, #tpu.memory_space<vmem>>, %arg29: memref<2x3xf32, #tpu.memory_space<vmem>>) attributes {dimension_semantics = [#tpu.dimension_semantics<arbitrary>], iteration_bounds = array<i64: 1>, scalar_prefetch = 0 : i64, scratch_operands = 0 : i64, tpu.core_type = #tpu.core_type<tc>, window_params = [{pipeline_mode = #tpu.pipeline_mode<synchronous>, transform_indices = @transform_0, window_bounds = array<i64: 16, 1>}, {pipeline_mode = #tpu.pipeline_mode<synchronous>, transform_indices = @transform_1, window_bounds = array<i64: 2, 8>}, {pipeline_mode = #tpu.pipeline_mode<synchronous>, transform_indices = @transform_2, window_bounds = array<i64: 100, 32>}, {pipeline_mode = #tpu.pipeline_mode<synchronous>, transform_indices = @transform_3, window_bounds = array<i64: 16, 32>}, {pipeline_mode = #tpu.pipeline_mode<synchronous>, transform_indices = @transform_4, window_bounds = array<i64: 1, 32>}, {pipeline_mode = #tpu.pipeline_mode<synchronous>, transform_indices = @transform_5, window_bounds = array<i64: 1, 32>}, {pipeline_mode = #tpu.pipeline_mode<synchronous>, transform_indices = @transform_6, window_bounds = array<i64: 2, 32, 96>}, {pipeline_mode = #tpu.pipeline_mode<synchronous>, transform_indices = @transform_7, window_bounds = array<i64: 2, 1, 96>}, {pipeline_mode = #tpu.pipeline_mode<synchronous>, transform_indices = @transform_8, window_bounds = array<i64: 2, 32, 32>}, {pipeline_mode = #tpu.pipeline_mode<synchronous>, transform_indices = @transform_9, window_bounds = array<i64: 2, 1, 32>}, {pipeline_mode = #tpu.pipeline_mode<synchronous>, transform_indices = @transform_10, window_bounds = array<i64: 2, 1, 32>}, {pipeline_mode = #tpu.pipeline_mode<synchronous>, transform_indices = @transform_11, window_bounds = array<i64: 2, 1, 32>}, {pipeline_mode = #tpu.pipeline_mode<synchronous>, transform_indices = @transform_12, window_bounds = array<i64: 2, 32, 64>}, {pipeline_mode = #tpu.pipeline_mode<synchronous>, transform_indices = @transform_13, window_bounds = array<i64: 2, 1, 64>}, {pipeline_mode = #tpu.pipeline_mode<synchronous>, transform_indices = @transform_14, window_bounds = array<i64: 2, 64, 32>}, {pipeline_mode = #tpu.pipeline_mode<synchronous>, transform_indices = @transform_15, window_bounds = array<i64: 2, 1, 32>}, {pipeline_mode = #tpu.pipeline_mode<synchronous>, transform_indices = @transform_16, window_bounds = array<i64: 2, 1, 32>}, {pipeline_mode = #tpu.pipeline_mode<synchronous>, transform_indices = @transform_17, window_bounds = array<i64: 2, 1, 32>}, {pipeline_mode = #tpu.pipeline_mode<synchronous>, transform_indices = @transform_18, window_bounds = array<i64: 2, 32, 48>}, {pipeline_mode = #tpu.pipeline_mode<synchronous>, transform_indices = @transform_19, window_bounds = array<i64: 2, 1, 48>}, {pipeline_mode = #tpu.pipeline_mode<synchronous>, transform_indices = @transform_20, window_bounds = array<i64: 2, 16, 48>}, {pipeline_mode = #tpu.pipeline_mode<synchronous>, transform_indices = @transform_21, window_bounds = array<i64: 2, 1, 48>}, {pipeline_mode = #tpu.pipeline_mode<synchronous>, transform_indices = @transform_22, window_bounds = array<i64: 2, 32, 48>}, {pipeline_mode = #tpu.pipeline_mode<synchronous>, transform_indices = @transform_23, window_bounds = array<i64: 2, 1, 48>}, {pipeline_mode = #tpu.pipeline_mode<synchronous>, transform_indices = @transform_24, window_bounds = array<i64: 2, 16, 48>}, {pipeline_mode = #tpu.pipeline_mode<synchronous>, transform_indices = @transform_25, window_bounds = array<i64: 2, 1, 48>}, {pipeline_mode = #tpu.pipeline_mode<synchronous>, transform_indices = @transform_26, window_bounds = array<i64: 32, 3>}, {pipeline_mode = #tpu.pipeline_mode<synchronous>, transform_indices = @transform_27, window_bounds = array<i64: 1, 3>}, {pipeline_mode = #tpu.pipeline_mode<synchronous>, transform_indices = @transform_28, window_bounds = array<i64: 2, 3>}]} {
    %c0 = arith.constant 0 : index
    %c0_0 = arith.constant 0 : index
    %0 = vector.load %arg1[%c0, %c0_0] : memref<16x1xi32, #tpu.memory_space<vmem>>, vector<16x1xi32>
    %1 = tpu.iota {dimensions = array<i32: 1>} : vector<16x100xi32>
    %2 = vector.broadcast %0 : vector<16x1xi32> to vector<16x100xi32>
    %3 = arith.cmpi eq, %1, %2 : vector<16x100xi32>
    %4 = arith.extui %3 : vector<16x100xi1> to vector<16x100xi32>
    %5 = arith.sitofp %4 : vector<16x100xi32> to vector<16x100xf32>
    %c0_1 = arith.constant 0 : index
    %c0_2 = arith.constant 0 : index
    %6 = vector.load %arg3[%c0_1, %c0_2] : memref<100x32xf32, #tpu.memory_space<vmem>>, vector<100x32xf32>
    %cst = arith.constant dense<0.000000e+00> : vector<16x32xf32>
    %7 = tpu.matmul %5, %6, %cst {dimension_numbers = #tpu.dot_dimension_numbers<[1], [0], [0], [1], [0, 0, 1, 1], [], []>} : vector<16x100xf32>, vector<100x32xf32>, vector<16x32xf32> -> vector<16x32xf32>
    %c0_3 = arith.constant 0 : index
    %c0_4 = arith.constant 0 : index
    %8 = vector.load %arg4[%c0_3, %c0_4] : memref<16x32xf32, #tpu.memory_space<vmem>>, vector<16x32xf32>
    %9 = arith.addf %7, %8 : vector<16x32xf32>
    %c0_5 = arith.constant 0 : index
    %c0_6 = arith.constant 0 : index
    %10 = vector.load %arg5[%c0_5, %c0_6] : memref<1x32xf32, #tpu.memory_space<vmem>>, vector<1x32xf32>
    %c0_7 = arith.constant 0 : index
    %c0_8 = arith.constant 0 : index
    %11 = vector.load %arg6[%c0_7, %c0_8] : memref<1x32xf32, #tpu.memory_space<vmem>>, vector<1x32xf32>
    %cst_9 = arith.constant dense<0.000000e+00> : vector<16xf32>
    %12 = vector.multi_reduction <add>, %9, %cst_9 [1] : vector<16x32xf32> to vector<16xf32>
    %13 = vector.shape_cast %12 : vector<16xf32> to vector<16x1xf32>
    %cst_10 = arith.constant 3.200000e+01 : f32
    %14 = vector.broadcast %cst_10 : f32 to vector<16x1xf32>
    %15 = arith.divf %13, %14 : vector<16x1xf32>
    %16 = vector.broadcast %15 : vector<16x1xf32> to vector<16x32xf32>
    %17 = arith.subf %9, %16 : vector<16x32xf32>
    %18 = vector.broadcast %15 : vector<16x1xf32> to vector<16x32xf32>
    %19 = arith.subf %9, %18 : vector<16x32xf32>
    %20 = arith.mulf %17, %19 : vector<16x32xf32>
    %cst_11 = arith.constant dense<0.000000e+00> : vector<16xf32>
    %21 = vector.multi_reduction <add>, %20, %cst_11 [1] : vector<16x32xf32> to vector<16xf32>
    %22 = vector.shape_cast %21 : vector<16xf32> to vector<16x1xf32>
    %cst_12 = arith.constant 3.200000e+01 : f32
    %23 = vector.broadcast %cst_12 : f32 to vector<16x1xf32>
    %24 = arith.divf %22, %23 : vector<16x1xf32>
    %25 = vector.broadcast %15 : vector<16x1xf32> to vector<16x32xf32>
    %26 = arith.subf %9, %25 : vector<16x32xf32>
    %cst_13 = arith.constant 9.99999996E-13 : f32
    %27 = vector.broadcast %cst_13 : f32 to vector<16x1xf32>
    %28 = arith.addf %24, %27 : vector<16x1xf32>
    %29 = math.rsqrt %28 : vector<16x1xf32>
    %30 = vector.broadcast %29 : vector<16x1xf32> to vector<16x32xf32>
    %31 = arith.mulf %26, %30 : vector<16x32xf32>
    %32 = vector.broadcast %10 : vector<1x32xf32> to vector<16x32xf32>
    %33 = arith.mulf %31, %32 : vector<16x32xf32>
    %34 = vector.broadcast %11 : vector<1x32xf32> to vector<16x32xf32>
    %35 = arith.addf %33, %34 : vector<16x32xf32>
    %c0_14 = arith.constant 0 : index
    %c0_15 = arith.constant 0 : index
    %36 = vector.load %arg2[%c0_14, %c0_15] : memref<2x8xf32, #tpu.memory_space<vmem>>, vector<2x8xf32>
    %cst_16 = arith.constant 1.000000e+00 : f32
    %37 = vector.broadcast %cst_16 : f32 to vector<2x8xf32>
    %38 = arith.subf %37, %36 : vector<2x8xf32>
    %cst_17 = arith.constant -1.000000e+04 : f32
    %39 = vector.broadcast %cst_17 : f32 to vector<2x8xf32>
    %40 = arith.mulf %38, %39 : vector<2x8xf32>
    %41 = vector.shape_cast %40 : vector<2x8xf32> to vector<2x1x8xf32>
    %c0_18 = arith.constant 0 : index
    %c0_19 = arith.constant 0 : index
    %c0_20 = arith.constant 0 : index
    %42 = vector.load %arg7[%c0_18, %c0_19, %c0_20] : memref<2x32x96xf32, #tpu.memory_space<vmem>>, vector<1x32x96xf32>
    %43 = vector.shape_cast %42 : vector<1x32x96xf32> to vector<32x96xf32>
    %cst_21 = arith.constant dense<0.000000e+00> : vector<16x96xf32>
    %44 = tpu.matmul %35, %43, %cst_21 {dimension_numbers = #tpu.dot_dimension_numbers<[1], [0], [0], [1], [0, 0, 1, 1], [], []>} : vector<16x32xf32>, vector<32x96xf32>, vector<16x96xf32> -> vector<16x96xf32>
    %c0_22 = arith.constant 0 : index
    %c0_23 = arith.constant 0 : index
    %c0_24 = arith.constant 0 : index
    %45 = vector.load %arg8[%c0_22, %c0_23, %c0_24] : memref<2x1x96xf32, #tpu.memory_space<vmem>>, vector<1x1x96xf32>
    %46 = vector.shape_cast %45 : vector<1x1x96xf32> to vector<1x96xf32>
    %47 = vector.broadcast %46 : vector<1x96xf32> to vector<16x96xf32>
    %48 = arith.addf %44, %47 : vector<16x96xf32>
    %49 = vector.shape_cast %48 : vector<16x96xf32> to vector<2x8x96xf32>
    %50 = vector.extract_strided_slice %49 {offsets = [0, 0, 0], sizes = [2, 8, 16], strides = [1, 1, 1]} : vector<2x8x96xf32> to vector<2x8x16xf32>
    %51 = vector.extract_strided_slice %49 {offsets = [0, 0, 32], sizes = [2, 8, 16], strides = [1, 1, 1]} : vector<2x8x96xf32> to vector<2x8x16xf32>
    %52 = vector.extract_strided_slice %49 {offsets = [0, 0, 64], sizes = [2, 8, 16], strides = [1, 1, 1]} : vector<2x8x96xf32> to vector<2x8x16xf32>
    "tpu.trace_start"() <{level = 10 : i32, message = "bqd,bkd->bqk"}> : () -> ()
    %cst_25 = arith.constant dense<0.000000e+00> : vector<2x8x8xf32>
    %53 = tpu.matmul %50, %51, %cst_25 {dimension_numbers = #tpu.dot_dimension_numbers<[2], [2], [1], [1], [0, 0, 0, 1, 1, 1], [0], [0]>} : vector<2x8x16xf32>, vector<2x8x16xf32>, vector<2x8x8xf32> -> vector<2x8x8xf32>
    "tpu.trace_stop"() : () -> ()
    %cst_26 = arith.constant 2.500000e-01 : f32
    %54 = vector.broadcast %cst_26 : f32 to vector<2x8x8xf32>
    %55 = arith.mulf %53, %54 : vector<2x8x8xf32>
    %56 = vector.broadcast %41 : vector<2x1x8xf32> to vector<2x8x8xf32>
    %57 = arith.addf %55, %56 : vector<2x8x8xf32>
    %cst_27 = arith.constant dense<0xFF800000> : vector<2x8xf32>
    %58 = vector.multi_reduction <maximumf>, %57, %cst_27 [2] : vector<2x8x8xf32> to vector<2x8xf32>
    %59 = vector.shape_cast %58 : vector<2x8xf32> to vector<2x8x1xf32>
    %60 = vector.broadcast %59 : vector<2x8x1xf32> to vector<2x8x8xf32>
    %61 = arith.subf %57, %60 : vector<2x8x8xf32>
    %62 = math.exp %61 : vector<2x8x8xf32>
    %cst_28 = arith.constant dense<0.000000e+00> : vector<2x8xf32>
    %63 = vector.multi_reduction <add>, %62, %cst_28 [2] : vector<2x8x8xf32> to vector<2x8xf32>
    %64 = vector.shape_cast %63 : vector<2x8xf32> to vector<2x8x1xf32>
    %65 = tpu.reciprocal %64 {approx = true} : vector<2x8x1xf32> -> vector<2x8x1xf32>
    %66 = vector.broadcast %65 : vector<2x8x1xf32> to vector<2x8x8xf32>
    %67 = arith.mulf %62, %66 : vector<2x8x8xf32>
    "tpu.trace_start"() <{level = 10 : i32, message = "bqk,bkd->bqd"}> : () -> ()
    %cst_29 = arith.constant dense<0.000000e+00> : vector<2x8x16xf32>
    %68 = tpu.matmul %67, %52, %cst_29 {dimension_numbers = #tpu.dot_dimension_numbers<[2], [1], [1], [2], [0, 0, 0, 1, 1, 2], [0], [0]>} : vector<2x8x8xf32>, vector<2x8x16xf32>, vector<2x8x16xf32> -> vector<2x8x16xf32>
    "tpu.trace_stop"() : () -> ()
    %69 = vector.extract_strided_slice %49 {offsets = [0, 0, 16], sizes = [2, 8, 16], strides = [1, 1, 1]} : vector<2x8x96xf32> to vector<2x8x16xf32>
    %70 = vector.extract_strided_slice %49 {offsets = [0, 0, 48], sizes = [2, 8, 16], strides = [1, 1, 1]} : vector<2x8x96xf32> to vector<2x8x16xf32>
    %71 = vector.extract_strided_slice %49 {offsets = [0, 0, 80], sizes = [2, 8, 16], strides = [1, 1, 1]} : vector<2x8x96xf32> to vector<2x8x16xf32>
    "tpu.trace_start"() <{level = 10 : i32, message = "bqd,bkd->bqk"}> : () -> ()
    %cst_30 = arith.constant dense<0.000000e+00> : vector<2x8x8xf32>
    %72 = tpu.matmul %69, %70, %cst_30 {dimension_numbers = #tpu.dot_dimension_numbers<[2], [2], [1], [1], [0, 0, 0, 1, 1, 1], [0], [0]>} : vector<2x8x16xf32>, vector<2x8x16xf32>, vector<2x8x8xf32> -> vector<2x8x8xf32>
    "tpu.trace_stop"() : () -> ()
    %cst_31 = arith.constant 2.500000e-01 : f32
    %73 = vector.broadcast %cst_31 : f32 to vector<2x8x8xf32>
    %74 = arith.mulf %72, %73 : vector<2x8x8xf32>
    %75 = vector.broadcast %41 : vector<2x1x8xf32> to vector<2x8x8xf32>
    %76 = arith.addf %74, %75 : vector<2x8x8xf32>
    %cst_32 = arith.constant dense<0xFF800000> : vector<2x8xf32>
    %77 = vector.multi_reduction <maximumf>, %76, %cst_32 [2] : vector<2x8x8xf32> to vector<2x8xf32>
    %78 = vector.shape_cast %77 : vector<2x8xf32> to vector<2x8x1xf32>
    %79 = vector.broadcast %78 : vector<2x8x1xf32> to vector<2x8x8xf32>
    %80 = arith.subf %76, %79 : vector<2x8x8xf32>
    %81 = math.exp %80 : vector<2x8x8xf32>
    %cst_33 = arith.constant dense<0.000000e+00> : vector<2x8xf32>
    %82 = vector.multi_reduction <add>, %81, %cst_33 [2] : vector<2x8x8xf32> to vector<2x8xf32>
    %83 = vector.shape_cast %82 : vector<2x8xf32> to vector<2x8x1xf32>
    %84 = tpu.reciprocal %83 {approx = true} : vector<2x8x1xf32> -> vector<2x8x1xf32>
    %85 = vector.broadcast %84 : vector<2x8x1xf32> to vector<2x8x8xf32>
    %86 = arith.mulf %81, %85 : vector<2x8x8xf32>
    "tpu.trace_start"() <{level = 10 : i32, message = "bqk,bkd->bqd"}> : () -> ()
    %cst_34 = arith.constant dense<0.000000e+00> : vector<2x8x16xf32>
    %87 = tpu.matmul %86, %71, %cst_34 {dimension_numbers = #tpu.dot_dimension_numbers<[2], [1], [1], [2], [0, 0, 0, 1, 1, 2], [0], [0]>} : vector<2x8x8xf32>, vector<2x8x16xf32>, vector<2x8x16xf32> -> vector<2x8x16xf32>
    "tpu.trace_stop"() : () -> ()
    %88 = tpu.concatenate %68, %87 in 2 : vector<2x8x16xf32>, vector<2x8x16xf32> -> vector<2x8x32xf32>
    %89 = vector.shape_cast %88 : vector<2x8x32xf32> to vector<16x32xf32>
    %c0_35 = arith.constant 0 : index
    %c0_36 = arith.constant 0 : index
    %c0_37 = arith.constant 0 : index
    %90 = vector.load %arg9[%c0_35, %c0_36, %c0_37] : memref<2x32x32xf32, #tpu.memory_space<vmem>>, vector<1x32x32xf32>
    %91 = vector.shape_cast %90 : vector<1x32x32xf32> to vector<32x32xf32>
    %cst_38 = arith.constant dense<0.000000e+00> : vector<16x32xf32>
    %92 = tpu.matmul %89, %91, %cst_38 {dimension_numbers = #tpu.dot_dimension_numbers<[1], [0], [0], [1], [0, 0, 1, 1], [], []>} : vector<16x32xf32>, vector<32x32xf32>, vector<16x32xf32> -> vector<16x32xf32>
    %c0_39 = arith.constant 0 : index
    %c0_40 = arith.constant 0 : index
    %c0_41 = arith.constant 0 : index
    %93 = vector.load %arg10[%c0_39, %c0_40, %c0_41] : memref<2x1x32xf32, #tpu.memory_space<vmem>>, vector<1x1x32xf32>
    %94 = vector.shape_cast %93 : vector<1x1x32xf32> to vector<1x32xf32>
    %95 = vector.broadcast %94 : vector<1x32xf32> to vector<16x32xf32>
    %96 = arith.addf %92, %95 : vector<16x32xf32>
    %97 = arith.addf %96, %35 : vector<16x32xf32>
    %c0_42 = arith.constant 0 : index
    %c0_43 = arith.constant 0 : index
    %c0_44 = arith.constant 0 : index
    %98 = vector.load %arg11[%c0_42, %c0_43, %c0_44] : memref<2x1x32xf32, #tpu.memory_space<vmem>>, vector<1x1x32xf32>
    %99 = vector.shape_cast %98 : vector<1x1x32xf32> to vector<1x32xf32>
    %c0_45 = arith.constant 0 : index
    %c0_46 = arith.constant 0 : index
    %c0_47 = arith.constant 0 : index
    %100 = vector.load %arg12[%c0_45, %c0_46, %c0_47] : memref<2x1x32xf32, #tpu.memory_space<vmem>>, vector<1x1x32xf32>
    %101 = vector.shape_cast %100 : vector<1x1x32xf32> to vector<1x32xf32>
    %cst_48 = arith.constant dense<0.000000e+00> : vector<16xf32>
    %102 = vector.multi_reduction <add>, %97, %cst_48 [1] : vector<16x32xf32> to vector<16xf32>
    %103 = vector.shape_cast %102 : vector<16xf32> to vector<16x1xf32>
    %cst_49 = arith.constant 3.200000e+01 : f32
    %104 = vector.broadcast %cst_49 : f32 to vector<16x1xf32>
    %105 = arith.divf %103, %104 : vector<16x1xf32>
    %106 = vector.broadcast %105 : vector<16x1xf32> to vector<16x32xf32>
    %107 = arith.subf %97, %106 : vector<16x32xf32>
    %108 = vector.broadcast %105 : vector<16x1xf32> to vector<16x32xf32>
    %109 = arith.subf %97, %108 : vector<16x32xf32>
    %110 = arith.mulf %107, %109 : vector<16x32xf32>
    %cst_50 = arith.constant dense<0.000000e+00> : vector<16xf32>
    %111 = vector.multi_reduction <add>, %110, %cst_50 [1] : vector<16x32xf32> to vector<16xf32>
    %112 = vector.shape_cast %111 : vector<16xf32> to vector<16x1xf32>
    %cst_51 = arith.constant 3.200000e+01 : f32
    %113 = vector.broadcast %cst_51 : f32 to vector<16x1xf32>
    %114 = arith.divf %112, %113 : vector<16x1xf32>
    %115 = vector.broadcast %105 : vector<16x1xf32> to vector<16x32xf32>
    %116 = arith.subf %97, %115 : vector<16x32xf32>
    %cst_52 = arith.constant 9.99999996E-13 : f32
    %117 = vector.broadcast %cst_52 : f32 to vector<16x1xf32>
    %118 = arith.addf %114, %117 : vector<16x1xf32>
    %119 = math.rsqrt %118 : vector<16x1xf32>
    %120 = vector.broadcast %119 : vector<16x1xf32> to vector<16x32xf32>
    %121 = arith.mulf %116, %120 : vector<16x32xf32>
    %122 = vector.broadcast %99 : vector<1x32xf32> to vector<16x32xf32>
    %123 = arith.mulf %121, %122 : vector<16x32xf32>
    %124 = vector.broadcast %101 : vector<1x32xf32> to vector<16x32xf32>
    %125 = arith.addf %123, %124 : vector<16x32xf32>
    %c0_53 = arith.constant 0 : index
    %c0_54 = arith.constant 0 : index
    %c0_55 = arith.constant 0 : index
    %126 = vector.load %arg13[%c0_53, %c0_54, %c0_55] : memref<2x32x64xf32, #tpu.memory_space<vmem>>, vector<1x32x64xf32>
    %127 = vector.shape_cast %126 : vector<1x32x64xf32> to vector<32x64xf32>
    %cst_56 = arith.constant dense<0.000000e+00> : vector<16x64xf32>
    %128 = tpu.matmul %125, %127, %cst_56 {dimension_numbers = #tpu.dot_dimension_numbers<[1], [0], [0], [1], [0, 0, 1, 1], [], []>} : vector<16x32xf32>, vector<32x64xf32>, vector<16x64xf32> -> vector<16x64xf32>
    %c0_57 = arith.constant 0 : index
    %c0_58 = arith.constant 0 : index
    %c0_59 = arith.constant 0 : index
    %129 = vector.load %arg14[%c0_57, %c0_58, %c0_59] : memref<2x1x64xf32, #tpu.memory_space<vmem>>, vector<1x1x64xf32>
    %130 = vector.shape_cast %129 : vector<1x1x64xf32> to vector<1x64xf32>
    %131 = vector.broadcast %130 : vector<1x64xf32> to vector<16x64xf32>
    %132 = arith.addf %128, %131 : vector<16x64xf32>
    %cst_60 = arith.constant 5.000000e-01 : f32
    %133 = vector.broadcast %cst_60 : f32 to vector<16x64xf32>
    %134 = arith.mulf %133, %132 : vector<16x64xf32>
    %cst_61 = arith.constant 4.471500e-02 : f32
    %135 = vector.broadcast %cst_61 : f32 to vector<16x64xf32>
    %136 = arith.mulf %135, %132 : vector<16x64xf32>
    %137 = arith.mulf %136, %132 : vector<16x64xf32>
    %138 = arith.mulf %137, %132 : vector<16x64xf32>
    %139 = arith.addf %132, %138 : vector<16x64xf32>
    %cst_62 = arith.constant 0.797884583 : f32
    %140 = vector.broadcast %cst_62 : f32 to vector<16x64xf32>
    %141 = arith.mulf %140, %139 : vector<16x64xf32>
    %142 = math.tanh %141 : vector<16x64xf32>
    %cst_63 = arith.constant 1.000000e+00 : f32
    %143 = vector.broadcast %cst_63 : f32 to vector<16x64xf32>
    %144 = arith.addf %143, %142 : vector<16x64xf32>
    %145 = arith.mulf %134, %144 : vector<16x64xf32>
    %c0_64 = arith.constant 0 : index
    %c0_65 = arith.constant 0 : index
    %c0_66 = arith.constant 0 : index
    %146 = vector.load %arg15[%c0_64, %c0_65, %c0_66] : memref<2x64x32xf32, #tpu.memory_space<vmem>>, vector<1x64x32xf32>
    %147 = vector.shape_cast %146 : vector<1x64x32xf32> to vector<64x32xf32>
    %cst_67 = arith.constant dense<0.000000e+00> : vector<16x32xf32>
    %148 = tpu.matmul %145, %147, %cst_67 {dimension_numbers = #tpu.dot_dimension_numbers<[1], [0], [0], [1], [0, 0, 1, 1], [], []>} : vector<16x64xf32>, vector<64x32xf32>, vector<16x32xf32> -> vector<16x32xf32>
    %c0_68 = arith.constant 0 : index
    %c0_69 = arith.constant 0 : index
    %c0_70 = arith.constant 0 : index
    %149 = vector.load %arg16[%c0_68, %c0_69, %c0_70] : memref<2x1x32xf32, #tpu.memory_space<vmem>>, vector<1x1x32xf32>
    %150 = vector.shape_cast %149 : vector<1x1x32xf32> to vector<1x32xf32>
    %151 = vector.broadcast %150 : vector<1x32xf32> to vector<16x32xf32>
    %152 = arith.addf %148, %151 : vector<16x32xf32>
    %153 = arith.addf %152, %125 : vector<16x32xf32>
    %c0_71 = arith.constant 0 : index
    %c0_72 = arith.constant 0 : index
    %c0_73 = arith.constant 0 : index
    %154 = vector.load %arg17[%c0_71, %c0_72, %c0_73] : memref<2x1x32xf32, #tpu.memory_space<vmem>>, vector<1x1x32xf32>
    %155 = vector.shape_cast %154 : vector<1x1x32xf32> to vector<1x32xf32>
    %c0_74 = arith.constant 0 : index
    %c0_75 = arith.constant 0 : index
    %c0_76 = arith.constant 0 : index
    %156 = vector.load %arg18[%c0_74, %c0_75, %c0_76] : memref<2x1x32xf32, #tpu.memory_space<vmem>>, vector<1x1x32xf32>
    %157 = vector.shape_cast %156 : vector<1x1x32xf32> to vector<1x32xf32>
    %cst_77 = arith.constant dense<0.000000e+00> : vector<16xf32>
    %158 = vector.multi_reduction <add>, %153, %cst_77 [1] : vector<16x32xf32> to vector<16xf32>
    %159 = vector.shape_cast %158 : vector<16xf32> to vector<16x1xf32>
    %cst_78 = arith.constant 3.200000e+01 : f32
    %160 = vector.broadcast %cst_78 : f32 to vector<16x1xf32>
    %161 = arith.divf %159, %160 : vector<16x1xf32>
    %162 = vector.broadcast %161 : vector<16x1xf32> to vector<16x32xf32>
    %163 = arith.subf %153, %162 : vector<16x32xf32>
    %164 = vector.broadcast %161 : vector<16x1xf32> to vector<16x32xf32>
    %165 = arith.subf %153, %164 : vector<16x32xf32>
    %166 = arith.mulf %163, %165 : vector<16x32xf32>
    %cst_79 = arith.constant dense<0.000000e+00> : vector<16xf32>
    %167 = vector.multi_reduction <add>, %166, %cst_79 [1] : vector<16x32xf32> to vector<16xf32>
    %168 = vector.shape_cast %167 : vector<16xf32> to vector<16x1xf32>
    %cst_80 = arith.constant 3.200000e+01 : f32
    %169 = vector.broadcast %cst_80 : f32 to vector<16x1xf32>
    %170 = arith.divf %168, %169 : vector<16x1xf32>
    %171 = vector.broadcast %161 : vector<16x1xf32> to vector<16x32xf32>
    %172 = arith.subf %153, %171 : vector<16x32xf32>
    %cst_81 = arith.constant 9.99999996E-13 : f32
    %173 = vector.broadcast %cst_81 : f32 to vector<16x1xf32>
    %174 = arith.addf %170, %173 : vector<16x1xf32>
    %175 = math.rsqrt %174 : vector<16x1xf32>
    %176 = vector.broadcast %175 : vector<16x1xf32> to vector<16x32xf32>
    %177 = arith.mulf %172, %176 : vector<16x32xf32>
    %178 = vector.broadcast %155 : vector<1x32xf32> to vector<16x32xf32>
    %179 = arith.mulf %177, %178 : vector<16x32xf32>
    %180 = vector.broadcast %157 : vector<1x32xf32> to vector<16x32xf32>
    %181 = arith.addf %179, %180 : vector<16x32xf32>
    %c1 = arith.constant 1 : index
    %c0_82 = arith.constant 0 : index
    %c0_83 = arith.constant 0 : index
    %182 = vector.load %arg7[%c1, %c0_82, %c0_83] : memref<2x32x96xf32, #tpu.memory_space<vmem>>, vector<1x32x96xf32>
    %183 = vector.shape_cast %182 : vector<1x32x96xf32> to vector<32x96xf32>
    %cst_84 = arith.constant dense<0.000000e+00> : vector<16x96xf32>
    %184 = tpu.matmul %181, %183, %cst_84 {dimension_numbers = #tpu.dot_dimension_numbers<[1], [0], [0], [1], [0, 0, 1, 1], [], []>} : vector<16x32xf32>, vector<32x96xf32>, vector<16x96xf32> -> vector<16x96xf32>
    %c1_85 = arith.constant 1 : index
    %c0_86 = arith.constant 0 : index
    %c0_87 = arith.constant 0 : index
    %185 = vector.load %arg8[%c1_85, %c0_86, %c0_87] : memref<2x1x96xf32, #tpu.memory_space<vmem>>, vector<1x1x96xf32>
    %186 = vector.shape_cast %185 : vector<1x1x96xf32> to vector<1x96xf32>
    %187 = vector.broadcast %186 : vector<1x96xf32> to vector<16x96xf32>
    %188 = arith.addf %184, %187 : vector<16x96xf32>
    %189 = vector.shape_cast %188 : vector<16x96xf32> to vector<2x8x96xf32>
    %190 = vector.extract_strided_slice %189 {offsets = [0, 0, 0], sizes = [2, 8, 16], strides = [1, 1, 1]} : vector<2x8x96xf32> to vector<2x8x16xf32>
    %191 = vector.extract_strided_slice %189 {offsets = [0, 0, 32], sizes = [2, 8, 16], strides = [1, 1, 1]} : vector<2x8x96xf32> to vector<2x8x16xf32>
    %192 = vector.extract_strided_slice %189 {offsets = [0, 0, 64], sizes = [2, 8, 16], strides = [1, 1, 1]} : vector<2x8x96xf32> to vector<2x8x16xf32>
    "tpu.trace_start"() <{level = 10 : i32, message = "bqd,bkd->bqk"}> : () -> ()
    %cst_88 = arith.constant dense<0.000000e+00> : vector<2x8x8xf32>
    %193 = tpu.matmul %190, %191, %cst_88 {dimension_numbers = #tpu.dot_dimension_numbers<[2], [2], [1], [1], [0, 0, 0, 1, 1, 1], [0], [0]>} : vector<2x8x16xf32>, vector<2x8x16xf32>, vector<2x8x8xf32> -> vector<2x8x8xf32>
    "tpu.trace_stop"() : () -> ()
    %cst_89 = arith.constant 2.500000e-01 : f32
    %194 = vector.broadcast %cst_89 : f32 to vector<2x8x8xf32>
    %195 = arith.mulf %193, %194 : vector<2x8x8xf32>
    %196 = vector.broadcast %41 : vector<2x1x8xf32> to vector<2x8x8xf32>
    %197 = arith.addf %195, %196 : vector<2x8x8xf32>
    %cst_90 = arith.constant dense<0xFF800000> : vector<2x8xf32>
    %198 = vector.multi_reduction <maximumf>, %197, %cst_90 [2] : vector<2x8x8xf32> to vector<2x8xf32>
    %199 = vector.shape_cast %198 : vector<2x8xf32> to vector<2x8x1xf32>
    %200 = vector.broadcast %199 : vector<2x8x1xf32> to vector<2x8x8xf32>
    %201 = arith.subf %197, %200 : vector<2x8x8xf32>
    %202 = math.exp %201 : vector<2x8x8xf32>
    %cst_91 = arith.constant dense<0.000000e+00> : vector<2x8xf32>
    %203 = vector.multi_reduction <add>, %202, %cst_91 [2] : vector<2x8x8xf32> to vector<2x8xf32>
    %204 = vector.shape_cast %203 : vector<2x8xf32> to vector<2x8x1xf32>
    %205 = tpu.reciprocal %204 {approx = true} : vector<2x8x1xf32> -> vector<2x8x1xf32>
    %206 = vector.broadcast %205 : vector<2x8x1xf32> to vector<2x8x8xf32>
    %207 = arith.mulf %202, %206 : vector<2x8x8xf32>
    "tpu.trace_start"() <{level = 10 : i32, message = "bqk,bkd->bqd"}> : () -> ()
    %cst_92 = arith.constant dense<0.000000e+00> : vector<2x8x16xf32>
    %208 = tpu.matmul %207, %192, %cst_92 {dimension_numbers = #tpu.dot_dimension_numbers<[2], [1], [1], [2], [0, 0, 0, 1, 1, 2], [0], [0]>} : vector<2x8x8xf32>, vector<2x8x16xf32>, vector<2x8x16xf32> -> vector<2x8x16xf32>
    "tpu.trace_stop"() : () -> ()
    %209 = vector.extract_strided_slice %189 {offsets = [0, 0, 16], sizes = [2, 8, 16], strides = [1, 1, 1]} : vector<2x8x96xf32> to vector<2x8x16xf32>
    %210 = vector.extract_strided_slice %189 {offsets = [0, 0, 48], sizes = [2, 8, 16], strides = [1, 1, 1]} : vector<2x8x96xf32> to vector<2x8x16xf32>
    %211 = vector.extract_strided_slice %189 {offsets = [0, 0, 80], sizes = [2, 8, 16], strides = [1, 1, 1]} : vector<2x8x96xf32> to vector<2x8x16xf32>
    "tpu.trace_start"() <{level = 10 : i32, message = "bqd,bkd->bqk"}> : () -> ()
    %cst_93 = arith.constant dense<0.000000e+00> : vector<2x8x8xf32>
    %212 = tpu.matmul %209, %210, %cst_93 {dimension_numbers = #tpu.dot_dimension_numbers<[2], [2], [1], [1], [0, 0, 0, 1, 1, 1], [0], [0]>} : vector<2x8x16xf32>, vector<2x8x16xf32>, vector<2x8x8xf32> -> vector<2x8x8xf32>
    "tpu.trace_stop"() : () -> ()
    %cst_94 = arith.constant 2.500000e-01 : f32
    %213 = vector.broadcast %cst_94 : f32 to vector<2x8x8xf32>
    %214 = arith.mulf %212, %213 : vector<2x8x8xf32>
    %215 = vector.broadcast %41 : vector<2x1x8xf32> to vector<2x8x8xf32>
    %216 = arith.addf %214, %215 : vector<2x8x8xf32>
    %cst_95 = arith.constant dense<0xFF800000> : vector<2x8xf32>
    %217 = vector.multi_reduction <maximumf>, %216, %cst_95 [2] : vector<2x8x8xf32> to vector<2x8xf32>
    %218 = vector.shape_cast %217 : vector<2x8xf32> to vector<2x8x1xf32>
    %219 = vector.broadcast %218 : vector<2x8x1xf32> to vector<2x8x8xf32>
    %220 = arith.subf %216, %219 : vector<2x8x8xf32>
    %221 = math.exp %220 : vector<2x8x8xf32>
    %cst_96 = arith.constant dense<0.000000e+00> : vector<2x8xf32>
    %222 = vector.multi_reduction <add>, %221, %cst_96 [2] : vector<2x8x8xf32> to vector<2x8xf32>
    %223 = vector.shape_cast %222 : vector<2x8xf32> to vector<2x8x1xf32>
    %224 = tpu.reciprocal %223 {approx = true} : vector<2x8x1xf32> -> vector<2x8x1xf32>
    %225 = vector.broadcast %224 : vector<2x8x1xf32> to vector<2x8x8xf32>
    %226 = arith.mulf %221, %225 : vector<2x8x8xf32>
    "tpu.trace_start"() <{level = 10 : i32, message = "bqk,bkd->bqd"}> : () -> ()
    %cst_97 = arith.constant dense<0.000000e+00> : vector<2x8x16xf32>
    %227 = tpu.matmul %226, %211, %cst_97 {dimension_numbers = #tpu.dot_dimension_numbers<[2], [1], [1], [2], [0, 0, 0, 1, 1, 2], [0], [0]>} : vector<2x8x8xf32>, vector<2x8x16xf32>, vector<2x8x16xf32> -> vector<2x8x16xf32>
    "tpu.trace_stop"() : () -> ()
    %228 = tpu.concatenate %208, %227 in 2 : vector<2x8x16xf32>, vector<2x8x16xf32> -> vector<2x8x32xf32>
    %229 = vector.shape_cast %228 : vector<2x8x32xf32> to vector<16x32xf32>
    %c1_98 = arith.constant 1 : index
    %c0_99 = arith.constant 0 : index
    %c0_100 = arith.constant 0 : index
    %230 = vector.load %arg9[%c1_98, %c0_99, %c0_100] : memref<2x32x32xf32, #tpu.memory_space<vmem>>, vector<1x32x32xf32>
    %231 = vector.shape_cast %230 : vector<1x32x32xf32> to vector<32x32xf32>
    %cst_101 = arith.constant dense<0.000000e+00> : vector<16x32xf32>
    %232 = tpu.matmul %229, %231, %cst_101 {dimension_numbers = #tpu.dot_dimension_numbers<[1], [0], [0], [1], [0, 0, 1, 1], [], []>} : vector<16x32xf32>, vector<32x32xf32>, vector<16x32xf32> -> vector<16x32xf32>
    %c1_102 = arith.constant 1 : index
    %c0_103 = arith.constant 0 : index
    %c0_104 = arith.constant 0 : index
    %233 = vector.load %arg10[%c1_102, %c0_103, %c0_104] : memref<2x1x32xf32, #tpu.memory_space<vmem>>, vector<1x1x32xf32>
    %234 = vector.shape_cast %233 : vector<1x1x32xf32> to vector<1x32xf32>
    %235 = vector.broadcast %234 : vector<1x32xf32> to vector<16x32xf32>
    %236 = arith.addf %232, %235 : vector<16x32xf32>
    %237 = arith.addf %236, %181 : vector<16x32xf32>
    %c1_105 = arith.constant 1 : index
    %c0_106 = arith.constant 0 : index
    %c0_107 = arith.constant 0 : index
    %238 = vector.load %arg11[%c1_105, %c0_106, %c0_107] : memref<2x1x32xf32, #tpu.memory_space<vmem>>, vector<1x1x32xf32>
    %239 = vector.shape_cast %238 : vector<1x1x32xf32> to vector<1x32xf32>
    %c1_108 = arith.constant 1 : index
    %c0_109 = arith.constant 0 : index
    %c0_110 = arith.constant 0 : index
    %240 = vector.load %arg12[%c1_108, %c0_109, %c0_110] : memref<2x1x32xf32, #tpu.memory_space<vmem>>, vector<1x1x32xf32>
    %241 = vector.shape_cast %240 : vector<1x1x32xf32> to vector<1x32xf32>
    %cst_111 = arith.constant dense<0.000000e+00> : vector<16xf32>
    %242 = vector.multi_reduction <add>, %237, %cst_111 [1] : vector<16x32xf32> to vector<16xf32>
    %243 = vector.shape_cast %242 : vector<16xf32> to vector<16x1xf32>
    %cst_112 = arith.constant 3.200000e+01 : f32
    %244 = vector.broadcast %cst_112 : f32 to vector<16x1xf32>
    %245 = arith.divf %243, %244 : vector<16x1xf32>
    %246 = vector.broadcast %245 : vector<16x1xf32> to vector<16x32xf32>
    %247 = arith.subf %237, %246 : vector<16x32xf32>
    %248 = vector.broadcast %245 : vector<16x1xf32> to vector<16x32xf32>
    %249 = arith.subf %237, %248 : vector<16x32xf32>
    %250 = arith.mulf %247, %249 : vector<16x32xf32>
    %cst_113 = arith.constant dense<0.000000e+00> : vector<16xf32>
    %251 = vector.multi_reduction <add>, %250, %cst_113 [1] : vector<16x32xf32> to vector<16xf32>
    %252 = vector.shape_cast %251 : vector<16xf32> to vector<16x1xf32>
    %cst_114 = arith.constant 3.200000e+01 : f32
    %253 = vector.broadcast %cst_114 : f32 to vector<16x1xf32>
    %254 = arith.divf %252, %253 : vector<16x1xf32>
    %255 = vector.broadcast %245 : vector<16x1xf32> to vector<16x32xf32>
    %256 = arith.subf %237, %255 : vector<16x32xf32>
    %cst_115 = arith.constant 9.99999996E-13 : f32
    %257 = vector.broadcast %cst_115 : f32 to vector<16x1xf32>
    %258 = arith.addf %254, %257 : vector<16x1xf32>
    %259 = math.rsqrt %258 : vector<16x1xf32>
    %260 = vector.broadcast %259 : vector<16x1xf32> to vector<16x32xf32>
    %261 = arith.mulf %256, %260 : vector<16x32xf32>
    %262 = vector.broadcast %239 : vector<1x32xf32> to vector<16x32xf32>
    %263 = arith.mulf %261, %262 : vector<16x32xf32>
    %264 = vector.broadcast %241 : vector<1x32xf32> to vector<16x32xf32>
    %265 = arith.addf %263, %264 : vector<16x32xf32>
    %c1_116 = arith.constant 1 : index
    %c0_117 = arith.constant 0 : index
    %c0_118 = arith.constant 0 : index
    %266 = vector.load %arg13[%c1_116, %c0_117, %c0_118] : memref<2x32x64xf32, #tpu.memory_space<vmem>>, vector<1x32x64xf32>
    %267 = vector.shape_cast %266 : vector<1x32x64xf32> to vector<32x64xf32>
    %cst_119 = arith.constant dense<0.000000e+00> : vector<16x64xf32>
    %268 = tpu.matmul %265, %267, %cst_119 {dimension_numbers = #tpu.dot_dimension_numbers<[1], [0], [0], [1], [0, 0, 1, 1], [], []>} : vector<16x32xf32>, vector<32x64xf32>, vector<16x64xf32> -> vector<16x64xf32>
    %c1_120 = arith.constant 1 : index
    %c0_121 = arith.constant 0 : index
    %c0_122 = arith.constant 0 : index
    %269 = vector.load %arg14[%c1_120, %c0_121, %c0_122] : memref<2x1x64xf32, #tpu.memory_space<vmem>>, vector<1x1x64xf32>
    %270 = vector.shape_cast %269 : vector<1x1x64xf32> to vector<1x64xf32>
    %271 = vector.broadcast %270 : vector<1x64xf32> to vector<16x64xf32>
    %272 = arith.addf %268, %271 : vector<16x64xf32>
    %cst_123 = arith.constant 5.000000e-01 : f32
    %273 = vector.broadcast %cst_123 : f32 to vector<16x64xf32>
    %274 = arith.mulf %273, %272 : vector<16x64xf32>
    %cst_124 = arith.constant 4.471500e-02 : f32
    %275 = vector.broadcast %cst_124 : f32 to vector<16x64xf32>
    %276 = arith.mulf %275, %272 : vector<16x64xf32>
    %277 = arith.mulf %276, %272 : vector<16x64xf32>
    %278 = arith.mulf %277, %272 : vector<16x64xf32>
    %279 = arith.addf %272, %278 : vector<16x64xf32>
    %cst_125 = arith.constant 0.797884583 : f32
    %280 = vector.broadcast %cst_125 : f32 to vector<16x64xf32>
    %281 = arith.mulf %280, %279 : vector<16x64xf32>
    %282 = math.tanh %281 : vector<16x64xf32>
    %cst_126 = arith.constant 1.000000e+00 : f32
    %283 = vector.broadcast %cst_126 : f32 to vector<16x64xf32>
    %284 = arith.addf %283, %282 : vector<16x64xf32>
    %285 = arith.mulf %274, %284 : vector<16x64xf32>
    %c1_127 = arith.constant 1 : index
    %c0_128 = arith.constant 0 : index
    %c0_129 = arith.constant 0 : index
    %286 = vector.load %arg15[%c1_127, %c0_128, %c0_129] : memref<2x64x32xf32, #tpu.memory_space<vmem>>, vector<1x64x32xf32>
    %287 = vector.shape_cast %286 : vector<1x64x32xf32> to vector<64x32xf32>
    %cst_130 = arith.constant dense<0.000000e+00> : vector<16x32xf32>
    %288 = tpu.matmul %285, %287, %cst_130 {dimension_numbers = #tpu.dot_dimension_numbers<[1], [0], [0], [1], [0, 0, 1, 1], [], []>} : vector<16x64xf32>, vector<64x32xf32>, vector<16x32xf32> -> vector<16x32xf32>
    %c1_131 = arith.constant 1 : index
    %c0_132 = arith.constant 0 : index
    %c0_133 = arith.constant 0 : index
    %289 = vector.load %arg16[%c1_131, %c0_132, %c0_133] : memref<2x1x32xf32, #tpu.memory_space<vmem>>, vector<1x1x32xf32>
    %290 = vector.shape_cast %289 : vector<1x1x32xf32> to vector<1x32xf32>
    %291 = vector.broadcast %290 : vector<1x32xf32> to vector<16x32xf32>
    %292 = arith.addf %288, %291 : vector<16x32xf32>
    %293 = arith.addf %292, %265 : vector<16x32xf32>
    %c1_134 = arith.constant 1 : index
    %c0_135 = arith.constant 0 : index
    %c0_136 = arith.constant 0 : index
    %294 = vector.load %arg17[%c1_134, %c0_135, %c0_136] : memref<2x1x32xf32, #tpu.memory_space<vmem>>, vector<1x1x32xf32>
    %295 = vector.shape_cast %294 : vector<1x1x32xf32> to vector<1x32xf32>
    %c1_137 = arith.constant 1 : index
    %c0_138 = arith.constant 0 : index
    %c0_139 = arith.constant 0 : index
    %296 = vector.load %arg18[%c1_137, %c0_138, %c0_139] : memref<2x1x32xf32, #tpu.memory_space<vmem>>, vector<1x1x32xf32>
    %297 = vector.shape_cast %296 : vector<1x1x32xf32> to vector<1x32xf32>
    %cst_140 = arith.constant dense<0.000000e+00> : vector<16xf32>
    %298 = vector.multi_reduction <add>, %293, %cst_140 [1] : vector<16x32xf32> to vector<16xf32>
    %299 = vector.shape_cast %298 : vector<16xf32> to vector<16x1xf32>
    %cst_141 = arith.constant 3.200000e+01 : f32
    %300 = vector.broadcast %cst_141 : f32 to vector<16x1xf32>
    %301 = arith.divf %299, %300 : vector<16x1xf32>
    %302 = vector.broadcast %301 : vector<16x1xf32> to vector<16x32xf32>
    %303 = arith.subf %293, %302 : vector<16x32xf32>
    %304 = vector.broadcast %301 : vector<16x1xf32> to vector<16x32xf32>
    %305 = arith.subf %293, %304 : vector<16x32xf32>
    %306 = arith.mulf %303, %305 : vector<16x32xf32>
    %cst_142 = arith.constant dense<0.000000e+00> : vector<16xf32>
    %307 = vector.multi_reduction <add>, %306, %cst_142 [1] : vector<16x32xf32> to vector<16xf32>
    %308 = vector.shape_cast %307 : vector<16xf32> to vector<16x1xf32>
    %cst_143 = arith.constant 3.200000e+01 : f32
    %309 = vector.broadcast %cst_143 : f32 to vector<16x1xf32>
    %310 = arith.divf %308, %309 : vector<16x1xf32>
    %311 = vector.broadcast %301 : vector<16x1xf32> to vector<16x32xf32>
    %312 = arith.subf %293, %311 : vector<16x32xf32>
    %cst_144 = arith.constant 9.99999996E-13 : f32
    %313 = vector.broadcast %cst_144 : f32 to vector<16x1xf32>
    %314 = arith.addf %310, %313 : vector<16x1xf32>
    %315 = math.rsqrt %314 : vector<16x1xf32>
    %316 = vector.broadcast %315 : vector<16x1xf32> to vector<16x32xf32>
    %317 = arith.mulf %312, %316 : vector<16x32xf32>
    %318 = vector.broadcast %295 : vector<1x32xf32> to vector<16x32xf32>
    %319 = arith.mulf %317, %318 : vector<16x32xf32>
    %320 = vector.broadcast %297 : vector<1x32xf32> to vector<16x32xf32>
    %321 = arith.addf %319, %320 : vector<16x32xf32>
    %c0_145 = arith.constant 0 : index
    %c0_146 = arith.constant 0 : index
    %c0_147 = arith.constant 0 : index
    %322 = vector.load %arg19[%c0_145, %c0_146, %c0_147] : memref<2x32x48xf32, #tpu.memory_space<vmem>>, vector<1x32x48xf32>
    %323 = vector.shape_cast %322 : vector<1x32x48xf32> to vector<32x48xf32>
    %cst_148 = arith.constant dense<0.000000e+00> : vector<16x48xf32>
    %324 = tpu.matmul %321, %323, %cst_148 {dimension_numbers = #tpu.dot_dimension_numbers<[1], [0], [0], [1], [0, 0, 1, 1], [], []>} : vector<16x32xf32>, vector<32x48xf32>, vector<16x48xf32> -> vector<16x48xf32>
    %c0_149 = arith.constant 0 : index
    %c0_150 = arith.constant 0 : index
    %c0_151 = arith.constant 0 : index
    %325 = vector.load %arg20[%c0_149, %c0_150, %c0_151] : memref<2x1x48xf32, #tpu.memory_space<vmem>>, vector<1x1x48xf32>
    %326 = vector.shape_cast %325 : vector<1x1x48xf32> to vector<1x48xf32>
    %327 = vector.broadcast %326 : vector<1x48xf32> to vector<16x48xf32>
    %328 = arith.addf %324, %327 : vector<16x48xf32>
    %329 = vector.shape_cast %328 : vector<16x48xf32> to vector<2x8x48xf32>
    %c1_152 = arith.constant 1 : index
    %c0_153 = arith.constant 0 : index
    %c0_154 = arith.constant 0 : index
    %330 = vector.load %arg19[%c1_152, %c0_153, %c0_154] : memref<2x32x48xf32, #tpu.memory_space<vmem>>, vector<1x32x48xf32>
    %331 = vector.shape_cast %330 : vector<1x32x48xf32> to vector<32x48xf32>
    %cst_155 = arith.constant dense<0.000000e+00> : vector<16x48xf32>
    %332 = tpu.matmul %321, %331, %cst_155 {dimension_numbers = #tpu.dot_dimension_numbers<[1], [0], [0], [1], [0, 0, 1, 1], [], []>} : vector<16x32xf32>, vector<32x48xf32>, vector<16x48xf32> -> vector<16x48xf32>
    %c1_156 = arith.constant 1 : index
    %c0_157 = arith.constant 0 : index
    %c0_158 = arith.constant 0 : index
    %333 = vector.load %arg20[%c1_156, %c0_157, %c0_158] : memref<2x1x48xf32, #tpu.memory_space<vmem>>, vector<1x1x48xf32>
    %334 = vector.shape_cast %333 : vector<1x1x48xf32> to vector<1x48xf32>
    %335 = vector.broadcast %334 : vector<1x48xf32> to vector<16x48xf32>
    %336 = arith.addf %332, %335 : vector<16x48xf32>
    %337 = vector.shape_cast %336 : vector<16x48xf32> to vector<2x8x48xf32>
    %c0_159 = arith.constant 0 : index
    %c0_160 = arith.constant 0 : index
    %c0_161 = arith.constant 0 : index
    %338 = vector.load %arg21[%c0_159, %c0_160, %c0_161] : memref<2x16x48xf32, #tpu.memory_space<vmem>>, vector<1x16x48xf32>
    %339 = vector.shape_cast %338 : vector<1x16x48xf32> to vector<16x48xf32>
    %c0_162 = arith.constant 0 : index
    %c0_163 = arith.constant 0 : index
    %c0_164 = arith.constant 0 : index
    %340 = vector.load %arg22[%c0_162, %c0_163, %c0_164] : memref<2x1x48xf32, #tpu.memory_space<vmem>>, vector<1x1x48xf32>
    %341 = vector.shape_cast %340 : vector<1x1x48xf32> to vector<1x48xf32>
    %c1_165 = arith.constant 1 : index
    %c0_166 = arith.constant 0 : index
    %c0_167 = arith.constant 0 : index
    %342 = vector.load %arg21[%c1_165, %c0_166, %c0_167] : memref<2x16x48xf32, #tpu.memory_space<vmem>>, vector<1x16x48xf32>
    %343 = vector.shape_cast %342 : vector<1x16x48xf32> to vector<16x48xf32>
    %c1_168 = arith.constant 1 : index
    %c0_169 = arith.constant 0 : index
    %c0_170 = arith.constant 0 : index
    %344 = vector.load %arg22[%c1_168, %c0_169, %c0_170] : memref<2x1x48xf32, #tpu.memory_space<vmem>>, vector<1x1x48xf32>
    %345 = vector.shape_cast %344 : vector<1x1x48xf32> to vector<1x48xf32>
    %cst_171 = arith.constant 0.000000e+00 : f32
    %346 = vector.broadcast %cst_171 : f32 to vector<2x16xf32>
    %cst_172 = arith.constant 0.000000e+00 : f32
    %347 = vector.broadcast %cst_172 : f32 to vector<2x16xf32>
    %348 = vector.extract_strided_slice %329 {offsets = [0, 0, 0], sizes = [2, 1, 48], strides = [1, 1, 1]} : vector<2x8x48xf32> to vector<2x1x48xf32>
    %349 = vector.shape_cast %348 : vector<2x1x48xf32> to vector<2x48xf32>
    %cst_173 = arith.constant dense<0.000000e+00> : vector<2x48xf32>
    %350 = tpu.matmul %346, %339, %cst_173 {dimension_numbers = #tpu.dot_dimension_numbers<[1], [0], [0], [1], [0, 0, 1, 1], [], []>} : vector<2x16xf32>, vector<16x48xf32>, vector<2x48xf32> -> vector<2x48xf32>
    %351 = vector.broadcast %341 : vector<1x48xf32> to vector<2x48xf32>
    %352 = arith.addf %350, %351 : vector<2x48xf32>
    %353 = vector.extract_strided_slice %349 {offsets = [0, 0], sizes = [2, 16], strides = [1, 1]} : vector<2x48xf32> to vector<2x16xf32>
    %354 = vector.extract_strided_slice %352 {offsets = [0, 0], sizes = [2, 16], strides = [1, 1]} : vector<2x48xf32> to vector<2x16xf32>
    %355 = arith.addf %353, %354 : vector<2x16xf32>
    %356 = arith.negf %355 : vector<2x16xf32>
    %357 = math.exp %356 : vector<2x16xf32>
    %cst_174 = arith.constant 1.000000e+00 : f32
    %358 = vector.broadcast %cst_174 : f32 to vector<2x16xf32>
    %359 = arith.addf %358, %357 : vector<2x16xf32>
    %360 = arith.divf %358, %359 : vector<2x16xf32>
    %361 = vector.extract_strided_slice %349 {offsets = [0, 16], sizes = [2, 16], strides = [1, 1]} : vector<2x48xf32> to vector<2x16xf32>
    %362 = vector.extract_strided_slice %352 {offsets = [0, 16], sizes = [2, 16], strides = [1, 1]} : vector<2x48xf32> to vector<2x16xf32>
    %363 = arith.addf %361, %362 : vector<2x16xf32>
    %364 = arith.negf %363 : vector<2x16xf32>
    %365 = math.exp %364 : vector<2x16xf32>
    %cst_175 = arith.constant 1.000000e+00 : f32
    %366 = vector.broadcast %cst_175 : f32 to vector<2x16xf32>
    %367 = arith.addf %366, %365 : vector<2x16xf32>
    %368 = arith.divf %366, %367 : vector<2x16xf32>
    %369 = vector.extract_strided_slice %349 {offsets = [0, 32], sizes = [2, 16], strides = [1, 1]} : vector<2x48xf32> to vector<2x16xf32>
    %370 = vector.extract_strided_slice %352 {offsets = [0, 32], sizes = [2, 16], strides = [1, 1]} : vector<2x48xf32> to vector<2x16xf32>
    %371 = arith.mulf %360, %370 : vector<2x16xf32>
    %372 = arith.addf %369, %371 : vector<2x16xf32>
    %373 = math.tanh %372 : vector<2x16xf32>
    %cst_176 = arith.constant 1.000000e+00 : f32
    %374 = vector.broadcast %cst_176 : f32 to vector<2x16xf32>
    %375 = arith.subf %374, %368 : vector<2x16xf32>
    %376 = arith.mulf %375, %373 : vector<2x16xf32>
    %377 = arith.mulf %368, %346 : vector<2x16xf32>
    %378 = arith.addf %376, %377 : vector<2x16xf32>
    %379 = vector.extract_strided_slice %337 {offsets = [0, 7, 0], sizes = [2, 1, 48], strides = [1, 1, 1]} : vector<2x8x48xf32> to vector<2x1x48xf32>
    %380 = vector.shape_cast %379 : vector<2x1x48xf32> to vector<2x48xf32>
    %cst_177 = arith.constant dense<0.000000e+00> : vector<2x48xf32>
    %381 = tpu.matmul %347, %343, %cst_177 {dimension_numbers = #tpu.dot_dimension_numbers<[1], [0], [0], [1], [0, 0, 1, 1], [], []>} : vector<2x16xf32>, vector<16x48xf32>, vector<2x48xf32> -> vector<2x48xf32>
    %382 = vector.broadcast %345 : vector<1x48xf32> to vector<2x48xf32>
    %383 = arith.addf %381, %382 : vector<2x48xf32>
    %384 = vector.extract_strided_slice %380 {offsets = [0, 0], sizes = [2, 16], strides = [1, 1]} : vector<2x48xf32> to vector<2x16xf32>
    %385 = vector.extract_strided_slice %383 {offsets = [0, 0], sizes = [2, 16], strides = [1, 1]} : vector<2x48xf32> to vector<2x16xf32>
    %386 = arith.addf %384, %385 : vector<2x16xf32>
    %387 = arith.negf %386 : vector<2x16xf32>
    %388 = math.exp %387 : vector<2x16xf32>
    %cst_178 = arith.constant 1.000000e+00 : f32
    %389 = vector.broadcast %cst_178 : f32 to vector<2x16xf32>
    %390 = arith.addf %389, %388 : vector<2x16xf32>
    %391 = arith.divf %389, %390 : vector<2x16xf32>
    %392 = vector.extract_strided_slice %380 {offsets = [0, 16], sizes = [2, 16], strides = [1, 1]} : vector<2x48xf32> to vector<2x16xf32>
    %393 = vector.extract_strided_slice %383 {offsets = [0, 16], sizes = [2, 16], strides = [1, 1]} : vector<2x48xf32> to vector<2x16xf32>
    %394 = arith.addf %392, %393 : vector<2x16xf32>
    %395 = arith.negf %394 : vector<2x16xf32>
    %396 = math.exp %395 : vector<2x16xf32>
    %cst_179 = arith.constant 1.000000e+00 : f32
    %397 = vector.broadcast %cst_179 : f32 to vector<2x16xf32>
    %398 = arith.addf %397, %396 : vector<2x16xf32>
    %399 = arith.divf %397, %398 : vector<2x16xf32>
    %400 = vector.extract_strided_slice %380 {offsets = [0, 32], sizes = [2, 16], strides = [1, 1]} : vector<2x48xf32> to vector<2x16xf32>
    %401 = vector.extract_strided_slice %383 {offsets = [0, 32], sizes = [2, 16], strides = [1, 1]} : vector<2x48xf32> to vector<2x16xf32>
    %402 = arith.mulf %391, %401 : vector<2x16xf32>
    %403 = arith.addf %400, %402 : vector<2x16xf32>
    %404 = math.tanh %403 : vector<2x16xf32>
    %cst_180 = arith.constant 1.000000e+00 : f32
    %405 = vector.broadcast %cst_180 : f32 to vector<2x16xf32>
    %406 = arith.subf %405, %399 : vector<2x16xf32>
    %407 = arith.mulf %406, %404 : vector<2x16xf32>
    %408 = arith.mulf %399, %347 : vector<2x16xf32>
    %409 = arith.addf %407, %408 : vector<2x16xf32>
    %410 = vector.extract_strided_slice %329 {offsets = [0, 1, 0], sizes = [2, 1, 48], strides = [1, 1, 1]} : vector<2x8x48xf32> to vector<2x1x48xf32>
    %411 = vector.shape_cast %410 : vector<2x1x48xf32> to vector<2x48xf32>
    %cst_181 = arith.constant dense<0.000000e+00> : vector<2x48xf32>
    %412 = tpu.matmul %378, %339, %cst_181 {dimension_numbers = #tpu.dot_dimension_numbers<[1], [0], [0], [1], [0, 0, 1, 1], [], []>} : vector<2x16xf32>, vector<16x48xf32>, vector<2x48xf32> -> vector<2x48xf32>
    %413 = vector.broadcast %341 : vector<1x48xf32> to vector<2x48xf32>
    %414 = arith.addf %412, %413 : vector<2x48xf32>
    %415 = vector.extract_strided_slice %411 {offsets = [0, 0], sizes = [2, 16], strides = [1, 1]} : vector<2x48xf32> to vector<2x16xf32>
    %416 = vector.extract_strided_slice %414 {offsets = [0, 0], sizes = [2, 16], strides = [1, 1]} : vector<2x48xf32> to vector<2x16xf32>
    %417 = arith.addf %415, %416 : vector<2x16xf32>
    %418 = arith.negf %417 : vector<2x16xf32>
    %419 = math.exp %418 : vector<2x16xf32>
    %cst_182 = arith.constant 1.000000e+00 : f32
    %420 = vector.broadcast %cst_182 : f32 to vector<2x16xf32>
    %421 = arith.addf %420, %419 : vector<2x16xf32>
    %422 = arith.divf %420, %421 : vector<2x16xf32>
    %423 = vector.extract_strided_slice %411 {offsets = [0, 16], sizes = [2, 16], strides = [1, 1]} : vector<2x48xf32> to vector<2x16xf32>
    %424 = vector.extract_strided_slice %414 {offsets = [0, 16], sizes = [2, 16], strides = [1, 1]} : vector<2x48xf32> to vector<2x16xf32>
    %425 = arith.addf %423, %424 : vector<2x16xf32>
    %426 = arith.negf %425 : vector<2x16xf32>
    %427 = math.exp %426 : vector<2x16xf32>
    %cst_183 = arith.constant 1.000000e+00 : f32
    %428 = vector.broadcast %cst_183 : f32 to vector<2x16xf32>
    %429 = arith.addf %428, %427 : vector<2x16xf32>
    %430 = arith.divf %428, %429 : vector<2x16xf32>
    %431 = vector.extract_strided_slice %411 {offsets = [0, 32], sizes = [2, 16], strides = [1, 1]} : vector<2x48xf32> to vector<2x16xf32>
    %432 = vector.extract_strided_slice %414 {offsets = [0, 32], sizes = [2, 16], strides = [1, 1]} : vector<2x48xf32> to vector<2x16xf32>
    %433 = arith.mulf %422, %432 : vector<2x16xf32>
    %434 = arith.addf %431, %433 : vector<2x16xf32>
    %435 = math.tanh %434 : vector<2x16xf32>
    %cst_184 = arith.constant 1.000000e+00 : f32
    %436 = vector.broadcast %cst_184 : f32 to vector<2x16xf32>
    %437 = arith.subf %436, %430 : vector<2x16xf32>
    %438 = arith.mulf %437, %435 : vector<2x16xf32>
    %439 = arith.mulf %430, %378 : vector<2x16xf32>
    %440 = arith.addf %438, %439 : vector<2x16xf32>
    %441 = vector.extract_strided_slice %337 {offsets = [0, 6, 0], sizes = [2, 1, 48], strides = [1, 1, 1]} : vector<2x8x48xf32> to vector<2x1x48xf32>
    %442 = vector.shape_cast %441 : vector<2x1x48xf32> to vector<2x48xf32>
    %cst_185 = arith.constant dense<0.000000e+00> : vector<2x48xf32>
    %443 = tpu.matmul %409, %343, %cst_185 {dimension_numbers = #tpu.dot_dimension_numbers<[1], [0], [0], [1], [0, 0, 1, 1], [], []>} : vector<2x16xf32>, vector<16x48xf32>, vector<2x48xf32> -> vector<2x48xf32>
    %444 = vector.broadcast %345 : vector<1x48xf32> to vector<2x48xf32>
    %445 = arith.addf %443, %444 : vector<2x48xf32>
    %446 = vector.extract_strided_slice %442 {offsets = [0, 0], sizes = [2, 16], strides = [1, 1]} : vector<2x48xf32> to vector<2x16xf32>
    %447 = vector.extract_strided_slice %445 {offsets = [0, 0], sizes = [2, 16], strides = [1, 1]} : vector<2x48xf32> to vector<2x16xf32>
    %448 = arith.addf %446, %447 : vector<2x16xf32>
    %449 = arith.negf %448 : vector<2x16xf32>
    %450 = math.exp %449 : vector<2x16xf32>
    %cst_186 = arith.constant 1.000000e+00 : f32
    %451 = vector.broadcast %cst_186 : f32 to vector<2x16xf32>
    %452 = arith.addf %451, %450 : vector<2x16xf32>
    %453 = arith.divf %451, %452 : vector<2x16xf32>
    %454 = vector.extract_strided_slice %442 {offsets = [0, 16], sizes = [2, 16], strides = [1, 1]} : vector<2x48xf32> to vector<2x16xf32>
    %455 = vector.extract_strided_slice %445 {offsets = [0, 16], sizes = [2, 16], strides = [1, 1]} : vector<2x48xf32> to vector<2x16xf32>
    %456 = arith.addf %454, %455 : vector<2x16xf32>
    %457 = arith.negf %456 : vector<2x16xf32>
    %458 = math.exp %457 : vector<2x16xf32>
    %cst_187 = arith.constant 1.000000e+00 : f32
    %459 = vector.broadcast %cst_187 : f32 to vector<2x16xf32>
    %460 = arith.addf %459, %458 : vector<2x16xf32>
    %461 = arith.divf %459, %460 : vector<2x16xf32>
    %462 = vector.extract_strided_slice %442 {offsets = [0, 32], sizes = [2, 16], strides = [1, 1]} : vector<2x48xf32> to vector<2x16xf32>
    %463 = vector.extract_strided_slice %445 {offsets = [0, 32], sizes = [2, 16], strides = [1, 1]} : vector<2x48xf32> to vector<2x16xf32>
    %464 = arith.mulf %453, %463 : vector<2x16xf32>
    %465 = arith.addf %462, %464 : vector<2x16xf32>
    %466 = math.tanh %465 : vector<2x16xf32>
    %cst_188 = arith.constant 1.000000e+00 : f32
    %467 = vector.broadcast %cst_188 : f32 to vector<2x16xf32>
    %468 = arith.subf %467, %461 : vector<2x16xf32>
    %469 = arith.mulf %468, %466 : vector<2x16xf32>
    %470 = arith.mulf %461, %409 : vector<2x16xf32>
    %471 = arith.addf %469, %470 : vector<2x16xf32>
    %472 = vector.extract_strided_slice %329 {offsets = [0, 2, 0], sizes = [2, 1, 48], strides = [1, 1, 1]} : vector<2x8x48xf32> to vector<2x1x48xf32>
    %473 = vector.shape_cast %472 : vector<2x1x48xf32> to vector<2x48xf32>
    %cst_189 = arith.constant dense<0.000000e+00> : vector<2x48xf32>
    %474 = tpu.matmul %440, %339, %cst_189 {dimension_numbers = #tpu.dot_dimension_numbers<[1], [0], [0], [1], [0, 0, 1, 1], [], []>} : vector<2x16xf32>, vector<16x48xf32>, vector<2x48xf32> -> vector<2x48xf32>
    %475 = vector.broadcast %341 : vector<1x48xf32> to vector<2x48xf32>
    %476 = arith.addf %474, %475 : vector<2x48xf32>
    %477 = vector.extract_strided_slice %473 {offsets = [0, 0], sizes = [2, 16], strides = [1, 1]} : vector<2x48xf32> to vector<2x16xf32>
    %478 = vector.extract_strided_slice %476 {offsets = [0, 0], sizes = [2, 16], strides = [1, 1]} : vector<2x48xf32> to vector<2x16xf32>
    %479 = arith.addf %477, %478 : vector<2x16xf32>
    %480 = arith.negf %479 : vector<2x16xf32>
    %481 = math.exp %480 : vector<2x16xf32>
    %cst_190 = arith.constant 1.000000e+00 : f32
    %482 = vector.broadcast %cst_190 : f32 to vector<2x16xf32>
    %483 = arith.addf %482, %481 : vector<2x16xf32>
    %484 = arith.divf %482, %483 : vector<2x16xf32>
    %485 = vector.extract_strided_slice %473 {offsets = [0, 16], sizes = [2, 16], strides = [1, 1]} : vector<2x48xf32> to vector<2x16xf32>
    %486 = vector.extract_strided_slice %476 {offsets = [0, 16], sizes = [2, 16], strides = [1, 1]} : vector<2x48xf32> to vector<2x16xf32>
    %487 = arith.addf %485, %486 : vector<2x16xf32>
    %488 = arith.negf %487 : vector<2x16xf32>
    %489 = math.exp %488 : vector<2x16xf32>
    %cst_191 = arith.constant 1.000000e+00 : f32
    %490 = vector.broadcast %cst_191 : f32 to vector<2x16xf32>
    %491 = arith.addf %490, %489 : vector<2x16xf32>
    %492 = arith.divf %490, %491 : vector<2x16xf32>
    %493 = vector.extract_strided_slice %473 {offsets = [0, 32], sizes = [2, 16], strides = [1, 1]} : vector<2x48xf32> to vector<2x16xf32>
    %494 = vector.extract_strided_slice %476 {offsets = [0, 32], sizes = [2, 16], strides = [1, 1]} : vector<2x48xf32> to vector<2x16xf32>
    %495 = arith.mulf %484, %494 : vector<2x16xf32>
    %496 = arith.addf %493, %495 : vector<2x16xf32>
    %497 = math.tanh %496 : vector<2x16xf32>
    %cst_192 = arith.constant 1.000000e+00 : f32
    %498 = vector.broadcast %cst_192 : f32 to vector<2x16xf32>
    %499 = arith.subf %498, %492 : vector<2x16xf32>
    %500 = arith.mulf %499, %497 : vector<2x16xf32>
    %501 = arith.mulf %492, %440 : vector<2x16xf32>
    %502 = arith.addf %500, %501 : vector<2x16xf32>
    %503 = vector.extract_strided_slice %337 {offsets = [0, 5, 0], sizes = [2, 1, 48], strides = [1, 1, 1]} : vector<2x8x48xf32> to vector<2x1x48xf32>
    %504 = vector.shape_cast %503 : vector<2x1x48xf32> to vector<2x48xf32>
    %cst_193 = arith.constant dense<0.000000e+00> : vector<2x48xf32>
    %505 = tpu.matmul %471, %343, %cst_193 {dimension_numbers = #tpu.dot_dimension_numbers<[1], [0], [0], [1], [0, 0, 1, 1], [], []>} : vector<2x16xf32>, vector<16x48xf32>, vector<2x48xf32> -> vector<2x48xf32>
    %506 = vector.broadcast %345 : vector<1x48xf32> to vector<2x48xf32>
    %507 = arith.addf %505, %506 : vector<2x48xf32>
    %508 = vector.extract_strided_slice %504 {offsets = [0, 0], sizes = [2, 16], strides = [1, 1]} : vector<2x48xf32> to vector<2x16xf32>
    %509 = vector.extract_strided_slice %507 {offsets = [0, 0], sizes = [2, 16], strides = [1, 1]} : vector<2x48xf32> to vector<2x16xf32>
    %510 = arith.addf %508, %509 : vector<2x16xf32>
    %511 = arith.negf %510 : vector<2x16xf32>
    %512 = math.exp %511 : vector<2x16xf32>
    %cst_194 = arith.constant 1.000000e+00 : f32
    %513 = vector.broadcast %cst_194 : f32 to vector<2x16xf32>
    %514 = arith.addf %513, %512 : vector<2x16xf32>
    %515 = arith.divf %513, %514 : vector<2x16xf32>
    %516 = vector.extract_strided_slice %504 {offsets = [0, 16], sizes = [2, 16], strides = [1, 1]} : vector<2x48xf32> to vector<2x16xf32>
    %517 = vector.extract_strided_slice %507 {offsets = [0, 16], sizes = [2, 16], strides = [1, 1]} : vector<2x48xf32> to vector<2x16xf32>
    %518 = arith.addf %516, %517 : vector<2x16xf32>
    %519 = arith.negf %518 : vector<2x16xf32>
    %520 = math.exp %519 : vector<2x16xf32>
    %cst_195 = arith.constant 1.000000e+00 : f32
    %521 = vector.broadcast %cst_195 : f32 to vector<2x16xf32>
    %522 = arith.addf %521, %520 : vector<2x16xf32>
    %523 = arith.divf %521, %522 : vector<2x16xf32>
    %524 = vector.extract_strided_slice %504 {offsets = [0, 32], sizes = [2, 16], strides = [1, 1]} : vector<2x48xf32> to vector<2x16xf32>
    %525 = vector.extract_strided_slice %507 {offsets = [0, 32], sizes = [2, 16], strides = [1, 1]} : vector<2x48xf32> to vector<2x16xf32>
    %526 = arith.mulf %515, %525 : vector<2x16xf32>
    %527 = arith.addf %524, %526 : vector<2x16xf32>
    %528 = math.tanh %527 : vector<2x16xf32>
    %cst_196 = arith.constant 1.000000e+00 : f32
    %529 = vector.broadcast %cst_196 : f32 to vector<2x16xf32>
    %530 = arith.subf %529, %523 : vector<2x16xf32>
    %531 = arith.mulf %530, %528 : vector<2x16xf32>
    %532 = arith.mulf %523, %471 : vector<2x16xf32>
    %533 = arith.addf %531, %532 : vector<2x16xf32>
    %534 = vector.extract_strided_slice %329 {offsets = [0, 3, 0], sizes = [2, 1, 48], strides = [1, 1, 1]} : vector<2x8x48xf32> to vector<2x1x48xf32>
    %535 = vector.shape_cast %534 : vector<2x1x48xf32> to vector<2x48xf32>
    %cst_197 = arith.constant dense<0.000000e+00> : vector<2x48xf32>
    %536 = tpu.matmul %502, %339, %cst_197 {dimension_numbers = #tpu.dot_dimension_numbers<[1], [0], [0], [1], [0, 0, 1, 1], [], []>} : vector<2x16xf32>, vector<16x48xf32>, vector<2x48xf32> -> vector<2x48xf32>
    %537 = vector.broadcast %341 : vector<1x48xf32> to vector<2x48xf32>
    %538 = arith.addf %536, %537 : vector<2x48xf32>
    %539 = vector.extract_strided_slice %535 {offsets = [0, 0], sizes = [2, 16], strides = [1, 1]} : vector<2x48xf32> to vector<2x16xf32>
    %540 = vector.extract_strided_slice %538 {offsets = [0, 0], sizes = [2, 16], strides = [1, 1]} : vector<2x48xf32> to vector<2x16xf32>
    %541 = arith.addf %539, %540 : vector<2x16xf32>
    %542 = arith.negf %541 : vector<2x16xf32>
    %543 = math.exp %542 : vector<2x16xf32>
    %cst_198 = arith.constant 1.000000e+00 : f32
    %544 = vector.broadcast %cst_198 : f32 to vector<2x16xf32>
    %545 = arith.addf %544, %543 : vector<2x16xf32>
    %546 = arith.divf %544, %545 : vector<2x16xf32>
    %547 = vector.extract_strided_slice %535 {offsets = [0, 16], sizes = [2, 16], strides = [1, 1]} : vector<2x48xf32> to vector<2x16xf32>
    %548 = vector.extract_strided_slice %538 {offsets = [0, 16], sizes = [2, 16], strides = [1, 1]} : vector<2x48xf32> to vector<2x16xf32>
    %549 = arith.addf %547, %548 : vector<2x16xf32>
    %550 = arith.negf %549 : vector<2x16xf32>
    %551 = math.exp %550 : vector<2x16xf32>
    %cst_199 = arith.constant 1.000000e+00 : f32
    %552 = vector.broadcast %cst_199 : f32 to vector<2x16xf32>
    %553 = arith.addf %552, %551 : vector<2x16xf32>
    %554 = arith.divf %552, %553 : vector<2x16xf32>
    %555 = vector.extract_strided_slice %535 {offsets = [0, 32], sizes = [2, 16], strides = [1, 1]} : vector<2x48xf32> to vector<2x16xf32>
    %556 = vector.extract_strided_slice %538 {offsets = [0, 32], sizes = [2, 16], strides = [1, 1]} : vector<2x48xf32> to vector<2x16xf32>
    %557 = arith.mulf %546, %556 : vector<2x16xf32>
    %558 = arith.addf %555, %557 : vector<2x16xf32>
    %559 = math.tanh %558 : vector<2x16xf32>
    %cst_200 = arith.constant 1.000000e+00 : f32
    %560 = vector.broadcast %cst_200 : f32 to vector<2x16xf32>
    %561 = arith.subf %560, %554 : vector<2x16xf32>
    %562 = arith.mulf %561, %559 : vector<2x16xf32>
    %563 = arith.mulf %554, %502 : vector<2x16xf32>
    %564 = arith.addf %562, %563 : vector<2x16xf32>
    %565 = vector.extract_strided_slice %337 {offsets = [0, 4, 0], sizes = [2, 1, 48], strides = [1, 1, 1]} : vector<2x8x48xf32> to vector<2x1x48xf32>
    %566 = vector.shape_cast %565 : vector<2x1x48xf32> to vector<2x48xf32>
    %cst_201 = arith.constant dense<0.000000e+00> : vector<2x48xf32>
    %567 = tpu.matmul %533, %343, %cst_201 {dimension_numbers = #tpu.dot_dimension_numbers<[1], [0], [0], [1], [0, 0, 1, 1], [], []>} : vector<2x16xf32>, vector<16x48xf32>, vector<2x48xf32> -> vector<2x48xf32>
    %568 = vector.broadcast %345 : vector<1x48xf32> to vector<2x48xf32>
    %569 = arith.addf %567, %568 : vector<2x48xf32>
    %570 = vector.extract_strided_slice %566 {offsets = [0, 0], sizes = [2, 16], strides = [1, 1]} : vector<2x48xf32> to vector<2x16xf32>
    %571 = vector.extract_strided_slice %569 {offsets = [0, 0], sizes = [2, 16], strides = [1, 1]} : vector<2x48xf32> to vector<2x16xf32>
    %572 = arith.addf %570, %571 : vector<2x16xf32>
    %573 = arith.negf %572 : vector<2x16xf32>
    %574 = math.exp %573 : vector<2x16xf32>
    %cst_202 = arith.constant 1.000000e+00 : f32
    %575 = vector.broadcast %cst_202 : f32 to vector<2x16xf32>
    %576 = arith.addf %575, %574 : vector<2x16xf32>
    %577 = arith.divf %575, %576 : vector<2x16xf32>
    %578 = vector.extract_strided_slice %566 {offsets = [0, 16], sizes = [2, 16], strides = [1, 1]} : vector<2x48xf32> to vector<2x16xf32>
    %579 = vector.extract_strided_slice %569 {offsets = [0, 16], sizes = [2, 16], strides = [1, 1]} : vector<2x48xf32> to vector<2x16xf32>
    %580 = arith.addf %578, %579 : vector<2x16xf32>
    %581 = arith.negf %580 : vector<2x16xf32>
    %582 = math.exp %581 : vector<2x16xf32>
    %cst_203 = arith.constant 1.000000e+00 : f32
    %583 = vector.broadcast %cst_203 : f32 to vector<2x16xf32>
    %584 = arith.addf %583, %582 : vector<2x16xf32>
    %585 = arith.divf %583, %584 : vector<2x16xf32>
    %586 = vector.extract_strided_slice %566 {offsets = [0, 32], sizes = [2, 16], strides = [1, 1]} : vector<2x48xf32> to vector<2x16xf32>
    %587 = vector.extract_strided_slice %569 {offsets = [0, 32], sizes = [2, 16], strides = [1, 1]} : vector<2x48xf32> to vector<2x16xf32>
    %588 = arith.mulf %577, %587 : vector<2x16xf32>
    %589 = arith.addf %586, %588 : vector<2x16xf32>
    %590 = math.tanh %589 : vector<2x16xf32>
    %cst_204 = arith.constant 1.000000e+00 : f32
    %591 = vector.broadcast %cst_204 : f32 to vector<2x16xf32>
    %592 = arith.subf %591, %585 : vector<2x16xf32>
    %593 = arith.mulf %592, %590 : vector<2x16xf32>
    %594 = arith.mulf %585, %533 : vector<2x16xf32>
    %595 = arith.addf %593, %594 : vector<2x16xf32>
    %596 = vector.extract_strided_slice %329 {offsets = [0, 4, 0], sizes = [2, 1, 48], strides = [1, 1, 1]} : vector<2x8x48xf32> to vector<2x1x48xf32>
    %597 = vector.shape_cast %596 : vector<2x1x48xf32> to vector<2x48xf32>
    %cst_205 = arith.constant dense<0.000000e+00> : vector<2x48xf32>
    %598 = tpu.matmul %564, %339, %cst_205 {dimension_numbers = #tpu.dot_dimension_numbers<[1], [0], [0], [1], [0, 0, 1, 1], [], []>} : vector<2x16xf32>, vector<16x48xf32>, vector<2x48xf32> -> vector<2x48xf32>
    %599 = vector.broadcast %341 : vector<1x48xf32> to vector<2x48xf32>
    %600 = arith.addf %598, %599 : vector<2x48xf32>
    %601 = vector.extract_strided_slice %597 {offsets = [0, 0], sizes = [2, 16], strides = [1, 1]} : vector<2x48xf32> to vector<2x16xf32>
    %602 = vector.extract_strided_slice %600 {offsets = [0, 0], sizes = [2, 16], strides = [1, 1]} : vector<2x48xf32> to vector<2x16xf32>
    %603 = arith.addf %601, %602 : vector<2x16xf32>
    %604 = arith.negf %603 : vector<2x16xf32>
    %605 = math.exp %604 : vector<2x16xf32>
    %cst_206 = arith.constant 1.000000e+00 : f32
    %606 = vector.broadcast %cst_206 : f32 to vector<2x16xf32>
    %607 = arith.addf %606, %605 : vector<2x16xf32>
    %608 = arith.divf %606, %607 : vector<2x16xf32>
    %609 = vector.extract_strided_slice %597 {offsets = [0, 16], sizes = [2, 16], strides = [1, 1]} : vector<2x48xf32> to vector<2x16xf32>
    %610 = vector.extract_strided_slice %600 {offsets = [0, 16], sizes = [2, 16], strides = [1, 1]} : vector<2x48xf32> to vector<2x16xf32>
    %611 = arith.addf %609, %610 : vector<2x16xf32>
    %612 = arith.negf %611 : vector<2x16xf32>
    %613 = math.exp %612 : vector<2x16xf32>
    %cst_207 = arith.constant 1.000000e+00 : f32
    %614 = vector.broadcast %cst_207 : f32 to vector<2x16xf32>
    %615 = arith.addf %614, %613 : vector<2x16xf32>
    %616 = arith.divf %614, %615 : vector<2x16xf32>
    %617 = vector.extract_strided_slice %597 {offsets = [0, 32], sizes = [2, 16], strides = [1, 1]} : vector<2x48xf32> to vector<2x16xf32>
    %618 = vector.extract_strided_slice %600 {offsets = [0, 32], sizes = [2, 16], strides = [1, 1]} : vector<2x48xf32> to vector<2x16xf32>
    %619 = arith.mulf %608, %618 : vector<2x16xf32>
    %620 = arith.addf %617, %619 : vector<2x16xf32>
    %621 = math.tanh %620 : vector<2x16xf32>
    %cst_208 = arith.constant 1.000000e+00 : f32
    %622 = vector.broadcast %cst_208 : f32 to vector<2x16xf32>
    %623 = arith.subf %622, %616 : vector<2x16xf32>
    %624 = arith.mulf %623, %621 : vector<2x16xf32>
    %625 = arith.mulf %616, %564 : vector<2x16xf32>
    %626 = arith.addf %624, %625 : vector<2x16xf32>
    %627 = vector.extract_strided_slice %337 {offsets = [0, 3, 0], sizes = [2, 1, 48], strides = [1, 1, 1]} : vector<2x8x48xf32> to vector<2x1x48xf32>
    %628 = vector.shape_cast %627 : vector<2x1x48xf32> to vector<2x48xf32>
    %cst_209 = arith.constant dense<0.000000e+00> : vector<2x48xf32>
    %629 = tpu.matmul %595, %343, %cst_209 {dimension_numbers = #tpu.dot_dimension_numbers<[1], [0], [0], [1], [0, 0, 1, 1], [], []>} : vector<2x16xf32>, vector<16x48xf32>, vector<2x48xf32> -> vector<2x48xf32>
    %630 = vector.broadcast %345 : vector<1x48xf32> to vector<2x48xf32>
    %631 = arith.addf %629, %630 : vector<2x48xf32>
    %632 = vector.extract_strided_slice %628 {offsets = [0, 0], sizes = [2, 16], strides = [1, 1]} : vector<2x48xf32> to vector<2x16xf32>
    %633 = vector.extract_strided_slice %631 {offsets = [0, 0], sizes = [2, 16], strides = [1, 1]} : vector<2x48xf32> to vector<2x16xf32>
    %634 = arith.addf %632, %633 : vector<2x16xf32>
    %635 = arith.negf %634 : vector<2x16xf32>
    %636 = math.exp %635 : vector<2x16xf32>
    %cst_210 = arith.constant 1.000000e+00 : f32
    %637 = vector.broadcast %cst_210 : f32 to vector<2x16xf32>
    %638 = arith.addf %637, %636 : vector<2x16xf32>
    %639 = arith.divf %637, %638 : vector<2x16xf32>
    %640 = vector.extract_strided_slice %628 {offsets = [0, 16], sizes = [2, 16], strides = [1, 1]} : vector<2x48xf32> to vector<2x16xf32>
    %641 = vector.extract_strided_slice %631 {offsets = [0, 16], sizes = [2, 16], strides = [1, 1]} : vector<2x48xf32> to vector<2x16xf32>
    %642 = arith.addf %640, %641 : vector<2x16xf32>
    %643 = arith.negf %642 : vector<2x16xf32>
    %644 = math.exp %643 : vector<2x16xf32>
    %cst_211 = arith.constant 1.000000e+00 : f32
    %645 = vector.broadcast %cst_211 : f32 to vector<2x16xf32>
    %646 = arith.addf %645, %644 : vector<2x16xf32>
    %647 = arith.divf %645, %646 : vector<2x16xf32>
    %648 = vector.extract_strided_slice %628 {offsets = [0, 32], sizes = [2, 16], strides = [1, 1]} : vector<2x48xf32> to vector<2x16xf32>
    %649 = vector.extract_strided_slice %631 {offsets = [0, 32], sizes = [2, 16], strides = [1, 1]} : vector<2x48xf32> to vector<2x16xf32>
    %650 = arith.mulf %639, %649 : vector<2x16xf32>
    %651 = arith.addf %648, %650 : vector<2x16xf32>
    %652 = math.tanh %651 : vector<2x16xf32>
    %cst_212 = arith.constant 1.000000e+00 : f32
    %653 = vector.broadcast %cst_212 : f32 to vector<2x16xf32>
    %654 = arith.subf %653, %647 : vector<2x16xf32>
    %655 = arith.mulf %654, %652 : vector<2x16xf32>
    %656 = arith.mulf %647, %595 : vector<2x16xf32>
    %657 = arith.addf %655, %656 : vector<2x16xf32>
    %658 = vector.extract_strided_slice %329 {offsets = [0, 5, 0], sizes = [2, 1, 48], strides = [1, 1, 1]} : vector<2x8x48xf32> to vector<2x1x48xf32>
    %659 = vector.shape_cast %658 : vector<2x1x48xf32> to vector<2x48xf32>
    %cst_213 = arith.constant dense<0.000000e+00> : vector<2x48xf32>
    %660 = tpu.matmul %626, %339, %cst_213 {dimension_numbers = #tpu.dot_dimension_numbers<[1], [0], [0], [1], [0, 0, 1, 1], [], []>} : vector<2x16xf32>, vector<16x48xf32>, vector<2x48xf32> -> vector<2x48xf32>
    %661 = vector.broadcast %341 : vector<1x48xf32> to vector<2x48xf32>
    %662 = arith.addf %660, %661 : vector<2x48xf32>
    %663 = vector.extract_strided_slice %659 {offsets = [0, 0], sizes = [2, 16], strides = [1, 1]} : vector<2x48xf32> to vector<2x16xf32>
    %664 = vector.extract_strided_slice %662 {offsets = [0, 0], sizes = [2, 16], strides = [1, 1]} : vector<2x48xf32> to vector<2x16xf32>
    %665 = arith.addf %663, %664 : vector<2x16xf32>
    %666 = arith.negf %665 : vector<2x16xf32>
    %667 = math.exp %666 : vector<2x16xf32>
    %cst_214 = arith.constant 1.000000e+00 : f32
    %668 = vector.broadcast %cst_214 : f32 to vector<2x16xf32>
    %669 = arith.addf %668, %667 : vector<2x16xf32>
    %670 = arith.divf %668, %669 : vector<2x16xf32>
    %671 = vector.extract_strided_slice %659 {offsets = [0, 16], sizes = [2, 16], strides = [1, 1]} : vector<2x48xf32> to vector<2x16xf32>
    %672 = vector.extract_strided_slice %662 {offsets = [0, 16], sizes = [2, 16], strides = [1, 1]} : vector<2x48xf32> to vector<2x16xf32>
    %673 = arith.addf %671, %672 : vector<2x16xf32>
    %674 = arith.negf %673 : vector<2x16xf32>
    %675 = math.exp %674 : vector<2x16xf32>
    %cst_215 = arith.constant 1.000000e+00 : f32
    %676 = vector.broadcast %cst_215 : f32 to vector<2x16xf32>
    %677 = arith.addf %676, %675 : vector<2x16xf32>
    %678 = arith.divf %676, %677 : vector<2x16xf32>
    %679 = vector.extract_strided_slice %659 {offsets = [0, 32], sizes = [2, 16], strides = [1, 1]} : vector<2x48xf32> to vector<2x16xf32>
    %680 = vector.extract_strided_slice %662 {offsets = [0, 32], sizes = [2, 16], strides = [1, 1]} : vector<2x48xf32> to vector<2x16xf32>
    %681 = arith.mulf %670, %680 : vector<2x16xf32>
    %682 = arith.addf %679, %681 : vector<2x16xf32>
    %683 = math.tanh %682 : vector<2x16xf32>
    %cst_216 = arith.constant 1.000000e+00 : f32
    %684 = vector.broadcast %cst_216 : f32 to vector<2x16xf32>
    %685 = arith.subf %684, %678 : vector<2x16xf32>
    %686 = arith.mulf %685, %683 : vector<2x16xf32>
    %687 = arith.mulf %678, %626 : vector<2x16xf32>
    %688 = arith.addf %686, %687 : vector<2x16xf32>
    %689 = vector.extract_strided_slice %337 {offsets = [0, 2, 0], sizes = [2, 1, 48], strides = [1, 1, 1]} : vector<2x8x48xf32> to vector<2x1x48xf32>
    %690 = vector.shape_cast %689 : vector<2x1x48xf32> to vector<2x48xf32>
    %cst_217 = arith.constant dense<0.000000e+00> : vector<2x48xf32>
    %691 = tpu.matmul %657, %343, %cst_217 {dimension_numbers = #tpu.dot_dimension_numbers<[1], [0], [0], [1], [0, 0, 1, 1], [], []>} : vector<2x16xf32>, vector<16x48xf32>, vector<2x48xf32> -> vector<2x48xf32>
    %692 = vector.broadcast %345 : vector<1x48xf32> to vector<2x48xf32>
    %693 = arith.addf %691, %692 : vector<2x48xf32>
    %694 = vector.extract_strided_slice %690 {offsets = [0, 0], sizes = [2, 16], strides = [1, 1]} : vector<2x48xf32> to vector<2x16xf32>
    %695 = vector.extract_strided_slice %693 {offsets = [0, 0], sizes = [2, 16], strides = [1, 1]} : vector<2x48xf32> to vector<2x16xf32>
    %696 = arith.addf %694, %695 : vector<2x16xf32>
    %697 = arith.negf %696 : vector<2x16xf32>
    %698 = math.exp %697 : vector<2x16xf32>
    %cst_218 = arith.constant 1.000000e+00 : f32
    %699 = vector.broadcast %cst_218 : f32 to vector<2x16xf32>
    %700 = arith.addf %699, %698 : vector<2x16xf32>
    %701 = arith.divf %699, %700 : vector<2x16xf32>
    %702 = vector.extract_strided_slice %690 {offsets = [0, 16], sizes = [2, 16], strides = [1, 1]} : vector<2x48xf32> to vector<2x16xf32>
    %703 = vector.extract_strided_slice %693 {offsets = [0, 16], sizes = [2, 16], strides = [1, 1]} : vector<2x48xf32> to vector<2x16xf32>
    %704 = arith.addf %702, %703 : vector<2x16xf32>
    %705 = arith.negf %704 : vector<2x16xf32>
    %706 = math.exp %705 : vector<2x16xf32>
    %cst_219 = arith.constant 1.000000e+00 : f32
    %707 = vector.broadcast %cst_219 : f32 to vector<2x16xf32>
    %708 = arith.addf %707, %706 : vector<2x16xf32>
    %709 = arith.divf %707, %708 : vector<2x16xf32>
    %710 = vector.extract_strided_slice %690 {offsets = [0, 32], sizes = [2, 16], strides = [1, 1]} : vector<2x48xf32> to vector<2x16xf32>
    %711 = vector.extract_strided_slice %693 {offsets = [0, 32], sizes = [2, 16], strides = [1, 1]} : vector<2x48xf32> to vector<2x16xf32>
    %712 = arith.mulf %701, %711 : vector<2x16xf32>
    %713 = arith.addf %710, %712 : vector<2x16xf32>
    %714 = math.tanh %713 : vector<2x16xf32>
    %cst_220 = arith.constant 1.000000e+00 : f32
    %715 = vector.broadcast %cst_220 : f32 to vector<2x16xf32>
    %716 = arith.subf %715, %709 : vector<2x16xf32>
    %717 = arith.mulf %716, %714 : vector<2x16xf32>
    %718 = arith.mulf %709, %657 : vector<2x16xf32>
    %719 = arith.addf %717, %718 : vector<2x16xf32>
    %720 = vector.extract_strided_slice %329 {offsets = [0, 6, 0], sizes = [2, 1, 48], strides = [1, 1, 1]} : vector<2x8x48xf32> to vector<2x1x48xf32>
    %721 = vector.shape_cast %720 : vector<2x1x48xf32> to vector<2x48xf32>
    %cst_221 = arith.constant dense<0.000000e+00> : vector<2x48xf32>
    %722 = tpu.matmul %688, %339, %cst_221 {dimension_numbers = #tpu.dot_dimension_numbers<[1], [0], [0], [1], [0, 0, 1, 1], [], []>} : vector<2x16xf32>, vector<16x48xf32>, vector<2x48xf32> -> vector<2x48xf32>
    %723 = vector.broadcast %341 : vector<1x48xf32> to vector<2x48xf32>
    %724 = arith.addf %722, %723 : vector<2x48xf32>
    %725 = vector.extract_strided_slice %721 {offsets = [0, 0], sizes = [2, 16], strides = [1, 1]} : vector<2x48xf32> to vector<2x16xf32>
    %726 = vector.extract_strided_slice %724 {offsets = [0, 0], sizes = [2, 16], strides = [1, 1]} : vector<2x48xf32> to vector<2x16xf32>
    %727 = arith.addf %725, %726 : vector<2x16xf32>
    %728 = arith.negf %727 : vector<2x16xf32>
    %729 = math.exp %728 : vector<2x16xf32>
    %cst_222 = arith.constant 1.000000e+00 : f32
    %730 = vector.broadcast %cst_222 : f32 to vector<2x16xf32>
    %731 = arith.addf %730, %729 : vector<2x16xf32>
    %732 = arith.divf %730, %731 : vector<2x16xf32>
    %733 = vector.extract_strided_slice %721 {offsets = [0, 16], sizes = [2, 16], strides = [1, 1]} : vector<2x48xf32> to vector<2x16xf32>
    %734 = vector.extract_strided_slice %724 {offsets = [0, 16], sizes = [2, 16], strides = [1, 1]} : vector<2x48xf32> to vector<2x16xf32>
    %735 = arith.addf %733, %734 : vector<2x16xf32>
    %736 = arith.negf %735 : vector<2x16xf32>
    %737 = math.exp %736 : vector<2x16xf32>
    %cst_223 = arith.constant 1.000000e+00 : f32
    %738 = vector.broadcast %cst_223 : f32 to vector<2x16xf32>
    %739 = arith.addf %738, %737 : vector<2x16xf32>
    %740 = arith.divf %738, %739 : vector<2x16xf32>
    %741 = vector.extract_strided_slice %721 {offsets = [0, 32], sizes = [2, 16], strides = [1, 1]} : vector<2x48xf32> to vector<2x16xf32>
    %742 = vector.extract_strided_slice %724 {offsets = [0, 32], sizes = [2, 16], strides = [1, 1]} : vector<2x48xf32> to vector<2x16xf32>
    %743 = arith.mulf %732, %742 : vector<2x16xf32>
    %744 = arith.addf %741, %743 : vector<2x16xf32>
    %745 = math.tanh %744 : vector<2x16xf32>
    %cst_224 = arith.constant 1.000000e+00 : f32
    %746 = vector.broadcast %cst_224 : f32 to vector<2x16xf32>
    %747 = arith.subf %746, %740 : vector<2x16xf32>
    %748 = arith.mulf %747, %745 : vector<2x16xf32>
    %749 = arith.mulf %740, %688 : vector<2x16xf32>
    %750 = arith.addf %748, %749 : vector<2x16xf32>
    %751 = vector.extract_strided_slice %337 {offsets = [0, 1, 0], sizes = [2, 1, 48], strides = [1, 1, 1]} : vector<2x8x48xf32> to vector<2x1x48xf32>
    %752 = vector.shape_cast %751 : vector<2x1x48xf32> to vector<2x48xf32>
    %cst_225 = arith.constant dense<0.000000e+00> : vector<2x48xf32>
    %753 = tpu.matmul %719, %343, %cst_225 {dimension_numbers = #tpu.dot_dimension_numbers<[1], [0], [0], [1], [0, 0, 1, 1], [], []>} : vector<2x16xf32>, vector<16x48xf32>, vector<2x48xf32> -> vector<2x48xf32>
    %754 = vector.broadcast %345 : vector<1x48xf32> to vector<2x48xf32>
    %755 = arith.addf %753, %754 : vector<2x48xf32>
    %756 = vector.extract_strided_slice %752 {offsets = [0, 0], sizes = [2, 16], strides = [1, 1]} : vector<2x48xf32> to vector<2x16xf32>
    %757 = vector.extract_strided_slice %755 {offsets = [0, 0], sizes = [2, 16], strides = [1, 1]} : vector<2x48xf32> to vector<2x16xf32>
    %758 = arith.addf %756, %757 : vector<2x16xf32>
    %759 = arith.negf %758 : vector<2x16xf32>
    %760 = math.exp %759 : vector<2x16xf32>
    %cst_226 = arith.constant 1.000000e+00 : f32
    %761 = vector.broadcast %cst_226 : f32 to vector<2x16xf32>
    %762 = arith.addf %761, %760 : vector<2x16xf32>
    %763 = arith.divf %761, %762 : vector<2x16xf32>
    %764 = vector.extract_strided_slice %752 {offsets = [0, 16], sizes = [2, 16], strides = [1, 1]} : vector<2x48xf32> to vector<2x16xf32>
    %765 = vector.extract_strided_slice %755 {offsets = [0, 16], sizes = [2, 16], strides = [1, 1]} : vector<2x48xf32> to vector<2x16xf32>
    %766 = arith.addf %764, %765 : vector<2x16xf32>
    %767 = arith.negf %766 : vector<2x16xf32>
    %768 = math.exp %767 : vector<2x16xf32>
    %cst_227 = arith.constant 1.000000e+00 : f32
    %769 = vector.broadcast %cst_227 : f32 to vector<2x16xf32>
    %770 = arith.addf %769, %768 : vector<2x16xf32>
    %771 = arith.divf %769, %770 : vector<2x16xf32>
    %772 = vector.extract_strided_slice %752 {offsets = [0, 32], sizes = [2, 16], strides = [1, 1]} : vector<2x48xf32> to vector<2x16xf32>
    %773 = vector.extract_strided_slice %755 {offsets = [0, 32], sizes = [2, 16], strides = [1, 1]} : vector<2x48xf32> to vector<2x16xf32>
    %774 = arith.mulf %763, %773 : vector<2x16xf32>
    %775 = arith.addf %772, %774 : vector<2x16xf32>
    %776 = math.tanh %775 : vector<2x16xf32>
    %cst_228 = arith.constant 1.000000e+00 : f32
    %777 = vector.broadcast %cst_228 : f32 to vector<2x16xf32>
    %778 = arith.subf %777, %771 : vector<2x16xf32>
    %779 = arith.mulf %778, %776 : vector<2x16xf32>
    %780 = arith.mulf %771, %719 : vector<2x16xf32>
    %781 = arith.addf %779, %780 : vector<2x16xf32>
    %782 = vector.extract_strided_slice %329 {offsets = [0, 7, 0], sizes = [2, 1, 48], strides = [1, 1, 1]} : vector<2x8x48xf32> to vector<2x1x48xf32>
    %783 = vector.shape_cast %782 : vector<2x1x48xf32> to vector<2x48xf32>
    %cst_229 = arith.constant dense<0.000000e+00> : vector<2x48xf32>
    %784 = tpu.matmul %750, %339, %cst_229 {dimension_numbers = #tpu.dot_dimension_numbers<[1], [0], [0], [1], [0, 0, 1, 1], [], []>} : vector<2x16xf32>, vector<16x48xf32>, vector<2x48xf32> -> vector<2x48xf32>
    %785 = vector.broadcast %341 : vector<1x48xf32> to vector<2x48xf32>
    %786 = arith.addf %784, %785 : vector<2x48xf32>
    %787 = vector.extract_strided_slice %783 {offsets = [0, 0], sizes = [2, 16], strides = [1, 1]} : vector<2x48xf32> to vector<2x16xf32>
    %788 = vector.extract_strided_slice %786 {offsets = [0, 0], sizes = [2, 16], strides = [1, 1]} : vector<2x48xf32> to vector<2x16xf32>
    %789 = arith.addf %787, %788 : vector<2x16xf32>
    %790 = arith.negf %789 : vector<2x16xf32>
    %791 = math.exp %790 : vector<2x16xf32>
    %cst_230 = arith.constant 1.000000e+00 : f32
    %792 = vector.broadcast %cst_230 : f32 to vector<2x16xf32>
    %793 = arith.addf %792, %791 : vector<2x16xf32>
    %794 = arith.divf %792, %793 : vector<2x16xf32>
    %795 = vector.extract_strided_slice %783 {offsets = [0, 16], sizes = [2, 16], strides = [1, 1]} : vector<2x48xf32> to vector<2x16xf32>
    %796 = vector.extract_strided_slice %786 {offsets = [0, 16], sizes = [2, 16], strides = [1, 1]} : vector<2x48xf32> to vector<2x16xf32>
    %797 = arith.addf %795, %796 : vector<2x16xf32>
    %798 = arith.negf %797 : vector<2x16xf32>
    %799 = math.exp %798 : vector<2x16xf32>
    %cst_231 = arith.constant 1.000000e+00 : f32
    %800 = vector.broadcast %cst_231 : f32 to vector<2x16xf32>
    %801 = arith.addf %800, %799 : vector<2x16xf32>
    %802 = arith.divf %800, %801 : vector<2x16xf32>
    %803 = vector.extract_strided_slice %783 {offsets = [0, 32], sizes = [2, 16], strides = [1, 1]} : vector<2x48xf32> to vector<2x16xf32>
    %804 = vector.extract_strided_slice %786 {offsets = [0, 32], sizes = [2, 16], strides = [1, 1]} : vector<2x48xf32> to vector<2x16xf32>
    %805 = arith.mulf %794, %804 : vector<2x16xf32>
    %806 = arith.addf %803, %805 : vector<2x16xf32>
    %807 = math.tanh %806 : vector<2x16xf32>
    %cst_232 = arith.constant 1.000000e+00 : f32
    %808 = vector.broadcast %cst_232 : f32 to vector<2x16xf32>
    %809 = arith.subf %808, %802 : vector<2x16xf32>
    %810 = arith.mulf %809, %807 : vector<2x16xf32>
    %811 = arith.mulf %802, %750 : vector<2x16xf32>
    %812 = arith.addf %810, %811 : vector<2x16xf32>
    %813 = vector.extract_strided_slice %337 {offsets = [0, 0, 0], sizes = [2, 1, 48], strides = [1, 1, 1]} : vector<2x8x48xf32> to vector<2x1x48xf32>
    %814 = vector.shape_cast %813 : vector<2x1x48xf32> to vector<2x48xf32>
    %cst_233 = arith.constant dense<0.000000e+00> : vector<2x48xf32>
    %815 = tpu.matmul %781, %343, %cst_233 {dimension_numbers = #tpu.dot_dimension_numbers<[1], [0], [0], [1], [0, 0, 1, 1], [], []>} : vector<2x16xf32>, vector<16x48xf32>, vector<2x48xf32> -> vector<2x48xf32>
    %816 = vector.broadcast %345 : vector<1x48xf32> to vector<2x48xf32>
    %817 = arith.addf %815, %816 : vector<2x48xf32>
    %818 = vector.extract_strided_slice %814 {offsets = [0, 0], sizes = [2, 16], strides = [1, 1]} : vector<2x48xf32> to vector<2x16xf32>
    %819 = vector.extract_strided_slice %817 {offsets = [0, 0], sizes = [2, 16], strides = [1, 1]} : vector<2x48xf32> to vector<2x16xf32>
    %820 = arith.addf %818, %819 : vector<2x16xf32>
    %821 = arith.negf %820 : vector<2x16xf32>
    %822 = math.exp %821 : vector<2x16xf32>
    %cst_234 = arith.constant 1.000000e+00 : f32
    %823 = vector.broadcast %cst_234 : f32 to vector<2x16xf32>
    %824 = arith.addf %823, %822 : vector<2x16xf32>
    %825 = arith.divf %823, %824 : vector<2x16xf32>
    %826 = vector.extract_strided_slice %814 {offsets = [0, 16], sizes = [2, 16], strides = [1, 1]} : vector<2x48xf32> to vector<2x16xf32>
    %827 = vector.extract_strided_slice %817 {offsets = [0, 16], sizes = [2, 16], strides = [1, 1]} : vector<2x48xf32> to vector<2x16xf32>
    %828 = arith.addf %826, %827 : vector<2x16xf32>
    %829 = arith.negf %828 : vector<2x16xf32>
    %830 = math.exp %829 : vector<2x16xf32>
    %cst_235 = arith.constant 1.000000e+00 : f32
    %831 = vector.broadcast %cst_235 : f32 to vector<2x16xf32>
    %832 = arith.addf %831, %830 : vector<2x16xf32>
    %833 = arith.divf %831, %832 : vector<2x16xf32>
    %834 = vector.extract_strided_slice %814 {offsets = [0, 32], sizes = [2, 16], strides = [1, 1]} : vector<2x48xf32> to vector<2x16xf32>
    %835 = vector.extract_strided_slice %817 {offsets = [0, 32], sizes = [2, 16], strides = [1, 1]} : vector<2x48xf32> to vector<2x16xf32>
    %836 = arith.mulf %825, %835 : vector<2x16xf32>
    %837 = arith.addf %834, %836 : vector<2x16xf32>
    %838 = math.tanh %837 : vector<2x16xf32>
    %cst_236 = arith.constant 1.000000e+00 : f32
    %839 = vector.broadcast %cst_236 : f32 to vector<2x16xf32>
    %840 = arith.subf %839, %833 : vector<2x16xf32>
    %841 = arith.mulf %840, %838 : vector<2x16xf32>
    %842 = arith.mulf %833, %781 : vector<2x16xf32>
    %843 = arith.addf %841, %842 : vector<2x16xf32>
    %844 = tpu.concatenate %378, %440, %502, %564, %626, %688, %750, %812 in 0 : vector<2x16xf32>, vector<2x16xf32>, vector<2x16xf32>, vector<2x16xf32>, vector<2x16xf32>, vector<2x16xf32>, vector<2x16xf32>, vector<2x16xf32> -> vector<16x16xf32>
    %845 = tpu.concatenate %843, %781, %719, %657, %595, %533, %471, %409 in 0 : vector<2x16xf32>, vector<2x16xf32>, vector<2x16xf32>, vector<2x16xf32>, vector<2x16xf32>, vector<2x16xf32>, vector<2x16xf32>, vector<2x16xf32> -> vector<16x16xf32>
    %846 = tpu.concatenate %844, %845 in 1 : vector<16x16xf32>, vector<16x16xf32> -> vector<16x32xf32>
    %c0_237 = arith.constant 0 : index
    %c0_238 = arith.constant 0 : index
    %c0_239 = arith.constant 0 : index
    %847 = vector.load %arg23[%c0_237, %c0_238, %c0_239] : memref<2x32x48xf32, #tpu.memory_space<vmem>>, vector<1x32x48xf32>
    %848 = vector.shape_cast %847 : vector<1x32x48xf32> to vector<32x48xf32>
    %cst_240 = arith.constant dense<0.000000e+00> : vector<16x48xf32>
    %849 = tpu.matmul %846, %848, %cst_240 {dimension_numbers = #tpu.dot_dimension_numbers<[1], [0], [0], [1], [0, 0, 1, 1], [], []>} : vector<16x32xf32>, vector<32x48xf32>, vector<16x48xf32> -> vector<16x48xf32>
    %c0_241 = arith.constant 0 : index
    %c0_242 = arith.constant 0 : index
    %c0_243 = arith.constant 0 : index
    %850 = vector.load %arg24[%c0_241, %c0_242, %c0_243] : memref<2x1x48xf32, #tpu.memory_space<vmem>>, vector<1x1x48xf32>
    %851 = vector.shape_cast %850 : vector<1x1x48xf32> to vector<1x48xf32>
    %852 = vector.broadcast %851 : vector<1x48xf32> to vector<16x48xf32>
    %853 = arith.addf %849, %852 : vector<16x48xf32>
    %c1_244 = arith.constant 1 : index
    %c0_245 = arith.constant 0 : index
    %c0_246 = arith.constant 0 : index
    %854 = vector.load %arg23[%c1_244, %c0_245, %c0_246] : memref<2x32x48xf32, #tpu.memory_space<vmem>>, vector<1x32x48xf32>
    %855 = vector.shape_cast %854 : vector<1x32x48xf32> to vector<32x48xf32>
    %cst_247 = arith.constant dense<0.000000e+00> : vector<16x48xf32>
    %856 = tpu.matmul %846, %855, %cst_247 {dimension_numbers = #tpu.dot_dimension_numbers<[1], [0], [0], [1], [0, 0, 1, 1], [], []>} : vector<16x32xf32>, vector<32x48xf32>, vector<16x48xf32> -> vector<16x48xf32>
    %c1_248 = arith.constant 1 : index
    %c0_249 = arith.constant 0 : index
    %c0_250 = arith.constant 0 : index
    %857 = vector.load %arg24[%c1_248, %c0_249, %c0_250] : memref<2x1x48xf32, #tpu.memory_space<vmem>>, vector<1x1x48xf32>
    %858 = vector.shape_cast %857 : vector<1x1x48xf32> to vector<1x48xf32>
    %859 = vector.broadcast %858 : vector<1x48xf32> to vector<16x48xf32>
    %860 = arith.addf %856, %859 : vector<16x48xf32>
    %c0_251 = arith.constant 0 : index
    %c0_252 = arith.constant 0 : index
    %c0_253 = arith.constant 0 : index
    %861 = vector.load %arg25[%c0_251, %c0_252, %c0_253] : memref<2x16x48xf32, #tpu.memory_space<vmem>>, vector<1x16x48xf32>
    %862 = vector.shape_cast %861 : vector<1x16x48xf32> to vector<16x48xf32>
    %c0_254 = arith.constant 0 : index
    %c0_255 = arith.constant 0 : index
    %c0_256 = arith.constant 0 : index
    %863 = vector.load %arg26[%c0_254, %c0_255, %c0_256] : memref<2x1x48xf32, #tpu.memory_space<vmem>>, vector<1x1x48xf32>
    %864 = vector.shape_cast %863 : vector<1x1x48xf32> to vector<1x48xf32>
    %c1_257 = arith.constant 1 : index
    %c0_258 = arith.constant 0 : index
    %c0_259 = arith.constant 0 : index
    %865 = vector.load %arg25[%c1_257, %c0_258, %c0_259] : memref<2x16x48xf32, #tpu.memory_space<vmem>>, vector<1x16x48xf32>
    %866 = vector.shape_cast %865 : vector<1x16x48xf32> to vector<16x48xf32>
    %c1_260 = arith.constant 1 : index
    %c0_261 = arith.constant 0 : index
    %c0_262 = arith.constant 0 : index
    %867 = vector.load %arg26[%c1_260, %c0_261, %c0_262] : memref<2x1x48xf32, #tpu.memory_space<vmem>>, vector<1x1x48xf32>
    %868 = vector.shape_cast %867 : vector<1x1x48xf32> to vector<1x48xf32>
    %cst_263 = arith.constant 0.000000e+00 : f32
    %869 = vector.broadcast %cst_263 : f32 to vector<2x16xf32>
    %cst_264 = arith.constant 0.000000e+00 : f32
    %870 = vector.broadcast %cst_264 : f32 to vector<2x16xf32>
    %871 = vector.extract_strided_slice %853 {offsets = [0, 0], sizes = [2, 48], strides = [1, 1]} : vector<16x48xf32> to vector<2x48xf32>
    %cst_265 = arith.constant dense<0.000000e+00> : vector<2x48xf32>
    %872 = tpu.matmul %869, %862, %cst_265 {dimension_numbers = #tpu.dot_dimension_numbers<[1], [0], [0], [1], [0, 0, 1, 1], [], []>} : vector<2x16xf32>, vector<16x48xf32>, vector<2x48xf32> -> vector<2x48xf32>
    %873 = vector.broadcast %864 : vector<1x48xf32> to vector<2x48xf32>
    %874 = arith.addf %872, %873 : vector<2x48xf32>
    %875 = vector.extract_strided_slice %871 {offsets = [0, 0], sizes = [2, 16], strides = [1, 1]} : vector<2x48xf32> to vector<2x16xf32>
    %876 = vector.extract_strided_slice %874 {offsets = [0, 0], sizes = [2, 16], strides = [1, 1]} : vector<2x48xf32> to vector<2x16xf32>
    %877 = arith.addf %875, %876 : vector<2x16xf32>
    %878 = arith.negf %877 : vector<2x16xf32>
    %879 = math.exp %878 : vector<2x16xf32>
    %cst_266 = arith.constant 1.000000e+00 : f32
    %880 = vector.broadcast %cst_266 : f32 to vector<2x16xf32>
    %881 = arith.addf %880, %879 : vector<2x16xf32>
    %882 = arith.divf %880, %881 : vector<2x16xf32>
    %883 = vector.extract_strided_slice %871 {offsets = [0, 16], sizes = [2, 16], strides = [1, 1]} : vector<2x48xf32> to vector<2x16xf32>
    %884 = vector.extract_strided_slice %874 {offsets = [0, 16], sizes = [2, 16], strides = [1, 1]} : vector<2x48xf32> to vector<2x16xf32>
    %885 = arith.addf %883, %884 : vector<2x16xf32>
    %886 = arith.negf %885 : vector<2x16xf32>
    %887 = math.exp %886 : vector<2x16xf32>
    %cst_267 = arith.constant 1.000000e+00 : f32
    %888 = vector.broadcast %cst_267 : f32 to vector<2x16xf32>
    %889 = arith.addf %888, %887 : vector<2x16xf32>
    %890 = arith.divf %888, %889 : vector<2x16xf32>
    %891 = vector.extract_strided_slice %871 {offsets = [0, 32], sizes = [2, 16], strides = [1, 1]} : vector<2x48xf32> to vector<2x16xf32>
    %892 = vector.extract_strided_slice %874 {offsets = [0, 32], sizes = [2, 16], strides = [1, 1]} : vector<2x48xf32> to vector<2x16xf32>
    %893 = arith.mulf %882, %892 : vector<2x16xf32>
    %894 = arith.addf %891, %893 : vector<2x16xf32>
    %895 = math.tanh %894 : vector<2x16xf32>
    %cst_268 = arith.constant 1.000000e+00 : f32
    %896 = vector.broadcast %cst_268 : f32 to vector<2x16xf32>
    %897 = arith.subf %896, %890 : vector<2x16xf32>
    %898 = arith.mulf %897, %895 : vector<2x16xf32>
    %899 = arith.mulf %890, %869 : vector<2x16xf32>
    %900 = arith.addf %898, %899 : vector<2x16xf32>
    %901 = vector.extract_strided_slice %860 {offsets = [14, 0], sizes = [2, 48], strides = [1, 1]} : vector<16x48xf32> to vector<2x48xf32>
    %cst_269 = arith.constant dense<0.000000e+00> : vector<2x48xf32>
    %902 = tpu.matmul %870, %866, %cst_269 {dimension_numbers = #tpu.dot_dimension_numbers<[1], [0], [0], [1], [0, 0, 1, 1], [], []>} : vector<2x16xf32>, vector<16x48xf32>, vector<2x48xf32> -> vector<2x48xf32>
    %903 = vector.broadcast %868 : vector<1x48xf32> to vector<2x48xf32>
    %904 = arith.addf %902, %903 : vector<2x48xf32>
    %905 = vector.extract_strided_slice %901 {offsets = [0, 0], sizes = [2, 16], strides = [1, 1]} : vector<2x48xf32> to vector<2x16xf32>
    %906 = vector.extract_strided_slice %904 {offsets = [0, 0], sizes = [2, 16], strides = [1, 1]} : vector<2x48xf32> to vector<2x16xf32>
    %907 = arith.addf %905, %906 : vector<2x16xf32>
    %908 = arith.negf %907 : vector<2x16xf32>
    %909 = math.exp %908 : vector<2x16xf32>
    %cst_270 = arith.constant 1.000000e+00 : f32
    %910 = vector.broadcast %cst_270 : f32 to vector<2x16xf32>
    %911 = arith.addf %910, %909 : vector<2x16xf32>
    %912 = arith.divf %910, %911 : vector<2x16xf32>
    %913 = vector.extract_strided_slice %901 {offsets = [0, 16], sizes = [2, 16], strides = [1, 1]} : vector<2x48xf32> to vector<2x16xf32>
    %914 = vector.extract_strided_slice %904 {offsets = [0, 16], sizes = [2, 16], strides = [1, 1]} : vector<2x48xf32> to vector<2x16xf32>
    %915 = arith.addf %913, %914 : vector<2x16xf32>
    %916 = arith.negf %915 : vector<2x16xf32>
    %917 = math.exp %916 : vector<2x16xf32>
    %cst_271 = arith.constant 1.000000e+00 : f32
    %918 = vector.broadcast %cst_271 : f32 to vector<2x16xf32>
    %919 = arith.addf %918, %917 : vector<2x16xf32>
    %920 = arith.divf %918, %919 : vector<2x16xf32>
    %921 = vector.extract_strided_slice %901 {offsets = [0, 32], sizes = [2, 16], strides = [1, 1]} : vector<2x48xf32> to vector<2x16xf32>
    %922 = vector.extract_strided_slice %904 {offsets = [0, 32], sizes = [2, 16], strides = [1, 1]} : vector<2x48xf32> to vector<2x16xf32>
    %923 = arith.mulf %912, %922 : vector<2x16xf32>
    %924 = arith.addf %921, %923 : vector<2x16xf32>
    %925 = math.tanh %924 : vector<2x16xf32>
    %cst_272 = arith.constant 1.000000e+00 : f32
    %926 = vector.broadcast %cst_272 : f32 to vector<2x16xf32>
    %927 = arith.subf %926, %920 : vector<2x16xf32>
    %928 = arith.mulf %927, %925 : vector<2x16xf32>
    %929 = arith.mulf %920, %870 : vector<2x16xf32>
    %930 = arith.addf %928, %929 : vector<2x16xf32>
    %931 = vector.extract_strided_slice %853 {offsets = [2, 0], sizes = [2, 48], strides = [1, 1]} : vector<16x48xf32> to vector<2x48xf32>
    %cst_273 = arith.constant dense<0.000000e+00> : vector<2x48xf32>
    %932 = tpu.matmul %900, %862, %cst_273 {dimension_numbers = #tpu.dot_dimension_numbers<[1], [0], [0], [1], [0, 0, 1, 1], [], []>} : vector<2x16xf32>, vector<16x48xf32>, vector<2x48xf32> -> vector<2x48xf32>
    %933 = vector.broadcast %864 : vector<1x48xf32> to vector<2x48xf32>
    %934 = arith.addf %932, %933 : vector<2x48xf32>
    %935 = vector.extract_strided_slice %931 {offsets = [0, 0], sizes = [2, 16], strides = [1, 1]} : vector<2x48xf32> to vector<2x16xf32>
    %936 = vector.extract_strided_slice %934 {offsets = [0, 0], sizes = [2, 16], strides = [1, 1]} : vector<2x48xf32> to vector<2x16xf32>
    %937 = arith.addf %935, %936 : vector<2x16xf32>
    %938 = arith.negf %937 : vector<2x16xf32>
    %939 = math.exp %938 : vector<2x16xf32>
    %cst_274 = arith.constant 1.000000e+00 : f32
    %940 = vector.broadcast %cst_274 : f32 to vector<2x16xf32>
    %941 = arith.addf %940, %939 : vector<2x16xf32>
    %942 = arith.divf %940, %941 : vector<2x16xf32>
    %943 = vector.extract_strided_slice %931 {offsets = [0, 16], sizes = [2, 16], strides = [1, 1]} : vector<2x48xf32> to vector<2x16xf32>
    %944 = vector.extract_strided_slice %934 {offsets = [0, 16], sizes = [2, 16], strides = [1, 1]} : vector<2x48xf32> to vector<2x16xf32>
    %945 = arith.addf %943, %944 : vector<2x16xf32>
    %946 = arith.negf %945 : vector<2x16xf32>
    %947 = math.exp %946 : vector<2x16xf32>
    %cst_275 = arith.constant 1.000000e+00 : f32
    %948 = vector.broadcast %cst_275 : f32 to vector<2x16xf32>
    %949 = arith.addf %948, %947 : vector<2x16xf32>
    %950 = arith.divf %948, %949 : vector<2x16xf32>
    %951 = vector.extract_strided_slice %931 {offsets = [0, 32], sizes = [2, 16], strides = [1, 1]} : vector<2x48xf32> to vector<2x16xf32>
    %952 = vector.extract_strided_slice %934 {offsets = [0, 32], sizes = [2, 16], strides = [1, 1]} : vector<2x48xf32> to vector<2x16xf32>
    %953 = arith.mulf %942, %952 : vector<2x16xf32>
    %954 = arith.addf %951, %953 : vector<2x16xf32>
    %955 = math.tanh %954 : vector<2x16xf32>
    %cst_276 = arith.constant 1.000000e+00 : f32
    %956 = vector.broadcast %cst_276 : f32 to vector<2x16xf32>
    %957 = arith.subf %956, %950 : vector<2x16xf32>
    %958 = arith.mulf %957, %955 : vector<2x16xf32>
    %959 = arith.mulf %950, %900 : vector<2x16xf32>
    %960 = arith.addf %958, %959 : vector<2x16xf32>
    %961 = vector.extract_strided_slice %860 {offsets = [12, 0], sizes = [2, 48], strides = [1, 1]} : vector<16x48xf32> to vector<2x48xf32>
    %cst_277 = arith.constant dense<0.000000e+00> : vector<2x48xf32>
    %962 = tpu.matmul %930, %866, %cst_277 {dimension_numbers = #tpu.dot_dimension_numbers<[1], [0], [0], [1], [0, 0, 1, 1], [], []>} : vector<2x16xf32>, vector<16x48xf32>, vector<2x48xf32> -> vector<2x48xf32>
    %963 = vector.broadcast %868 : vector<1x48xf32> to vector<2x48xf32>
    %964 = arith.addf %962, %963 : vector<2x48xf32>
    %965 = vector.extract_strided_slice %961 {offsets = [0, 0], sizes = [2, 16], strides = [1, 1]} : vector<2x48xf32> to vector<2x16xf32>
    %966 = vector.extract_strided_slice %964 {offsets = [0, 0], sizes = [2, 16], strides = [1, 1]} : vector<2x48xf32> to vector<2x16xf32>
    %967 = arith.addf %965, %966 : vector<2x16xf32>
    %968 = arith.negf %967 : vector<2x16xf32>
    %969 = math.exp %968 : vector<2x16xf32>
    %cst_278 = arith.constant 1.000000e+00 : f32
    %970 = vector.broadcast %cst_278 : f32 to vector<2x16xf32>
    %971 = arith.addf %970, %969 : vector<2x16xf32>
    %972 = arith.divf %970, %971 : vector<2x16xf32>
    %973 = vector.extract_strided_slice %961 {offsets = [0, 16], sizes = [2, 16], strides = [1, 1]} : vector<2x48xf32> to vector<2x16xf32>
    %974 = vector.extract_strided_slice %964 {offsets = [0, 16], sizes = [2, 16], strides = [1, 1]} : vector<2x48xf32> to vector<2x16xf32>
    %975 = arith.addf %973, %974 : vector<2x16xf32>
    %976 = arith.negf %975 : vector<2x16xf32>
    %977 = math.exp %976 : vector<2x16xf32>
    %cst_279 = arith.constant 1.000000e+00 : f32
    %978 = vector.broadcast %cst_279 : f32 to vector<2x16xf32>
    %979 = arith.addf %978, %977 : vector<2x16xf32>
    %980 = arith.divf %978, %979 : vector<2x16xf32>
    %981 = vector.extract_strided_slice %961 {offsets = [0, 32], sizes = [2, 16], strides = [1, 1]} : vector<2x48xf32> to vector<2x16xf32>
    %982 = vector.extract_strided_slice %964 {offsets = [0, 32], sizes = [2, 16], strides = [1, 1]} : vector<2x48xf32> to vector<2x16xf32>
    %983 = arith.mulf %972, %982 : vector<2x16xf32>
    %984 = arith.addf %981, %983 : vector<2x16xf32>
    %985 = math.tanh %984 : vector<2x16xf32>
    %cst_280 = arith.constant 1.000000e+00 : f32
    %986 = vector.broadcast %cst_280 : f32 to vector<2x16xf32>
    %987 = arith.subf %986, %980 : vector<2x16xf32>
    %988 = arith.mulf %987, %985 : vector<2x16xf32>
    %989 = arith.mulf %980, %930 : vector<2x16xf32>
    %990 = arith.addf %988, %989 : vector<2x16xf32>
    %991 = vector.extract_strided_slice %853 {offsets = [4, 0], sizes = [2, 48], strides = [1, 1]} : vector<16x48xf32> to vector<2x48xf32>
    %cst_281 = arith.constant dense<0.000000e+00> : vector<2x48xf32>
    %992 = tpu.matmul %960, %862, %cst_281 {dimension_numbers = #tpu.dot_dimension_numbers<[1], [0], [0], [1], [0, 0, 1, 1], [], []>} : vector<2x16xf32>, vector<16x48xf32>, vector<2x48xf32> -> vector<2x48xf32>
    %993 = vector.broadcast %864 : vector<1x48xf32> to vector<2x48xf32>
    %994 = arith.addf %992, %993 : vector<2x48xf32>
    %995 = vector.extract_strided_slice %991 {offsets = [0, 0], sizes = [2, 16], strides = [1, 1]} : vector<2x48xf32> to vector<2x16xf32>
    %996 = vector.extract_strided_slice %994 {offsets = [0, 0], sizes = [2, 16], strides = [1, 1]} : vector<2x48xf32> to vector<2x16xf32>
    %997 = arith.addf %995, %996 : vector<2x16xf32>
    %998 = arith.negf %997 : vector<2x16xf32>
    %999 = math.exp %998 : vector<2x16xf32>
    %cst_282 = arith.constant 1.000000e+00 : f32
    %1000 = vector.broadcast %cst_282 : f32 to vector<2x16xf32>
    %1001 = arith.addf %1000, %999 : vector<2x16xf32>
    %1002 = arith.divf %1000, %1001 : vector<2x16xf32>
    %1003 = vector.extract_strided_slice %991 {offsets = [0, 16], sizes = [2, 16], strides = [1, 1]} : vector<2x48xf32> to vector<2x16xf32>
    %1004 = vector.extract_strided_slice %994 {offsets = [0, 16], sizes = [2, 16], strides = [1, 1]} : vector<2x48xf32> to vector<2x16xf32>
    %1005 = arith.addf %1003, %1004 : vector<2x16xf32>
    %1006 = arith.negf %1005 : vector<2x16xf32>
    %1007 = math.exp %1006 : vector<2x16xf32>
    %cst_283 = arith.constant 1.000000e+00 : f32
    %1008 = vector.broadcast %cst_283 : f32 to vector<2x16xf32>
    %1009 = arith.addf %1008, %1007 : vector<2x16xf32>
    %1010 = arith.divf %1008, %1009 : vector<2x16xf32>
    %1011 = vector.extract_strided_slice %991 {offsets = [0, 32], sizes = [2, 16], strides = [1, 1]} : vector<2x48xf32> to vector<2x16xf32>
    %1012 = vector.extract_strided_slice %994 {offsets = [0, 32], sizes = [2, 16], strides = [1, 1]} : vector<2x48xf32> to vector<2x16xf32>
    %1013 = arith.mulf %1002, %1012 : vector<2x16xf32>
    %1014 = arith.addf %1011, %1013 : vector<2x16xf32>
    %1015 = math.tanh %1014 : vector<2x16xf32>
    %cst_284 = arith.constant 1.000000e+00 : f32
    %1016 = vector.broadcast %cst_284 : f32 to vector<2x16xf32>
    %1017 = arith.subf %1016, %1010 : vector<2x16xf32>
    %1018 = arith.mulf %1017, %1015 : vector<2x16xf32>
    %1019 = arith.mulf %1010, %960 : vector<2x16xf32>
    %1020 = arith.addf %1018, %1019 : vector<2x16xf32>
    %1021 = vector.extract_strided_slice %860 {offsets = [10, 0], sizes = [2, 48], strides = [1, 1]} : vector<16x48xf32> to vector<2x48xf32>
    %cst_285 = arith.constant dense<0.000000e+00> : vector<2x48xf32>
    %1022 = tpu.matmul %990, %866, %cst_285 {dimension_numbers = #tpu.dot_dimension_numbers<[1], [0], [0], [1], [0, 0, 1, 1], [], []>} : vector<2x16xf32>, vector<16x48xf32>, vector<2x48xf32> -> vector<2x48xf32>
    %1023 = vector.broadcast %868 : vector<1x48xf32> to vector<2x48xf32>
    %1024 = arith.addf %1022, %1023 : vector<2x48xf32>
    %1025 = vector.extract_strided_slice %1021 {offsets = [0, 0], sizes = [2, 16], strides = [1, 1]} : vector<2x48xf32> to vector<2x16xf32>
    %1026 = vector.extract_strided_slice %1024 {offsets = [0, 0], sizes = [2, 16], strides = [1, 1]} : vector<2x48xf32> to vector<2x16xf32>
    %1027 = arith.addf %1025, %1026 : vector<2x16xf32>
    %1028 = arith.negf %1027 : vector<2x16xf32>
    %1029 = math.exp %1028 : vector<2x16xf32>
    %cst_286 = arith.constant 1.000000e+00 : f32
    %1030 = vector.broadcast %cst_286 : f32 to vector<2x16xf32>
    %1031 = arith.addf %1030, %1029 : vector<2x16xf32>
    %1032 = arith.divf %1030, %1031 : vector<2x16xf32>
    %1033 = vector.extract_strided_slice %1021 {offsets = [0, 16], sizes = [2, 16], strides = [1, 1]} : vector<2x48xf32> to vector<2x16xf32>
    %1034 = vector.extract_strided_slice %1024 {offsets = [0, 16], sizes = [2, 16], strides = [1, 1]} : vector<2x48xf32> to vector<2x16xf32>
    %1035 = arith.addf %1033, %1034 : vector<2x16xf32>
    %1036 = arith.negf %1035 : vector<2x16xf32>
    %1037 = math.exp %1036 : vector<2x16xf32>
    %cst_287 = arith.constant 1.000000e+00 : f32
    %1038 = vector.broadcast %cst_287 : f32 to vector<2x16xf32>
    %1039 = arith.addf %1038, %1037 : vector<2x16xf32>
    %1040 = arith.divf %1038, %1039 : vector<2x16xf32>
    %1041 = vector.extract_strided_slice %1021 {offsets = [0, 32], sizes = [2, 16], strides = [1, 1]} : vector<2x48xf32> to vector<2x16xf32>
    %1042 = vector.extract_strided_slice %1024 {offsets = [0, 32], sizes = [2, 16], strides = [1, 1]} : vector<2x48xf32> to vector<2x16xf32>
    %1043 = arith.mulf %1032, %1042 : vector<2x16xf32>
    %1044 = arith.addf %1041, %1043 : vector<2x16xf32>
    %1045 = math.tanh %1044 : vector<2x16xf32>
    %cst_288 = arith.constant 1.000000e+00 : f32
    %1046 = vector.broadcast %cst_288 : f32 to vector<2x16xf32>
    %1047 = arith.subf %1046, %1040 : vector<2x16xf32>
    %1048 = arith.mulf %1047, %1045 : vector<2x16xf32>
    %1049 = arith.mulf %1040, %990 : vector<2x16xf32>
    %1050 = arith.addf %1048, %1049 : vector<2x16xf32>
    %1051 = vector.extract_strided_slice %853 {offsets = [6, 0], sizes = [2, 48], strides = [1, 1]} : vector<16x48xf32> to vector<2x48xf32>
    %cst_289 = arith.constant dense<0.000000e+00> : vector<2x48xf32>
    %1052 = tpu.matmul %1020, %862, %cst_289 {dimension_numbers = #tpu.dot_dimension_numbers<[1], [0], [0], [1], [0, 0, 1, 1], [], []>} : vector<2x16xf32>, vector<16x48xf32>, vector<2x48xf32> -> vector<2x48xf32>
    %1053 = vector.broadcast %864 : vector<1x48xf32> to vector<2x48xf32>
    %1054 = arith.addf %1052, %1053 : vector<2x48xf32>
    %1055 = vector.extract_strided_slice %1051 {offsets = [0, 0], sizes = [2, 16], strides = [1, 1]} : vector<2x48xf32> to vector<2x16xf32>
    %1056 = vector.extract_strided_slice %1054 {offsets = [0, 0], sizes = [2, 16], strides = [1, 1]} : vector<2x48xf32> to vector<2x16xf32>
    %1057 = arith.addf %1055, %1056 : vector<2x16xf32>
    %1058 = arith.negf %1057 : vector<2x16xf32>
    %1059 = math.exp %1058 : vector<2x16xf32>
    %cst_290 = arith.constant 1.000000e+00 : f32
    %1060 = vector.broadcast %cst_290 : f32 to vector<2x16xf32>
    %1061 = arith.addf %1060, %1059 : vector<2x16xf32>
    %1062 = arith.divf %1060, %1061 : vector<2x16xf32>
    %1063 = vector.extract_strided_slice %1051 {offsets = [0, 16], sizes = [2, 16], strides = [1, 1]} : vector<2x48xf32> to vector<2x16xf32>
    %1064 = vector.extract_strided_slice %1054 {offsets = [0, 16], sizes = [2, 16], strides = [1, 1]} : vector<2x48xf32> to vector<2x16xf32>
    %1065 = arith.addf %1063, %1064 : vector<2x16xf32>
    %1066 = arith.negf %1065 : vector<2x16xf32>
    %1067 = math.exp %1066 : vector<2x16xf32>
    %cst_291 = arith.constant 1.000000e+00 : f32
    %1068 = vector.broadcast %cst_291 : f32 to vector<2x16xf32>
    %1069 = arith.addf %1068, %1067 : vector<2x16xf32>
    %1070 = arith.divf %1068, %1069 : vector<2x16xf32>
    %1071 = vector.extract_strided_slice %1051 {offsets = [0, 32], sizes = [2, 16], strides = [1, 1]} : vector<2x48xf32> to vector<2x16xf32>
    %1072 = vector.extract_strided_slice %1054 {offsets = [0, 32], sizes = [2, 16], strides = [1, 1]} : vector<2x48xf32> to vector<2x16xf32>
    %1073 = arith.mulf %1062, %1072 : vector<2x16xf32>
    %1074 = arith.addf %1071, %1073 : vector<2x16xf32>
    %1075 = math.tanh %1074 : vector<2x16xf32>
    %cst_292 = arith.constant 1.000000e+00 : f32
    %1076 = vector.broadcast %cst_292 : f32 to vector<2x16xf32>
    %1077 = arith.subf %1076, %1070 : vector<2x16xf32>
    %1078 = arith.mulf %1077, %1075 : vector<2x16xf32>
    %1079 = arith.mulf %1070, %1020 : vector<2x16xf32>
    %1080 = arith.addf %1078, %1079 : vector<2x16xf32>
    %1081 = vector.extract_strided_slice %860 {offsets = [8, 0], sizes = [2, 48], strides = [1, 1]} : vector<16x48xf32> to vector<2x48xf32>
    %cst_293 = arith.constant dense<0.000000e+00> : vector<2x48xf32>
    %1082 = tpu.matmul %1050, %866, %cst_293 {dimension_numbers = #tpu.dot_dimension_numbers<[1], [0], [0], [1], [0, 0, 1, 1], [], []>} : vector<2x16xf32>, vector<16x48xf32>, vector<2x48xf32> -> vector<2x48xf32>
    %1083 = vector.broadcast %868 : vector<1x48xf32> to vector<2x48xf32>
    %1084 = arith.addf %1082, %1083 : vector<2x48xf32>
    %1085 = vector.extract_strided_slice %1081 {offsets = [0, 0], sizes = [2, 16], strides = [1, 1]} : vector<2x48xf32> to vector<2x16xf32>
    %1086 = vector.extract_strided_slice %1084 {offsets = [0, 0], sizes = [2, 16], strides = [1, 1]} : vector<2x48xf32> to vector<2x16xf32>
    %1087 = arith.addf %1085, %1086 : vector<2x16xf32>
    %1088 = arith.negf %1087 : vector<2x16xf32>
    %1089 = math.exp %1088 : vector<2x16xf32>
    %cst_294 = arith.constant 1.000000e+00 : f32
    %1090 = vector.broadcast %cst_294 : f32 to vector<2x16xf32>
    %1091 = arith.addf %1090, %1089 : vector<2x16xf32>
    %1092 = arith.divf %1090, %1091 : vector<2x16xf32>
    %1093 = vector.extract_strided_slice %1081 {offsets = [0, 16], sizes = [2, 16], strides = [1, 1]} : vector<2x48xf32> to vector<2x16xf32>
    %1094 = vector.extract_strided_slice %1084 {offsets = [0, 16], sizes = [2, 16], strides = [1, 1]} : vector<2x48xf32> to vector<2x16xf32>
    %1095 = arith.addf %1093, %1094 : vector<2x16xf32>
    %1096 = arith.negf %1095 : vector<2x16xf32>
    %1097 = math.exp %1096 : vector<2x16xf32>
    %cst_295 = arith.constant 1.000000e+00 : f32
    %1098 = vector.broadcast %cst_295 : f32 to vector<2x16xf32>
    %1099 = arith.addf %1098, %1097 : vector<2x16xf32>
    %1100 = arith.divf %1098, %1099 : vector<2x16xf32>
    %1101 = vector.extract_strided_slice %1081 {offsets = [0, 32], sizes = [2, 16], strides = [1, 1]} : vector<2x48xf32> to vector<2x16xf32>
    %1102 = vector.extract_strided_slice %1084 {offsets = [0, 32], sizes = [2, 16], strides = [1, 1]} : vector<2x48xf32> to vector<2x16xf32>
    %1103 = arith.mulf %1092, %1102 : vector<2x16xf32>
    %1104 = arith.addf %1101, %1103 : vector<2x16xf32>
    %1105 = math.tanh %1104 : vector<2x16xf32>
    %cst_296 = arith.constant 1.000000e+00 : f32
    %1106 = vector.broadcast %cst_296 : f32 to vector<2x16xf32>
    %1107 = arith.subf %1106, %1100 : vector<2x16xf32>
    %1108 = arith.mulf %1107, %1105 : vector<2x16xf32>
    %1109 = arith.mulf %1100, %1050 : vector<2x16xf32>
    %1110 = arith.addf %1108, %1109 : vector<2x16xf32>
    %1111 = vector.extract_strided_slice %853 {offsets = [8, 0], sizes = [2, 48], strides = [1, 1]} : vector<16x48xf32> to vector<2x48xf32>
    %cst_297 = arith.constant dense<0.000000e+00> : vector<2x48xf32>
    %1112 = tpu.matmul %1080, %862, %cst_297 {dimension_numbers = #tpu.dot_dimension_numbers<[1], [0], [0], [1], [0, 0, 1, 1], [], []>} : vector<2x16xf32>, vector<16x48xf32>, vector<2x48xf32> -> vector<2x48xf32>
    %1113 = vector.broadcast %864 : vector<1x48xf32> to vector<2x48xf32>
    %1114 = arith.addf %1112, %1113 : vector<2x48xf32>
    %1115 = vector.extract_strided_slice %1111 {offsets = [0, 0], sizes = [2, 16], strides = [1, 1]} : vector<2x48xf32> to vector<2x16xf32>
    %1116 = vector.extract_strided_slice %1114 {offsets = [0, 0], sizes = [2, 16], strides = [1, 1]} : vector<2x48xf32> to vector<2x16xf32>
    %1117 = arith.addf %1115, %1116 : vector<2x16xf32>
    %1118 = arith.negf %1117 : vector<2x16xf32>
    %1119 = math.exp %1118 : vector<2x16xf32>
    %cst_298 = arith.constant 1.000000e+00 : f32
    %1120 = vector.broadcast %cst_298 : f32 to vector<2x16xf32>
    %1121 = arith.addf %1120, %1119 : vector<2x16xf32>
    %1122 = arith.divf %1120, %1121 : vector<2x16xf32>
    %1123 = vector.extract_strided_slice %1111 {offsets = [0, 16], sizes = [2, 16], strides = [1, 1]} : vector<2x48xf32> to vector<2x16xf32>
    %1124 = vector.extract_strided_slice %1114 {offsets = [0, 16], sizes = [2, 16], strides = [1, 1]} : vector<2x48xf32> to vector<2x16xf32>
    %1125 = arith.addf %1123, %1124 : vector<2x16xf32>
    %1126 = arith.negf %1125 : vector<2x16xf32>
    %1127 = math.exp %1126 : vector<2x16xf32>
    %cst_299 = arith.constant 1.000000e+00 : f32
    %1128 = vector.broadcast %cst_299 : f32 to vector<2x16xf32>
    %1129 = arith.addf %1128, %1127 : vector<2x16xf32>
    %1130 = arith.divf %1128, %1129 : vector<2x16xf32>
    %1131 = vector.extract_strided_slice %1111 {offsets = [0, 32], sizes = [2, 16], strides = [1, 1]} : vector<2x48xf32> to vector<2x16xf32>
    %1132 = vector.extract_strided_slice %1114 {offsets = [0, 32], sizes = [2, 16], strides = [1, 1]} : vector<2x48xf32> to vector<2x16xf32>
    %1133 = arith.mulf %1122, %1132 : vector<2x16xf32>
    %1134 = arith.addf %1131, %1133 : vector<2x16xf32>
    %1135 = math.tanh %1134 : vector<2x16xf32>
    %cst_300 = arith.constant 1.000000e+00 : f32
    %1136 = vector.broadcast %cst_300 : f32 to vector<2x16xf32>
    %1137 = arith.subf %1136, %1130 : vector<2x16xf32>
    %1138 = arith.mulf %1137, %1135 : vector<2x16xf32>
    %1139 = arith.mulf %1130, %1080 : vector<2x16xf32>
    %1140 = arith.addf %1138, %1139 : vector<2x16xf32>
    %1141 = vector.extract_strided_slice %860 {offsets = [6, 0], sizes = [2, 48], strides = [1, 1]} : vector<16x48xf32> to vector<2x48xf32>
    %cst_301 = arith.constant dense<0.000000e+00> : vector<2x48xf32>
    %1142 = tpu.matmul %1110, %866, %cst_301 {dimension_numbers = #tpu.dot_dimension_numbers<[1], [0], [0], [1], [0, 0, 1, 1], [], []>} : vector<2x16xf32>, vector<16x48xf32>, vector<2x48xf32> -> vector<2x48xf32>
    %1143 = vector.broadcast %868 : vector<1x48xf32> to vector<2x48xf32>
    %1144 = arith.addf %1142, %1143 : vector<2x48xf32>
    %1145 = vector.extract_strided_slice %1141 {offsets = [0, 0], sizes = [2, 16], strides = [1, 1]} : vector<2x48xf32> to vector<2x16xf32>
    %1146 = vector.extract_strided_slice %1144 {offsets = [0, 0], sizes = [2, 16], strides = [1, 1]} : vector<2x48xf32> to vector<2x16xf32>
    %1147 = arith.addf %1145, %1146 : vector<2x16xf32>
    %1148 = arith.negf %1147 : vector<2x16xf32>
    %1149 = math.exp %1148 : vector<2x16xf32>
    %cst_302 = arith.constant 1.000000e+00 : f32
    %1150 = vector.broadcast %cst_302 : f32 to vector<2x16xf32>
    %1151 = arith.addf %1150, %1149 : vector<2x16xf32>
    %1152 = arith.divf %1150, %1151 : vector<2x16xf32>
    %1153 = vector.extract_strided_slice %1141 {offsets = [0, 16], sizes = [2, 16], strides = [1, 1]} : vector<2x48xf32> to vector<2x16xf32>
    %1154 = vector.extract_strided_slice %1144 {offsets = [0, 16], sizes = [2, 16], strides = [1, 1]} : vector<2x48xf32> to vector<2x16xf32>
    %1155 = arith.addf %1153, %1154 : vector<2x16xf32>
    %1156 = arith.negf %1155 : vector<2x16xf32>
    %1157 = math.exp %1156 : vector<2x16xf32>
    %cst_303 = arith.constant 1.000000e+00 : f32
    %1158 = vector.broadcast %cst_303 : f32 to vector<2x16xf32>
    %1159 = arith.addf %1158, %1157 : vector<2x16xf32>
    %1160 = arith.divf %1158, %1159 : vector<2x16xf32>
    %1161 = vector.extract_strided_slice %1141 {offsets = [0, 32], sizes = [2, 16], strides = [1, 1]} : vector<2x48xf32> to vector<2x16xf32>
    %1162 = vector.extract_strided_slice %1144 {offsets = [0, 32], sizes = [2, 16], strides = [1, 1]} : vector<2x48xf32> to vector<2x16xf32>
    %1163 = arith.mulf %1152, %1162 : vector<2x16xf32>
    %1164 = arith.addf %1161, %1163 : vector<2x16xf32>
    %1165 = math.tanh %1164 : vector<2x16xf32>
    %cst_304 = arith.constant 1.000000e+00 : f32
    %1166 = vector.broadcast %cst_304 : f32 to vector<2x16xf32>
    %1167 = arith.subf %1166, %1160 : vector<2x16xf32>
    %1168 = arith.mulf %1167, %1165 : vector<2x16xf32>
    %1169 = arith.mulf %1160, %1110 : vector<2x16xf32>
    %1170 = arith.addf %1168, %1169 : vector<2x16xf32>
    %1171 = vector.extract_strided_slice %853 {offsets = [10, 0], sizes = [2, 48], strides = [1, 1]} : vector<16x48xf32> to vector<2x48xf32>
    %cst_305 = arith.constant dense<0.000000e+00> : vector<2x48xf32>
    %1172 = tpu.matmul %1140, %862, %cst_305 {dimension_numbers = #tpu.dot_dimension_numbers<[1], [0], [0], [1], [0, 0, 1, 1], [], []>} : vector<2x16xf32>, vector<16x48xf32>, vector<2x48xf32> -> vector<2x48xf32>
    %1173 = vector.broadcast %864 : vector<1x48xf32> to vector<2x48xf32>
    %1174 = arith.addf %1172, %1173 : vector<2x48xf32>
    %1175 = vector.extract_strided_slice %1171 {offsets = [0, 0], sizes = [2, 16], strides = [1, 1]} : vector<2x48xf32> to vector<2x16xf32>
    %1176 = vector.extract_strided_slice %1174 {offsets = [0, 0], sizes = [2, 16], strides = [1, 1]} : vector<2x48xf32> to vector<2x16xf32>
    %1177 = arith.addf %1175, %1176 : vector<2x16xf32>
    %1178 = arith.negf %1177 : vector<2x16xf32>
    %1179 = math.exp %1178 : vector<2x16xf32>
    %cst_306 = arith.constant 1.000000e+00 : f32
    %1180 = vector.broadcast %cst_306 : f32 to vector<2x16xf32>
    %1181 = arith.addf %1180, %1179 : vector<2x16xf32>
    %1182 = arith.divf %1180, %1181 : vector<2x16xf32>
    %1183 = vector.extract_strided_slice %1171 {offsets = [0, 16], sizes = [2, 16], strides = [1, 1]} : vector<2x48xf32> to vector<2x16xf32>
    %1184 = vector.extract_strided_slice %1174 {offsets = [0, 16], sizes = [2, 16], strides = [1, 1]} : vector<2x48xf32> to vector<2x16xf32>
    %1185 = arith.addf %1183, %1184 : vector<2x16xf32>
    %1186 = arith.negf %1185 : vector<2x16xf32>
    %1187 = math.exp %1186 : vector<2x16xf32>
    %cst_307 = arith.constant 1.000000e+00 : f32
    %1188 = vector.broadcast %cst_307 : f32 to vector<2x16xf32>
    %1189 = arith.addf %1188, %1187 : vector<2x16xf32>
    %1190 = arith.divf %1188, %1189 : vector<2x16xf32>
    %1191 = vector.extract_strided_slice %1171 {offsets = [0, 32], sizes = [2, 16], strides = [1, 1]} : vector<2x48xf32> to vector<2x16xf32>
    %1192 = vector.extract_strided_slice %1174 {offsets = [0, 32], sizes = [2, 16], strides = [1, 1]} : vector<2x48xf32> to vector<2x16xf32>
    %1193 = arith.mulf %1182, %1192 : vector<2x16xf32>
    %1194 = arith.addf %1191, %1193 : vector<2x16xf32>
    %1195 = math.tanh %1194 : vector<2x16xf32>
    %cst_308 = arith.constant 1.000000e+00 : f32
    %1196 = vector.broadcast %cst_308 : f32 to vector<2x16xf32>
    %1197 = arith.subf %1196, %1190 : vector<2x16xf32>
    %1198 = arith.mulf %1197, %1195 : vector<2x16xf32>
    %1199 = arith.mulf %1190, %1140 : vector<2x16xf32>
    %1200 = arith.addf %1198, %1199 : vector<2x16xf32>
    %1201 = vector.extract_strided_slice %860 {offsets = [4, 0], sizes = [2, 48], strides = [1, 1]} : vector<16x48xf32> to vector<2x48xf32>
    %cst_309 = arith.constant dense<0.000000e+00> : vector<2x48xf32>
    %1202 = tpu.matmul %1170, %866, %cst_309 {dimension_numbers = #tpu.dot_dimension_numbers<[1], [0], [0], [1], [0, 0, 1, 1], [], []>} : vector<2x16xf32>, vector<16x48xf32>, vector<2x48xf32> -> vector<2x48xf32>
    %1203 = vector.broadcast %868 : vector<1x48xf32> to vector<2x48xf32>
    %1204 = arith.addf %1202, %1203 : vector<2x48xf32>
    %1205 = vector.extract_strided_slice %1201 {offsets = [0, 0], sizes = [2, 16], strides = [1, 1]} : vector<2x48xf32> to vector<2x16xf32>
    %1206 = vector.extract_strided_slice %1204 {offsets = [0, 0], sizes = [2, 16], strides = [1, 1]} : vector<2x48xf32> to vector<2x16xf32>
    %1207 = arith.addf %1205, %1206 : vector<2x16xf32>
    %1208 = arith.negf %1207 : vector<2x16xf32>
    %1209 = math.exp %1208 : vector<2x16xf32>
    %cst_310 = arith.constant 1.000000e+00 : f32
    %1210 = vector.broadcast %cst_310 : f32 to vector<2x16xf32>
    %1211 = arith.addf %1210, %1209 : vector<2x16xf32>
    %1212 = arith.divf %1210, %1211 : vector<2x16xf32>
    %1213 = vector.extract_strided_slice %1201 {offsets = [0, 16], sizes = [2, 16], strides = [1, 1]} : vector<2x48xf32> to vector<2x16xf32>
    %1214 = vector.extract_strided_slice %1204 {offsets = [0, 16], sizes = [2, 16], strides = [1, 1]} : vector<2x48xf32> to vector<2x16xf32>
    %1215 = arith.addf %1213, %1214 : vector<2x16xf32>
    %1216 = arith.negf %1215 : vector<2x16xf32>
    %1217 = math.exp %1216 : vector<2x16xf32>
    %cst_311 = arith.constant 1.000000e+00 : f32
    %1218 = vector.broadcast %cst_311 : f32 to vector<2x16xf32>
    %1219 = arith.addf %1218, %1217 : vector<2x16xf32>
    %1220 = arith.divf %1218, %1219 : vector<2x16xf32>
    %1221 = vector.extract_strided_slice %1201 {offsets = [0, 32], sizes = [2, 16], strides = [1, 1]} : vector<2x48xf32> to vector<2x16xf32>
    %1222 = vector.extract_strided_slice %1204 {offsets = [0, 32], sizes = [2, 16], strides = [1, 1]} : vector<2x48xf32> to vector<2x16xf32>
    %1223 = arith.mulf %1212, %1222 : vector<2x16xf32>
    %1224 = arith.addf %1221, %1223 : vector<2x16xf32>
    %1225 = math.tanh %1224 : vector<2x16xf32>
    %cst_312 = arith.constant 1.000000e+00 : f32
    %1226 = vector.broadcast %cst_312 : f32 to vector<2x16xf32>
    %1227 = arith.subf %1226, %1220 : vector<2x16xf32>
    %1228 = arith.mulf %1227, %1225 : vector<2x16xf32>
    %1229 = arith.mulf %1220, %1170 : vector<2x16xf32>
    %1230 = arith.addf %1228, %1229 : vector<2x16xf32>
    %1231 = vector.extract_strided_slice %853 {offsets = [12, 0], sizes = [2, 48], strides = [1, 1]} : vector<16x48xf32> to vector<2x48xf32>
    %cst_313 = arith.constant dense<0.000000e+00> : vector<2x48xf32>
    %1232 = tpu.matmul %1200, %862, %cst_313 {dimension_numbers = #tpu.dot_dimension_numbers<[1], [0], [0], [1], [0, 0, 1, 1], [], []>} : vector<2x16xf32>, vector<16x48xf32>, vector<2x48xf32> -> vector<2x48xf32>
    %1233 = vector.broadcast %864 : vector<1x48xf32> to vector<2x48xf32>
    %1234 = arith.addf %1232, %1233 : vector<2x48xf32>
    %1235 = vector.extract_strided_slice %1231 {offsets = [0, 0], sizes = [2, 16], strides = [1, 1]} : vector<2x48xf32> to vector<2x16xf32>
    %1236 = vector.extract_strided_slice %1234 {offsets = [0, 0], sizes = [2, 16], strides = [1, 1]} : vector<2x48xf32> to vector<2x16xf32>
    %1237 = arith.addf %1235, %1236 : vector<2x16xf32>
    %1238 = arith.negf %1237 : vector<2x16xf32>
    %1239 = math.exp %1238 : vector<2x16xf32>
    %cst_314 = arith.constant 1.000000e+00 : f32
    %1240 = vector.broadcast %cst_314 : f32 to vector<2x16xf32>
    %1241 = arith.addf %1240, %1239 : vector<2x16xf32>
    %1242 = arith.divf %1240, %1241 : vector<2x16xf32>
    %1243 = vector.extract_strided_slice %1231 {offsets = [0, 16], sizes = [2, 16], strides = [1, 1]} : vector<2x48xf32> to vector<2x16xf32>
    %1244 = vector.extract_strided_slice %1234 {offsets = [0, 16], sizes = [2, 16], strides = [1, 1]} : vector<2x48xf32> to vector<2x16xf32>
    %1245 = arith.addf %1243, %1244 : vector<2x16xf32>
    %1246 = arith.negf %1245 : vector<2x16xf32>
    %1247 = math.exp %1246 : vector<2x16xf32>
    %cst_315 = arith.constant 1.000000e+00 : f32
    %1248 = vector.broadcast %cst_315 : f32 to vector<2x16xf32>
    %1249 = arith.addf %1248, %1247 : vector<2x16xf32>
    %1250 = arith.divf %1248, %1249 : vector<2x16xf32>
    %1251 = vector.extract_strided_slice %1231 {offsets = [0, 32], sizes = [2, 16], strides = [1, 1]} : vector<2x48xf32> to vector<2x16xf32>
    %1252 = vector.extract_strided_slice %1234 {offsets = [0, 32], sizes = [2, 16], strides = [1, 1]} : vector<2x48xf32> to vector<2x16xf32>
    %1253 = arith.mulf %1242, %1252 : vector<2x16xf32>
    %1254 = arith.addf %1251, %1253 : vector<2x16xf32>
    %1255 = math.tanh %1254 : vector<2x16xf32>
    %cst_316 = arith.constant 1.000000e+00 : f32
    %1256 = vector.broadcast %cst_316 : f32 to vector<2x16xf32>
    %1257 = arith.subf %1256, %1250 : vector<2x16xf32>
    %1258 = arith.mulf %1257, %1255 : vector<2x16xf32>
    %1259 = arith.mulf %1250, %1200 : vector<2x16xf32>
    %1260 = arith.addf %1258, %1259 : vector<2x16xf32>
    %1261 = vector.extract_strided_slice %860 {offsets = [2, 0], sizes = [2, 48], strides = [1, 1]} : vector<16x48xf32> to vector<2x48xf32>
    %cst_317 = arith.constant dense<0.000000e+00> : vector<2x48xf32>
    %1262 = tpu.matmul %1230, %866, %cst_317 {dimension_numbers = #tpu.dot_dimension_numbers<[1], [0], [0], [1], [0, 0, 1, 1], [], []>} : vector<2x16xf32>, vector<16x48xf32>, vector<2x48xf32> -> vector<2x48xf32>
    %1263 = vector.broadcast %868 : vector<1x48xf32> to vector<2x48xf32>
    %1264 = arith.addf %1262, %1263 : vector<2x48xf32>
    %1265 = vector.extract_strided_slice %1261 {offsets = [0, 0], sizes = [2, 16], strides = [1, 1]} : vector<2x48xf32> to vector<2x16xf32>
    %1266 = vector.extract_strided_slice %1264 {offsets = [0, 0], sizes = [2, 16], strides = [1, 1]} : vector<2x48xf32> to vector<2x16xf32>
    %1267 = arith.addf %1265, %1266 : vector<2x16xf32>
    %1268 = arith.negf %1267 : vector<2x16xf32>
    %1269 = math.exp %1268 : vector<2x16xf32>
    %cst_318 = arith.constant 1.000000e+00 : f32
    %1270 = vector.broadcast %cst_318 : f32 to vector<2x16xf32>
    %1271 = arith.addf %1270, %1269 : vector<2x16xf32>
    %1272 = arith.divf %1270, %1271 : vector<2x16xf32>
    %1273 = vector.extract_strided_slice %1261 {offsets = [0, 16], sizes = [2, 16], strides = [1, 1]} : vector<2x48xf32> to vector<2x16xf32>
    %1274 = vector.extract_strided_slice %1264 {offsets = [0, 16], sizes = [2, 16], strides = [1, 1]} : vector<2x48xf32> to vector<2x16xf32>
    %1275 = arith.addf %1273, %1274 : vector<2x16xf32>
    %1276 = arith.negf %1275 : vector<2x16xf32>
    %1277 = math.exp %1276 : vector<2x16xf32>
    %cst_319 = arith.constant 1.000000e+00 : f32
    %1278 = vector.broadcast %cst_319 : f32 to vector<2x16xf32>
    %1279 = arith.addf %1278, %1277 : vector<2x16xf32>
    %1280 = arith.divf %1278, %1279 : vector<2x16xf32>
    %1281 = vector.extract_strided_slice %1261 {offsets = [0, 32], sizes = [2, 16], strides = [1, 1]} : vector<2x48xf32> to vector<2x16xf32>
    %1282 = vector.extract_strided_slice %1264 {offsets = [0, 32], sizes = [2, 16], strides = [1, 1]} : vector<2x48xf32> to vector<2x16xf32>
    %1283 = arith.mulf %1272, %1282 : vector<2x16xf32>
    %1284 = arith.addf %1281, %1283 : vector<2x16xf32>
    %1285 = math.tanh %1284 : vector<2x16xf32>
    %cst_320 = arith.constant 1.000000e+00 : f32
    %1286 = vector.broadcast %cst_320 : f32 to vector<2x16xf32>
    %1287 = arith.subf %1286, %1280 : vector<2x16xf32>
    %1288 = arith.mulf %1287, %1285 : vector<2x16xf32>
    %1289 = arith.mulf %1280, %1230 : vector<2x16xf32>
    %1290 = arith.addf %1288, %1289 : vector<2x16xf32>
    %1291 = vector.extract_strided_slice %853 {offsets = [14, 0], sizes = [2, 48], strides = [1, 1]} : vector<16x48xf32> to vector<2x48xf32>
    %cst_321 = arith.constant dense<0.000000e+00> : vector<2x48xf32>
    %1292 = tpu.matmul %1260, %862, %cst_321 {dimension_numbers = #tpu.dot_dimension_numbers<[1], [0], [0], [1], [0, 0, 1, 1], [], []>} : vector<2x16xf32>, vector<16x48xf32>, vector<2x48xf32> -> vector<2x48xf32>
    %1293 = vector.broadcast %864 : vector<1x48xf32> to vector<2x48xf32>
    %1294 = arith.addf %1292, %1293 : vector<2x48xf32>
    %1295 = vector.extract_strided_slice %1291 {offsets = [0, 0], sizes = [2, 16], strides = [1, 1]} : vector<2x48xf32> to vector<2x16xf32>
    %1296 = vector.extract_strided_slice %1294 {offsets = [0, 0], sizes = [2, 16], strides = [1, 1]} : vector<2x48xf32> to vector<2x16xf32>
    %1297 = arith.addf %1295, %1296 : vector<2x16xf32>
    %1298 = arith.negf %1297 : vector<2x16xf32>
    %1299 = math.exp %1298 : vector<2x16xf32>
    %cst_322 = arith.constant 1.000000e+00 : f32
    %1300 = vector.broadcast %cst_322 : f32 to vector<2x16xf32>
    %1301 = arith.addf %1300, %1299 : vector<2x16xf32>
    %1302 = arith.divf %1300, %1301 : vector<2x16xf32>
    %1303 = vector.extract_strided_slice %1291 {offsets = [0, 16], sizes = [2, 16], strides = [1, 1]} : vector<2x48xf32> to vector<2x16xf32>
    %1304 = vector.extract_strided_slice %1294 {offsets = [0, 16], sizes = [2, 16], strides = [1, 1]} : vector<2x48xf32> to vector<2x16xf32>
    %1305 = arith.addf %1303, %1304 : vector<2x16xf32>
    %1306 = arith.negf %1305 : vector<2x16xf32>
    %1307 = math.exp %1306 : vector<2x16xf32>
    %cst_323 = arith.constant 1.000000e+00 : f32
    %1308 = vector.broadcast %cst_323 : f32 to vector<2x16xf32>
    %1309 = arith.addf %1308, %1307 : vector<2x16xf32>
    %1310 = arith.divf %1308, %1309 : vector<2x16xf32>
    %1311 = vector.extract_strided_slice %1291 {offsets = [0, 32], sizes = [2, 16], strides = [1, 1]} : vector<2x48xf32> to vector<2x16xf32>
    %1312 = vector.extract_strided_slice %1294 {offsets = [0, 32], sizes = [2, 16], strides = [1, 1]} : vector<2x48xf32> to vector<2x16xf32>
    %1313 = arith.mulf %1302, %1312 : vector<2x16xf32>
    %1314 = arith.addf %1311, %1313 : vector<2x16xf32>
    %1315 = math.tanh %1314 : vector<2x16xf32>
    %cst_324 = arith.constant 1.000000e+00 : f32
    %1316 = vector.broadcast %cst_324 : f32 to vector<2x16xf32>
    %1317 = arith.subf %1316, %1310 : vector<2x16xf32>
    %1318 = arith.mulf %1317, %1315 : vector<2x16xf32>
    %1319 = arith.mulf %1310, %1260 : vector<2x16xf32>
    %1320 = arith.addf %1318, %1319 : vector<2x16xf32>
    %1321 = vector.extract_strided_slice %860 {offsets = [0, 0], sizes = [2, 48], strides = [1, 1]} : vector<16x48xf32> to vector<2x48xf32>
    %cst_325 = arith.constant dense<0.000000e+00> : vector<2x48xf32>
    %1322 = tpu.matmul %1290, %866, %cst_325 {dimension_numbers = #tpu.dot_dimension_numbers<[1], [0], [0], [1], [0, 0, 1, 1], [], []>} : vector<2x16xf32>, vector<16x48xf32>, vector<2x48xf32> -> vector<2x48xf32>
    %1323 = vector.broadcast %868 : vector<1x48xf32> to vector<2x48xf32>
    %1324 = arith.addf %1322, %1323 : vector<2x48xf32>
    %1325 = vector.extract_strided_slice %1321 {offsets = [0, 0], sizes = [2, 16], strides = [1, 1]} : vector<2x48xf32> to vector<2x16xf32>
    %1326 = vector.extract_strided_slice %1324 {offsets = [0, 0], sizes = [2, 16], strides = [1, 1]} : vector<2x48xf32> to vector<2x16xf32>
    %1327 = arith.addf %1325, %1326 : vector<2x16xf32>
    %1328 = arith.negf %1327 : vector<2x16xf32>
    %1329 = math.exp %1328 : vector<2x16xf32>
    %cst_326 = arith.constant 1.000000e+00 : f32
    %1330 = vector.broadcast %cst_326 : f32 to vector<2x16xf32>
    %1331 = arith.addf %1330, %1329 : vector<2x16xf32>
    %1332 = arith.divf %1330, %1331 : vector<2x16xf32>
    %1333 = vector.extract_strided_slice %1321 {offsets = [0, 16], sizes = [2, 16], strides = [1, 1]} : vector<2x48xf32> to vector<2x16xf32>
    %1334 = vector.extract_strided_slice %1324 {offsets = [0, 16], sizes = [2, 16], strides = [1, 1]} : vector<2x48xf32> to vector<2x16xf32>
    %1335 = arith.addf %1333, %1334 : vector<2x16xf32>
    %1336 = arith.negf %1335 : vector<2x16xf32>
    %1337 = math.exp %1336 : vector<2x16xf32>
    %cst_327 = arith.constant 1.000000e+00 : f32
    %1338 = vector.broadcast %cst_327 : f32 to vector<2x16xf32>
    %1339 = arith.addf %1338, %1337 : vector<2x16xf32>
    %1340 = arith.divf %1338, %1339 : vector<2x16xf32>
    %1341 = vector.extract_strided_slice %1321 {offsets = [0, 32], sizes = [2, 16], strides = [1, 1]} : vector<2x48xf32> to vector<2x16xf32>
    %1342 = vector.extract_strided_slice %1324 {offsets = [0, 32], sizes = [2, 16], strides = [1, 1]} : vector<2x48xf32> to vector<2x16xf32>
    %1343 = arith.mulf %1332, %1342 : vector<2x16xf32>
    %1344 = arith.addf %1341, %1343 : vector<2x16xf32>
    %1345 = math.tanh %1344 : vector<2x16xf32>
    %cst_328 = arith.constant 1.000000e+00 : f32
    %1346 = vector.broadcast %cst_328 : f32 to vector<2x16xf32>
    %1347 = arith.subf %1346, %1340 : vector<2x16xf32>
    %1348 = arith.mulf %1347, %1345 : vector<2x16xf32>
    %1349 = arith.mulf %1340, %1290 : vector<2x16xf32>
    %1350 = arith.addf %1348, %1349 : vector<2x16xf32>
    %1351 = tpu.concatenate %1320, %1350 in 1 : vector<2x16xf32>, vector<2x16xf32> -> vector<2x32xf32>
    %c0_329 = arith.constant 0 : index
    %c0_330 = arith.constant 0 : index
    %1352 = vector.load %arg27[%c0_329, %c0_330] : memref<32x3xf32, #tpu.memory_space<vmem>>, vector<32x3xf32>
    %cst_331 = arith.constant dense<0.000000e+00> : vector<2x3xf32>
    %1353 = tpu.matmul %1351, %1352, %cst_331 {dimension_numbers = #tpu.dot_dimension_numbers<[1], [0], [0], [1], [0, 0, 1, 1], [], []>} : vector<2x32xf32>, vector<32x3xf32>, vector<2x3xf32> -> vector<2x3xf32>
    %c0_332 = arith.constant 0 : index
    %c0_333 = arith.constant 0 : index
    %1354 = vector.load %arg28[%c0_332, %c0_333] : memref<1x3xf32, #tpu.memory_space<vmem>>, vector<1x3xf32>
    %1355 = vector.broadcast %1354 : vector<1x3xf32> to vector<2x3xf32>
    %1356 = arith.addf %1353, %1355 : vector<2x3xf32>
    %c0_334 = arith.constant 0 : index
    %c0_335 = arith.constant 0 : index
    %1357 = vector.load %arg29[%c0_334, %c0_335] : memref<2x3xf32, #tpu.memory_space<vmem>>, vector<2x3xf32>
    tpu.vector_store %arg29[%c0_334, %c0_335], %1356 {strides = array<i32>} : memref<2x3xf32, #tpu.memory_space<vmem>>, vector<2x3xf32>,
    return
  }
  func.func @transform_0(%arg0: i32) -> (i32, i32) {
    %c0_i32 = arith.constant 0 : i32
    %c0_i32_0 = arith.constant 0 : i32
    %c0_i32_1 = arith.constant 0 : i32
    return %c0_i32, %c0_i32_0 : i32, i32
  }
  func.func @transform_1(%arg0: i32) -> (i32, i32) {
    %c0_i32 = arith.constant 0 : i32
    %c0_i32_0 = arith.constant 0 : i32
    %c0_i32_1 = arith.constant 0 : i32
    return %c0_i32, %c0_i32_0 : i32, i32
  }
  func.func @transform_2(%arg0: i32) -> (i32, i32) {
    %c0_i32 = arith.constant 0 : i32
    %c0_i32_0 = arith.constant 0 : i32
    %c0_i32_1 = arith.constant 0 : i32
    return %c0_i32, %c0_i32_0 : i32, i32
  }
  func.func @transform_3(%arg0: i32) -> (i32, i32) {
    %c0_i32 = arith.constant 0 : i32
    %c0_i32_0 = arith.constant 0 : i32
    %c0_i32_1 = arith.constant 0 : i32
    return %c0_i32, %c0_i32_0 : i32, i32
  }
  func.func @transform_4(%arg0: i32) -> (i32, i32) {
    %c0_i32 = arith.constant 0 : i32
    %c0_i32_0 = arith.constant 0 : i32
    %c0_i32_1 = arith.constant 0 : i32
    return %c0_i32, %c0_i32_0 : i32, i32
  }
  func.func @transform_5(%arg0: i32) -> (i32, i32) {
    %c0_i32 = arith.constant 0 : i32
    %c0_i32_0 = arith.constant 0 : i32
    %c0_i32_1 = arith.constant 0 : i32
    return %c0_i32, %c0_i32_0 : i32, i32
  }
  func.func @transform_6(%arg0: i32) -> (i32, i32, i32) {
    %c0_i32 = arith.constant 0 : i32
    %c0_i32_0 = arith.constant 0 : i32
    %c0_i32_1 = arith.constant 0 : i32
    %c0_i32_2 = arith.constant 0 : i32
    return %c0_i32, %c0_i32_0, %c0_i32_1 : i32, i32, i32
  }
  func.func @transform_7(%arg0: i32) -> (i32, i32, i32) {
    %c0_i32 = arith.constant 0 : i32
    %c0_i32_0 = arith.constant 0 : i32
    %c0_i32_1 = arith.constant 0 : i32
    %c0_i32_2 = arith.constant 0 : i32
    return %c0_i32, %c0_i32_0, %c0_i32_1 : i32, i32, i32
  }
  func.func @transform_8(%arg0: i32) -> (i32, i32, i32) {
    %c0_i32 = arith.constant 0 : i32
    %c0_i32_0 = arith.constant 0 : i32
    %c0_i32_1 = arith.constant 0 : i32
    %c0_i32_2 = arith.constant 0 : i32
    return %c0_i32, %c0_i32_0, %c0_i32_1 : i32, i32, i32
  }
  func.func @transform_9(%arg0: i32) -> (i32, i32, i32) {
    %c0_i32 = arith.constant 0 : i32
    %c0_i32_0 = arith.constant 0 : i32
    %c0_i32_1 = arith.constant 0 : i32
    %c0_i32_2 = arith.constant 0 : i32
    return %c0_i32, %c0_i32_0, %c0_i32_1 : i32, i32, i32
  }
  func.func @transform_10(%arg0: i32) -> (i32, i32, i32) {
    %c0_i32 = arith.constant 0 : i32
    %c0_i32_0 = arith.constant 0 : i32
    %c0_i32_1 = arith.constant 0 : i32
    %c0_i32_2 = arith.constant 0 : i32
    return %c0_i32, %c0_i32_0, %c0_i32_1 : i32, i32, i32
  }
  func.func @transform_11(%arg0: i32) -> (i32, i32, i32) {
    %c0_i32 = arith.constant 0 : i32
    %c0_i32_0 = arith.constant 0 : i32
    %c0_i32_1 = arith.constant 0 : i32
    %c0_i32_2 = arith.constant 0 : i32
    return %c0_i32, %c0_i32_0, %c0_i32_1 : i32, i32, i32
  }
  func.func @transform_12(%arg0: i32) -> (i32, i32, i32) {
    %c0_i32 = arith.constant 0 : i32
    %c0_i32_0 = arith.constant 0 : i32
    %c0_i32_1 = arith.constant 0 : i32
    %c0_i32_2 = arith.constant 0 : i32
    return %c0_i32, %c0_i32_0, %c0_i32_1 : i32, i32, i32
  }
  func.func @transform_13(%arg0: i32) -> (i32, i32, i32) {
    %c0_i32 = arith.constant 0 : i32
    %c0_i32_0 = arith.constant 0 : i32
    %c0_i32_1 = arith.constant 0 : i32
    %c0_i32_2 = arith.constant 0 : i32
    return %c0_i32, %c0_i32_0, %c0_i32_1 : i32, i32, i32
  }
  func.func @transform_14(%arg0: i32) -> (i32, i32, i32) {
    %c0_i32 = arith.constant 0 : i32
    %c0_i32_0 = arith.constant 0 : i32
    %c0_i32_1 = arith.constant 0 : i32
    %c0_i32_2 = arith.constant 0 : i32
    return %c0_i32, %c0_i32_0, %c0_i32_1 : i32, i32, i32
  }
  func.func @transform_15(%arg0: i32) -> (i32, i32, i32) {
    %c0_i32 = arith.constant 0 : i32
    %c0_i32_0 = arith.constant 0 : i32
    %c0_i32_1 = arith.constant 0 : i32
    %c0_i32_2 = arith.constant 0 : i32
    return %c0_i32, %c0_i32_0, %c0_i32_1 : i32, i32, i32
  }
  func.func @transform_16(%arg0: i32) -> (i32, i32, i32) {
    %c0_i32 = arith.constant 0 : i32
    %c0_i32_0 = arith.constant 0 : i32
    %c0_i32_1 = arith.constant 0 : i32
    %c0_i32_2 = arith.constant 0 : i32
    return %c0_i32, %c0_i32_0, %c0_i32_1 : i32, i32, i32
  }
  func.func @transform_17(%arg0: i32) -> (i32, i32, i32) {
    %c0_i32 = arith.constant 0 : i32
    %c0_i32_0 = arith.constant 0 : i32
    %c0_i32_1 = arith.constant 0 : i32
    %c0_i32_2 = arith.constant 0 : i32
    return %c0_i32, %c0_i32_0, %c0_i32_1 : i32, i32, i32
  }
  func.func @transform_18(%arg0: i32) -> (i32, i32, i32) {
    %c0_i32 = arith.constant 0 : i32
    %c0_i32_0 = arith.constant 0 : i32
    %c0_i32_1 = arith.constant 0 : i32
    %c0_i32_2 = arith.constant 0 : i32
    return %c0_i32, %c0_i32_0, %c0_i32_1 : i32, i32, i32
  }
  func.func @transform_19(%arg0: i32) -> (i32, i32, i32) {
    %c0_i32 = arith.constant 0 : i32
    %c0_i32_0 = arith.constant 0 : i32
    %c0_i32_1 = arith.constant 0 : i32
    %c0_i32_2 = arith.constant 0 : i32
    return %c0_i32, %c0_i32_0, %c0_i32_1 : i32, i32, i32
  }
  func.func @transform_20(%arg0: i32) -> (i32, i32, i32) {
    %c0_i32 = arith.constant 0 : i32
    %c0_i32_0 = arith.constant 0 : i32
    %c0_i32_1 = arith.constant 0 : i32
    %c0_i32_2 = arith.constant 0 : i32
    return %c0_i32, %c0_i32_0, %c0_i32_1 : i32, i32, i32
  }
  func.func @transform_21(%arg0: i32) -> (i32, i32, i32) {
    %c0_i32 = arith.constant 0 : i32
    %c0_i32_0 = arith.constant 0 : i32
    %c0_i32_1 = arith.constant 0 : i32
    %c0_i32_2 = arith.constant 0 : i32
    return %c0_i32, %c0_i32_0, %c0_i32_1 : i32, i32, i32
  }
  func.func @transform_22(%arg0: i32) -> (i32, i32, i32) {
    %c0_i32 = arith.constant 0 : i32
    %c0_i32_0 = arith.constant 0 : i32
    %c0_i32_1 = arith.constant 0 : i32
    %c0_i32_2 = arith.constant 0 : i32
    return %c0_i32, %c0_i32_0, %c0_i32_1 : i32, i32, i32
  }
  func.func @transform_23(%arg0: i32) -> (i32, i32, i32) {
    %c0_i32 = arith.constant 0 : i32
    %c0_i32_0 = arith.constant 0 : i32
    %c0_i32_1 = arith.constant 0 : i32
    %c0_i32_2 = arith.constant 0 : i32
    return %c0_i32, %c0_i32_0, %c0_i32_1 : i32, i32, i32
  }
  func.func @transform_24(%arg0: i32) -> (i32, i32, i32) {
    %c0_i32 = arith.constant 0 : i32
    %c0_i32_0 = arith.constant 0 : i32
    %c0_i32_1 = arith.constant 0 : i32
    %c0_i32_2 = arith.constant 0 : i32
    return %c0_i32, %c0_i32_0, %c0_i32_1 : i32, i32, i32
  }
  func.func @transform_25(%arg0: i32) -> (i32, i32, i32) {
    %c0_i32 = arith.constant 0 : i32
    %c0_i32_0 = arith.constant 0 : i32
    %c0_i32_1 = arith.constant 0 : i32
    %c0_i32_2 = arith.constant 0 : i32
    return %c0_i32, %c0_i32_0, %c0_i32_1 : i32, i32, i32
  }
  func.func @transform_26(%arg0: i32) -> (i32, i32) {
    %c0_i32 = arith.constant 0 : i32
    %c0_i32_0 = arith.constant 0 : i32
    %c0_i32_1 = arith.constant 0 : i32
    return %c0_i32, %c0_i32_0 : i32, i32
  }
  func.func @transform_27(%arg0: i32) -> (i32, i32) {
    %c0_i32 = arith.constant 0 : i32
    %c0_i32_0 = arith.constant 0 : i32
    %c0_i32_1 = arith.constant 0 : i32
    return %c0_i32, %c0_i32_0 : i32, i32
  }
  func.func @transform_28(%arg0: i32) -> (i32, i32) {
    %c0_i32 = arith.constant 0 : i32
    %c0_i32_0 = arith.constant 0 : i32
    %c0_i32_1 = arith.constant 0 : i32
    return %c0_i32, %c0_i32_0 : i32, i32
  }
}

</mosaic_0001>

<llo_original>
// kernel: bert_classifier_forward.1
$region0: #{bert_classifier_forward.1}
  #allocation0 [shape = 'u32[]', space=smem, size = 0x4, offset = 0x4, fixed_abs, tag = 'smem constant byte address 0x4 - core index']
  #allocation1 [shape = 'u32[144,128]{1,0:T(1,128)}', space=vmem, size = 0x12000, scoped, tag = 'internal scratch']
  %s0 = inlined_call_operand.vmem [shape: s32[16,1], index: 0, kind: input, shape index: {}]
  %s1 = inlined_call_operand.vmem [shape: f32[2,8], index: 1, kind: input, shape index: {}]
  %s2 = inlined_call_operand.hbm [shape: f32[100,32], index: 2, kind: input, shape index: {}]
  %s3 = inlined_call_operand.hbm [shape: f32[16,32], index: 3, kind: input, shape index: {}]
  %s4 = inlined_call_operand.vmem [shape: f32[1,32], index: 4, kind: input, shape index: {}]
  %s5 = inlined_call_operand.vmem [shape: f32[1,32], index: 5, kind: input, shape index: {}]
  %s6 = inlined_call_operand.hbm [shape: f32[2,32,96], index: 6, kind: input, shape index: {}]
  %s7 = inlined_call_operand.vmem [shape: f32[2,1,96], index: 7, kind: input, shape index: {}]
  %s8 = inlined_call_operand.hbm [shape: f32[2,32,32], index: 8, kind: input, shape index: {}]
  %s9 = inlined_call_operand.vmem [shape: f32[2,1,32], index: 9, kind: input, shape index: {}, may-alias: {9,11,15,17}]
  %s10 = inlined_call_operand.vmem [shape: f32[2,1,32], index: 10, kind: input, shape index: {}, may-alias: {10,16}]
  %s11 = inlined_call_operand.vmem [shape: f32[2,1,32], index: 11, kind: input, shape index: {}, may-alias: {9,11,15,17}]
  %s12 = inlined_call_operand.hbm [shape: f32[2,32,64], index: 12, kind: input, shape index: {}]
  %s13 = inlined_call_operand.vmem [shape: f32[2,1,64], index: 13, kind: input, shape index: {}]
  %s14 = inlined_call_operand.hbm [shape: f32[2,64,32], index: 14, kind: input, shape index: {}]
  %s15 = inlined_call_operand.vmem [shape: f32[2,1,32], index: 15, kind: input, shape index: {}, may-alias: {9,11,15,17}]
  %s16 = inlined_call_operand.vmem [shape: f32[2,1,32], index: 16, kind: input, shape index: {}, may-alias: {10,16}]
  %s17 = inlined_call_operand.vmem [shape: f32[2,1,32], index: 17, kind: input, shape index: {}, may-alias: {9,11,15,17}]
  %s18 = inlined_call_operand.hbm [shape: f32[2,32,48], index: 18, kind: input, shape index: {}]
  %s19 = inlined_call_operand.vmem [shape: f32[2,1,48], index: 19, kind: input, shape index: {}, may-alias: {19,21,23,25}]
  %s20 = inlined_call_operand.hbm [shape: f32[2,16,48], index: 20, kind: input, shape index: {}]
  %s21 = inlined_call_operand.vmem [shape: f32[2,1,48], index: 21, kind: input, shape index: {}, may-alias: {19,21,23,25}]
  %s22 = inlined_call_operand.vmem [shape: f32[2,32,48], index: 22, kind: input, shape index: {}]
  %s23 = inlined_call_operand.vmem [shape: f32[2,1,48], index: 23, kind: input, shape index: {}, may-alias: {19,21,23,25}]
  %s24 = inlined_call_operand.hbm [shape: f32[2,16,48], index: 24, kind: input, shape index: {}]
  %s25 = inlined_call_operand.vmem [shape: f32[2,1,48], index: 25, kind: input, shape index: {}, may-alias: {19,21,23,25}]
  %s26 = inlined_call_operand.vmem [shape: f32[32,3], index: 26, kind: input, shape index: {}]
  %s27 = inlined_call_operand.vmem [shape: f32[1,3], index: 27, kind: input, shape index: {}]
  %s28 = inlined_call_operand.hbm [shape: f32[2,3], index: 28, kind: output, shape index: {}]
  %s29 = sld [smem:[#allocation0]]
  $region158: #{bert_classifier_forward.1} parent=0
    _
  %s31 = ssub.s32 1, %s29
  %s32 = scalar_select 0, %s31, %s29
  $region1: #{bert_classifier_forward.1} parent=0
    #allocation2 [shape = 'u8[53248]{0}', space=vmem, size = 0xd000, scoped, tag = 'input window, operand 2, single buffered']
    #allocation3 [shape = 's32[1]{0}', space=sflag, size = 0x4, scoped, tag = 'scoped memory for bert_classifier_forward.1']
    #allocation4 [shape = 's32[1]{0}', space=sflag, size = 0x4, scoped, tag = 'scoped memory for bert_classifier_forward.1']
    #allocation5 [shape = 'u8[8192]{0}', space=vmem, size = 0x2000, scoped, tag = 'input window, operand 3, single buffered']
    #allocation6 [shape = 's32[1]{0}', space=sflag, size = 0x4, scoped, tag = 'scoped memory for bert_classifier_forward.1']
    #allocation7 [shape = 'u8[32768]{0}', space=vmem, size = 0x8000, scoped, tag = 'input window, operand 6, single buffered']
    #allocation8 [shape = 'u8[32768]{0}', space=vmem, size = 0x8000, scoped, tag = 'input window, operand 8, single buffered']
    #allocation9 [shape = 's32[1]{0}', space=sflag, size = 0x4, scoped, tag = 'scoped memory for bert_classifier_forward.1']
    #allocation10 [shape = 'u8[32768]{0}', space=vmem, size = 0x8000, scoped, tag = 'input window, operand 12, single buffered']
    #allocation11 [shape = 'u8[65536]{0}', space=vmem, size = 0x10000, scoped, tag = 'input window, operand 14, single buffered']
    #allocation12 [shape = 's32[1]{0}', space=sflag, size = 0x4, scoped, tag = 'scoped memory for bert_classifier_forward.1']
    #allocation13 [shape = 'u8[32768]{0}', space=vmem, size = 0x8000, scoped, tag = 'input window, operand 18, single buffered']
    #allocation14 [shape = 'u8[16384]{0}', space=vmem, size = 0x4000, scoped, tag = 'input window, operand 20, single buffered']
    #allocation15 [shape = 's32[1]{0}', space=sflag, size = 0x4, scoped, tag = 'scoped memory for bert_classifier_forward.1']
    #allocation16 [shape = 'u8[16384]{0}', space=vmem, size = 0x4000, scoped, tag = 'input window, operand 24, single buffered']
    #allocation17 [shape = 'u8[1024]{0}', space=vmem, size = 0x400, scoped, tag = 'output window, operand 0, single buffered']
    %33 = vsyncpa [#allocation3], 0
    %34 = vsyncpa [#allocation6], 0
    %35 = vsyncpa [#allocation9], 0
    %36 = vsyncpa [#allocation12], 0
    %37 = vsyncpa [#allocation15], 0
    %38 = vsyncpa [#allocation4], 0
    // Predicated region
    $region2: #{bert_classifier_forward.1} parent=1 // pred_check
      _
    $region3: #{bert_classifier_forward.1} parent=1 // pred_check_branch
      %40 = sbr.rel (0) target = $region5
    $region4: #{bert_classifier_forward.1} parent=1 // pred_region
      _
    $region5: #{bert_classifier_forward.1} parent=1 // pred_fallthru
      _
    // Predicated region
    $region6: #{bert_classifier_forward.1} parent=1 // pred_check
      _
    $region7: #{bert_classifier_forward.1} parent=1 // pred_check_branch
      %42 = sbr.rel (0) target = $region9
    $region8: #{bert_classifier_forward.1} parent=1 // pred_region
      _
    $region9: #{bert_classifier_forward.1} parent=1 // pred_fallthru
      _
    // Predicated region
    $region10: #{bert_classifier_forward.1} parent=1 // pred_check
      _
    $region11: #{bert_classifier_forward.1} parent=1 // pred_check_branch
      %44 = sbr.rel (0) target = $region13
    $region12: #{bert_classifier_forward.1} parent=1 // pred_region
      %s46 = ssub.s32 1664, 1664
      %47 = vsyncadd [#allocation3], %s46
      %s48 = sshll.u32 [#allocation2], 4
      %s49 = int_to_ptr.vmem [resolvable:$true] %s48
      %54 = dma.hbm_to_vmem [thread:$0]  %s2, 1664, %s49, [#allocation3], 128, 128, 8
    $region13: #{bert_classifier_forward.1} parent=1 // pred_fallthru
      _
    // Predicated region
    $region14: #{bert_classifier_forward.1} parent=1 // pred_check
      _
    $region15: #{bert_classifier_forward.1} parent=1 // pred_check_branch
      %56 = sbr.rel (0) target = $region17
    $region16: #{bert_classifier_forward.1} parent=1 // pred_region
      %s58 = ssub.s32 256, 256
      %59 = vsyncadd [#allocation6], %s58
      %s60 = sshll.u32 [#allocation5], 4
      %s61 = int_to_ptr.vmem [resolvable:$true] %s60
      %66 = dma.hbm_to_vmem [thread:$0]  %s3, 256, %s61, [#allocation6], 128, 128, 8
    $region17: #{bert_classifier_forward.1} parent=1 // pred_fallthru
      _
    // Predicated region
    $region18: #{bert_classifier_forward.1} parent=1 // pred_check
      _
    $region19: #{bert_classifier_forward.1} parent=1 // pred_check_branch
      %68 = sbr.rel (0) target = $region21
    $region20: #{bert_classifier_forward.1} parent=1 // pred_region
      _
    $region21: #{bert_classifier_forward.1} parent=1 // pred_fallthru
      _
    // Predicated region
    $region22: #{bert_classifier_forward.1} parent=1 // pred_check
      _
    $region23: #{bert_classifier_forward.1} parent=1 // pred_check_branch
      %70 = sbr.rel (0) target = $region25
    $region24: #{bert_classifier_forward.1} parent=1 // pred_region
      _
    $region25: #{bert_classifier_forward.1} parent=1 // pred_fallthru
      _
    // Predicated region
    $region26: #{bert_classifier_forward.1} parent=1 // pred_check
      _
    $region27: #{bert_classifier_forward.1} parent=1 // pred_check_branch
      %72 = sbr.rel (0) target = $region29
    $region28: #{bert_classifier_forward.1} parent=1 // pred_region
      %s74 = ssub.s32 1024, 1024
      %75 = vsyncadd [#allocation6], %s74
      %s76 = sshll.u32 [#allocation7], 4
      %s77 = int_to_ptr.vmem [resolvable:$true] %s76
      %82 = dma.hbm_to_vmem [thread:$0]  %s6, 1024, %s77, [#allocation6], 128, 128, 8
    $region29: #{bert_classifier_forward.1} parent=1 // pred_fallthru
      _
    // Predicated region
    $region30: #{bert_classifier_forward.1} parent=1 // pred_check
      _
    $region31: #{bert_classifier_forward.1} parent=1 // pred_check_branch
      %84 = sbr.rel (0) target = $region33
    $region32: #{bert_classifier_forward.1} parent=1 // pred_region
      _
    $region33: #{bert_classifier_forward.1} parent=1 // pred_fallthru
      _
    // Predicated region
    $region34: #{bert_classifier_forward.1} parent=1 // pred_check
      _
    $region35: #{bert_classifier_forward.1} parent=1 // pred_check_branch
      %86 = sbr.rel (0) target = $region37
    $region36: #{bert_classifier_forward.1} parent=1 // pred_region
      %s88 = ssub.s32 1024, 1024
      %89 = vsyncadd [#allocation9], %s88
      %s90 = sshll.u32 [#allocation8], 4
      %s91 = int_to_ptr.vmem [resolvable:$true] %s90
      %96 = dma.hbm_to_vmem [thread:$0]  %s8, 1024, %s91, [#allocation9], 128, 128, 8
    $region37: #{bert_classifier_forward.1} parent=1 // pred_fallthru
      _
    // Predicated region
    $region38: #{bert_classifier_forward.1} parent=1 // pred_check
      _
    $region39: #{bert_classifier_forward.1} parent=1 // pred_check_branch
      %98 = sbr.rel (0) target = $region41
    $region40: #{bert_classifier_forward.1} parent=1 // pred_region
      _
    $region41: #{bert_classifier_forward.1} parent=1 // pred_fallthru
      _
    // Predicated region
    $region42: #{bert_classifier_forward.1} parent=1 // pred_check
      _
    $region43: #{bert_classifier_forward.1} parent=1 // pred_check_branch
      %100 = sbr.rel (0) target = $region45
    $region44: #{bert_classifier_forward.1} parent=1 // pred_region
      _
    $region45: #{bert_classifier_forward.1} parent=1 // pred_fallthru
      _
    // Predicated region
    $region46: #{bert_classifier_forward.1} parent=1 // pred_check
      _
    $region47: #{bert_classifier_forward.1} parent=1 // pred_check_branch
      %102 = sbr.rel (0) target = $region49
    $region48: #{bert_classifier_forward.1} parent=1 // pred_region
      _
    $region49: #{bert_classifier_forward.1} parent=1 // pred_fallthru
      _
    // Predicated region
    $region50: #{bert_classifier_forward.1} parent=1 // pred_check
      _
    $region51: #{bert_classifier_forward.1} parent=1 // pred_check_branch
      %104 = sbr.rel (0) target = $region53
    $region52: #{bert_classifier_forward.1} parent=1 // pred_region
      %s106 = ssub.s32 1024, 1024
      %107 = vsyncadd [#allocation9], %s106
      %s108 = sshll.u32 [#allocation10], 4
      %s109 = int_to_ptr.vmem [resolvable:$true] %s108
      %114 = dma.hbm_to_vmem [thread:$0]  %s12, 1024, %s109, [#allocation9], 128, 128, 8
    $region53: #{bert_classifier_forward.1} parent=1 // pred_fallthru
      _
    // Predicated region
    $region54: #{bert_classifier_forward.1} parent=1 // pred_check
      _
    $region55: #{bert_classifier_forward.1} parent=1 // pred_check_branch
      %116 = sbr.rel (0) target = $region57
    $region56: #{bert_classifier_forward.1} parent=1 // pred_region
      _
    $region57: #{bert_classifier_forward.1} parent=1 // pred_fallthru
      _
    // Predicated region
    $region58: #{bert_classifier_forward.1} parent=1 // pred_check
      _
    $region59: #{bert_classifier_forward.1} parent=1 // pred_check_branch
      %118 = sbr.rel (0) target = $region61
    $region60: #{bert_classifier_forward.1} parent=1 // pred_region
      %s120 = ssub.s32 2048, 2048
      %121 = vsyncadd [#allocation12], %s120
      %s122 = sshll.u32 [#allocation11], 4
      %s123 = int_to_ptr.vmem [resolvable:$true] %s122
      %128 = dma.hbm_to_vmem [thread:$0]  %s14, 2048, %s123, [#allocation12], 128, 128, 8
    $region61: #{bert_classifier_forward.1} parent=1 // pred_fallthru
      _
    // Predicated region
    $region62: #{bert_classifier_forward.1} parent=1 // pred_check
      _
    $region63: #{bert_classifier_forward.1} parent=1 // pred_check_branch
      %130 = sbr.rel (0) target = $region65
    $region64: #{bert_classifier_forward.1} parent=1 // pred_region
      _
    $region65: #{bert_classifier_forward.1} parent=1 // pred_fallthru
      _
    // Predicated region
    $region66: #{bert_classifier_forward.1} parent=1 // pred_check
      _
    $region67: #{bert_classifier_forward.1} parent=1 // pred_check_branch
      %132 = sbr.rel (0) target = $region69
    $region68: #{bert_classifier_forward.1} parent=1 // pred_region
      _
    $region69: #{bert_classifier_forward.1} parent=1 // pred_fallthru
      _
    // Predicated region
    $region70: #{bert_classifier_forward.1} parent=1 // pred_check
      _
    $region71: #{bert_classifier_forward.1} parent=1 // pred_check_branch
      %134 = sbr.rel (0) target = $region73
    $region72: #{bert_classifier_forward.1} parent=1 // pred_region
      _
    $region73: #{bert_classifier_forward.1} parent=1 // pred_fallthru
      _
    // Predicated region
    $region74: #{bert_classifier_forward.1} parent=1 // pred_check
      _
    $region75: #{bert_classifier_forward.1} parent=1 // pred_check_branch
      %136 = sbr.rel (0) target = $region77
    $region76: #{bert_classifier_forward.1} parent=1 // pred_region
      %s138 = ssub.s32 1024, 1024
      %139 = vsyncadd [#allocation12], %s138
      %s140 = sshll.u32 [#allocation13], 4
      %s141 = int_to_ptr.vmem [resolvable:$true] %s140
      %146 = dma.hbm_to_vmem [thread:$0]  %s18, 1024, %s141, [#allocation12], 128, 128, 8
    $region77: #{bert_classifier_forward.1} parent=1 // pred_fallthru
      _
    // Predicated region
    $region78: #{bert_classifier_forward.1} parent=1 // pred_check
      _
    $region79: #{bert_classifier_forward.1} parent=1 // pred_check_branch
      %148 = sbr.rel (0) target = $region81
    $region80: #{bert_classifier_forward.1} parent=1 // pred_region
      _
    $region81: #{bert_classifier_forward.1} parent=1 // pred_fallthru
      _
    // Predicated region
    $region82: #{bert_classifier_forward.1} parent=1 // pred_check
      _
    $region83: #{bert_classifier_forward.1} parent=1 // pred_check_branch
      %150 = sbr.rel (0) target = $region85
    $region84: #{bert_classifier_forward.1} parent=1 // pred_region
      %s152 = ssub.s32 512, 512
      %153 = vsyncadd [#allocation15], %s152
      %s154 = sshll.u32 [#allocation14], 4
      %s155 = int_to_ptr.vmem [resolvable:$true] %s154
      %160 = dma.hbm_to_vmem [thread:$0]  %s20, 512, %s155, [#allocation15], 128, 128, 8
    $region85: #{bert_classifier_forward.1} parent=1 // pred_fallthru
      _
    // Predicated region
    $region86: #{bert_classifier_forward.1} parent=1 // pred_check
      _
    $region87: #{bert_classifier_forward.1} parent=1 // pred_check_branch
      %162 = sbr.rel (0) target = $region89
    $region88: #{bert_classifier_forward.1} parent=1 // pred_region
      _
    $region89: #{bert_classifier_forward.1} parent=1 // pred_fallthru
      _
    // Predicated region
    $region90: #{bert_classifier_forward.1} parent=1 // pred_check
      _
    $region91: #{bert_classifier_forward.1} parent=1 // pred_check_branch
      %164 = sbr.rel (0) target = $region93
    $region92: #{bert_classifier_forward.1} parent=1 // pred_region
      _
    $region93: #{bert_classifier_forward.1} parent=1 // pred_fallthru
      _
    // Predicated region
    $region94: #{bert_classifier_forward.1} parent=1 // pred_check
      _
    $region95: #{bert_classifier_forward.1} parent=1 // pred_check_branch
      %166 = sbr.rel (0) target = $region97
    $region96: #{bert_classifier_forward.1} parent=1 // pred_region
      _
    $region97: #{bert_classifier_forward.1} parent=1 // pred_fallthru
      _
    // Predicated region
    $region98: #{bert_classifier_forward.1} parent=1 // pred_check
      _
    $region99: #{bert_classifier_forward.1} parent=1 // pred_check_branch
      %168 = sbr.rel (0) target = $region101
    $region100: #{bert_classifier_forward.1} parent=1 // pred_region
      %s170 = ssub.s32 512, 512
      %171 = vsyncadd [#allocation15], %s170
      %s172 = sshll.u32 [#allocation16], 4
      %s173 = int_to_ptr.vmem [resolvable:$true] %s172
      %178 = dma.hbm_to_vmem [thread:$0]  %s24, 512, %s173, [#allocation15], 128, 128, 8
    $region101: #{bert_classifier_forward.1} parent=1 // pred_fallthru
      _
    // Predicated region
    $region102: #{bert_classifier_forward.1} parent=1 // pred_check
      _
    $region103: #{bert_classifier_forward.1} parent=1 // pred_check_branch
      %180 = sbr.rel (0) target = $region105
    $region104: #{bert_classifier_forward.1} parent=1 // pred_region
      _
    $region105: #{bert_classifier_forward.1} parent=1 // pred_fallthru
      _
    // Predicated region
    $region106: #{bert_classifier_forward.1} parent=1 // pred_check
      _
    $region107: #{bert_classifier_forward.1} parent=1 // pred_check_branch
      %182 = sbr.rel (0) target = $region109
    $region108: #{bert_classifier_forward.1} parent=1 // pred_region
      _
    $region109: #{bert_classifier_forward.1} parent=1 // pred_fallthru
      _
    // Predicated region
    $region110: #{bert_classifier_forward.1} parent=1 // pred_check
      _
    $region111: #{bert_classifier_forward.1} parent=1 // pred_check_branch
      %184 = sbr.rel (0) target = $region113
    $region112: #{bert_classifier_forward.1} parent=1 // pred_region
      _
    $region113: #{bert_classifier_forward.1} parent=1 // pred_fallthru
      _
    // Predicated region
    $region114: #{bert_classifier_forward.1} parent=1 // pred_check
      _
    $region115: #{bert_classifier_forward.1} parent=1 // pred_check_branch
      %186 = sbr.rel (0) target = $region117
    $region116: #{bert_classifier_forward.1} parent=1 // pred_region
      %187 = dma.done [#allocation3], 1664
    $region117: #{bert_classifier_forward.1} parent=1 // pred_fallthru
      _
    // Predicated region
    $region118: #{bert_classifier_forward.1} parent=1 // pred_check
      _
    $region119: #{bert_classifier_forward.1} parent=1 // pred_check_branch
      %189 = sbr.rel (0) target = $region121
    $region120: #{bert_classifier_forward.1} parent=1 // pred_region
      %190 = dma.done [#allocation6], 256
    $region121: #{bert_classifier_forward.1} parent=1 // pred_fallthru
      _
    // Predicated region
    $region122: #{bert_classifier_forward.1} parent=1 // pred_check
      _
    $region123: #{bert_classifier_forward.1} parent=1 // pred_check_branch
      %192 = sbr.rel (0) target = $region125
    $region124: #{bert_classifier_forward.1} parent=1 // pred_region
      %193 = dma.done [#allocation6], 1024
    $region125: #{bert_classifier_forward.1} parent=1 // pred_fallthru
      _
    // Predicated region
    $region126: #{bert_classifier_forward.1} parent=1 // pred_check
      _
    $region127: #{bert_classifier_forward.1} parent=1 // pred_check_branch
      %195 = sbr.rel (0) target = $region129
    $region128: #{bert_classifier_forward.1} parent=1 // pred_region
      %196 = dma.done [#allocation9], 1024
    $region129: #{bert_classifier_forward.1} parent=1 // pred_fallthru
      _
    // Predicated region
    $region130: #{bert_classifier_forward.1} parent=1 // pred_check
      _
    $region131: #{bert_classifier_forward.1} parent=1 // pred_check_branch
      %198 = sbr.rel (0) target = $region133
    $region132: #{bert_classifier_forward.1} parent=1 // pred_region
      %199 = dma.done [#allocation9], 1024
    $region133: #{bert_classifier_forward.1} parent=1 // pred_fallthru
      _
    // Predicated region
    $region134: #{bert_classifier_forward.1} parent=1 // pred_check
      _
    $region135: #{bert_classifier_forward.1} parent=1 // pred_check_branch
      %201 = sbr.rel (0) target = $region137
    $region136: #{bert_classifier_forward.1} parent=1 // pred_region
      %202 = dma.done [#allocation12], 2048
    $region137: #{bert_classifier_forward.1} parent=1 // pred_fallthru
      _
    // Predicated region
    $region138: #{bert_classifier_forward.1} parent=1 // pred_check
      _
    $region139: #{bert_classifier_forward.1} parent=1 // pred_check_branch
      %204 = sbr.rel (0) target = $region141
    $region140: #{bert_classifier_forward.1} parent=1 // pred_region
      %205 = dma.done [#allocation12], 1024
    $region141: #{bert_classifier_forward.1} parent=1 // pred_fallthru
      _
    // Predicated region
    $region142: #{bert_classifier_forward.1} parent=1 // pred_check
      _
    $region143: #{bert_classifier_forward.1} parent=1 // pred_check_branch
      %207 = sbr.rel (0) target = $region145
    $region144: #{bert_classifier_forward.1} parent=1 // pred_region
      %208 = dma.done [#allocation15], 512
    $region145: #{bert_classifier_forward.1} parent=1 // pred_fallthru
      _
    // Predicated region
    $region146: #{bert_classifier_forward.1} parent=1 // pred_check
      _
    $region147: #{bert_classifier_forward.1} parent=1 // pred_check_branch
      %210 = sbr.rel (0) target = $region149
    $region148: #{bert_classifier_forward.1} parent=1 // pred_region
      %211 = dma.done [#allocation15], 512
    $region149: #{bert_classifier_forward.1} parent=1 // pred_fallthru
      _
    %v212 = vld [vmem:[%s0] sm:$0xff]
    %v213 = vld [vmem:[%s0 + $0x8] sm:$0xff]
    %v214 = vlaneseq
    %v215 = vand.u32 %v214, 127
    %216 = vset.pattern.permute.xlu0 0
    %217 = vperm.xlu0 %216, %v212
    %v218 = vpop.permute.xlu0 %217
    %219 = vset.pattern.permute.xlu0 0
    %220 = vperm.xlu0 %219, %v213
    %v221 = vpop.permute.xlu0 %220
    %vm222 = vcmp.eq.s32.totalorder %v215, %v218
    %vm223 = vcmp.eq.s32.totalorder %v215, %v221
    %v224 = vsel %vm222, 1, 0
    %v225 = vsel %vm223, 1, 0
    %v226 = vcvt.s32.f32 %v224
    %v227 = vcvt.s32.f32 %v225
    %v228 = vld [vmem:[#allocation2] sm:$0xff]
    %v229 = vld [vmem:[#allocation2 + $0x8] sm:$0xff]
    %v230 = vld [vmem:[#allocation2 + $0x10] sm:$0xff]
    %v231 = vld [vmem:[#allocation2 + $0x18] sm:$0xff]
    %v232 = vld [vmem:[#allocation2 + $0x20] sm:$0xff]
    %v233 = vld [vmem:[#allocation2 + $0x28] sm:$0xff]
    %v234 = vld [vmem:[#allocation2 + $0x30] sm:$0xff]
    %v235 = vld [vmem:[#allocation2 + $0x38] sm:$0xff]
    %v236 = vld [vmem:[#allocation2 + $0x40] sm:$0xff]
    %v237 = vld [vmem:[#allocation2 + $0x48] sm:$0xff]
    %v238 = vld [vmem:[#allocation2 + $0x50] sm:$0xff]
    %v239 = vld [vmem:[#allocation2 + $0x58] sm:$0xff]
    %v240 = vld [vmem:[#allocation2 + $0x60] sm:$0xf]
    %v241 = vld [vmem:[#allocation5] sm:$0xff]
    %v242 = vld [vmem:[#allocation5 + $0x8] sm:$0xff]
    %vm243 = vcmask 818176
    %v245 = vsel %vm243, %v226, 0
    %v248 = vsel %vm243, %v227, 0
    %vm250 = vcmask 1043456
    %v252 = vsel %vm250, %v240, 0
    %254 = vmatprep.subr.mxu0 0.0
    %255 = vmatpush1.msra.mxu0 %v228
    %256 = vmatprep.subr.mxu0 0.0
    %257 = vmatpush1.msra.mxu0 %v229
    %258 = vmatprep.subr.mxu0 0.0
    %259 = vmatpush1.msra.mxu0 %v230
    %260 = vmatprep.subr.mxu0 0.0
    %261 = vmatpush1.msra.mxu0 %v231
    %262 = vmatprep.subr.mxu0 0.0
    %263 = vmatpush1.msra.mxu0 %v232
    %264 = vmatprep.subr.mxu0 0.0
    %265 = vmatpush1.msra.mxu0 %v233
    %266 = vmatprep.subr.mxu0 0.0
    %267 = vmatpush1.msra.mxu0 %v234
    %268 = vmatprep.subr.mxu0 0.0
    %269 = vmatpush1.msra.mxu0 %v235
    %270 = vmatprep.subr.mxu0 0.0
    %271 = vmatpush1.msra.mxu0 %v236
    %272 = vmatprep.subr.mxu0 0.0
    %273 = vmatpush1.msra.mxu0 %v237
    %274 = vmatprep.subr.mxu0 0.0
    %275 = vmatpush1.msra.mxu0 %v238
    %276 = vmatprep.subr.mxu0 0.0
    %277 = vmatpush1.msra.mxu0 %v239
    %278 = vmatprep.subr.mxu0 0.0
    %279 = vmatpush1.msra.mxu0 %v252
    %280 = vmatprep.subr.mxu0 0.0
    %281 = vmatpush1.msra.mxu0 0.0
    %282 = vmatprep.subr.mxu0 0.0
    %283 = vmatpush1.msra.mxu0 0.0
    %284 = vmatprep.subr.mxu0 0.0
    %285 = vmatpush1.msra.mxu0 0.0
    %286 = vmatprep.subr.mxu0 0.0
    %287 = vmatpush1.msra.mxu0 0.0
    %288 = vmatprep.subr.mxu0 0.0
    %289 = vmatpush1.msra.mxu0 0.0
    %290 = vmatprep.subr.mxu0 0.0
    %291 = vmatpush1.msra.mxu0 0.0
    %292 = vmatprep.subr.mxu0 0.0
    %293 = vmatpush1.msra.mxu0 0.0
    %294 = vmatprep.subr.mxu0 0.0
    %295 = vmatpush1.msra.mxu0 0.0
    %296 = vmatprep.subr.mxu0 0.0
    %297 = vmatpush1.msra.mxu0 0.0
    %298 = vmatprep.subr.mxu0 0.0
    %299 = vmatpush1.msra.mxu0 0.0
    %300 = vmatprep.subr.mxu0 0.0
    %301 = vmatpush1.msra.mxu0 0.0
    %302 = vmatprep.subr.mxu0 0.0
    %303 = vmatpush1.msra.mxu0 0.0
    %304 = vmatprep.subr.mxu0 0.0
    %305 = vmatpush1.msra.mxu0 0.0
    %306 = vmatprep.subr.mxu0 0.0
    %307 = vmatpush1.msra.mxu0 0.0
    %308 = vmatprep.subr.mxu0 0.0
    %309 = vmatpush1.msra.mxu0 0.0
    %310 = vmatprep.subr.mxu0 0.0
    %311 = vmatpush1.msra.mxu0 0.0
    %312 = vmatprep.subr.mxu0 0.0
    %313 = vmatpush1.msra.mxu0 0.0
    %314 = vmatprep.subr.mxu0 0.0
    %315 = vmatpush1.msra.mxu0 0.0
    %316 = vmatprep.subr.mxu0 0.0
    %317 = vmatpush1.msra.mxu0 0.0
    %318 = vmatprep.mubr.f32.mxu0 0.0
    %319 = vmatmul.mubr.f32.gmra.mrb[0].mxu0 %v245
    %v320 = vpop.f32.mrb[0].mxu0
    %v321 = vadd.f32 %v241, %v320
    %v322 = vpop.f32.mrb[0].mxu0
    %323 = vmatprep.mubr.f32.mxu0 0.0
    %324 = vmatmul.mubr.f32.gmra.mrb[0].mxu0 %v248
    %v325 = vpop.f32.mrb[0].mxu0
    %v326 = vadd.f32 %v242, %v325
    %v327 = vpop.f32.mrb[0].mxu0
    %328 = vdwg.mxu0
    %v329 = vld [vmem:[%s4] sm:$0x1]
    %v330 = vld [vmem:[%s5] sm:$0x1]
    %vm331 = vcmask 261120
    %v332 = vsel %vm331, %v321, 0.0
    %333 = vadd.xlane.f32.xlu0 %v332
    %v334 = vpop.xlane.xlu0 %333
    %v335 = vsel %vm331, %v326, 0.0
    %336 = vadd.xlane.f32.xlu0 %v335
    %v337 = vpop.xlane.xlu0 %336
    %v338 = vrcp.pop 32.0
    %v339 = vmul.f32 %v334, %v338
    %v340 = vmul.f32 %v337, %v338
    %v341 = vsub.f32 %v321, %v339
    %v342 = vsub.f32 %v326, %v340
    %v343 = vmul.f32 %v341, %v341
    %v344 = vmul.f32 %v342, %v342
    %v345 = vsel %vm331, %v343, 0.0
    %346 = vadd.xlane.f32.xlu0 %v345
    %v347 = vpop.xlane.xlu0 %346
    %v348 = vsel %vm331, %v344, 0.0
    %349 = vadd.xlane.f32.xlu0 %v348
    %v350 = vpop.xlane.xlu0 %349
    %v351 = vmul.f32 %v347, %v338
    %v352 = vmul.f32 %v350, %v338
    %v353 = vadd.f32 %v351, 1e-12
    %v354 = vadd.f32 %v352, 1e-12
    %v355 = vrsqrt.pop %v353
    %v356 = vrsqrt.pop %v354
    %v357 = vmul.f32 %v341, %v355
    %v358 = vmul.f32 %v342, %v356
    %v360 = vlaneseq
    %v361 = vshrl.u32 %v360, 7
    %v362 = vsub.s32 0, %v361
    %v363 = vrot.slane %v329, %v362
    %v365 = vmul.f32 %v357, %v363
    %v366 = vmul.f32 %v358, %v363
    %v368 = vlaneseq
    %v369 = vshrl.u32 %v368, 7
    %v370 = vsub.s32 0, %v369
    %v371 = vrot.slane %v330, %v370
    %v373 = vadd.f32 %v365, %v371
    %v374 = vadd.f32 %v366, %v371
    %v375 = vld [vmem:[%s1] sm:$0x3]
    %v376 = vsub.f32 1.0, %v375
    %v377 = vmul.f32 %v376, -10000.0
    %v380 = vunpack.c.l.s4 1966171168
    %v381 = vunpack.c.0.s8 %v380
    %v382 = vlaneseq
    %v383 = vshrl.u32 %v382, 7
    %v384 = vsub.s32 %v381, %v383
    %v385 = vrot.slane %v377, %v384
    %v386 = vcombine.high %v385, %v385
    %v388 = vunpack.c.l.s4 1966171168
    %v389 = vunpack.c.0.s8 %v388
    %v390 = vlaneseq
    %v391 = vshrl.u32 %v390, 7
    %v392 = vsub.s32 %v389, %v391
    %v393 = vrot.slane %v385, %v392
    %v395 = vunpack.c.l.s4 1966171168
    %v396 = vunpack.c.0.s8 %v395
    %v397 = vlaneseq
    %v398 = vshrl.u32 %v397, 7
    %v399 = vsub.s32 %v396, %v398
    %v400 = vrot.slane %v386, %v399
    %v401 = vld [vmem:[#allocation7] sm:$0xff]
    %v402 = vld [vmem:[#allocation7 + $0x8] sm:$0xff]
    %v403 = vld [vmem:[#allocation7 + $0x10] sm:$0xff]
    %v404 = vld [vmem:[#allocation7 + $0x18] sm:$0xff]
    %v405 = vld [vmem:[%s7] sm:$0x1]
    %v407 = vlaneseq
    %v408 = vshrl.u32 %v407, 7
    %v409 = vsub.s32 0, %v408
    %v410 = vrot.slane %v405, %v409
    %v413 = vsel %vm331, %v373, 0
    %v416 = vsel %vm331, %v374, 0
    %418 = vmatprep.subr.mxu0 0.0
    %419 = vmatpush1.msra.mxu0 %v401
    %420 = vmatprep.subr.mxu0 0.0
    %421 = vmatpush1.msra.mxu0 %v402
    %422 = vmatprep.subr.mxu0 0.0
    %423 = vmatpush1.msra.mxu0 %v403
    %424 = vmatprep.subr.mxu0 0.0
    %425 = vmatpush1.msra.mxu0 %v404
    %426 = vmatprep.subr.mxu0 0.0
    %427 = vmatpush1.msra.mxu0 0.0
    %428 = vmatprep.subr.mxu0 0.0
    %429 = vmatpush1.msra.mxu0 0.0
    %430 = vmatprep.subr.mxu0 0.0
    %431 = vmatpush1.msra.mxu0 0.0
    %432 = vmatprep.subr.mxu0 0.0
    %433 = vmatpush1.msra.mxu0 0.0
    %434 = vmatprep.subr.mxu0 0.0
    %435 = vmatpush1.msra.mxu0 0.0
    %436 = vmatprep.subr.mxu0 0.0
    %437 = vmatpush1.msra.mxu0 0.0
    %438 = vmatprep.subr.mxu0 0.0
    %439 = vmatpush1.msra.mxu0 0.0
    %440 = vmatprep.subr.mxu0 0.0
    %441 = vmatpush1.msra.mxu0 0.0
    %442 = vmatprep.subr.mxu0 0.0
    %443 = vmatpush1.msra.mxu0 0.0
    %444 = vmatprep.subr.mxu0 0.0
    %445 = vmatpush1.msra.mxu0 0.0
    %446 = vmatprep.subr.mxu0 0.0
    %447 = vmatpush1.msra.mxu0 0.0
    %448 = vmatprep.subr.mxu0 0.0
    %449 = vmatpush1.msra.mxu0 0.0
    %450 = vmatprep.subr.mxu0 0.0
    %451 = vmatpush1.msra.mxu0 0.0
    %452 = vmatprep.subr.mxu0 0.0
    %453 = vmatpush1.msra.mxu0 0.0
    %454 = vmatprep.subr.mxu0 0.0
    %455 = vmatpush1.msra.mxu0 0.0
    %456 = vmatprep.subr.mxu0 0.0
    %457 = vmatpush1.msra.mxu0 0.0
    %458 = vmatprep.subr.mxu0 0.0
    %459 = vmatpush1.msra.mxu0 0.0
    %460 = vmatprep.subr.mxu0 0.0
    %461 = vmatpush1.msra.mxu0 0.0
    %462 = vmatprep.subr.mxu0 0.0
    %463 = vmatpush1.msra.mxu0 0.0
    %464 = vmatprep.subr.mxu0 0.0
    %465 = vmatpush1.msra.mxu0 0.0
    %466 = vmatprep.subr.mxu0 0.0
    %467 = vmatpush1.msra.mxu0 0.0
    %468 = vmatprep.subr.mxu0 0.0
    %469 = vmatpush1.msra.mxu0 0.0
    %470 = vmatprep.subr.mxu0 0.0
    %471 = vmatpush1.msra.mxu0 0.0
    %472 = vmatprep.subr.mxu0 0.0
    %473 = vmatpush1.msra.mxu0 0.0
    %474 = vmatprep.subr.mxu0 0.0
    %475 = vmatpush1.msra.mxu0 0.0
    %476 = vmatprep.subr.mxu0 0.0
    %477 = vmatpush1.msra.mxu0 0.0
    %478 = vmatprep.subr.mxu0 0.0
    %479 = vmatpush1.msra.mxu0 0.0
    %480 = vmatprep.subr.mxu0 0.0
    %481 = vmatpush1.msra.mxu0 0.0
    %482 = vmatprep.mubr.f32.mxu0 0.0
    %483 = vmatmul.mubr.f32.gmra.mrb[0].mxu0 %v413
    %v484 = vpop.f32.mrb[0].mxu0
    %v485 = vadd.f32 %v410, %v484
    %v486 = vpop.f32.mrb[0].mxu0
    %487 = vmatprep.mubr.f32.mxu0 0.0
    %488 = vmatmul.mubr.f32.gmra.mrb[0].mxu0 %v416
    %v489 = vpop.f32.mrb[0].mxu0
    %v490 = vadd.f32 %v410, %v489
    %v491 = vpop.f32.mrb[0].mxu0
    %492 = vdwg.mxu0
    %494 = vrot.lane.b32.xlu0 %v485, 96
    %v495 = vpop.permute.xlu0 %494
    %vm496 = vcmask 130048
    %v497 = vsel %vm496, %v485, 0
    %v499 = vsel %vm496, %v495, 0
    %501 = vmatprep.subr.mxu0 0.0
    %502 = vmatpush1.xpose.msra.mxu0 %v499
    %503 = vmatprep.subr.mxu0 0.0
    %504 = vmatpush1.xpose.msra.mxu0 0.0
    %505 = vmatprep.subr.mxu0 0.0
    %506 = vmatpush1.xpose.msra.mxu0 0.0
    %507 = vmatprep.subr.mxu0 0.0
    %508 = vmatpush1.xpose.msra.mxu0 0.0
    %509 = vmatprep.subr.mxu0 0.0
    %510 = vmatpush1.xpose.msra.mxu0 0.0
    %511 = vmatprep.subr.mxu0 0.0
    %512 = vmatpush1.xpose.msra.mxu0 0.0
    %513 = vmatprep.subr.mxu0 0.0
    %514 = vmatpush1.xpose.msra.mxu0 0.0
    %515 = vmatprep.subr.mxu0 0.0
    %516 = vmatpush1.xpose.msra.mxu0 0.0
    %517 = vmatprep.subr.mxu0 0.0
    %518 = vmatpush1.xpose.msra.mxu0 0.0
    %519 = vmatprep.subr.mxu0 0.0
    %520 = vmatpush1.xpose.msra.mxu0 0.0
    %521 = vmatprep.subr.mxu0 0.0
    %522 = vmatpush1.xpose.msra.mxu0 0.0
    %523 = vmatprep.subr.mxu0 0.0
    %524 = vmatpush1.xpose.msra.mxu0 0.0
    %525 = vmatprep.subr.mxu0 0.0
    %526 = vmatpush1.xpose.msra.mxu0 0.0
    %527 = vmatprep.subr.mxu0 0.0
    %528 = vmatpush1.xpose.msra.mxu0 0.0
    %529 = vmatprep.subr.mxu0 0.0
    %530 = vmatpush1.xpose.msra.mxu0 0.0
    %531 = vmatprep.subr.mxu0 0.0
    %532 = vmatpush1.xpose.msra.mxu0 0.0
    %533 = vmatprep.subr.mxu0 0.0
    %534 = vmatpush1.xpose.msra.mxu0 0.0
    %535 = vmatprep.subr.mxu0 0.0
    %536 = vmatpush1.xpose.msra.mxu0 0.0
    %537 = vmatprep.subr.mxu0 0.0
    %538 = vmatpush1.xpose.msra.mxu0 0.0
    %539 = vmatprep.subr.mxu0 0.0
    %540 = vmatpush1.xpose.msra.mxu0 0.0
    %541 = vmatprep.subr.mxu0 0.0
    %542 = vmatpush1.xpose.msra.mxu0 0.0
    %543 = vmatprep.subr.mxu0 0.0
    %544 = vmatpush1.xpose.msra.mxu0 0.0
    %545 = vmatprep.subr.mxu0 0.0
    %546 = vmatpush1.xpose.msra.mxu0 0.0
    %547 = vmatprep.subr.mxu0 0.0
    %548 = vmatpush1.xpose.msra.mxu0 0.0
    %549 = vmatprep.subr.mxu0 0.0
    %550 = vmatpush1.xpose.msra.mxu0 0.0
    %551 = vmatprep.subr.mxu0 0.0
    %552 = vmatpush1.xpose.msra.mxu0 0.0
    %553 = vmatprep.subr.mxu0 0.0
    %554 = vmatpush1.xpose.msra.mxu0 0.0
    %555 = vmatprep.subr.mxu0 0.0
    %556 = vmatpush1.xpose.msra.mxu0 0.0
    %557 = vmatprep.subr.mxu0 0.0
    %558 = vmatpush1.xpose.msra.mxu0 0.0
    %559 = vmatprep.subr.mxu0 0.0
    %560 = vmatpush1.xpose.msra.mxu0 0.0
    %561 = vmatprep.subr.mxu0 0.0
    %562 = vmatpush1.xpose.msra.mxu0 0.0
    %563 = vmatprep.subr.mxu0 0.0
    %564 = vmatpush1.xpose.msra.mxu0 0.0
    %565 = vmatprep.mubr.f32.mxu0 0.0
    %566 = vmatmul.mubr.f32.gmra.mrb[0].mxu0 %v497
    %v567 = vpop.f32.mrb[0].mxu0
    %v568 = vadd.f32 0.0, %v567
    %v569 = vpop.f32.mrb[0].mxu0
    %570 = vdwg.mxu0
    %572 = vrot.lane.b32.xlu0 %v490, 96
    %v573 = vpop.permute.xlu0 %572
    %v574 = vsel %vm496, %v490, 0
    %v576 = vsel %vm496, %v573, 0
    %578 = vmatprep.subr.mxu0 0.0
    %579 = vmatpush1.xpose.msra.mxu0 %v576
    %580 = vmatprep.subr.mxu0 0.0
    %581 = vmatpush1.xpose.msra.mxu0 0.0
    %582 = vmatprep.subr.mxu0 0.0
    %583 = vmatpush1.xpose.msra.mxu0 0.0
    %584 = vmatprep.subr.mxu0 0.0
    %585 = vmatpush1.xpose.msra.mxu0 0.0
    %586 = vmatprep.subr.mxu0 0.0
    %587 = vmatpush1.xpose.msra.mxu0 0.0
    %588 = vmatprep.subr.mxu0 0.0
    %589 = vmatpush1.xpose.msra.mxu0 0.0
    %590 = vmatprep.subr.mxu0 0.0
    %591 = vmatpush1.xpose.msra.mxu0 0.0
    %592 = vmatprep.subr.mxu0 0.0
    %593 = vmatpush1.xpose.msra.mxu0 0.0
    %594 = vmatprep.subr.mxu0 0.0
    %595 = vmatpush1.xpose.msra.mxu0 0.0
    %596 = vmatprep.subr.mxu0 0.0
    %597 = vmatpush1.xpose.msra.mxu0 0.0
    %598 = vmatprep.subr.mxu0 0.0
    %599 = vmatpush1.xpose.msra.mxu0 0.0
    %600 = vmatprep.subr.mxu0 0.0
    %601 = vmatpush1.xpose.msra.mxu0 0.0
    %602 = vmatprep.subr.mxu0 0.0
    %603 = vmatpush1.xpose.msra.mxu0 0.0
    %604 = vmatprep.subr.mxu0 0.0
    %605 = vmatpush1.xpose.msra.mxu0 0.0
    %606 = vmatprep.subr.mxu0 0.0
    %607 = vmatpush1.xpose.msra.mxu0 0.0
    %608 = vmatprep.subr.mxu0 0.0
    %609 = vmatpush1.xpose.msra.mxu0 0.0
    %610 = vmatprep.subr.mxu0 0.0
    %611 = vmatpush1.xpose.msra.mxu0 0.0
    %612 = vmatprep.subr.mxu0 0.0
    %613 = vmatpush1.xpose.msra.mxu0 0.0
    %614 = vmatprep.subr.mxu0 0.0
    %615 = vmatpush1.xpose.msra.mxu0 0.0
    %616 = vmatprep.subr.mxu0 0.0
    %617 = vmatpush1.xpose.msra.mxu0 0.0
    %618 = vmatprep.subr.mxu0 0.0
    %619 = vmatpush1.xpose.msra.mxu0 0.0
    %620 = vmatprep.subr.mxu0 0.0
    %621 = vmatpush1.xpose.msra.mxu0 0.0
    %622 = vmatprep.subr.mxu0 0.0
    %623 = vmatpush1.xpose.msra.mxu0 0.0
    %624 = vmatprep.subr.mxu0 0.0
    %625 = vmatpush1.xpose.msra.mxu0 0.0
    %626 = vmatprep.subr.mxu0 0.0
    %627 = vmatpush1.xpose.msra.mxu0 0.0
    %628 = vmatprep.subr.mxu0 0.0
    %629 = vmatpush1.xpose.msra.mxu0 0.0
    %630 = vmatprep.subr.mxu0 0.0
    %631 = vmatpush1.xpose.msra.mxu0 0.0
    %632 = vmatprep.subr.mxu0 0.0
    %633 = vmatpush1.xpose.msra.mxu0 0.0
    %634 = vmatprep.subr.mxu0 0.0
    %635 = vmatpush1.xpose.msra.mxu0 0.0
    %636 = vmatprep.subr.mxu0 0.0
    %637 = vmatpush1.xpose.msra.mxu0 0.0
    %638 = vmatprep.subr.mxu0 0.0
    %639 = vmatpush1.xpose.msra.mxu0 0.0
    %640 = vmatprep.subr.mxu0 0.0
    %641 = vmatpush1.xpose.msra.mxu0 0.0
    %642 = vmatprep.mubr.f32.mxu0 0.0
    %643 = vmatmul.mubr.f32.gmra.mrb[0].mxu0 %v574
    %v644 = vpop.f32.mrb[0].mxu0
    %v645 = vadd.f32 0.0, %v644
    %v646 = vpop.f32.mrb[0].mxu0
    %647 = vdwg.mxu0
    %v648 = vmul.f32 %v568, 0.25
    %v649 = vmul.f32 %v645, 0.25
    %v650 = vlaneseq
    %v651 = vshrl.u32 %v650, 7
    %v652 = vsub.s32 0, %v651
    %v653 = vrot.slane %v393, %v652
    %v654 = vlaneseq
    %v655 = vshrl.u32 %v654, 7
    %v656 = vsub.s32 0, %v655
    %v657 = vrot.slane %v400, %v656
    %v660 = vadd.f32 %v648, %v653
    %v661 = vadd.f32 %v649, %v657
    %vm662 = vcmask 64512
    %v663 = vsel %vm662, %v660, -inf
    %664 = vmax.xlane.f32.xlu0 %v663
    %v665 = vpop.xlane.xlu0 %664
    %v666 = vsel %vm662, %v661, -inf
    %667 = vmax.xlane.f32.xlu0 %v666
    %v668 = vpop.xlane.xlu0 %667
    %v669 = vsub.f32 %v660, %v665
    %v670 = vsub.f32 %v661, %v668
    %v671 = vmul.f32 %v669, 1.442695
    %v672 = vpow.pop %v671
    %v673 = vmul.f32 %v670, 1.442695
    %v674 = vpow.pop %v673
    %v675 = vsel %vm662, %v672, 0.0
    %676 = vadd.xlane.f32.xlu0 %v675
    %v677 = vpop.xlane.xlu0 %676
    %v678 = vsel %vm662, %v674, 0.0
    %679 = vadd.xlane.f32.xlu0 %v678
    %v680 = vpop.xlane.xlu0 %679
    %v681 = vrcp.pop %v677
    %v682 = vrcp.pop %v680
    %v683 = vmul.f32 %v672, %v681
    %v684 = vmul.f32 %v674, %v682
    %685 = vrot.lane.b32.xlu0 %v485, 64
    %v686 = vpop.permute.xlu0 %685
    %v689 = vsel %vm662, %v683, 0
    %691 = vmatprep.subr.mxu0 0.0
    %692 = vmatpush1.msra.mxu0 %v686
    %693 = vmatprep.subr.mxu0 0.0
    %694 = vmatpush1.msra.mxu0 0.0
    %695 = vmatprep.subr.mxu0 0.0
    %696 = vmatpush1.msra.mxu0 0.0
    %697 = vmatprep.subr.mxu0 0.0
    %698 = vmatpush1.msra.mxu0 0.0
    %699 = vmatprep.subr.mxu0 0.0
    %700 = vmatpush1.msra.mxu0 0.0
    %701 = vmatprep.subr.mxu0 0.0
    %702 = vmatpush1.msra.mxu0 0.0
    %703 = vmatprep.subr.mxu0 0.0
    %704 = vmatpush1.msra.mxu0 0.0
    %705 = vmatprep.subr.mxu0 0.0
    %706 = vmatpush1.msra.mxu0 0.0
    %707 = vmatprep.subr.mxu0 0.0
    %708 = vmatpush1.msra.mxu0 0.0
    %709 = vmatprep.subr.mxu0 0.0
    %710 = vmatpush1.msra.mxu0 0.0
    %711 = vmatprep.subr.mxu0 0.0
    %712 = vmatpush1.msra.mxu0 0.0
    %713 = vmatprep.subr.mxu0 0.0
    %714 = vmatpush1.msra.mxu0 0.0
    %715 = vmatprep.subr.mxu0 0.0
    %716 = vmatpush1.msra.mxu0 0.0
    %717 = vmatprep.subr.mxu0 0.0
    %718 = vmatpush1.msra.mxu0 0.0
    %719 = vmatprep.subr.mxu0 0.0
    %720 = vmatpush1.msra.mxu0 0.0
    %721 = vmatprep.subr.mxu0 0.0
    %722 = vmatpush1.msra.mxu0 0.0
    %723 = vmatprep.subr.mxu0 0.0
    %724 = vmatpush1.msra.mxu0 0.0
    %725 = vmatprep.subr.mxu0 0.0
    %726 = vmatpush1.msra.mxu0 0.0
    %727 = vmatprep.subr.mxu0 0.0
    %728 = vmatpush1.msra.mxu0 0.0
    %729 = vmatprep.subr.mxu0 0.0
    %730 = vmatpush1.msra.mxu0 0.0
    %731 = vmatprep.subr.mxu0 0.0
    %732 = vmatpush1.msra.mxu0 0.0
    %733 = vmatprep.subr.mxu0 0.0
    %734 = vmatpush1.msra.mxu0 0.0
    %735 = vmatprep.subr.mxu0 0.0
    %736 = vmatpush1.msra.mxu0 0.0
    %737 = vmatprep.subr.mxu0 0.0
    %738 = vmatpush1.msra.mxu0 0.0
    %739 = vmatprep.subr.mxu0 0.0
    %740 = vmatpush1.msra.mxu0 0.0
    %741 = vmatprep.subr.mxu0 0.0
    %742 = vmatpush1.msra.mxu0 0.0
    %743 = vmatprep.subr.mxu0 0.0
    %744 = vmatpush1.msra.mxu0 0.0
    %745 = vmatprep.subr.mxu0 0.0
    %746 = vmatpush1.msra.mxu0 0.0
    %747 = vmatprep.subr.mxu0 0.0
    %748 = vmatpush1.msra.mxu0 0.0
    %749 = vmatprep.subr.mxu0 0.0
    %750 = vmatpush1.msra.mxu0 0.0
    %751 = vmatprep.subr.mxu0 0.0
    %752 = vmatpush1.msra.mxu0 0.0
    %753 = vmatprep.subr.mxu0 0.0
    %754 = vmatpush1.msra.mxu0 0.0
    %755 = vmatprep.mubr.f32.mxu0 0.0
    %756 = vmatmul.mubr.f32.gmra.mrb[0].mxu0 %v689
    %v757 = vpop.f32.mrb[0].mxu0
    %v758 = vadd.f32 0.0, %v757
    %v759 = vpop.f32.mrb[0].mxu0
    %760 = vdwg.mxu0
    %761 = vrot.lane.b32.xlu0 %v490, 64
    %v762 = vpop.permute.xlu0 %761
    %v765 = vsel %vm662, %v684, 0
    %767 = vmatprep.subr.mxu0 0.0
    %768 = vmatpush1.msra.mxu0 %v762
    %769 = vmatprep.subr.mxu0 0.0
    %770 = vmatpush1.msra.mxu0 0.0
    %771 = vmatprep.subr.mxu0 0.0
    %772 = vmatpush1.msra.mxu0 0.0
    %773 = vmatprep.subr.mxu0 0.0
    %774 = vmatpush1.msra.mxu0 0.0
    %775 = vmatprep.subr.mxu0 0.0
    %776 = vmatpush1.msra.mxu0 0.0
    %777 = vmatprep.subr.mxu0 0.0
    %778 = vmatpush1.msra.mxu0 0.0
    %779 = vmatprep.subr.mxu0 0.0
    %780 = vmatpush1.msra.mxu0 0.0
    %781 = vmatprep.subr.mxu0 0.0
    %782 = vmatpush1.msra.mxu0 0.0
    %783 = vmatprep.subr.mxu0 0.0
    %784 = vmatpush1.msra.mxu0 0.0
    %785 = vmatprep.subr.mxu0 0.0
    %786 = vmatpush1.msra.mxu0 0.0
    %787 = vmatprep.subr.mxu0 0.0
    %788 = vmatpush1.msra.mxu0 0.0
    %789 = vmatprep.subr.mxu0 0.0
    %790 = vmatpush1.msra.mxu0 0.0
    %791 = vmatprep.subr.mxu0 0.0
    %792 = vmatpush1.msra.mxu0 0.0
    %793 = vmatprep.subr.mxu0 0.0
    %794 = vmatpush1.msra.mxu0 0.0
    %795 = vmatprep.subr.mxu0 0.0
    %796 = vmatpush1.msra.mxu0 0.0
    %797 = vmatprep.subr.mxu0 0.0
    %798 = vmatpush1.msra.mxu0 0.0
    %799 = vmatprep.subr.mxu0 0.0
    %800 = vmatpush1.msra.mxu0 0.0
    %801 = vmatprep.subr.mxu0 0.0
    %802 = vmatpush1.msra.mxu0 0.0
    %803 = vmatprep.subr.mxu0 0.0
    %804 = vmatpush1.msra.mxu0 0.0
    %805 = vmatprep.subr.mxu0 0.0
    %806 = vmatpush1.msra.mxu0 0.0
    %807 = vmatprep.subr.mxu0 0.0
    %808 = vmatpush1.msra.mxu0 0.0
    %809 = vmatprep.subr.mxu0 0.0
    %810 = vmatpush1.msra.mxu0 0.0
    %811 = vmatprep.subr.mxu0 0.0
    %812 = vmatpush1.msra.mxu0 0.0
    %813 = vmatprep.subr.mxu0 0.0
    %814 = vmatpush1.msra.mxu0 0.0
    %815 = vmatprep.subr.mxu0 0.0
    %816 = vmatpush1.msra.mxu0 0.0
    %817 = vmatprep.subr.mxu0 0.0
    %818 = vmatpush1.msra.mxu0 0.0
    %819 = vmatprep.subr.mxu0 0.0
    %820 = vmatpush1.msra.mxu0 0.0
    %821 = vmatprep.subr.mxu0 0.0
    %822 = vmatpush1.msra.mxu0 0.0
    %823 = vmatprep.subr.mxu0 0.0
    %824 = vmatpush1.msra.mxu0 0.0
    %825 = vmatprep.subr.mxu0 0.0
    %826 = vmatpush1.msra.mxu0 0.0
    %827 = vmatprep.subr.mxu0 0.0
    %828 = vmatpush1.msra.mxu0 0.0
    %829 = vmatprep.subr.mxu0 0.0
    %830 = vmatpush1.msra.mxu0 0.0
    %831 = vmatprep.mubr.f32.mxu0 0.0
    %832 = vmatmul.mubr.f32.gmra.mrb[0].mxu0 %v765
    %v833 = vpop.f32.mrb[0].mxu0
    %v834 = vadd.f32 0.0, %v833
    %v835 = vpop.f32.mrb[0].mxu0
    %836 = vdwg.mxu0
    %837 = vrot.lane.b32.xlu0 %v485, 112
    %v838 = vpop.permute.xlu0 %837
    %839 = vrot.lane.b32.xlu0 %v485, 80
    %v840 = vpop.permute.xlu0 %839
    %v841 = vsel %vm496, %v838, 0
    %v843 = vsel %vm496, %v840, 0
    %845 = vmatprep.subr.mxu0 0.0
    %846 = vmatpush1.xpose.msra.mxu0 %v843
    %847 = vmatprep.subr.mxu0 0.0
    %848 = vmatpush1.xpose.msra.mxu0 0.0
    %849 = vmatprep.subr.mxu0 0.0
    %850 = vmatpush1.xpose.msra.mxu0 0.0
    %851 = vmatprep.subr.mxu0 0.0
    %852 = vmatpush1.xpose.msra.mxu0 0.0
    %853 = vmatprep.subr.mxu0 0.0
    %854 = vmatpush1.xpose.msra.mxu0 0.0
    %855 = vmatprep.subr.mxu0 0.0
    %856 = vmatpush1.xpose.msra.mxu0 0.0
    %857 = vmatprep.subr.mxu0 0.0
    %858 = vmatpush1.xpose.msra.mxu0 0.0
    %859 = vmatprep.subr.mxu0 0.0
    %860 = vmatpush1.xpose.msra.mxu0 0.0
    %861 = vmatprep.subr.mxu0 0.0
    %862 = vmatpush1.xpose.msra.mxu0 0.0
    %863 = vmatprep.subr.mxu0 0.0
    %864 = vmatpush1.xpose.msra.mxu0 0.0
    %865 = vmatprep.subr.mxu0 0.0
    %866 = vmatpush1.xpose.msra.mxu0 0.0
    %867 = vmatprep.subr.mxu0 0.0
    %868 = vmatpush1.xpose.msra.mxu0 0.0
    %869 = vmatprep.subr.mxu0 0.0
    %870 = vmatpush1.xpose.msra.mxu0 0.0
    %871 = vmatprep.subr.mxu0 0.0
    %872 = vmatpush1.xpose.msra.mxu0 0.0
    %873 = vmatprep.subr.mxu0 0.0
    %874 = vmatpush1.xpose.msra.mxu0 0.0
    %875 = vmatprep.subr.mxu0 0.0
    %876 = vmatpush1.xpose.msra.mxu0 0.0
    %877 = vmatprep.subr.mxu0 0.0
    %878 = vmatpush1.xpose.msra.mxu0 0.0
    %879 = vmatprep.subr.mxu0 0.0
    %880 = vmatpush1.xpose.msra.mxu0 0.0
    %881 = vmatprep.subr.mxu0 0.0
    %882 = vmatpush1.xpose.msra.mxu0 0.0
    %883 = vmatprep.subr.mxu0 0.0
    %884 = vmatpush1.xpose.msra.mxu0 0.0
    %885 = vmatprep.subr.mxu0 0.0
    %886 = vmatpush1.xpose.msra.mxu0 0.0
    %887 = vmatprep.subr.mxu0 0.0
    %888 = vmatpush1.xpose.msra.mxu0 0.0
    %889 = vmatprep.subr.mxu0 0.0
    %890 = vmatpush1.xpose.msra.mxu0 0.0
    %891 = vmatprep.subr.mxu0 0.0
    %892 = vmatpush1.xpose.msra.mxu0 0.0
    %893 = vmatprep.subr.mxu0 0.0
    %894 = vmatpush1.xpose.msra.mxu0 0.0
    %895 = vmatprep.subr.mxu0 0.0
    %896 = vmatpush1.xpose.msra.mxu0 0.0
    %897 = vmatprep.subr.mxu0 0.0
    %898 = vmatpush1.xpose.msra.mxu0 0.0
    %899 = vmatprep.subr.mxu0 0.0
    %900 = vmatpush1.xpose.msra.mxu0 0.0
    %901 = vmatprep.subr.mxu0 0.0
    %902 = vmatpush1.xpose.msra.mxu0 0.0
    %903 = vmatprep.subr.mxu0 0.0
    %904 = vmatpush1.xpose.msra.mxu0 0.0
    %905 = vmatprep.subr.mxu0 0.0
    %906 = vmatpush1.xpose.msra.mxu0 0.0
    %907 = vmatprep.subr.mxu0 0.0
    %908 = vmatpush1.xpose.msra.mxu0 0.0
    %909 = vmatprep.mubr.f32.mxu0 0.0
    %910 = vmatmul.mubr.f32.gmra.mrb[0].mxu0 %v841
    %v911 = vpop.f32.mrb[0].mxu0
    %v912 = vadd.f32 0.0, %v911
    %v913 = vpop.f32.mrb[0].mxu0
    %914 = vdwg.mxu0
    %915 = vrot.lane.b32.xlu0 %v490, 112
    %v916 = vpop.permute.xlu0 %915
    %917 = vrot.lane.b32.xlu0 %v490, 80
    %v918 = vpop.permute.xlu0 %917
    %v919 = vsel %vm496, %v916, 0
    %v921 = vsel %vm496, %v918, 0
    %923 = vmatprep.subr.mxu0 0.0
    %924 = vmatpush1.xpose.msra.mxu0 %v921
    %925 = vmatprep.subr.mxu0 0.0
    %926 = vmatpush1.xpose.msra.mxu0 0.0
    %927 = vmatprep.subr.mxu0 0.0
    %928 = vmatpush1.xpose.msra.mxu0 0.0
    %929 = vmatprep.subr.mxu0 0.0
    %930 = vmatpush1.xpose.msra.mxu0 0.0
    %931 = vmatprep.subr.mxu0 0.0
    %932 = vmatpush1.xpose.msra.mxu0 0.0
    %933 = vmatprep.subr.mxu0 0.0
    %934 = vmatpush1.xpose.msra.mxu0 0.0
    %935 = vmatprep.subr.mxu0 0.0
    %936 = vmatpush1.xpose.msra.mxu0 0.0
    %937 = vmatprep.subr.mxu0 0.0
    %938 = vmatpush1.xpose.msra.mxu0 0.0
    %939 = vmatprep.subr.mxu0 0.0
    %940 = vmatpush1.xpose.msra.mxu0 0.0
    %941 = vmatprep.subr.mxu0 0.0
    %942 = vmatpush1.xpose.msra.mxu0 0.0
    %943 = vmatprep.subr.mxu0 0.0
    %944 = vmatpush1.xpose.msra.mxu0 0.0
    %945 = vmatprep.subr.mxu0 0.0
    %946 = vmatpush1.xpose.msra.mxu0 0.0
    %947 = vmatprep.subr.mxu0 0.0
    %948 = vmatpush1.xpose.msra.mxu0 0.0
    %949 = vmatprep.subr.mxu0 0.0
    %950 = vmatpush1.xpose.msra.mxu0 0.0
    %951 = vmatprep.subr.mxu0 0.0
    %952 = vmatpush1.xpose.msra.mxu0 0.0
    %953 = vmatprep.subr.mxu0 0.0
    %954 = vmatpush1.xpose.msra.mxu0 0.0
    %955 = vmatprep.subr.mxu0 0.0
    %956 = vmatpush1.xpose.msra.mxu0 0.0
    %957 = vmatprep.subr.mxu0 0.0
    %958 = vmatpush1.xpose.msra.mxu0 0.0
    %959 = vmatprep.subr.mxu0 0.0
    %960 = vmatpush1.xpose.msra.mxu0 0.0
    %961 = vmatprep.subr.mxu0 0.0
    %962 = vmatpush1.xpose.msra.mxu0 0.0
    %963 = vmatprep.subr.mxu0 0.0
    %964 = vmatpush1.xpose.msra.mxu0 0.0
    %965 = vmatprep.subr.mxu0 0.0
    %966 = vmatpush1.xpose.msra.mxu0 0.0
    %967 = vmatprep.subr.mxu0 0.0
    %968 = vmatpush1.xpose.msra.mxu0 0.0
    %969 = vmatprep.subr.mxu0 0.0
    %970 = vmatpush1.xpose.msra.mxu0 0.0
    %971 = vmatprep.subr.mxu0 0.0
    %972 = vmatpush1.xpose.msra.mxu0 0.0
    %973 = vmatprep.subr.mxu0 0.0
    %974 = vmatpush1.xpose.msra.mxu0 0.0
    %975 = vmatprep.subr.mxu0 0.0
    %976 = vmatpush1.xpose.msra.mxu0 0.0
    %977 = vmatprep.subr.mxu0 0.0
    %978 = vmatpush1.xpose.msra.mxu0 0.0
    %979 = vmatprep.subr.mxu0 0.0
    %980 = vmatpush1.xpose.msra.mxu0 0.0
    %981 = vmatprep.subr.mxu0 0.0
    %982 = vmatpush1.xpose.msra.mxu0 0.0
    %983 = vmatprep.subr.mxu0 0.0
    %984 = vmatpush1.xpose.msra.mxu0 0.0
    %985 = vmatprep.subr.mxu0 0.0
    %986 = vmatpush1.xpose.msra.mxu0 0.0
    %987 = vmatprep.mubr.f32.mxu0 0.0
    %988 = vmatmul.mubr.f32.gmra.mrb[0].mxu0 %v919
    %v989 = vpop.f32.mrb[0].mxu0
    %v990 = vadd.f32 0.0, %v989
    %v991 = vpop.f32.mrb[0].mxu0
    %992 = vdwg.mxu0
    %v993 = vmul.f32 %v912, 0.25
    %v994 = vmul.f32 %v990, 0.25
    %v995 = vadd.f32 %v993, %v653
    %v996 = vadd.f32 %v994, %v657
    %v997 = vsel %vm662, %v995, -inf
    %998 = vmax.xlane.f32.xlu0 %v997
    %v999 = vpop.xlane.xlu0 %998
    %v1000 = vsel %vm662, %v996, -inf
    %1001 = vmax.xlane.f32.xlu0 %v1000
    %v1002 = vpop.xlane.xlu0 %1001
    %v1003 = vsub.f32 %v995, %v999
    %v1004 = vsub.f32 %v996, %v1002
    %v1005 = vmul.f32 %v1003, 1.442695
    %v1006 = vpow.pop %v1005
    %v1007 = vmul.f32 %v1004, 1.442695
    %v1008 = vpow.pop %v1007
    %v1009 = vsel %vm662, %v1006, 0.0
    %1010 = vadd.xlane.f32.xlu0 %v1009
    %v1011 = vpop.xlane.xlu0 %1010
    %v1012 = vsel %vm662, %v1008, 0.0
    %1013 = vadd.xlane.f32.xlu0 %v1012
    %v1014 = vpop.xlane.xlu0 %1013
    %v1015 = vrcp.pop %v1011
    %v1016 = vrcp.pop %v1014
    %v1017 = vmul.f32 %v1006, %v1015
    %v1018 = vmul.f32 %v1008, %v1016
    %1019 = vrot.lane.b32.xlu0 %v485, 48
    %v1020 = vpop.permute.xlu0 %1019
    %v1023 = vsel %vm662, %v1017, 0
    %1025 = vmatprep.subr.mxu0 0.0
    %1026 = vmatpush1.msra.mxu0 %v1020
    %1027 = vmatprep.subr.mxu0 0.0
    %1028 = vmatpush1.msra.mxu0 0.0
    %1029 = vmatprep.subr.mxu0 0.0
    %1030 = vmatpush1.msra.mxu0 0.0
    %1031 = vmatprep.subr.mxu0 0.0
    %1032 = vmatpush1.msra.mxu0 0.0
    %1033 = vmatprep.subr.mxu0 0.0
    %1034 = vmatpush1.msra.mxu0 0.0
    %1035 = vmatprep.subr.mxu0 0.0
    %1036 = vmatpush1.msra.mxu0 0.0
    %1037 = vmatprep.subr.mxu0 0.0
    %1038 = vmatpush1.msra.mxu0 0.0
    %1039 = vmatprep.subr.mxu0 0.0
    %1040 = vmatpush1.msra.mxu0 0.0
    %1041 = vmatprep.subr.mxu0 0.0
    %1042 = vmatpush1.msra.mxu0 0.0
    %1043 = vmatprep.subr.mxu0 0.0
    %1044 = vmatpush1.msra.mxu0 0.0
    %1045 = vmatprep.subr.mxu0 0.0
    %1046 = vmatpush1.msra.mxu0 0.0
    %1047 = vmatprep.subr.mxu0 0.0
    %1048 = vmatpush1.msra.mxu0 0.0
    %1049 = vmatprep.subr.mxu0 0.0
    %1050 = vmatpush1.msra.mxu0 0.0
    %1051 = vmatprep.subr.mxu0 0.0
    %1052 = vmatpush1.msra.mxu0 0.0
    %1053 = vmatprep.subr.mxu0 0.0
    %1054 = vmatpush1.msra.mxu0 0.0
    %1055 = vmatprep.subr.mxu0 0.0
    %1056 = vmatpush1.msra.mxu0 0.0
    %1057 = vmatprep.subr.mxu0 0.0
    %1058 = vmatpush1.msra.mxu0 0.0
    %1059 = vmatprep.subr.mxu0 0.0
    %1060 = vmatpush1.msra.mxu0 0.0
    %1061 = vmatprep.subr.mxu0 0.0
    %1062 = vmatpush1.msra.mxu0 0.0
    %1063 = vmatprep.subr.mxu0 0.0
    %1064 = vmatpush1.msra.mxu0 0.0
    %1065 = vmatprep.subr.mxu0 0.0
    %1066 = vmatpush1.msra.mxu0 0.0
    %1067 = vmatprep.subr.mxu0 0.0
    %1068 = vmatpush1.msra.mxu0 0.0
    %1069 = vmatprep.subr.mxu0 0.0
    %1070 = vmatpush1.msra.mxu0 0.0
    %1071 = vmatprep.subr.mxu0 0.0
    %1072 = vmatpush1.msra.mxu0 0.0
    %1073 = vmatprep.subr.mxu0 0.0
    %1074 = vmatpush1.msra.mxu0 0.0
    %1075 = vmatprep.subr.mxu0 0.0
    %1076 = vmatpush1.msra.mxu0 0.0
    %1077 = vmatprep.subr.mxu0 0.0
    %1078 = vmatpush1.msra.mxu0 0.0
    %1079 = vmatprep.subr.mxu0 0.0
    %1080 = vmatpush1.msra.mxu0 0.0
    %1081 = vmatprep.subr.mxu0 0.0
    %1082 = vmatpush1.msra.mxu0 0.0
    %1083 = vmatprep.subr.mxu0 0.0
    %1084 = vmatpush1.msra.mxu0 0.0
    %1085 = vmatprep.subr.mxu0 0.0
    %1086 = vmatpush1.msra.mxu0 0.0
    %1087 = vmatprep.subr.mxu0 0.0
    %1088 = vmatpush1.msra.mxu0 0.0
    %1089 = vmatprep.mubr.f32.mxu0 0.0
    %1090 = vmatmul.mubr.f32.gmra.mrb[0].mxu0 %v1023
    %v1091 = vpop.f32.mrb[0].mxu0
    %v1092 = vadd.f32 0.0, %v1091
    %v1093 = vpop.f32.mrb[0].mxu0
    %1094 = vdwg.mxu0
    %1095 = vrot.lane.b32.xlu0 %v490, 48
    %v1096 = vpop.permute.xlu0 %1095
    %v1099 = vsel %vm662, %v1018, 0
    %1101 = vmatprep.subr.mxu0 0.0
    %1102 = vmatpush1.msra.mxu0 %v1096
    %1103 = vmatprep.subr.mxu0 0.0
    %1104 = vmatpush1.msra.mxu0 0.0
    %1105 = vmatprep.subr.mxu0 0.0
    %1106 = vmatpush1.msra.mxu0 0.0
    %1107 = vmatprep.subr.mxu0 0.0
    %1108 = vmatpush1.msra.mxu0 0.0
    %1109 = vmatprep.subr.mxu0 0.0
    %1110 = vmatpush1.msra.mxu0 0.0
    %1111 = vmatprep.subr.mxu0 0.0
    %1112 = vmatpush1.msra.mxu0 0.0
    %1113 = vmatprep.subr.mxu0 0.0
    %1114 = vmatpush1.msra.mxu0 0.0
    %1115 = vmatprep.subr.mxu0 0.0
    %1116 = vmatpush1.msra.mxu0 0.0
    %1117 = vmatprep.subr.mxu0 0.0
    %1118 = vmatpush1.msra.mxu0 0.0
    %1119 = vmatprep.subr.mxu0 0.0
    %1120 = vmatpush1.msra.mxu0 0.0
    %1121 = vmatprep.subr.mxu0 0.0
    %1122 = vmatpush1.msra.mxu0 0.0
    %1123 = vmatprep.subr.mxu0 0.0
    %1124 = vmatpush1.msra.mxu0 0.0
    %1125 = vmatprep.subr.mxu0 0.0
    %1126 = vmatpush1.msra.mxu0 0.0
    %1127 = vmatprep.subr.mxu0 0.0
    %1128 = vmatpush1.msra.mxu0 0.0
    %1129 = vmatprep.subr.mxu0 0.0
    %1130 = vmatpush1.msra.mxu0 0.0
    %1131 = vmatprep.subr.mxu0 0.0
    %1132 = vmatpush1.msra.mxu0 0.0
    %1133 = vmatprep.subr.mxu0 0.0
    %1134 = vmatpush1.msra.mxu0 0.0
    %1135 = vmatprep.subr.mxu0 0.0
    %1136 = vmatpush1.msra.mxu0 0.0
    %1137 = vmatprep.subr.mxu0 0.0
    %1138 = vmatpush1.msra.mxu0 0.0
    %1139 = vmatprep.subr.mxu0 0.0
    %1140 = vmatpush1.msra.mxu0 0.0
    %1141 = vmatprep.subr.mxu0 0.0
    %1142 = vmatpush1.msra.mxu0 0.0
    %1143 = vmatprep.subr.mxu0 0.0
    %1144 = vmatpush1.msra.mxu0 0.0
    %1145 = vmatprep.subr.mxu0 0.0
    %1146 = vmatpush1.msra.mxu0 0.0
    %1147 = vmatprep.subr.mxu0 0.0
    %1148 = vmatpush1.msra.mxu0 0.0
    %1149 = vmatprep.subr.mxu0 0.0
    %1150 = vmatpush1.msra.mxu0 0.0
    %1151 = vmatprep.subr.mxu0 0.0
    %1152 = vmatpush1.msra.mxu0 0.0
    %1153 = vmatprep.subr.mxu0 0.0
    %1154 = vmatpush1.msra.mxu0 0.0
    %1155 = vmatprep.subr.mxu0 0.0
    %1156 = vmatpush1.msra.mxu0 0.0
    %1157 = vmatprep.subr.mxu0 0.0
    %1158 = vmatpush1.msra.mxu0 0.0
    %1159 = vmatprep.subr.mxu0 0.0
    %1160 = vmatpush1.msra.mxu0 0.0
    %1161 = vmatprep.subr.mxu0 0.0
    %1162 = vmatpush1.msra.mxu0 0.0
    %1163 = vmatprep.subr.mxu0 0.0
    %1164 = vmatpush1.msra.mxu0 0.0
    %1165 = vmatprep.mubr.f32.mxu0 0.0
    %1166 = vmatmul.mubr.f32.gmra.mrb[0].mxu0 %v1099
    %v1167 = vpop.f32.mrb[0].mxu0
    %v1168 = vadd.f32 0.0, %v1167
    %v1169 = vpop.f32.mrb[0].mxu0
    %1170 = vdwg.mxu0
    %1173 = vrot.lane.b32.xlu0 %v1092, 16
    %v1174 = vpop.permute.xlu0 %1173
    %1175 = vrot.lane.b32.xlu0 %v1168, 16
    %v1176 = vpop.permute.xlu0 %1175
    %v1179 = vsel %vm496, %v758, %v1174
    %v1180 = vsel %vm496, %v834, %v1176
    %v1181 = vld [vmem:[#allocation8] sm:$0xff]
    %v1182 = vld [vmem:[#allocation8 + $0x8] sm:$0xff]
    %v1183 = vld [vmem:[#allocation8 + $0x10] sm:$0xff]
    %v1184 = vld [vmem:[#allocation8 + $0x18] sm:$0xff]
    %v1185 = vld [vmem:[%s9] sm:$0x1]
    %v1187 = vlaneseq
    %v1188 = vshrl.u32 %v1187, 7
    %v1189 = vsub.s32 0, %v1188
    %v1190 = vrot.slane %v1185, %v1189
    %v1193 = vsel %vm331, %v1179, 0
    %v1196 = vsel %vm331, %v1180, 0
    %1198 = vmatprep.subr.mxu0 0.0
    %1199 = vmatpush1.msra.mxu0 %v1181
    %1200 = vmatprep.subr.mxu0 0.0
    %1201 = vmatpush1.msra.mxu0 %v1182
    %1202 = vmatprep.subr.mxu0 0.0
    %1203 = vmatpush1.msra.mxu0 %v1183
    %1204 = vmatprep.subr.mxu0 0.0
    %1205 = vmatpush1.msra.mxu0 %v1184
    %1206 = vmatprep.subr.mxu0 0.0
    %1207 = vmatpush1.msra.mxu0 0.0
    %1208 = vmatprep.subr.mxu0 0.0
    %1209 = vmatpush1.msra.mxu0 0.0
    %1210 = vmatprep.subr.mxu0 0.0
    %1211 = vmatpush1.msra.mxu0 0.0
    %1212 = vmatprep.subr.mxu0 0.0
    %1213 = vmatpush1.msra.mxu0 0.0
    %1214 = vmatprep.subr.mxu0 0.0
    %1215 = vmatpush1.msra.mxu0 0.0
    %1216 = vmatprep.subr.mxu0 0.0
    %1217 = vmatpush1.msra.mxu0 0.0
    %1218 = vmatprep.subr.mxu0 0.0
    %1219 = vmatpush1.msra.mxu0 0.0
    %1220 = vmatprep.subr.mxu0 0.0
    %1221 = vmatpush1.msra.mxu0 0.0
    %1222 = vmatprep.subr.mxu0 0.0
    %1223 = vmatpush1.msra.mxu0 0.0
    %1224 = vmatprep.subr.mxu0 0.0
    %1225 = vmatpush1.msra.mxu0 0.0
    %1226 = vmatprep.subr.mxu0 0.0
    %1227 = vmatpush1.msra.mxu0 0.0
    %1228 = vmatprep.subr.mxu0 0.0
    %1229 = vmatpush1.msra.mxu0 0.0
    %1230 = vmatprep.subr.mxu0 0.0
    %1231 = vmatpush1.msra.mxu0 0.0
    %1232 = vmatprep.subr.mxu0 0.0
    %1233 = vmatpush1.msra.mxu0 0.0
    %1234 = vmatprep.subr.mxu0 0.0
    %1235 = vmatpush1.msra.mxu0 0.0
    %1236 = vmatprep.subr.mxu0 0.0
    %1237 = vmatpush1.msra.mxu0 0.0
    %1238 = vmatprep.subr.mxu0 0.0
    %1239 = vmatpush1.msra.mxu0 0.0
    %1240 = vmatprep.subr.mxu0 0.0
    %1241 = vmatpush1.msra.mxu0 0.0
    %1242 = vmatprep.subr.mxu0 0.0
    %1243 = vmatpush1.msra.mxu0 0.0
    %1244 = vmatprep.subr.mxu0 0.0
    %1245 = vmatpush1.msra.mxu0 0.0
    %1246 = vmatprep.subr.mxu0 0.0
    %1247 = vmatpush1.msra.mxu0 0.0
    %1248 = vmatprep.subr.mxu0 0.0
    %1249 = vmatpush1.msra.mxu0 0.0
    %1250 = vmatprep.subr.mxu0 0.0
    %1251 = vmatpush1.msra.mxu0 0.0
    %1252 = vmatprep.subr.mxu0 0.0
    %1253 = vmatpush1.msra.mxu0 0.0
    %1254 = vmatprep.subr.mxu0 0.0
    %1255 = vmatpush1.msra.mxu0 0.0
    %1256 = vmatprep.subr.mxu0 0.0
    %1257 = vmatpush1.msra.mxu0 0.0
    %1258 = vmatprep.subr.mxu0 0.0
    %1259 = vmatpush1.msra.mxu0 0.0
    %1260 = vmatprep.subr.mxu0 0.0
    %1261 = vmatpush1.msra.mxu0 0.0
    %1262 = vmatprep.mubr.f32.mxu0 0.0
    %1263 = vmatmul.mubr.f32.gmra.mrb[0].mxu0 %v1193
    %v1264 = vpop.f32.mrb[0].mxu0
    %v1265 = vadd.f32 %v1190, %v1264
    %v1266 = vpop.f32.mrb[0].mxu0
    %1267 = vmatprep.mubr.f32.mxu0 0.0
    %1268 = vmatmul.mubr.f32.gmra.mrb[0].mxu0 %v1196
    %v1269 = vpop.f32.mrb[0].mxu0
    %v1270 = vadd.f32 %v1190, %v1269
    %v1271 = vpop.f32.mrb[0].mxu0
    %1272 = vdwg.mxu0
    %v1273 = vadd.f32 %v1265, %v373
    %v1274 = vadd.f32 %v1270, %v374
    %v1275 = vld [vmem:[%s10] sm:$0x1]
    %v1276 = vld [vmem:[%s11] sm:$0x1]
    %v1277 = vsel %vm331, %v1273, 0.0
    %1278 = vadd.xlane.f32.xlu0 %v1277
    %v1279 = vpop.xlane.xlu0 %1278
    %v1280 = vsel %vm331, %v1274, 0.0
    %1281 = vadd.xlane.f32.xlu0 %v1280
    %v1282 = vpop.xlane.xlu0 %1281
    %v1283 = vmul.f32 %v1279, %v338
    %v1284 = vmul.f32 %v1282, %v338
    %v1285 = vsub.f32 %v1273, %v1283
    %v1286 = vsub.f32 %v1274, %v1284
    %v1287 = vmul.f32 %v1285, %v1285
    %v1288 = vmul.f32 %v1286, %v1286
    %v1289 = vsel %vm331, %v1287, 0.0
    %1290 = vadd.xlane.f32.xlu0 %v1289
    %v1291 = vpop.xlane.xlu0 %1290
    %v1292 = vsel %vm331, %v1288, 0.0
    %1293 = vadd.xlane.f32.xlu0 %v1292
    %v1294 = vpop.xlane.xlu0 %1293
    %v1295 = vmul.f32 %v1291, %v338
    %v1296 = vmul.f32 %v1294, %v338
    %v1297 = vadd.f32 %v1295, 1e-12
    %v1298 = vadd.f32 %v1296, 1e-12
    %v1299 = vrsqrt.pop %v1297
    %v1300 = vrsqrt.pop %v1298
    %v1301 = vmul.f32 %v1285, %v1299
    %v1302 = vmul.f32 %v1286, %v1300
    %v1304 = vlaneseq
    %v1305 = vshrl.u32 %v1304, 7
    %v1306 = vsub.s32 0, %v1305
    %v1307 = vrot.slane %v1275, %v1306
    %v1309 = vmul.f32 %v1301, %v1307
    %v1310 = vmul.f32 %v1302, %v1307
    %v1312 = vlaneseq
    %v1313 = vshrl.u32 %v1312, 7
    %v1314 = vsub.s32 0, %v1313
    %v1315 = vrot.slane %v1276, %v1314
    %v1317 = vadd.f32 %v1309, %v1315
    %v1318 = vadd.f32 %v1310, %v1315
    %v1319 = vld [vmem:[#allocation10] sm:$0xff]
    %v1320 = vld [vmem:[#allocation10 + $0x8] sm:$0xff]
    %v1321 = vld [vmem:[#allocation10 + $0x10] sm:$0xff]
    %v1322 = vld [vmem:[#allocation10 + $0x18] sm:$0xff]
    %v1323 = vld [vmem:[%s13] sm:$0x1]
    %v1325 = vlaneseq
    %v1326 = vshrl.u32 %v1325, 7
    %v1327 = vsub.s32 0, %v1326
    %v1328 = vrot.slane %v1323, %v1327
    %v1331 = vsel %vm331, %v1317, 0
    %v1334 = vsel %vm331, %v1318, 0
    %1336 = vmatprep.subr.mxu0 0.0
    %1337 = vmatpush1.msra.mxu0 %v1319
    %1338 = vmatprep.subr.mxu0 0.0
    %1339 = vmatpush1.msra.mxu0 %v1320
    %1340 = vmatprep.subr.mxu0 0.0
    %1341 = vmatpush1.msra.mxu0 %v1321
    %1342 = vmatprep.subr.mxu0 0.0
    %1343 = vmatpush1.msra.mxu0 %v1322
    %1344 = vmatprep.subr.mxu0 0.0
    %1345 = vmatpush1.msra.mxu0 0.0
    %1346 = vmatprep.subr.mxu0 0.0
    %1347 = vmatpush1.msra.mxu0 0.0
    %1348 = vmatprep.subr.mxu0 0.0
    %1349 = vmatpush1.msra.mxu0 0.0
    %1350 = vmatprep.subr.mxu0 0.0
    %1351 = vmatpush1.msra.mxu0 0.0
    %1352 = vmatprep.subr.mxu0 0.0
    %1353 = vmatpush1.msra.mxu0 0.0
    %1354 = vmatprep.subr.mxu0 0.0
    %1355 = vmatpush1.msra.mxu0 0.0
    %1356 = vmatprep.subr.mxu0 0.0
    %1357 = vmatpush1.msra.mxu0 0.0
    %1358 = vmatprep.subr.mxu0 0.0
    %1359 = vmatpush1.msra.mxu0 0.0
    %1360 = vmatprep.subr.mxu0 0.0
    %1361 = vmatpush1.msra.mxu0 0.0
    %1362 = vmatprep.subr.mxu0 0.0
    %1363 = vmatpush1.msra.mxu0 0.0
    %1364 = vmatprep.subr.mxu0 0.0
    %1365 = vmatpush1.msra.mxu0 0.0
    %1366 = vmatprep.subr.mxu0 0.0
    %1367 = vmatpush1.msra.mxu0 0.0
    %1368 = vmatprep.subr.mxu0 0.0
    %1369 = vmatpush1.msra.mxu0 0.0
    %1370 = vmatprep.subr.mxu0 0.0
    %1371 = vmatpush1.msra.mxu0 0.0
    %1372 = vmatprep.subr.mxu0 0.0
    %1373 = vmatpush1.msra.mxu0 0.0
    %1374 = vmatprep.subr.mxu0 0.0
    %1375 = vmatpush1.msra.mxu0 0.0
    %1376 = vmatprep.subr.mxu0 0.0
    %1377 = vmatpush1.msra.mxu0 0.0
    %1378 = vmatprep.subr.mxu0 0.0
    %1379 = vmatpush1.msra.mxu0 0.0
    %1380 = vmatprep.subr.mxu0 0.0
    %1381 = vmatpush1.msra.mxu0 0.0
    %1382 = vmatprep.subr.mxu0 0.0
    %1383 = vmatpush1.msra.mxu0 0.0
    %1384 = vmatprep.subr.mxu0 0.0
    %1385 = vmatpush1.msra.mxu0 0.0
    %1386 = vmatprep.subr.mxu0 0.0
    %1387 = vmatpush1.msra.mxu0 0.0
    %1388 = vmatprep.subr.mxu0 0.0
    %1389 = vmatpush1.msra.mxu0 0.0
    %1390 = vmatprep.subr.mxu0 0.0
    %1391 = vmatpush1.msra.mxu0 0.0
    %1392 = vmatprep.subr.mxu0 0.0
    %1393 = vmatpush1.msra.mxu0 0.0
    %1394 = vmatprep.subr.mxu0 0.0
    %1395 = vmatpush1.msra.mxu0 0.0
    %1396 = vmatprep.subr.mxu0 0.0
    %1397 = vmatpush1.msra.mxu0 0.0
    %1398 = vmatprep.subr.mxu0 0.0
    %1399 = vmatpush1.msra.mxu0 0.0
    %1400 = vmatprep.mubr.f32.mxu0 0.0
    %1401 = vmatmul.mubr.f32.gmra.mrb[0].mxu0 %v1331
    %v1402 = vpop.f32.mrb[0].mxu0
    %v1403 = vadd.f32 %v1328, %v1402
    %v1404 = vpop.f32.mrb[0].mxu0
    %1405 = vmatprep.mubr.f32.mxu0 0.0
    %1406 = vmatmul.mubr.f32.gmra.mrb[0].mxu0 %v1334
    %v1407 = vpop.f32.mrb[0].mxu0
    %v1408 = vadd.f32 %v1328, %v1407
    %v1409 = vpop.f32.mrb[0].mxu0
    %1410 = vdwg.mxu0
    %v1411 = vmul.f32 %v1403, 0.5
    %v1412 = vmul.f32 %v1408, 0.5
    %v1413 = vmul.f32 %v1403, 0.044715
    %v1414 = vmul.f32 %v1408, 0.044715
    %v1415 = vmul.f32 %v1413, %v1403
    %v1416 = vmul.f32 %v1414, %v1408
    %v1417 = vmul.f32 %v1415, %v1403
    %v1418 = vmul.f32 %v1416, %v1408
    %v1419 = vadd.f32 %v1403, %v1417
    %v1420 = vadd.f32 %v1408, %v1418
    %v1421 = vmul.f32 %v1419, 0.7978846
    %v1422 = vmul.f32 %v1420, 0.7978846
    %v1423 = vtanh.pop %v1421
    %v1424 = vtanh.pop %v1422
    %v1425 = vadd.f32 %v1423, 1.0
    %v1426 = vadd.f32 %v1424, 1.0
    %v1427 = vmul.f32 %v1411, %v1425
    %v1428 = vmul.f32 %v1412, %v1426
    %v1429 = vld [vmem:[#allocation11] sm:$0xff]
    %v1430 = vld [vmem:[#allocation11 + $0x8] sm:$0xff]
    %v1431 = vld [vmem:[#allocation11 + $0x10] sm:$0xff]
    %v1432 = vld [vmem:[#allocation11 + $0x18] sm:$0xff]
    %v1433 = vld [vmem:[#allocation11 + $0x20] sm:$0xff]
    %v1434 = vld [vmem:[#allocation11 + $0x28] sm:$0xff]
    %v1435 = vld [vmem:[#allocation11 + $0x30] sm:$0xff]
    %v1436 = vld [vmem:[#allocation11 + $0x38] sm:$0xff]
    %v1437 = vld [vmem:[%s15] sm:$0x1]
    %v1439 = vlaneseq
    %v1440 = vshrl.u32 %v1439, 7
    %v1441 = vsub.s32 0, %v1440
    %v1442 = vrot.slane %v1437, %v1441
    %vm1444 = vcmask 523264
    %v1446 = vsel %vm1444, %v1427, 0
    %v1449 = vsel %vm1444, %v1428, 0
    %1451 = vmatprep.subr.mxu0 0.0
    %1452 = vmatpush1.msra.mxu0 %v1429
    %1453 = vmatprep.subr.mxu0 0.0
    %1454 = vmatpush1.msra.mxu0 %v1430
    %1455 = vmatprep.subr.mxu0 0.0
    %1456 = vmatpush1.msra.mxu0 %v1431
    %1457 = vmatprep.subr.mxu0 0.0
    %1458 = vmatpush1.msra.mxu0 %v1432
    %1459 = vmatprep.subr.mxu0 0.0
    %1460 = vmatpush1.msra.mxu0 %v1433
    %1461 = vmatprep.subr.mxu0 0.0
    %1462 = vmatpush1.msra.mxu0 %v1434
    %1463 = vmatprep.subr.mxu0 0.0
    %1464 = vmatpush1.msra.mxu0 %v1435
    %1465 = vmatprep.subr.mxu0 0.0
    %1466 = vmatpush1.msra.mxu0 %v1436
    %1467 = vmatprep.subr.mxu0 0.0
    %1468 = vmatpush1.msra.mxu0 0.0
    %1469 = vmatprep.subr.mxu0 0.0
    %1470 = vmatpush1.msra.mxu0 0.0
    %1471 = vmatprep.subr.mxu0 0.0
    %1472 = vmatpush1.msra.mxu0 0.0
    %1473 = vmatprep.subr.mxu0 0.0
    %1474 = vmatpush1.msra.mxu0 0.0
    %1475 = vmatprep.subr.mxu0 0.0
    %1476 = vmatpush1.msra.mxu0 0.0
    %1477 = vmatprep.subr.mxu0 0.0
    %1478 = vmatpush1.msra.mxu0 0.0
    %1479 = vmatprep.subr.mxu0 0.0
    %1480 = vmatpush1.msra.mxu0 0.0
    %1481 = vmatprep.subr.mxu0 0.0
    %1482 = vmatpush1.msra.mxu0 0.0
    %1483 = vmatprep.subr.mxu0 0.0
    %1484 = vmatpush1.msra.mxu0 0.0
    %1485 = vmatprep.subr.mxu0 0.0
    %1486 = vmatpush1.msra.mxu0 0.0
    %1487 = vmatprep.subr.mxu0 0.0
    %1488 = vmatpush1.msra.mxu0 0.0
    %1489 = vmatprep.subr.mxu0 0.0
    %1490 = vmatpush1.msra.mxu0 0.0
    %1491 = vmatprep.subr.mxu0 0.0
    %1492 = vmatpush1.msra.mxu0 0.0
    %1493 = vmatprep.subr.mxu0 0.0
    %1494 = vmatpush1.msra.mxu0 0.0
    %1495 = vmatprep.subr.mxu0 0.0
    %1496 = vmatpush1.msra.mxu0 0.0
    %1497 = vmatprep.subr.mxu0 0.0
    %1498 = vmatpush1.msra.mxu0 0.0
    %1499 = vmatprep.subr.mxu0 0.0
    %1500 = vmatpush1.msra.mxu0 0.0
    %1501 = vmatprep.subr.mxu0 0.0
    %1502 = vmatpush1.msra.mxu0 0.0
    %1503 = vmatprep.subr.mxu0 0.0
    %1504 = vmatpush1.msra.mxu0 0.0
    %1505 = vmatprep.subr.mxu0 0.0
    %1506 = vmatpush1.msra.mxu0 0.0
    %1507 = vmatprep.subr.mxu0 0.0
    %1508 = vmatpush1.msra.mxu0 0.0
    %1509 = vmatprep.subr.mxu0 0.0
    %1510 = vmatpush1.msra.mxu0 0.0
    %1511 = vmatprep.subr.mxu0 0.0
    %1512 = vmatpush1.msra.mxu0 0.0
    %1513 = vmatprep.subr.mxu0 0.0
    %1514 = vmatpush1.msra.mxu0 0.0
    %1515 = vmatprep.mubr.f32.mxu0 0.0
    %1516 = vmatmul.mubr.f32.gmra.mrb[0].mxu0 %v1446
    %v1517 = vpop.f32.mrb[0].mxu0
    %v1518 = vadd.f32 %v1442, %v1517
    %v1519 = vpop.f32.mrb[0].mxu0
    %1520 = vmatprep.mubr.f32.mxu0 0.0
    %1521 = vmatmul.mubr.f32.gmra.mrb[0].mxu0 %v1449
    %v1522 = vpop.f32.mrb[0].mxu0
    %v1523 = vadd.f32 %v1442, %v1522
    %v1524 = vpop.f32.mrb[0].mxu0
    %1525 = vdwg.mxu0
    %v1526 = vadd.f32 %v1518, %v1317
    %v1527 = vadd.f32 %v1523, %v1318
    %v1528 = vld [vmem:[%s16] sm:$0x1]
    %v1529 = vld [vmem:[%s17] sm:$0x1]
    %v1530 = vsel %vm331, %v1526, 0.0
    %1531 = vadd.xlane.f32.xlu0 %v1530
    %v1532 = vpop.xlane.xlu0 %1531
    %v1533 = vsel %vm331, %v1527, 0.0
    %1534 = vadd.xlane.f32.xlu0 %v1533
    %v1535 = vpop.xlane.xlu0 %1534
    %v1536 = vmul.f32 %v1532, %v338
    %v1537 = vmul.f32 %v1535, %v338
    %v1538 = vsub.f32 %v1526, %v1536
    %v1539 = vsub.f32 %v1527, %v1537
    %v1540 = vmul.f32 %v1538, %v1538
    %v1541 = vmul.f32 %v1539, %v1539
    %v1542 = vsel %vm331, %v1540, 0.0
    %1543 = vadd.xlane.f32.xlu0 %v1542
    %v1544 = vpop.xlane.xlu0 %1543
    %v1545 = vsel %vm331, %v1541, 0.0
    %1546 = vadd.xlane.f32.xlu0 %v1545
    %v1547 = vpop.xlane.xlu0 %1546
    %v1548 = vmul.f32 %v1544, %v338
    %v1549 = vmul.f32 %v1547, %v338
    %v1550 = vadd.f32 %v1548, 1e-12
    %v1551 = vadd.f32 %v1549, 1e-12
    %v1552 = vrsqrt.pop %v1550
    %v1553 = vrsqrt.pop %v1551
    %v1554 = vmul.f32 %v1538, %v1552
    %v1555 = vmul.f32 %v1539, %v1553
    %v1557 = vlaneseq
    %v1558 = vshrl.u32 %v1557, 7
    %v1559 = vsub.s32 0, %v1558
    %v1560 = vrot.slane %v1528, %v1559
    %v1562 = vmul.f32 %v1554, %v1560
    %v1563 = vmul.f32 %v1555, %v1560
    %v1565 = vlaneseq
    %v1566 = vshrl.u32 %v1565, 7
    %v1567 = vsub.s32 0, %v1566
    %v1568 = vrot.slane %v1529, %v1567
    %v1570 = vadd.f32 %v1562, %v1568
    %v1571 = vadd.f32 %v1563, %v1568
    %s1572 = scalar_lea.vmem [#allocation7], 32
    %v1573 = vld [vmem:[%s1572] sm:$0xff]
    %v1574 = vld [vmem:[%s1572 + $0x8] sm:$0xff]
    %v1575 = vld [vmem:[%s1572 + $0x10] sm:$0xff]
    %v1576 = vld [vmem:[%s1572 + $0x18] sm:$0xff]
    %s1577 = scalar_lea.vmem %s7, 1
    %v1578 = vld [vmem:[%s1577] sm:$0x1]
    %v1580 = vlaneseq
    %v1581 = vshrl.u32 %v1580, 7
    %v1582 = vsub.s32 0, %v1581
    %v1583 = vrot.slane %v1578, %v1582
    %v1586 = vsel %vm331, %v1570, 0
    %v1589 = vsel %vm331, %v1571, 0
    %1591 = vmatprep.subr.mxu0 0.0
    %1592 = vmatpush1.msra.mxu0 %v1573
    %1593 = vmatprep.subr.mxu0 0.0
    %1594 = vmatpush1.msra.mxu0 %v1574
    %1595 = vmatprep.subr.mxu0 0.0
    %1596 = vmatpush1.msra.mxu0 %v1575
    %1597 = vmatprep.subr.mxu0 0.0
    %1598 = vmatpush1.msra.mxu0 %v1576
    %1599 = vmatprep.subr.mxu0 0.0
    %1600 = vmatpush1.msra.mxu0 0.0
    %1601 = vmatprep.subr.mxu0 0.0
    %1602 = vmatpush1.msra.mxu0 0.0
    %1603 = vmatprep.subr.mxu0 0.0
    %1604 = vmatpush1.msra.mxu0 0.0
    %1605 = vmatprep.subr.mxu0 0.0
    %1606 = vmatpush1.msra.mxu0 0.0
    %1607 = vmatprep.subr.mxu0 0.0
    %1608 = vmatpush1.msra.mxu0 0.0
    %1609 = vmatprep.subr.mxu0 0.0
    %1610 = vmatpush1.msra.mxu0 0.0
    %1611 = vmatprep.subr.mxu0 0.0
    %1612 = vmatpush1.msra.mxu0 0.0
    %1613 = vmatprep.subr.mxu0 0.0
    %1614 = vmatpush1.msra.mxu0 0.0
    %1615 = vmatprep.subr.mxu0 0.0
    %1616 = vmatpush1.msra.mxu0 0.0
    %1617 = vmatprep.subr.mxu0 0.0
    %1618 = vmatpush1.msra.mxu0 0.0
    %1619 = vmatprep.subr.mxu0 0.0
    %1620 = vmatpush1.msra.mxu0 0.0
    %1621 = vmatprep.subr.mxu0 0.0
    %1622 = vmatpush1.msra.mxu0 0.0
    %1623 = vmatprep.subr.mxu0 0.0
    %1624 = vmatpush1.msra.mxu0 0.0
    %1625 = vmatprep.subr.mxu0 0.0
    %1626 = vmatpush1.msra.mxu0 0.0
    %1627 = vmatprep.subr.mxu0 0.0
    %1628 = vmatpush1.msra.mxu0 0.0
    %1629 = vmatprep.subr.mxu0 0.0
    %1630 = vmatpush1.msra.mxu0 0.0
    %1631 = vmatprep.subr.mxu0 0.0
    %1632 = vmatpush1.msra.mxu0 0.0
    %1633 = vmatprep.subr.mxu0 0.0
    %1634 = vmatpush1.msra.mxu0 0.0
    %1635 = vmatprep.subr.mxu0 0.0
    %1636 = vmatpush1.msra.mxu0 0.0
    %1637 = vmatprep.subr.mxu0 0.0
    %1638 = vmatpush1.msra.mxu0 0.0
    %1639 = vmatprep.subr.mxu0 0.0
    %1640 = vmatpush1.msra.mxu0 0.0
    %1641 = vmatprep.subr.mxu0 0.0
    %1642 = vmatpush1.msra.mxu0 0.0
    %1643 = vmatprep.subr.mxu0 0.0
    %1644 = vmatpush1.msra.mxu0 0.0
    %1645 = vmatprep.subr.mxu0 0.0
    %1646 = vmatpush1.msra.mxu0 0.0
    %1647 = vmatprep.subr.mxu0 0.0
    %1648 = vmatpush1.msra.mxu0 0.0
    %1649 = vmatprep.subr.mxu0 0.0
    %1650 = vmatpush1.msra.mxu0 0.0
    %1651 = vmatprep.subr.mxu0 0.0
    %1652 = vmatpush1.msra.mxu0 0.0
    %1653 = vmatprep.subr.mxu0 0.0
    %1654 = vmatpush1.msra.mxu0 0.0
    %1655 = vmatprep.mubr.f32.mxu0 0.0
    %1656 = vmatmul.mubr.f32.gmra.mrb[0].mxu0 %v1586
    %v1657 = vpop.f32.mrb[0].mxu0
    %v1658 = vadd.f32 %v1583, %v1657
    %v1659 = vpop.f32.mrb[0].mxu0
    %1660 = vmatprep.mubr.f32.mxu0 0.0
    %1661 = vmatmul.mubr.f32.gmra.mrb[0].mxu0 %v1589
    %v1662 = vpop.f32.mrb[0].mxu0
    %v1663 = vadd.f32 %v1583, %v1662
    %v1664 = vpop.f32.mrb[0].mxu0
    %1665 = vdwg.mxu0
    %1667 = vrot.lane.b32.xlu0 %v1658, 96
    %v1668 = vpop.permute.xlu0 %1667
    %v1669 = vsel %vm496, %v1658, 0
    %v1671 = vsel %vm496, %v1668, 0
    %1673 = vmatprep.subr.mxu0 0.0
    %1674 = vmatpush1.xpose.msra.mxu0 %v1671
    %1675 = vmatprep.subr.mxu0 0.0
    %1676 = vmatpush1.xpose.msra.mxu0 0.0
    %1677 = vmatprep.subr.mxu0 0.0
    %1678 = vmatpush1.xpose.msra.mxu0 0.0
    %1679 = vmatprep.subr.mxu0 0.0
    %1680 = vmatpush1.xpose.msra.mxu0 0.0
    %1681 = vmatprep.subr.mxu0 0.0
    %1682 = vmatpush1.xpose.msra.mxu0 0.0
    %1683 = vmatprep.subr.mxu0 0.0
    %1684 = vmatpush1.xpose.msra.mxu0 0.0
    %1685 = vmatprep.subr.mxu0 0.0
    %1686 = vmatpush1.xpose.msra.mxu0 0.0
    %1687 = vmatprep.subr.mxu0 0.0
    %1688 = vmatpush1.xpose.msra.mxu0 0.0
    %1689 = vmatprep.subr.mxu0 0.0
    %1690 = vmatpush1.xpose.msra.mxu0 0.0
    %1691 = vmatprep.subr.mxu0 0.0
    %1692 = vmatpush1.xpose.msra.mxu0 0.0
    %1693 = vmatprep.subr.mxu0 0.0
    %1694 = vmatpush1.xpose.msra.mxu0 0.0
    %1695 = vmatprep.subr.mxu0 0.0
    %1696 = vmatpush1.xpose.msra.mxu0 0.0
    %1697 = vmatprep.subr.mxu0 0.0
    %1698 = vmatpush1.xpose.msra.mxu0 0.0
    %1699 = vmatprep.subr.mxu0 0.0
    %1700 = vmatpush1.xpose.msra.mxu0 0.0
    %1701 = vmatprep.subr.mxu0 0.0
    %1702 = vmatpush1.xpose.msra.mxu0 0.0
    %1703 = vmatprep.subr.mxu0 0.0
    %1704 = vmatpush1.xpose.msra.mxu0 0.0
    %1705 = vmatprep.subr.mxu0 0.0
    %1706 = vmatpush1.xpose.msra.mxu0 0.0
    %1707 = vmatprep.subr.mxu0 0.0
    %1708 = vmatpush1.xpose.msra.mxu0 0.0
    %1709 = vmatprep.subr.mxu0 0.0
    %1710 = vmatpush1.xpose.msra.mxu0 0.0
    %1711 = vmatprep.subr.mxu0 0.0
    %1712 = vmatpush1.xpose.msra.mxu0 0.0
    %1713 = vmatprep.subr.mxu0 0.0
    %1714 = vmatpush1.xpose.msra.mxu0 0.0
    %1715 = vmatprep.subr.mxu0 0.0
    %1716 = vmatpush1.xpose.msra.mxu0 0.0
    %1717 = vmatprep.subr.mxu0 0.0
    %1718 = vmatpush1.xpose.msra.mxu0 0.0
    %1719 = vmatprep.subr.mxu0 0.0
    %1720 = vmatpush1.xpose.msra.mxu0 0.0
    %1721 = vmatprep.subr.mxu0 0.0
    %1722 = vmatpush1.xpose.msra.mxu0 0.0
    %1723 = vmatprep.subr.mxu0 0.0
    %1724 = vmatpush1.xpose.msra.mxu0 0.0
    %1725 = vmatprep.subr.mxu0 0.0
    %1726 = vmatpush1.xpose.msra.mxu0 0.0
    %1727 = vmatprep.subr.mxu0 0.0
    %1728 = vmatpush1.xpose.msra.mxu0 0.0
    %1729 = vmatprep.subr.mxu0 0.0
    %1730 = vmatpush1.xpose.msra.mxu0 0.0
    %1731 = vmatprep.subr.mxu0 0.0
    %1732 = vmatpush1.xpose.msra.mxu0 0.0
    %1733 = vmatprep.subr.mxu0 0.0
    %1734 = vmatpush1.xpose.msra.mxu0 0.0
    %1735 = vmatprep.subr.mxu0 0.0
    %1736 = vmatpush1.xpose.msra.mxu0 0.0
    %1737 = vmatprep.mubr.f32.mxu0 0.0
    %1738 = vmatmul.mubr.f32.gmra.mrb[0].mxu0 %v1669
    %v1739 = vpop.f32.mrb[0].mxu0
    %v1740 = vadd.f32 0.0, %v1739
    %v1741 = vpop.f32.mrb[0].mxu0
    %1742 = vdwg.mxu0
    %1744 = vrot.lane.b32.xlu0 %v1663, 96
    %v1745 = vpop.permute.xlu0 %1744
    %v1746 = vsel %vm496, %v1663, 0
    %v1748 = vsel %vm496, %v1745, 0
    %1750 = vmatprep.subr.mxu0 0.0
    %1751 = vmatpush1.xpose.msra.mxu0 %v1748
    %1752 = vmatprep.subr.mxu0 0.0
    %1753 = vmatpush1.xpose.msra.mxu0 0.0
    %1754 = vmatprep.subr.mxu0 0.0
    %1755 = vmatpush1.xpose.msra.mxu0 0.0
    %1756 = vmatprep.subr.mxu0 0.0
    %1757 = vmatpush1.xpose.msra.mxu0 0.0
    %1758 = vmatprep.subr.mxu0 0.0
    %1759 = vmatpush1.xpose.msra.mxu0 0.0
    %1760 = vmatprep.subr.mxu0 0.0
    %1761 = vmatpush1.xpose.msra.mxu0 0.0
    %1762 = vmatprep.subr.mxu0 0.0
    %1763 = vmatpush1.xpose.msra.mxu0 0.0
    %1764 = vmatprep.subr.mxu0 0.0
    %1765 = vmatpush1.xpose.msra.mxu0 0.0
    %1766 = vmatprep.subr.mxu0 0.0
    %1767 = vmatpush1.xpose.msra.mxu0 0.0
    %1768 = vmatprep.subr.mxu0 0.0
    %1769 = vmatpush1.xpose.msra.mxu0 0.0
    %1770 = vmatprep.subr.mxu0 0.0
    %1771 = vmatpush1.xpose.msra.mxu0 0.0
    %1772 = vmatprep.subr.mxu0 0.0
    %1773 = vmatpush1.xpose.msra.mxu0 0.0
    %1774 = vmatprep.subr.mxu0 0.0
    %1775 = vmatpush1.xpose.msra.mxu0 0.0
    %1776 = vmatprep.subr.mxu0 0.0
    %1777 = vmatpush1.xpose.msra.mxu0 0.0
    %1778 = vmatprep.subr.mxu0 0.0
    %1779 = vmatpush1.xpose.msra.mxu0 0.0
    %1780 = vmatprep.subr.mxu0 0.0
    %1781 = vmatpush1.xpose.msra.mxu0 0.0
    %1782 = vmatprep.subr.mxu0 0.0
    %1783 = vmatpush1.xpose.msra.mxu0 0.0
    %1784 = vmatprep.subr.mxu0 0.0
    %1785 = vmatpush1.xpose.msra.mxu0 0.0
    %1786 = vmatprep.subr.mxu0 0.0
    %1787 = vmatpush1.xpose.msra.mxu0 0.0
    %1788 = vmatprep.subr.mxu0 0.0
    %1789 = vmatpush1.xpose.msra.mxu0 0.0
    %1790 = vmatprep.subr.mxu0 0.0
    %1791 = vmatpush1.xpose.msra.mxu0 0.0
    %1792 = vmatprep.subr.mxu0 0.0
    %1793 = vmatpush1.xpose.msra.mxu0 0.0
    %1794 = vmatprep.subr.mxu0 0.0
    %1795 = vmatpush1.xpose.msra.mxu0 0.0
    %1796 = vmatprep.subr.mxu0 0.0
    %1797 = vmatpush1.xpose.msra.mxu0 0.0
    %1798 = vmatprep.subr.mxu0 0.0
    %1799 = vmatpush1.xpose.msra.mxu0 0.0
    %1800 = vmatprep.subr.mxu0 0.0
    %1801 = vmatpush1.xpose.msra.mxu0 0.0
    %1802 = vmatprep.subr.mxu0 0.0
    %1803 = vmatpush1.xpose.msra.mxu0 0.0
    %1804 = vmatprep.subr.mxu0 0.0
    %1805 = vmatpush1.xpose.msra.mxu0 0.0
    %1806 = vmatprep.subr.mxu0 0.0
    %1807 = vmatpush1.xpose.msra.mxu0 0.0
    %1808 = vmatprep.subr.mxu0 0.0
    %1809 = vmatpush1.xpose.msra.mxu0 0.0
    %1810 = vmatprep.subr.mxu0 0.0
    %1811 = vmatpush1.xpose.msra.mxu0 0.0
    %1812 = vmatprep.subr.mxu0 0.0
    %1813 = vmatpush1.xpose.msra.mxu0 0.0
    %1814 = vmatprep.mubr.f32.mxu0 0.0
    %1815 = vmatmul.mubr.f32.gmra.mrb[0].mxu0 %v1746
    %v1816 = vpop.f32.mrb[0].mxu0
    %v1817 = vadd.f32 0.0, %v1816
    %v1818 = vpop.f32.mrb[0].mxu0
    %1819 = vdwg.mxu0
    %v1820 = vmul.f32 %v1740, 0.25
    %v1821 = vmul.f32 %v1817, 0.25
    %v1822 = vadd.f32 %v1820, %v653
    %v1823 = vadd.f32 %v1821, %v657
    %v1824 = vsel %vm662, %v1822, -inf
    %1825 = vmax.xlane.f32.xlu0 %v1824
    %v1826 = vpop.xlane.xlu0 %1825
    %v1827 = vsel %vm662, %v1823, -inf
    %1828 = vmax.xlane.f32.xlu0 %v1827
    %v1829 = vpop.xlane.xlu0 %1828
    %v1830 = vsub.f32 %v1822, %v1826
    %v1831 = vsub.f32 %v1823, %v1829
    %v1832 = vmul.f32 %v1830, 1.442695
    %v1833 = vpow.pop %v1832
    %v1834 = vmul.f32 %v1831, 1.442695
    %v1835 = vpow.pop %v1834
    %v1836 = vsel %vm662, %v1833, 0.0
    %1837 = vadd.xlane.f32.xlu0 %v1836
    %v1838 = vpop.xlane.xlu0 %1837
    %v1839 = vsel %vm662, %v1835, 0.0
    %1840 = vadd.xlane.f32.xlu0 %v1839
    %v1841 = vpop.xlane.xlu0 %1840
    %v1842 = vrcp.pop %v1838
    %v1843 = vrcp.pop %v1841
    %v1844 = vmul.f32 %v1833, %v1842
    %v1845 = vmul.f32 %v1835, %v1843
    %1846 = vrot.lane.b32.xlu0 %v1658, 64
    %v1847 = vpop.permute.xlu0 %1846
    %v1850 = vsel %vm662, %v1844, 0
    %1852 = vmatprep.subr.mxu0 0.0
    %1853 = vmatpush1.msra.mxu0 %v1847
    %1854 = vmatprep.subr.mxu0 0.0
    %1855 = vmatpush1.msra.mxu0 0.0
    %1856 = vmatprep.subr.mxu0 0.0
    %1857 = vmatpush1.msra.mxu0 0.0
    %1858 = vmatprep.subr.mxu0 0.0
    %1859 = vmatpush1.msra.mxu0 0.0
    %1860 = vmatprep.subr.mxu0 0.0
    %1861 = vmatpush1.msra.mxu0 0.0
    %1862 = vmatprep.subr.mxu0 0.0
    %1863 = vmatpush1.msra.mxu0 0.0
    %1864 = vmatprep.subr.mxu0 0.0
    %1865 = vmatpush1.msra.mxu0 0.0
    %1866 = vmatprep.subr.mxu0 0.0
    %1867 = vmatpush1.msra.mxu0 0.0
    %1868 = vmatprep.subr.mxu0 0.0
    %1869 = vmatpush1.msra.mxu0 0.0
    %1870 = vmatprep.subr.mxu0 0.0
    %1871 = vmatpush1.msra.mxu0 0.0
    %1872 = vmatprep.subr.mxu0 0.0
    %1873 = vmatpush1.msra.mxu0 0.0
    %1874 = vmatprep.subr.mxu0 0.0
    %1875 = vmatpush1.msra.mxu0 0.0
    %1876 = vmatprep.subr.mxu0 0.0
    %1877 = vmatpush1.msra.mxu0 0.0
    %1878 = vmatprep.subr.mxu0 0.0
    %1879 = vmatpush1.msra.mxu0 0.0
    %1880 = vmatprep.subr.mxu0 0.0
    %1881 = vmatpush1.msra.mxu0 0.0
    %1882 = vmatprep.subr.mxu0 0.0
    %1883 = vmatpush1.msra.mxu0 0.0
    %1884 = vmatprep.subr.mxu0 0.0
    %1885 = vmatpush1.msra.mxu0 0.0
    %1886 = vmatprep.subr.mxu0 0.0
    %1887 = vmatpush1.msra.mxu0 0.0
    %1888 = vmatprep.subr.mxu0 0.0
    %1889 = vmatpush1.msra.mxu0 0.0
    %1890 = vmatprep.subr.mxu0 0.0
    %1891 = vmatpush1.msra.mxu0 0.0
    %1892 = vmatprep.subr.mxu0 0.0
    %1893 = vmatpush1.msra.mxu0 0.0
    %1894 = vmatprep.subr.mxu0 0.0
    %1895 = vmatpush1.msra.mxu0 0.0
    %1896 = vmatprep.subr.mxu0 0.0
    %1897 = vmatpush1.msra.mxu0 0.0
    %1898 = vmatprep.subr.mxu0 0.0
    %1899 = vmatpush1.msra.mxu0 0.0
    %1900 = vmatprep.subr.mxu0 0.0
    %1901 = vmatpush1.msra.mxu0 0.0
    %1902 = vmatprep.subr.mxu0 0.0
    %1903 = vmatpush1.msra.mxu0 0.0
    %1904 = vmatprep.subr.mxu0 0.0
    %1905 = vmatpush1.msra.mxu0 0.0
    %1906 = vmatprep.subr.mxu0 0.0
    %1907 = vmatpush1.msra.mxu0 0.0
    %1908 = vmatprep.subr.mxu0 0.0
    %1909 = vmatpush1.msra.mxu0 0.0
    %1910 = vmatprep.subr.mxu0 0.0
    %1911 = vmatpush1.msra.mxu0 0.0
    %1912 = vmatprep.subr.mxu0 0.0
    %1913 = vmatpush1.msra.mxu0 0.0
    %1914 = vmatprep.subr.mxu0 0.0
    %1915 = vmatpush1.msra.mxu0 0.0
    %1916 = vmatprep.mubr.f32.mxu0 0.0
    %1917 = vmatmul.mubr.f32.gmra.mrb[0].mxu0 %v1850
    %v1918 = vpop.f32.mrb[0].mxu0
    %v1919 = vadd.f32 0.0, %v1918
    %v1920 = vpop.f32.mrb[0].mxu0
    %1921 = vdwg.mxu0
    %1922 = vrot.lane.b32.xlu0 %v1663, 64
    %v1923 = vpop.permute.xlu0 %1922
    %v1926 = vsel %vm662, %v1845, 0
    %1928 = vmatprep.subr.mxu0 0.0
    %1929 = vmatpush1.msra.mxu0 %v1923
    %1930 = vmatprep.subr.mxu0 0.0
    %1931 = vmatpush1.msra.mxu0 0.0
    %1932 = vmatprep.subr.mxu0 0.0
    %1933 = vmatpush1.msra.mxu0 0.0
    %1934 = vmatprep.subr.mxu0 0.0
    %1935 = vmatpush1.msra.mxu0 0.0
    %1936 = vmatprep.subr.mxu0 0.0
    %1937 = vmatpush1.msra.mxu0 0.0
    %1938 = vmatprep.subr.mxu0 0.0
    %1939 = vmatpush1.msra.mxu0 0.0
    %1940 = vmatprep.subr.mxu0 0.0
    %1941 = vmatpush1.msra.mxu0 0.0
    %1942 = vmatprep.subr.mxu0 0.0
    %1943 = vmatpush1.msra.mxu0 0.0
    %1944 = vmatprep.subr.mxu0 0.0
    %1945 = vmatpush1.msra.mxu0 0.0
    %1946 = vmatprep.subr.mxu0 0.0
    %1947 = vmatpush1.msra.mxu0 0.0
    %1948 = vmatprep.subr.mxu0 0.0
    %1949 = vmatpush1.msra.mxu0 0.0
    %1950 = vmatprep.subr.mxu0 0.0
    %1951 = vmatpush1.msra.mxu0 0.0
    %1952 = vmatprep.subr.mxu0 0.0
    %1953 = vmatpush1.msra.mxu0 0.0
    %1954 = vmatprep.subr.mxu0 0.0
    %1955 = vmatpush1.msra.mxu0 0.0
    %1956 = vmatprep.subr.mxu0 0.0
    %1957 = vmatpush1.msra.mxu0 0.0
    %1958 = vmatprep.subr.mxu0 0.0
    %1959 = vmatpush1.msra.mxu0 0.0
    %1960 = vmatprep.subr.mxu0 0.0
    %1961 = vmatpush1.msra.mxu0 0.0
    %1962 = vmatprep.subr.mxu0 0.0
    %1963 = vmatpush1.msra.mxu0 0.0
    %1964 = vmatprep.subr.mxu0 0.0
    %1965 = vmatpush1.msra.mxu0 0.0
    %1966 = vmatprep.subr.mxu0 0.0
    %1967 = vmatpush1.msra.mxu0 0.0
    %1968 = vmatprep.subr.mxu0 0.0
    %1969 = vmatpush1.msra.mxu0 0.0
    %1970 = vmatprep.subr.mxu0 0.0
    %1971 = vmatpush1.msra.mxu0 0.0
    %1972 = vmatprep.subr.mxu0 0.0
    %1973 = vmatpush1.msra.mxu0 0.0
    %1974 = vmatprep.subr.mxu0 0.0
    %1975 = vmatpush1.msra.mxu0 0.0
    %1976 = vmatprep.subr.mxu0 0.0
    %1977 = vmatpush1.msra.mxu0 0.0
    %1978 = vmatprep.subr.mxu0 0.0
    %1979 = vmatpush1.msra.mxu0 0.0
    %1980 = vmatprep.subr.mxu0 0.0
    %1981 = vmatpush1.msra.mxu0 0.0
    %1982 = vmatprep.subr.mxu0 0.0
    %1983 = vmatpush1.msra.mxu0 0.0
    %1984 = vmatprep.subr.mxu0 0.0
    %1985 = vmatpush1.msra.mxu0 0.0
    %1986 = vmatprep.subr.mxu0 0.0
    %1987 = vmatpush1.msra.mxu0 0.0
    %1988 = vmatprep.subr.mxu0 0.0
    %1989 = vmatpush1.msra.mxu0 0.0
    %1990 = vmatprep.subr.mxu0 0.0
    %1991 = vmatpush1.msra.mxu0 0.0
    %1992 = vmatprep.mubr.f32.mxu0 0.0
    %1993 = vmatmul.mubr.f32.gmra.mrb[0].mxu0 %v1926
    %v1994 = vpop.f32.mrb[0].mxu0
    %v1995 = vadd.f32 0.0, %v1994
    %v1996 = vpop.f32.mrb[0].mxu0
    %1997 = vdwg.mxu0
    %1998 = vrot.lane.b32.xlu0 %v1658, 112
    %v1999 = vpop.permute.xlu0 %1998
    %2000 = vrot.lane.b32.xlu0 %v1658, 80
    %v2001 = vpop.permute.xlu0 %2000
    %v2002 = vsel %vm496, %v1999, 0
    %v2004 = vsel %vm496, %v2001, 0
    %2006 = vmatprep.subr.mxu0 0.0
    %2007 = vmatpush1.xpose.msra.mxu0 %v2004
    %2008 = vmatprep.subr.mxu0 0.0
    %2009 = vmatpush1.xpose.msra.mxu0 0.0
    %2010 = vmatprep.subr.mxu0 0.0
    %2011 = vmatpush1.xpose.msra.mxu0 0.0
    %2012 = vmatprep.subr.mxu0 0.0
    %2013 = vmatpush1.xpose.msra.mxu0 0.0
    %2014 = vmatprep.subr.mxu0 0.0
    %2015 = vmatpush1.xpose.msra.mxu0 0.0
    %2016 = vmatprep.subr.mxu0 0.0
    %2017 = vmatpush1.xpose.msra.mxu0 0.0
    %2018 = vmatprep.subr.mxu0 0.0
    %2019 = vmatpush1.xpose.msra.mxu0 0.0
    %2020 = vmatprep.subr.mxu0 0.0
    %2021 = vmatpush1.xpose.msra.mxu0 0.0
    %2022 = vmatprep.subr.mxu0 0.0
    %2023 = vmatpush1.xpose.msra.mxu0 0.0
    %2024 = vmatprep.subr.mxu0 0.0
    %2025 = vmatpush1.xpose.msra.mxu0 0.0
    %2026 = vmatprep.subr.mxu0 0.0
    %2027 = vmatpush1.xpose.msra.mxu0 0.0
    %2028 = vmatprep.subr.mxu0 0.0
    %2029 = vmatpush1.xpose.msra.mxu0 0.0
    %2030 = vmatprep.subr.mxu0 0.0
    %2031 = vmatpush1.xpose.msra.mxu0 0.0
    %2032 = vmatprep.subr.mxu0 0.0
    %2033 = vmatpush1.xpose.msra.mxu0 0.0
    %2034 = vmatprep.subr.mxu0 0.0
    %2035 = vmatpush1.xpose.msra.mxu0 0.0
    %2036 = vmatprep.subr.mxu0 0.0
    %2037 = vmatpush1.xpose.msra.mxu0 0.0
    %2038 = vmatprep.subr.mxu0 0.0
    %2039 = vmatpush1.xpose.msra.mxu0 0.0
    %2040 = vmatprep.subr.mxu0 0.0
    %2041 = vmatpush1.xpose.msra.mxu0 0.0
    %2042 = vmatprep.subr.mxu0 0.0
    %2043 = vmatpush1.xpose.msra.mxu0 0.0
    %2044 = vmatprep.subr.mxu0 0.0
    %2045 = vmatpush1.xpose.msra.mxu0 0.0
    %2046 = vmatprep.subr.mxu0 0.0
    %2047 = vmatpush1.xpose.msra.mxu0 0.0
    %2048 = vmatprep.subr.mxu0 0.0
    %2049 = vmatpush1.xpose.msra.mxu0 0.0
    %2050 = vmatprep.subr.mxu0 0.0
    %2051 = vmatpush1.xpose.msra.mxu0 0.0
    %2052 = vmatprep.subr.mxu0 0.0
    %2053 = vmatpush1.xpose.msra.mxu0 0.0
    %2054 = vmatprep.subr.mxu0 0.0
    %2055 = vmatpush1.xpose.msra.mxu0 0.0
    %2056 = vmatprep.subr.mxu0 0.0
    %2057 = vmatpush1.xpose.msra.mxu0 0.0
    %2058 = vmatprep.subr.mxu0 0.0
    %2059 = vmatpush1.xpose.msra.mxu0 0.0
    %2060 = vmatprep.subr.mxu0 0.0
    %2061 = vmatpush1.xpose.msra.mxu0 0.0
    %2062 = vmatprep.subr.mxu0 0.0
    %2063 = vmatpush1.xpose.msra.mxu0 0.0
    %2064 = vmatprep.subr.mxu0 0.0
    %2065 = vmatpush1.xpose.msra.mxu0 0.0
    %2066 = vmatprep.subr.mxu0 0.0
    %2067 = vmatpush1.xpose.msra.mxu0 0.0
    %2068 = vmatprep.subr.mxu0 0.0
    %2069 = vmatpush1.xpose.msra.mxu0 0.0
    %2070 = vmatprep.mubr.f32.mxu0 0.0
    %2071 = vmatmul.mubr.f32.gmra.mrb[0].mxu0 %v2002
    %v2072 = vpop.f32.mrb[0].mxu0
    %v2073 = vadd.f32 0.0, %v2072
    %v2074 = vpop.f32.mrb[0].mxu0
    %2075 = vdwg.mxu0
    %2076 = vrot.lane.b32.xlu0 %v1663, 112
    %v2077 = vpop.permute.xlu0 %2076
    %2078 = vrot.lane.b32.xlu0 %v1663, 80
    %v2079 = vpop.permute.xlu0 %2078
    %v2080 = vsel %vm496, %v2077, 0
    %v2082 = vsel %vm496, %v2079, 0
    %2084 = vmatprep.subr.mxu0 0.0
    %2085 = vmatpush1.xpose.msra.mxu0 %v2082
    %2086 = vmatprep.subr.mxu0 0.0
    %2087 = vmatpush1.xpose.msra.mxu0 0.0
    %2088 = vmatprep.subr.mxu0 0.0
    %2089 = vmatpush1.xpose.msra.mxu0 0.0
    %2090 = vmatprep.subr.mxu0 0.0
    %2091 = vmatpush1.xpose.msra.mxu0 0.0
    %2092 = vmatprep.subr.mxu0 0.0
    %2093 = vmatpush1.xpose.msra.mxu0 0.0
    %2094 = vmatprep.subr.mxu0 0.0
    %2095 = vmatpush1.xpose.msra.mxu0 0.0
    %2096 = vmatprep.subr.mxu0 0.0
    %2097 = vmatpush1.xpose.msra.mxu0 0.0
    %2098 = vmatprep.subr.mxu0 0.0
    %2099 = vmatpush1.xpose.msra.mxu0 0.0
    %2100 = vmatprep.subr.mxu0 0.0
    %2101 = vmatpush1.xpose.msra.mxu0 0.0
    %2102 = vmatprep.subr.mxu0 0.0
    %2103 = vmatpush1.xpose.msra.mxu0 0.0
    %2104 = vmatprep.subr.mxu0 0.0
    %2105 = vmatpush1.xpose.msra.mxu0 0.0
    %2106 = vmatprep.subr.mxu0 0.0
    %2107 = vmatpush1.xpose.msra.mxu0 0.0
    %2108 = vmatprep.subr.mxu0 0.0
    %2109 = vmatpush1.xpose.msra.mxu0 0.0
    %2110 = vmatprep.subr.mxu0 0.0
    %2111 = vmatpush1.xpose.msra.mxu0 0.0
    %2112 = vmatprep.subr.mxu0 0.0
    %2113 = vmatpush1.xpose.msra.mxu0 0.0
    %2114 = vmatprep.subr.mxu0 0.0
    %2115 = vmatpush1.xpose.msra.mxu0 0.0
    %2116 = vmatprep.subr.mxu0 0.0
    %2117 = vmatpush1.xpose.msra.mxu0 0.0
    %2118 = vmatprep.subr.mxu0 0.0
    %2119 = vmatpush1.xpose.msra.mxu0 0.0
    %2120 = vmatprep.subr.mxu0 0.0
    %2121 = vmatpush1.xpose.msra.mxu0 0.0
    %2122 = vmatprep.subr.mxu0 0.0
    %2123 = vmatpush1.xpose.msra.mxu0 0.0
    %2124 = vmatprep.subr.mxu0 0.0
    %2125 = vmatpush1.xpose.msra.mxu0 0.0
    %2126 = vmatprep.subr.mxu0 0.0
    %2127 = vmatpush1.xpose.msra.mxu0 0.0
    %2128 = vmatprep.subr.mxu0 0.0
    %2129 = vmatpush1.xpose.msra.mxu0 0.0
    %2130 = vmatprep.subr.mxu0 0.0
    %2131 = vmatpush1.xpose.msra.mxu0 0.0
    %2132 = vmatprep.subr.mxu0 0.0
    %2133 = vmatpush1.xpose.msra.mxu0 0.0
    %2134 = vmatprep.subr.mxu0 0.0
    %2135 = vmatpush1.xpose.msra.mxu0 0.0
    %2136 = vmatprep.subr.mxu0 0.0
    %2137 = vmatpush1.xpose.msra.mxu0 0.0
    %2138 = vmatprep.subr.mxu0 0.0
    %2139 = vmatpush1.xpose.msra.mxu0 0.0
    %2140 = vmatprep.subr.mxu0 0.0
    %2141 = vmatpush1.xpose.msra.mxu0 0.0
    %2142 = vmatprep.subr.mxu0 0.0
    %2143 = vmatpush1.xpose.msra.mxu0 0.0
    %2144 = vmatprep.subr.mxu0 0.0
    %2145 = vmatpush1.xpose.msra.mxu0 0.0
    %2146 = vmatprep.subr.mxu0 0.0
    %2147 = vmatpush1.xpose.msra.mxu0 0.0
    %2148 = vmatprep.mubr.f32.mxu0 0.0
    %2149 = vmatmul.mubr.f32.gmra.mrb[0].mxu0 %v2080
    %v2150 = vpop.f32.mrb[0].mxu0
    %v2151 = vadd.f32 0.0, %v2150
    %v2152 = vpop.f32.mrb[0].mxu0
    %2153 = vdwg.mxu0
    %v2154 = vmul.f32 %v2073, 0.25
    %v2155 = vmul.f32 %v2151, 0.25
    %v2156 = vadd.f32 %v2154, %v653
    %v2157 = vadd.f32 %v2155, %v657
    %v2158 = vsel %vm662, %v2156, -inf
    %2159 = vmax.xlane.f32.xlu0 %v2158
    %v2160 = vpop.xlane.xlu0 %2159
    %v2161 = vsel %vm662, %v2157, -inf
    %2162 = vmax.xlane.f32.xlu0 %v2161
    %v2163 = vpop.xlane.xlu0 %2162
    %v2164 = vsub.f32 %v2156, %v2160
    %v2165 = vsub.f32 %v2157, %v2163
    %v2166 = vmul.f32 %v2164, 1.442695
    %v2167 = vpow.pop %v2166
    %v2168 = vmul.f32 %v2165, 1.442695
    %v2169 = vpow.pop %v2168
    %v2170 = vsel %vm662, %v2167, 0.0
    %2171 = vadd.xlane.f32.xlu0 %v2170
    %v2172 = vpop.xlane.xlu0 %2171
    %v2173 = vsel %vm662, %v2169, 0.0
    %2174 = vadd.xlane.f32.xlu0 %v2173
    %v2175 = vpop.xlane.xlu0 %2174
    %v2176 = vrcp.pop %v2172
    %v2177 = vrcp.pop %v2175
    %v2178 = vmul.f32 %v2167, %v2176
    %v2179 = vmul.f32 %v2169, %v2177
    %2180 = vrot.lane.b32.xlu0 %v1658, 48
    %v2181 = vpop.permute.xlu0 %2180
    %v2184 = vsel %vm662, %v2178, 0
    %2186 = vmatprep.subr.mxu0 0.0
    %2187 = vmatpush1.msra.mxu0 %v2181
    %2188 = vmatprep.subr.mxu0 0.0
    %2189 = vmatpush1.msra.mxu0 0.0
    %2190 = vmatprep.subr.mxu0 0.0
    %2191 = vmatpush1.msra.mxu0 0.0
    %2192 = vmatprep.subr.mxu0 0.0
    %2193 = vmatpush1.msra.mxu0 0.0
    %2194 = vmatprep.subr.mxu0 0.0
    %2195 = vmatpush1.msra.mxu0 0.0
    %2196 = vmatprep.subr.mxu0 0.0
    %2197 = vmatpush1.msra.mxu0 0.0
    %2198 = vmatprep.subr.mxu0 0.0
    %2199 = vmatpush1.msra.mxu0 0.0
    %2200 = vmatprep.subr.mxu0 0.0
    %2201 = vmatpush1.msra.mxu0 0.0
    %2202 = vmatprep.subr.mxu0 0.0
    %2203 = vmatpush1.msra.mxu0 0.0
    %2204 = vmatprep.subr.mxu0 0.0
    %2205 = vmatpush1.msra.mxu0 0.0
    %2206 = vmatprep.subr.mxu0 0.0
    %2207 = vmatpush1.msra.mxu0 0.0
    %2208 = vmatprep.subr.mxu0 0.0
    %2209 = vmatpush1.msra.mxu0 0.0
    %2210 = vmatprep.subr.mxu0 0.0
    %2211 = vmatpush1.msra.mxu0 0.0
    %2212 = vmatprep.subr.mxu0 0.0
    %2213 = vmatpush1.msra.mxu0 0.0
    %2214 = vmatprep.subr.mxu0 0.0
    %2215 = vmatpush1.msra.mxu0 0.0
    %2216 = vmatprep.subr.mxu0 0.0
    %2217 = vmatpush1.msra.mxu0 0.0
    %2218 = vmatprep.subr.mxu0 0.0
    %2219 = vmatpush1.msra.mxu0 0.0
    %2220 = vmatprep.subr.mxu0 0.0
    %2221 = vmatpush1.msra.mxu0 0.0
    %2222 = vmatprep.subr.mxu0 0.0
    %2223 = vmatpush1.msra.mxu0 0.0
    %2224 = vmatprep.subr.mxu0 0.0
    %2225 = vmatpush1.msra.mxu0 0.0
    %2226 = vmatprep.subr.mxu0 0.0
    %2227 = vmatpush1.msra.mxu0 0.0
    %2228 = vmatprep.subr.mxu0 0.0
    %2229 = vmatpush1.msra.mxu0 0.0
    %2230 = vmatprep.subr.mxu0 0.0
    %2231 = vmatpush1.msra.mxu0 0.0
    %2232 = vmatprep.subr.mxu0 0.0
    %2233 = vmatpush1.msra.mxu0 0.0
    %2234 = vmatprep.subr.mxu0 0.0
    %2235 = vmatpush1.msra.mxu0 0.0
    %2236 = vmatprep.subr.mxu0 0.0
    %2237 = vmatpush1.msra.mxu0 0.0
    %2238 = vmatprep.subr.mxu0 0.0
    %2239 = vmatpush1.msra.mxu0 0.0
    %2240 = vmatprep.subr.mxu0 0.0
    %2241 = vmatpush1.msra.mxu0 0.0
    %2242 = vmatprep.subr.mxu0 0.0
    %2243 = vmatpush1.msra.mxu0 0.0
    %2244 = vmatprep.subr.mxu0 0.0
    %2245 = vmatpush1.msra.mxu0 0.0
    %2246 = vmatprep.subr.mxu0 0.0
    %2247 = vmatpush1.msra.mxu0 0.0
    %2248 = vmatprep.subr.mxu0 0.0
    %2249 = vmatpush1.msra.mxu0 0.0
    %2250 = vmatprep.mubr.f32.mxu0 0.0
    %2251 = vmatmul.mubr.f32.gmra.mrb[0].mxu0 %v2184
    %v2252 = vpop.f32.mrb[0].mxu0
    %v2253 = vadd.f32 0.0, %v2252
    %v2254 = vpop.f32.mrb[0].mxu0
    %2255 = vdwg.mxu0
    %2256 = vrot.lane.b32.xlu0 %v1663, 48
    %v2257 = vpop.permute.xlu0 %2256
    %v2260 = vsel %vm662, %v2179, 0
    %2262 = vmatprep.subr.mxu0 0.0
    %2263 = vmatpush1.msra.mxu0 %v2257
    %2264 = vmatprep.subr.mxu0 0.0
    %2265 = vmatpush1.msra.mxu0 0.0
    %2266 = vmatprep.subr.mxu0 0.0
    %2267 = vmatpush1.msra.mxu0 0.0
    %2268 = vmatprep.subr.mxu0 0.0
    %2269 = vmatpush1.msra.mxu0 0.0
    %2270 = vmatprep.subr.mxu0 0.0
    %2271 = vmatpush1.msra.mxu0 0.0
    %2272 = vmatprep.subr.mxu0 0.0
    %2273 = vmatpush1.msra.mxu0 0.0
    %2274 = vmatprep.subr.mxu0 0.0
    %2275 = vmatpush1.msra.mxu0 0.0
    %2276 = vmatprep.subr.mxu0 0.0
    %2277 = vmatpush1.msra.mxu0 0.0
    %2278 = vmatprep.subr.mxu0 0.0
    %2279 = vmatpush1.msra.mxu0 0.0
    %2280 = vmatprep.subr.mxu0 0.0
    %2281 = vmatpush1.msra.mxu0 0.0
    %2282 = vmatprep.subr.mxu0 0.0
    %2283 = vmatpush1.msra.mxu0 0.0
    %2284 = vmatprep.subr.mxu0 0.0
    %2285 = vmatpush1.msra.mxu0 0.0
    %2286 = vmatprep.subr.mxu0 0.0
    %2287 = vmatpush1.msra.mxu0 0.0
    %2288 = vmatprep.subr.mxu0 0.0
    %2289 = vmatpush1.msra.mxu0 0.0
    %2290 = vmatprep.subr.mxu0 0.0
    %2291 = vmatpush1.msra.mxu0 0.0
    %2292 = vmatprep.subr.mxu0 0.0
    %2293 = vmatpush1.msra.mxu0 0.0
    %2294 = vmatprep.subr.mxu0 0.0
    %2295 = vmatpush1.msra.mxu0 0.0
    %2296 = vmatprep.subr.mxu0 0.0
    %2297 = vmatpush1.msra.mxu0 0.0
    %2298 = vmatprep.subr.mxu0 0.0
    %2299 = vmatpush1.msra.mxu0 0.0
    %2300 = vmatprep.subr.mxu0 0.0
    %2301 = vmatpush1.msra.mxu0 0.0
    %2302 = vmatprep.subr.mxu0 0.0
    %2303 = vmatpush1.msra.mxu0 0.0
    %2304 = vmatprep.subr.mxu0 0.0
    %2305 = vmatpush1.msra.mxu0 0.0
    %2306 = vmatprep.subr.mxu0 0.0
    %2307 = vmatpush1.msra.mxu0 0.0
    %2308 = vmatprep.subr.mxu0 0.0
    %2309 = vmatpush1.msra.mxu0 0.0
    %2310 = vmatprep.subr.mxu0 0.0
    %2311 = vmatpush1.msra.mxu0 0.0
    %2312 = vmatprep.subr.mxu0 0.0
    %2313 = vmatpush1.msra.mxu0 0.0
    %2314 = vmatprep.subr.mxu0 0.0
    %2315 = vmatpush1.msra.mxu0 0.0
    %2316 = vmatprep.subr.mxu0 0.0
    %2317 = vmatpush1.msra.mxu0 0.0
    %2318 = vmatprep.subr.mxu0 0.0
    %2319 = vmatpush1.msra.mxu0 0.0
    %2320 = vmatprep.subr.mxu0 0.0
    %2321 = vmatpush1.msra.mxu0 0.0
    %2322 = vmatprep.subr.mxu0 0.0
    %2323 = vmatpush1.msra.mxu0 0.0
    %2324 = vmatprep.subr.mxu0 0.0
    %2325 = vmatpush1.msra.mxu0 0.0
    %2326 = vmatprep.mubr.f32.mxu0 0.0
    %2327 = vmatmul.mubr.f32.gmra.mrb[0].mxu0 %v2260
    %v2328 = vpop.f32.mrb[0].mxu0
    %v2329 = vadd.f32 0.0, %v2328
    %v2330 = vpop.f32.mrb[0].mxu0
    %2331 = vdwg.mxu0
    %2334 = vrot.lane.b32.xlu0 %v2253, 16
    %v2335 = vpop.permute.xlu0 %2334
    %2336 = vrot.lane.b32.xlu0 %v2329, 16
    %v2337 = vpop.permute.xlu0 %2336
    %v2340 = vsel %vm496, %v1919, %v2335
    %v2341 = vsel %vm496, %v1995, %v2337
    %s2342 = scalar_lea.vmem [#allocation8], 32
    %v2343 = vld [vmem:[%s2342] sm:$0xff]
    %v2344 = vld [vmem:[%s2342 + $0x8] sm:$0xff]
    %v2345 = vld [vmem:[%s2342 + $0x10] sm:$0xff]
    %v2346 = vld [vmem:[%s2342 + $0x18] sm:$0xff]
    %s2347 = scalar_lea.vmem %s9, 1
    %v2348 = vld [vmem:[%s2347] sm:$0x1]
    %v2350 = vlaneseq
    %v2351 = vshrl.u32 %v2350, 7
    %v2352 = vsub.s32 0, %v2351
    %v2353 = vrot.slane %v2348, %v2352
    %v2356 = vsel %vm331, %v2340, 0
    %v2359 = vsel %vm331, %v2341, 0
    %2361 = vmatprep.subr.mxu0 0.0
    %2362 = vmatpush1.msra.mxu0 %v2343
    %2363 = vmatprep.subr.mxu0 0.0
    %2364 = vmatpush1.msra.mxu0 %v2344
    %2365 = vmatprep.subr.mxu0 0.0
    %2366 = vmatpush1.msra.mxu0 %v2345
    %2367 = vmatprep.subr.mxu0 0.0
    %2368 = vmatpush1.msra.mxu0 %v2346
    %2369 = vmatprep.subr.mxu0 0.0
    %2370 = vmatpush1.msra.mxu0 0.0
    %2371 = vmatprep.subr.mxu0 0.0
    %2372 = vmatpush1.msra.mxu0 0.0
    %2373 = vmatprep.subr.mxu0 0.0
    %2374 = vmatpush1.msra.mxu0 0.0
    %2375 = vmatprep.subr.mxu0 0.0
    %2376 = vmatpush1.msra.mxu0 0.0
    %2377 = vmatprep.subr.mxu0 0.0
    %2378 = vmatpush1.msra.mxu0 0.0
    %2379 = vmatprep.subr.mxu0 0.0
    %2380 = vmatpush1.msra.mxu0 0.0
    %2381 = vmatprep.subr.mxu0 0.0
    %2382 = vmatpush1.msra.mxu0 0.0
    %2383 = vmatprep.subr.mxu0 0.0
    %2384 = vmatpush1.msra.mxu0 0.0
    %2385 = vmatprep.subr.mxu0 0.0
    %2386 = vmatpush1.msra.mxu0 0.0
    %2387 = vmatprep.subr.mxu0 0.0
    %2388 = vmatpush1.msra.mxu0 0.0
    %2389 = vmatprep.subr.mxu0 0.0
    %2390 = vmatpush1.msra.mxu0 0.0
    %2391 = vmatprep.subr.mxu0 0.0
    %2392 = vmatpush1.msra.mxu0 0.0
    %2393 = vmatprep.subr.mxu0 0.0
    %2394 = vmatpush1.msra.mxu0 0.0
    %2395 = vmatprep.subr.mxu0 0.0
    %2396 = vmatpush1.msra.mxu0 0.0
    %2397 = vmatprep.subr.mxu0 0.0
    %2398 = vmatpush1.msra.mxu0 0.0
    %2399 = vmatprep.subr.mxu0 0.0
    %2400 = vmatpush1.msra.mxu0 0.0
    %2401 = vmatprep.subr.mxu0 0.0
    %2402 = vmatpush1.msra.mxu0 0.0
    %2403 = vmatprep.subr.mxu0 0.0
    %2404 = vmatpush1.msra.mxu0 0.0
    %2405 = vmatprep.subr.mxu0 0.0
    %2406 = vmatpush1.msra.mxu0 0.0
    %2407 = vmatprep.subr.mxu0 0.0
    %2408 = vmatpush1.msra.mxu0 0.0
    %2409 = vmatprep.subr.mxu0 0.0
    %2410 = vmatpush1.msra.mxu0 0.0
    %2411 = vmatprep.subr.mxu0 0.0
    %2412 = vmatpush1.msra.mxu0 0.0
    %2413 = vmatprep.subr.mxu0 0.0
    %2414 = vmatpush1.msra.mxu0 0.0
    %2415 = vmatprep.subr.mxu0 0.0
    %2416 = vmatpush1.msra.mxu0 0.0
    %2417 = vmatprep.subr.mxu0 0.0
    %2418 = vmatpush1.msra.mxu0 0.0
    %2419 = vmatprep.subr.mxu0 0.0
    %2420 = vmatpush1.msra.mxu0 0.0
    %2421 = vmatprep.subr.mxu0 0.0
    %2422 = vmatpush1.msra.mxu0 0.0
    %2423 = vmatprep.subr.mxu0 0.0
    %2424 = vmatpush1.msra.mxu0 0.0
    %2425 = vmatprep.mubr.f32.mxu0 0.0
    %2426 = vmatmul.mubr.f32.gmra.mrb[0].mxu0 %v2356
    %v2427 = vpop.f32.mrb[0].mxu0
    %v2428 = vadd.f32 %v2353, %v2427
    %v2429 = vpop.f32.mrb[0].mxu0
    %2430 = vmatprep.mubr.f32.mxu0 0.0
    %2431 = vmatmul.mubr.f32.gmra.mrb[0].mxu0 %v2359
    %v2432 = vpop.f32.mrb[0].mxu0
    %v2433 = vadd.f32 %v2353, %v2432
    %v2434 = vpop.f32.mrb[0].mxu0
    %2435 = vdwg.mxu0
    %v2436 = vadd.f32 %v2428, %v1570
    %v2437 = vadd.f32 %v2433, %v1571
    %s2438 = scalar_lea.vmem %s10, 1
    %v2439 = vld [vmem:[%s2438] sm:$0x1]
    %s2440 = scalar_lea.vmem %s11, 1
    %v2441 = vld [vmem:[%s2440] sm:$0x1]
    %v2442 = vsel %vm331, %v2436, 0.0
    %2443 = vadd.xlane.f32.xlu0 %v2442
    %v2444 = vpop.xlane.xlu0 %2443
    %v2445 = vsel %vm331, %v2437, 0.0
    %2446 = vadd.xlane.f32.xlu0 %v2445
    %v2447 = vpop.xlane.xlu0 %2446
    %v2448 = vmul.f32 %v2444, %v338
    %v2449 = vmul.f32 %v2447, %v338
    %v2450 = vsub.f32 %v2436, %v2448
    %v2451 = vsub.f32 %v2437, %v2449
    %v2452 = vmul.f32 %v2450, %v2450
    %v2453 = vmul.f32 %v2451, %v2451
    %v2454 = vsel %vm331, %v2452, 0.0
    %2455 = vadd.xlane.f32.xlu0 %v2454
    %v2456 = vpop.xlane.xlu0 %2455
    %v2457 = vsel %vm331, %v2453, 0.0
    %2458 = vadd.xlane.f32.xlu0 %v2457
    %v2459 = vpop.xlane.xlu0 %2458
    %v2460 = vmul.f32 %v2456, %v338
    %v2461 = vmul.f32 %v2459, %v338
    %v2462 = vadd.f32 %v2460, 1e-12
    %v2463 = vadd.f32 %v2461, 1e-12
    %v2464 = vrsqrt.pop %v2462
    %v2465 = vrsqrt.pop %v2463
    %v2466 = vmul.f32 %v2450, %v2464
    %v2467 = vmul.f32 %v2451, %v2465
    %v2469 = vlaneseq
    %v2470 = vshrl.u32 %v2469, 7
    %v2471 = vsub.s32 0, %v2470
    %v2472 = vrot.slane %v2439, %v2471
    %v2474 = vmul.f32 %v2466, %v2472
    %v2475 = vmul.f32 %v2467, %v2472
    %v2477 = vlaneseq
    %v2478 = vshrl.u32 %v2477, 7
    %v2479 = vsub.s32 0, %v2478
    %v2480 = vrot.slane %v2441, %v2479
    %v2482 = vadd.f32 %v2474, %v2480
    %v2483 = vadd.f32 %v2475, %v2480
    %s2484 = scalar_lea.vmem [#allocation10], 32
    %v2485 = vld [vmem:[%s2484] sm:$0xff]
    %v2486 = vld [vmem:[%s2484 + $0x8] sm:$0xff]
    %v2487 = vld [vmem:[%s2484 + $0x10] sm:$0xff]
    %v2488 = vld [vmem:[%s2484 + $0x18] sm:$0xff]
    %s2489 = scalar_lea.vmem %s13, 1
    %v2490 = vld [vmem:[%s2489] sm:$0x1]
    %v2492 = vlaneseq
    %v2493 = vshrl.u32 %v2492, 7
    %v2494 = vsub.s32 0, %v2493
    %v2495 = vrot.slane %v2490, %v2494
    %v2498 = vsel %vm331, %v2482, 0
    %v2501 = vsel %vm331, %v2483, 0
    %2503 = vmatprep.subr.mxu0 0.0
    %2504 = vmatpush1.msra.mxu0 %v2485
    %2505 = vmatprep.subr.mxu0 0.0
    %2506 = vmatpush1.msra.mxu0 %v2486
    %2507 = vmatprep.subr.mxu0 0.0
    %2508 = vmatpush1.msra.mxu0 %v2487
    %2509 = vmatprep.subr.mxu0 0.0
    %2510 = vmatpush1.msra.mxu0 %v2488
    %2511 = vmatprep.subr.mxu0 0.0
    %2512 = vmatpush1.msra.mxu0 0.0
    %2513 = vmatprep.subr.mxu0 0.0
    %2514 = vmatpush1.msra.mxu0 0.0
    %2515 = vmatprep.subr.mxu0 0.0
    %2516 = vmatpush1.msra.mxu0 0.0
    %2517 = vmatprep.subr.mxu0 0.0
    %2518 = vmatpush1.msra.mxu0 0.0
    %2519 = vmatprep.subr.mxu0 0.0
    %2520 = vmatpush1.msra.mxu0 0.0
    %2521 = vmatprep.subr.mxu0 0.0
    %2522 = vmatpush1.msra.mxu0 0.0
    %2523 = vmatprep.subr.mxu0 0.0
    %2524 = vmatpush1.msra.mxu0 0.0
    %2525 = vmatprep.subr.mxu0 0.0
    %2526 = vmatpush1.msra.mxu0 0.0
    %2527 = vmatprep.subr.mxu0 0.0
    %2528 = vmatpush1.msra.mxu0 0.0
    %2529 = vmatprep.subr.mxu0 0.0
    %2530 = vmatpush1.msra.mxu0 0.0
    %2531 = vmatprep.subr.mxu0 0.0
    %2532 = vmatpush1.msra.mxu0 0.0
    %2533 = vmatprep.subr.mxu0 0.0
    %2534 = vmatpush1.msra.mxu0 0.0
    %2535 = vmatprep.subr.mxu0 0.0
    %2536 = vmatpush1.msra.mxu0 0.0
    %2537 = vmatprep.subr.mxu0 0.0
    %2538 = vmatpush1.msra.mxu0 0.0
    %2539 = vmatprep.subr.mxu0 0.0
    %2540 = vmatpush1.msra.mxu0 0.0
    %2541 = vmatprep.subr.mxu0 0.0
    %2542 = vmatpush1.msra.mxu0 0.0
    %2543 = vmatprep.subr.mxu0 0.0
    %2544 = vmatpush1.msra.mxu0 0.0
    %2545 = vmatprep.subr.mxu0 0.0
    %2546 = vmatpush1.msra.mxu0 0.0
    %2547 = vmatprep.subr.mxu0 0.0
    %2548 = vmatpush1.msra.mxu0 0.0
    %2549 = vmatprep.subr.mxu0 0.0
    %2550 = vmatpush1.msra.mxu0 0.0
    %2551 = vmatprep.subr.mxu0 0.0
    %2552 = vmatpush1.msra.mxu0 0.0
    %2553 = vmatprep.subr.mxu0 0.0
    %2554 = vmatpush1.msra.mxu0 0.0
    %2555 = vmatprep.subr.mxu0 0.0
    %2556 = vmatpush1.msra.mxu0 0.0
    %2557 = vmatprep.subr.mxu0 0.0
    %2558 = vmatpush1.msra.mxu0 0.0
    %2559 = vmatprep.subr.mxu0 0.0
    %2560 = vmatpush1.msra.mxu0 0.0
    %2561 = vmatprep.subr.mxu0 0.0
    %2562 = vmatpush1.msra.mxu0 0.0
    %2563 = vmatprep.subr.mxu0 0.0
    %2564 = vmatpush1.msra.mxu0 0.0
    %2565 = vmatprep.subr.mxu0 0.0
    %2566 = vmatpush1.msra.mxu0 0.0
    %2567 = vmatprep.mubr.f32.mxu0 0.0
    %2568 = vmatmul.mubr.f32.gmra.mrb[0].mxu0 %v2498
    %v2569 = vpop.f32.mrb[0].mxu0
    %v2570 = vadd.f32 %v2495, %v2569
    %v2571 = vpop.f32.mrb[0].mxu0
    %2572 = vmatprep.mubr.f32.mxu0 0.0
    %2573 = vmatmul.mubr.f32.gmra.mrb[0].mxu0 %v2501
    %v2574 = vpop.f32.mrb[0].mxu0
    %v2575 = vadd.f32 %v2495, %v2574
    %v2576 = vpop.f32.mrb[0].mxu0
    %2577 = vdwg.mxu0
    %v2578 = vmul.f32 %v2570, 0.5
    %v2579 = vmul.f32 %v2575, 0.5
    %v2580 = vmul.f32 %v2570, 0.044715
    %v2581 = vmul.f32 %v2575, 0.044715
    %v2582 = vmul.f32 %v2580, %v2570
    %v2583 = vmul.f32 %v2581, %v2575
    %v2584 = vmul.f32 %v2582, %v2570
    %v2585 = vmul.f32 %v2583, %v2575
    %v2586 = vadd.f32 %v2570, %v2584
    %v2587 = vadd.f32 %v2575, %v2585
    %v2588 = vmul.f32 %v2586, 0.7978846
    %v2589 = vmul.f32 %v2587, 0.7978846
    %v2590 = vtanh.pop %v2588
    %v2591 = vtanh.pop %v2589
    %v2592 = vadd.f32 %v2590, 1.0
    %v2593 = vadd.f32 %v2591, 1.0
    %v2594 = vmul.f32 %v2578, %v2592
    %v2595 = vmul.f32 %v2579, %v2593
    %s2596 = scalar_lea.vmem [#allocation11], 64
    %v2597 = vld [vmem:[%s2596] sm:$0xff]
    %v2598 = vld [vmem:[%s2596 + $0x8] sm:$0xff]
    %v2599 = vld [vmem:[%s2596 + $0x10] sm:$0xff]
    %v2600 = vld [vmem:[%s2596 + $0x18] sm:$0xff]
    %v2601 = vld [vmem:[%s2596 + $0x20] sm:$0xff]
    %v2602 = vld [vmem:[%s2596 + $0x28] sm:$0xff]
    %v2603 = vld [vmem:[%s2596 + $0x30] sm:$0xff]
    %v2604 = vld [vmem:[%s2596 + $0x38] sm:$0xff]
    %s2605 = scalar_lea.vmem %s15, 1
    %v2606 = vld [vmem:[%s2605] sm:$0x1]
    %v2608 = vlaneseq
    %v2609 = vshrl.u32 %v2608, 7
    %v2610 = vsub.s32 0, %v2609
    %v2611 = vrot.slane %v2606, %v2610
    %v2614 = vsel %vm1444, %v2594, 0
    %v2617 = vsel %vm1444, %v2595, 0
    %2619 = vmatprep.subr.mxu0 0.0
    %2620 = vmatpush1.msra.mxu0 %v2597
    %2621 = vmatprep.subr.mxu0 0.0
    %2622 = vmatpush1.msra.mxu0 %v2598
    %2623 = vmatprep.subr.mxu0 0.0
    %2624 = vmatpush1.msra.mxu0 %v2599
    %2625 = vmatprep.subr.mxu0 0.0
    %2626 = vmatpush1.msra.mxu0 %v2600
    %2627 = vmatprep.subr.mxu0 0.0
    %2628 = vmatpush1.msra.mxu0 %v2601
    %2629 = vmatprep.subr.mxu0 0.0
    %2630 = vmatpush1.msra.mxu0 %v2602
    %2631 = vmatprep.subr.mxu0 0.0
    %2632 = vmatpush1.msra.mxu0 %v2603
    %2633 = vmatprep.subr.mxu0 0.0
    %2634 = vmatpush1.msra.mxu0 %v2604
    %2635 = vmatprep.subr.mxu0 0.0
    %2636 = vmatpush1.msra.mxu0 0.0
    %2637 = vmatprep.subr.mxu0 0.0
    %2638 = vmatpush1.msra.mxu0 0.0
    %2639 = vmatprep.subr.mxu0 0.0
    %2640 = vmatpush1.msra.mxu0 0.0
    %2641 = vmatprep.subr.mxu0 0.0
    %2642 = vmatpush1.msra.mxu0 0.0
    %2643 = vmatprep.subr.mxu0 0.0
    %2644 = vmatpush1.msra.mxu0 0.0
    %2645 = vmatprep.subr.mxu0 0.0
    %2646 = vmatpush1.msra.mxu0 0.0
    %2647 = vmatprep.subr.mxu0 0.0
    %2648 = vmatpush1.msra.mxu0 0.0
    %2649 = vmatprep.subr.mxu0 0.0
    %2650 = vmatpush1.msra.mxu0 0.0
    %2651 = vmatprep.subr.mxu0 0.0
    %2652 = vmatpush1.msra.mxu0 0.0
    %2653 = vmatprep.subr.mxu0 0.0
    %2654 = vmatpush1.msra.mxu0 0.0
    %2655 = vmatprep.subr.mxu0 0.0
    %2656 = vmatpush1.msra.mxu0 0.0
    %2657 = vmatprep.subr.mxu0 0.0
    %2658 = vmatpush1.msra.mxu0 0.0
    %2659 = vmatprep.subr.mxu0 0.0
    %2660 = vmatpush1.msra.mxu0 0.0
    %2661 = vmatprep.subr.mxu0 0.0
    %2662 = vmatpush1.msra.mxu0 0.0
    %2663 = vmatprep.subr.mxu0 0.0
    %2664 = vmatpush1.msra.mxu0 0.0
    %2665 = vmatprep.subr.mxu0 0.0
    %2666 = vmatpush1.msra.mxu0 0.0
    %2667 = vmatprep.subr.mxu0 0.0
    %2668 = vmatpush1.msra.mxu0 0.0
    %2669 = vmatprep.subr.mxu0 0.0
    %2670 = vmatpush1.msra.mxu0 0.0
    %2671 = vmatprep.subr.mxu0 0.0
    %2672 = vmatpush1.msra.mxu0 0.0
    %2673 = vmatprep.subr.mxu0 0.0
    %2674 = vmatpush1.msra.mxu0 0.0
    %2675 = vmatprep.subr.mxu0 0.0
    %2676 = vmatpush1.msra.mxu0 0.0
    %2677 = vmatprep.subr.mxu0 0.0
    %2678 = vmatpush1.msra.mxu0 0.0
    %2679 = vmatprep.subr.mxu0 0.0
    %2680 = vmatpush1.msra.mxu0 0.0
    %2681 = vmatprep.subr.mxu0 0.0
    %2682 = vmatpush1.msra.mxu0 0.0
    %2683 = vmatprep.mubr.f32.mxu0 0.0
    %2684 = vmatmul.mubr.f32.gmra.mrb[0].mxu0 %v2614
    %v2685 = vpop.f32.mrb[0].mxu0
    %v2686 = vadd.f32 %v2611, %v2685
    %v2687 = vpop.f32.mrb[0].mxu0
    %2688 = vmatprep.mubr.f32.mxu0 0.0
    %2689 = vmatmul.mubr.f32.gmra.mrb[0].mxu0 %v2617
    %v2690 = vpop.f32.mrb[0].mxu0
    %v2691 = vadd.f32 %v2611, %v2690
    %v2692 = vpop.f32.mrb[0].mxu0
    %2693 = vdwg.mxu0
    %v2694 = vadd.f32 %v2686, %v2482
    %v2695 = vadd.f32 %v2691, %v2483
    %s2696 = scalar_lea.vmem %s16, 1
    %v2697 = vld [vmem:[%s2696] sm:$0x1]
    %s2698 = scalar_lea.vmem %s17, 1
    %v2699 = vld [vmem:[%s2698] sm:$0x1]
    %v2700 = vsel %vm331, %v2694, 0.0
    %2701 = vadd.xlane.f32.xlu0 %v2700
    %v2702 = vpop.xlane.xlu0 %2701
    %v2703 = vsel %vm331, %v2695, 0.0
    %2704 = vadd.xlane.f32.xlu0 %v2703
    %v2705 = vpop.xlane.xlu0 %2704
    %v2706 = vmul.f32 %v2702, %v338
    %v2707 = vmul.f32 %v2705, %v338
    %v2708 = vsub.f32 %v2694, %v2706
    %v2709 = vsub.f32 %v2695, %v2707
    %v2710 = vmul.f32 %v2708, %v2708
    %v2711 = vmul.f32 %v2709, %v2709
    %v2712 = vsel %vm331, %v2710, 0.0
    %2713 = vadd.xlane.f32.xlu0 %v2712
    %v2714 = vpop.xlane.xlu0 %2713
    %v2715 = vsel %vm331, %v2711, 0.0
    %2716 = vadd.xlane.f32.xlu0 %v2715
    %v2717 = vpop.xlane.xlu0 %2716
    %v2718 = vmul.f32 %v2714, %v338
    %v2719 = vmul.f32 %v2717, %v338
    %v2720 = vadd.f32 %v2718, 1e-12
    %v2721 = vadd.f32 %v2719, 1e-12
    %v2722 = vrsqrt.pop %v2720
    %v2723 = vrsqrt.pop %v2721
    %v2724 = vmul.f32 %v2708, %v2722
    %v2725 = vmul.f32 %v2709, %v2723
    %v2727 = vlaneseq
    %v2728 = vshrl.u32 %v2727, 7
    %v2729 = vsub.s32 0, %v2728
    %v2730 = vrot.slane %v2697, %v2729
    %v2732 = vmul.f32 %v2724, %v2730
    %v2733 = vmul.f32 %v2725, %v2730
    %v2735 = vlaneseq
    %v2736 = vshrl.u32 %v2735, 7
    %v2737 = vsub.s32 0, %v2736
    %v2738 = vrot.slane %v2699, %v2737
    %v2740 = vadd.f32 %v2732, %v2738
    %v2741 = vadd.f32 %v2733, %v2738
    %v2742 = vld [vmem:[#allocation13] sm:$0xff]
    %v2743 = vld [vmem:[#allocation13 + $0x8] sm:$0xff]
    %v2744 = vld [vmem:[#allocation13 + $0x10] sm:$0xff]
    %v2745 = vld [vmem:[#allocation13 + $0x18] sm:$0xff]
    %v2746 = vld [vmem:[%s19] sm:$0x1]
    %v2748 = vlaneseq
    %v2749 = vshrl.u32 %v2748, 7
    %v2750 = vsub.s32 0, %v2749
    %v2751 = vrot.slane %v2746, %v2750
    %v2754 = vsel %vm331, %v2740, 0
    %v2757 = vsel %vm331, %v2741, 0
    %2759 = vmatprep.subr.mxu0 0.0
    %2760 = vmatpush1.msra.mxu0 %v2742
    %2761 = vmatprep.subr.mxu0 0.0
    %2762 = vmatpush1.msra.mxu0 %v2743
    %2763 = vmatprep.subr.mxu0 0.0
    %2764 = vmatpush1.msra.mxu0 %v2744
    %2765 = vmatprep.subr.mxu0 0.0
    %2766 = vmatpush1.msra.mxu0 %v2745
    %2767 = vmatprep.subr.mxu0 0.0
    %2768 = vmatpush1.msra.mxu0 0.0
    %2769 = vmatprep.subr.mxu0 0.0
    %2770 = vmatpush1.msra.mxu0 0.0
    %2771 = vmatprep.subr.mxu0 0.0
    %2772 = vmatpush1.msra.mxu0 0.0
    %2773 = vmatprep.subr.mxu0 0.0
    %2774 = vmatpush1.msra.mxu0 0.0
    %2775 = vmatprep.subr.mxu0 0.0
    %2776 = vmatpush1.msra.mxu0 0.0
    %2777 = vmatprep.subr.mxu0 0.0
    %2778 = vmatpush1.msra.mxu0 0.0
    %2779 = vmatprep.subr.mxu0 0.0
    %2780 = vmatpush1.msra.mxu0 0.0
    %2781 = vmatprep.subr.mxu0 0.0
    %2782 = vmatpush1.msra.mxu0 0.0
    %2783 = vmatprep.subr.mxu0 0.0
    %2784 = vmatpush1.msra.mxu0 0.0
    %2785 = vmatprep.subr.mxu0 0.0
    %2786 = vmatpush1.msra.mxu0 0.0
    %2787 = vmatprep.subr.mxu0 0.0
    %2788 = vmatpush1.msra.mxu0 0.0
    %2789 = vmatprep.subr.mxu0 0.0
    %2790 = vmatpush1.msra.mxu0 0.0
    %2791 = vmatprep.subr.mxu0 0.0
    %2792 = vmatpush1.msra.mxu0 0.0
    %2793 = vmatprep.subr.mxu0 0.0
    %2794 = vmatpush1.msra.mxu0 0.0
    %2795 = vmatprep.subr.mxu0 0.0
    %2796 = vmatpush1.msra.mxu0 0.0
    %2797 = vmatprep.subr.mxu0 0.0
    %2798 = vmatpush1.msra.mxu0 0.0
    %2799 = vmatprep.subr.mxu0 0.0
    %2800 = vmatpush1.msra.mxu0 0.0
    %2801 = vmatprep.subr.mxu0 0.0
    %2802 = vmatpush1.msra.mxu0 0.0
    %2803 = vmatprep.subr.mxu0 0.0
    %2804 = vmatpush1.msra.mxu0 0.0
    %2805 = vmatprep.subr.mxu0 0.0
    %2806 = vmatpush1.msra.mxu0 0.0
    %2807 = vmatprep.subr.mxu0 0.0
    %2808 = vmatpush1.msra.mxu0 0.0
    %2809 = vmatprep.subr.mxu0 0.0
    %2810 = vmatpush1.msra.mxu0 0.0
    %2811 = vmatprep.subr.mxu0 0.0
    %2812 = vmatpush1.msra.mxu0 0.0
    %2813 = vmatprep.subr.mxu0 0.0
    %2814 = vmatpush1.msra.mxu0 0.0
    %2815 = vmatprep.subr.mxu0 0.0
    %2816 = vmatpush1.msra.mxu0 0.0
    %2817 = vmatprep.subr.mxu0 0.0
    %2818 = vmatpush1.msra.mxu0 0.0
    %2819 = vmatprep.subr.mxu0 0.0
    %2820 = vmatpush1.msra.mxu0 0.0
    %2821 = vmatprep.subr.mxu0 0.0
    %2822 = vmatpush1.msra.mxu0 0.0
    %2823 = vmatprep.mubr.f32.mxu0 0.0
    %2824 = vmatmul.mubr.f32.gmra.mrb[0].mxu0 %v2754
    %v2825 = vpop.f32.mrb[0].mxu0
    %v2826 = vadd.f32 %v2751, %v2825
    %v2827 = vpop.f32.mrb[0].mxu0
    %2828 = vmatprep.mubr.f32.mxu0 0.0
    %2829 = vmatmul.mubr.f32.gmra.mrb[0].mxu0 %v2757
    %v2830 = vpop.f32.mrb[0].mxu0
    %v2831 = vadd.f32 %v2751, %v2830
    %v2832 = vpop.f32.mrb[0].mxu0
    %2833 = vdwg.mxu0
    %s2834 = scalar_lea.vmem [#allocation13], 32
    %v2835 = vld [vmem:[%s2834] sm:$0xff]
    %v2836 = vld [vmem:[%s2834 + $0x8] sm:$0xff]
    %v2837 = vld [vmem:[%s2834 + $0x10] sm:$0xff]
    %v2838 = vld [vmem:[%s2834 + $0x18] sm:$0xff]
    %s2839 = scalar_lea.vmem %s19, 1
    %v2840 = vld [vmem:[%s2839] sm:$0x1]
    %v2842 = vlaneseq
    %v2843 = vshrl.u32 %v2842, 7
    %v2844 = vsub.s32 0, %v2843
    %v2845 = vrot.slane %v2840, %v2844
    %2847 = vmatprep.subr.mxu0 0.0
    %2848 = vmatpush1.msra.mxu0 %v2835
    %2849 = vmatprep.subr.mxu0 0.0
    %2850 = vmatpush1.msra.mxu0 %v2836
    %2851 = vmatprep.subr.mxu0 0.0
    %2852 = vmatpush1.msra.mxu0 %v2837
    %2853 = vmatprep.subr.mxu0 0.0
    %2854 = vmatpush1.msra.mxu0 %v2838
    %2855 = vmatprep.subr.mxu0 0.0
    %2856 = vmatpush1.msra.mxu0 0.0
    %2857 = vmatprep.subr.mxu0 0.0
    %2858 = vmatpush1.msra.mxu0 0.0
    %2859 = vmatprep.subr.mxu0 0.0
    %2860 = vmatpush1.msra.mxu0 0.0
    %2861 = vmatprep.subr.mxu0 0.0
    %2862 = vmatpush1.msra.mxu0 0.0
    %2863 = vmatprep.subr.mxu0 0.0
    %2864 = vmatpush1.msra.mxu0 0.0
    %2865 = vmatprep.subr.mxu0 0.0
    %2866 = vmatpush1.msra.mxu0 0.0
    %2867 = vmatprep.subr.mxu0 0.0
    %2868 = vmatpush1.msra.mxu0 0.0
    %2869 = vmatprep.subr.mxu0 0.0
    %2870 = vmatpush1.msra.mxu0 0.0
    %2871 = vmatprep.subr.mxu0 0.0
    %2872 = vmatpush1.msra.mxu0 0.0
    %2873 = vmatprep.subr.mxu0 0.0
    %2874 = vmatpush1.msra.mxu0 0.0
    %2875 = vmatprep.subr.mxu0 0.0
    %2876 = vmatpush1.msra.mxu0 0.0
    %2877 = vmatprep.subr.mxu0 0.0
    %2878 = vmatpush1.msra.mxu0 0.0
    %2879 = vmatprep.subr.mxu0 0.0
    %2880 = vmatpush1.msra.mxu0 0.0
    %2881 = vmatprep.subr.mxu0 0.0
    %2882 = vmatpush1.msra.mxu0 0.0
    %2883 = vmatprep.subr.mxu0 0.0
    %2884 = vmatpush1.msra.mxu0 0.0
    %2885 = vmatprep.subr.mxu0 0.0
    %2886 = vmatpush1.msra.mxu0 0.0
    %2887 = vmatprep.subr.mxu0 0.0
    %2888 = vmatpush1.msra.mxu0 0.0
    %2889 = vmatprep.subr.mxu0 0.0
    %2890 = vmatpush1.msra.mxu0 0.0
    %2891 = vmatprep.subr.mxu0 0.0
    %2892 = vmatpush1.msra.mxu0 0.0
    %2893 = vmatprep.subr.mxu0 0.0
    %2894 = vmatpush1.msra.mxu0 0.0
    %2895 = vmatprep.subr.mxu0 0.0
    %2896 = vmatpush1.msra.mxu0 0.0
    %2897 = vmatprep.subr.mxu0 0.0
    %2898 = vmatpush1.msra.mxu0 0.0
    %2899 = vmatprep.subr.mxu0 0.0
    %2900 = vmatpush1.msra.mxu0 0.0
    %2901 = vmatprep.subr.mxu0 0.0
    %2902 = vmatpush1.msra.mxu0 0.0
    %2903 = vmatprep.subr.mxu0 0.0
    %2904 = vmatpush1.msra.mxu0 0.0
    %2905 = vmatprep.subr.mxu0 0.0
    %2906 = vmatpush1.msra.mxu0 0.0
    %2907 = vmatprep.subr.mxu0 0.0
    %2908 = vmatpush1.msra.mxu0 0.0
    %2909 = vmatprep.subr.mxu0 0.0
    %2910 = vmatpush1.msra.mxu0 0.0
    %2911 = vmatprep.mubr.f32.mxu0 0.0
    %2912 = vmatmul.mubr.f32.gmra.mrb[0].mxu0 %v2754
    %v2913 = vpop.f32.mrb[0].mxu0
    %v2914 = vadd.f32 %v2845, %v2913
    %v2915 = vpop.f32.mrb[0].mxu0
    %2916 = vmatprep.mubr.f32.mxu0 0.0
    %2917 = vmatmul.mubr.f32.gmra.mrb[0].mxu0 %v2757
    %v2918 = vpop.f32.mrb[0].mxu0
    %v2919 = vadd.f32 %v2845, %v2918
    %v2920 = vpop.f32.mrb[0].mxu0
    %2921 = vdwg.mxu0
    %v2922 = vld [vmem:[#allocation14] sm:$0xff]
    %v2923 = vld [vmem:[#allocation14 + $0x8] sm:$0xff]
    %v2924 = vld [vmem:[%s21] sm:$0x1]
    %s2925 = scalar_lea.vmem [#allocation14], 16
    %v2926 = vld [vmem:[%s2925] sm:$0xff]
    %v2927 = vld [vmem:[%s2925 + $0x8] sm:$0xff]
    %s2928 = scalar_lea.vmem %s21, 1
    %v2929 = vld [vmem:[%s2928] sm:$0x1]
    %v2931 = vlaneseq
    %v2932 = vshrl.u32 %v2931, 7
    %v2933 = vsub.s32 0, %v2932
    %v2934 = vrot.slane %v2924, %v2933
    %v2937 = vsel %vm496, 0.0, 0
    %2939 = vmatprep.subr.mxu0 0.0
    %2940 = vmatpush1.msra.mxu0 %v2922
    %2941 = vmatprep.subr.mxu0 0.0
    %2942 = vmatpush1.msra.mxu0 %v2923
    %2943 = vmatprep.subr.mxu0 0.0
    %2944 = vmatpush1.msra.mxu0 0.0
    %2945 = vmatprep.subr.mxu0 0.0
    %2946 = vmatpush1.msra.mxu0 0.0
    %2947 = vmatprep.subr.mxu0 0.0
    %2948 = vmatpush1.msra.mxu0 0.0
    %2949 = vmatprep.subr.mxu0 0.0
    %2950 = vmatpush1.msra.mxu0 0.0
    %2951 = vmatprep.subr.mxu0 0.0
    %2952 = vmatpush1.msra.mxu0 0.0
    %2953 = vmatprep.subr.mxu0 0.0
    %2954 = vmatpush1.msra.mxu0 0.0
    %2955 = vmatprep.subr.mxu0 0.0
    %2956 = vmatpush1.msra.mxu0 0.0
    %2957 = vmatprep.subr.mxu0 0.0
    %2958 = vmatpush1.msra.mxu0 0.0
    %2959 = vmatprep.subr.mxu0 0.0
    %2960 = vmatpush1.msra.mxu0 0.0
    %2961 = vmatprep.subr.mxu0 0.0
    %2962 = vmatpush1.msra.mxu0 0.0
    %2963 = vmatprep.subr.mxu0 0.0
    %2964 = vmatpush1.msra.mxu0 0.0
    %2965 = vmatprep.subr.mxu0 0.0
    %2966 = vmatpush1.msra.mxu0 0.0
    %2967 = vmatprep.subr.mxu0 0.0
    %2968 = vmatpush1.msra.mxu0 0.0
    %2969 = vmatprep.subr.mxu0 0.0
    %2970 = vmatpush1.msra.mxu0 0.0
    %2971 = vmatprep.subr.mxu0 0.0
    %2972 = vmatpush1.msra.mxu0 0.0
    %2973 = vmatprep.subr.mxu0 0.0
    %2974 = vmatpush1.msra.mxu0 0.0
    %2975 = vmatprep.subr.mxu0 0.0
    %2976 = vmatpush1.msra.mxu0 0.0
    %2977 = vmatprep.subr.mxu0 0.0
    %2978 = vmatpush1.msra.mxu0 0.0
    %2979 = vmatprep.subr.mxu0 0.0
    %2980 = vmatpush1.msra.mxu0 0.0
    %2981 = vmatprep.subr.mxu0 0.0
    %2982 = vmatpush1.msra.mxu0 0.0
    %2983 = vmatprep.subr.mxu0 0.0
    %2984 = vmatpush1.msra.mxu0 0.0
    %2985 = vmatprep.subr.mxu0 0.0
    %2986 = vmatpush1.msra.mxu0 0.0
    %2987 = vmatprep.subr.mxu0 0.0
    %2988 = vmatpush1.msra.mxu0 0.0
    %2989 = vmatprep.subr.mxu0 0.0
    %2990 = vmatpush1.msra.mxu0 0.0
    %2991 = vmatprep.subr.mxu0 0.0
    %2992 = vmatpush1.msra.mxu0 0.0
    %2993 = vmatprep.subr.mxu0 0.0
    %2994 = vmatpush1.msra.mxu0 0.0
    %2995 = vmatprep.subr.mxu0 0.0
    %2996 = vmatpush1.msra.mxu0 0.0
    %2997 = vmatprep.subr.mxu0 0.0
    %2998 = vmatpush1.msra.mxu0 0.0
    %2999 = vmatprep.subr.mxu0 0.0
    %3000 = vmatpush1.msra.mxu0 0.0
    %3001 = vmatprep.subr.mxu0 0.0
    %3002 = vmatpush1.msra.mxu0 0.0
    %3003 = vmatprep.mubr.f32.mxu0 0.0
    %3004 = vmatmul.mubr.f32.gmra.mrb[0].mxu0 %v2937
    %v3005 = vpop.f32.mrb[0].mxu0
    %v3006 = vadd.f32 %v2934, %v3005
    %v3007 = vpop.f32.mrb[0].mxu0
    %3008 = vdwg.mxu0
    %v3010 = vrot.slane %v3006, 1
    %v3013 = vadd.f32 %v2826, %v3006
    %v3014 = vadd.f32 %v2831, %v3010
    %v3015 = vxor.u32 %v3013, 2147483648
    %v3016 = vxor.u32 %v3014, 2147483648
    %v3017 = vmul.f32 %v3015, 1.442695
    %v3018 = vpow.pop %v3017
    %v3019 = vmul.f32 %v3016, 1.442695
    %v3020 = vpow.pop %v3019
    %v3021 = vadd.f32 %v3018, 1.0
    %v3022 = vadd.f32 %v3020, 1.0
    %v3023 = vrcp.pop %v3021
    %v3024 = vmul.f32 1.0, %v3023
    %v3025 = vrcp.pop %v3022
    %v3026 = vmul.f32 1.0, %v3025
    %3027 = vrot.lane.b32.xlu0 %v3006, 96
    %v3028 = vpop.permute.xlu0 %3027
    %3029 = vrot.lane.b32.xlu0 %v3010, 96
    %v3030 = vpop.permute.xlu0 %3029
    %v3033 = vmul.f32 %v3024, %v3028
    %v3034 = vmul.f32 %v3026, %v3030
    %3037 = vrot.lane.b32.xlu0 %v3033, 32
    %v3038 = vpop.permute.xlu0 %3037
    %3039 = vrot.lane.b32.xlu0 %v3034, 32
    %v3040 = vpop.permute.xlu0 %3039
    %v3043 = vadd.f32 %v2826, %v3038
    %v3044 = vadd.f32 %v2831, %v3040
    %v3045 = vtanh.pop %v3043
    %v3046 = vtanh.pop %v3044
    %v3047 = vsub.f32 1.0, %v3024
    %v3048 = vsub.f32 1.0, %v3026
    %3051 = vrot.lane.b32.xlu0 %v3045, 112
    %v3052 = vpop.permute.xlu0 %3051
    %3053 = vrot.lane.b32.xlu0 %v3046, 112
    %v3054 = vpop.permute.xlu0 %3053
    %v3057 = vmul.f32 %v3047, %v3052
    %v3058 = vmul.f32 %v3048, %v3054
    %v3059 = vmul.f32 %v3024, 0.0
    %v3060 = vmul.f32 %v3026, 0.0
    %v3061 = vadd.f32 %v3057, %v3059
    %v3062 = vadd.f32 %v3058, %v3060
    %v3064 = vlaneseq
    %v3065 = vshrl.u32 %v3064, 7
    %v3066 = vsub.s32 0, %v3065
    %v3067 = vrot.slane %v2929, %v3066
    %3069 = vmatprep.subr.mxu0 0.0
    %3070 = vmatpush1.msra.mxu0 %v2926
    %3071 = vmatprep.subr.mxu0 0.0
    %3072 = vmatpush1.msra.mxu0 %v2927
    %3073 = vmatprep.subr.mxu0 0.0
    %3074 = vmatpush1.msra.mxu0 0.0
    %3075 = vmatprep.subr.mxu0 0.0
    %3076 = vmatpush1.msra.mxu0 0.0
    %3077 = vmatprep.subr.mxu0 0.0
    %3078 = vmatpush1.msra.mxu0 0.0
    %3079 = vmatprep.subr.mxu0 0.0
    %3080 = vmatpush1.msra.mxu0 0.0
    %3081 = vmatprep.subr.mxu0 0.0
    %3082 = vmatpush1.msra.mxu0 0.0
    %3083 = vmatprep.subr.mxu0 0.0
    %3084 = vmatpush1.msra.mxu0 0.0
    %3085 = vmatprep.subr.mxu0 0.0
    %3086 = vmatpush1.msra.mxu0 0.0
    %3087 = vmatprep.subr.mxu0 0.0
    %3088 = vmatpush1.msra.mxu0 0.0
    %3089 = vmatprep.subr.mxu0 0.0
    %3090 = vmatpush1.msra.mxu0 0.0
    %3091 = vmatprep.subr.mxu0 0.0
    %3092 = vmatpush1.msra.mxu0 0.0
    %3093 = vmatprep.subr.mxu0 0.0
    %3094 = vmatpush1.msra.mxu0 0.0
    %3095 = vmatprep.subr.mxu0 0.0
    %3096 = vmatpush1.msra.mxu0 0.0
    %3097 = vmatprep.subr.mxu0 0.0
    %3098 = vmatpush1.msra.mxu0 0.0
    %3099 = vmatprep.subr.mxu0 0.0
    %3100 = vmatpush1.msra.mxu0 0.0
    %3101 = vmatprep.subr.mxu0 0.0
    %3102 = vmatpush1.msra.mxu0 0.0
    %3103 = vmatprep.subr.mxu0 0.0
    %3104 = vmatpush1.msra.mxu0 0.0
    %3105 = vmatprep.subr.mxu0 0.0
    %3106 = vmatpush1.msra.mxu0 0.0
    %3107 = vmatprep.subr.mxu0 0.0
    %3108 = vmatpush1.msra.mxu0 0.0
    %3109 = vmatprep.subr.mxu0 0.0
    %3110 = vmatpush1.msra.mxu0 0.0
    %3111 = vmatprep.subr.mxu0 0.0
    %3112 = vmatpush1.msra.mxu0 0.0
    %3113 = vmatprep.subr.mxu0 0.0
    %3114 = vmatpush1.msra.mxu0 0.0
    %3115 = vmatprep.subr.mxu0 0.0
    %3116 = vmatpush1.msra.mxu0 0.0
    %3117 = vmatprep.subr.mxu0 0.0
    %3118 = vmatpush1.msra.mxu0 0.0
    %3119 = vmatprep.subr.mxu0 0.0
    %3120 = vmatpush1.msra.mxu0 0.0
    %3121 = vmatprep.subr.mxu0 0.0
    %3122 = vmatpush1.msra.mxu0 0.0
    %3123 = vmatprep.subr.mxu0 0.0
    %3124 = vmatpush1.msra.mxu0 0.0
    %3125 = vmatprep.subr.mxu0 0.0
    %3126 = vmatpush1.msra.mxu0 0.0
    %3127 = vmatprep.subr.mxu0 0.0
    %3128 = vmatpush1.msra.mxu0 0.0
    %3129 = vmatprep.subr.mxu0 0.0
    %3130 = vmatpush1.msra.mxu0 0.0
    %3131 = vmatprep.subr.mxu0 0.0
    %3132 = vmatpush1.msra.mxu0 0.0
    %3133 = vmatprep.mubr.f32.mxu0 0.0
    %3134 = vmatmul.mubr.f32.gmra.mrb[0].mxu0 %v2937
    %v3135 = vpop.f32.mrb[0].mxu0
    %v3136 = vadd.f32 %v3067, %v3135
    %v3137 = vpop.f32.mrb[0].mxu0
    %3138 = vdwg.mxu0
    %v3140 = vrot.slane %v3136, 1
    %v3141 = vrot.slane %v3136, 2
    %v3144 = vadd.f32 %v2914, %v3140
    %v3145 = vadd.f32 %v2919, %v3141
    %v3146 = vxor.u32 %v3144, 2147483648
    %v3147 = vxor.u32 %v3145, 2147483648
    %v3148 = vmul.f32 %v3146, 1.442695
    %v3149 = vpow.pop %v3148
    %v3150 = vmul.f32 %v3147, 1.442695
    %v3151 = vpow.pop %v3150
    %v3152 = vadd.f32 %v3149, 1.0
    %v3153 = vadd.f32 %v3151, 1.0
    %v3154 = vrcp.pop %v3152
    %v3155 = vmul.f32 1.0, %v3154
    %v3156 = vrcp.pop %v3153
    %v3157 = vmul.f32 1.0, %v3156
    %3158 = vrot.lane.b32.xlu0 %v3140, 96
    %v3159 = vpop.permute.xlu0 %3158
    %3160 = vrot.lane.b32.xlu0 %v3141, 96
    %v3161 = vpop.permute.xlu0 %3160
    %v3164 = vmul.f32 %v3155, %v3159
    %v3165 = vmul.f32 %v3157, %v3161
    %3168 = vrot.lane.b32.xlu0 %v3164, 32
    %v3169 = vpop.permute.xlu0 %3168
    %3170 = vrot.lane.b32.xlu0 %v3165, 32
    %v3171 = vpop.permute.xlu0 %3170
    %v3174 = vadd.f32 %v2914, %v3169
    %v3175 = vadd.f32 %v2919, %v3171
    %v3176 = vtanh.pop %v3174
    %v3177 = vtanh.pop %v3175
    %v3178 = vsub.f32 1.0, %v3155
    %v3179 = vsub.f32 1.0, %v3157
    %3182 = vrot.lane.b32.xlu0 %v3176, 112
    %v3183 = vpop.permute.xlu0 %3182
    %3184 = vrot.lane.b32.xlu0 %v3177, 112
    %v3185 = vpop.permute.xlu0 %3184
    %v3188 = vmul.f32 %v3178, %v3183
    %v3189 = vmul.f32 %v3179, %v3185
    %v3190 = vmul.f32 %v3155, 0.0
    %v3191 = vmul.f32 %v3157, 0.0
    %v3192 = vadd.f32 %v3188, %v3190
    %v3193 = vadd.f32 %v3189, %v3191
    %v3196 = vrot.slane %v3062, 7
    %vm3197 = vcmask 1041409
    %v3198 = vsel %vm3197, %v3196, %v3061
    %3199 = vrot.lane.b32.xlu0 %v3198, 112
    %v3200 = vpop.permute.xlu0 %3199
    %v3201 = vsel %vm496, %v3200, 0
    %3203 = vmatprep.subr.mxu0 0.0
    %3204 = vmatpush1.msra.mxu0 %v2922
    %3205 = vmatprep.subr.mxu0 0.0
    %3206 = vmatpush1.msra.mxu0 %v2923
    %3207 = vmatprep.subr.mxu0 0.0
    %3208 = vmatpush1.msra.mxu0 0.0
    %3209 = vmatprep.subr.mxu0 0.0
    %3210 = vmatpush1.msra.mxu0 0.0
    %3211 = vmatprep.subr.mxu0 0.0
    %3212 = vmatpush1.msra.mxu0 0.0
    %3213 = vmatprep.subr.mxu0 0.0
    %3214 = vmatpush1.msra.mxu0 0.0
    %3215 = vmatprep.subr.mxu0 0.0
    %3216 = vmatpush1.msra.mxu0 0.0
    %3217 = vmatprep.subr.mxu0 0.0
    %3218 = vmatpush1.msra.mxu0 0.0
    %3219 = vmatprep.subr.mxu0 0.0
    %3220 = vmatpush1.msra.mxu0 0.0
    %3221 = vmatprep.subr.mxu0 0.0
    %3222 = vmatpush1.msra.mxu0 0.0
    %3223 = vmatprep.subr.mxu0 0.0
    %3224 = vmatpush1.msra.mxu0 0.0
    %3225 = vmatprep.subr.mxu0 0.0
    %3226 = vmatpush1.msra.mxu0 0.0
    %3227 = vmatprep.subr.mxu0 0.0
    %3228 = vmatpush1.msra.mxu0 0.0
    %3229 = vmatprep.subr.mxu0 0.0
    %3230 = vmatpush1.msra.mxu0 0.0
    %3231 = vmatprep.subr.mxu0 0.0
    %3232 = vmatpush1.msra.mxu0 0.0
    %3233 = vmatprep.subr.mxu0 0.0
    %3234 = vmatpush1.msra.mxu0 0.0
    %3235 = vmatprep.subr.mxu0 0.0
    %3236 = vmatpush1.msra.mxu0 0.0
    %3237 = vmatprep.subr.mxu0 0.0
    %3238 = vmatpush1.msra.mxu0 0.0
    %3239 = vmatprep.subr.mxu0 0.0
    %3240 = vmatpush1.msra.mxu0 0.0
    %3241 = vmatprep.subr.mxu0 0.0
    %3242 = vmatpush1.msra.mxu0 0.0
    %3243 = vmatprep.subr.mxu0 0.0
    %3244 = vmatpush1.msra.mxu0 0.0
    %3245 = vmatprep.subr.mxu0 0.0
    %3246 = vmatpush1.msra.mxu0 0.0
    %3247 = vmatprep.subr.mxu0 0.0
    %3248 = vmatpush1.msra.mxu0 0.0
    %3249 = vmatprep.subr.mxu0 0.0
    %3250 = vmatpush1.msra.mxu0 0.0
    %3251 = vmatprep.subr.mxu0 0.0
    %3252 = vmatpush1.msra.mxu0 0.0
    %3253 = vmatprep.subr.mxu0 0.0
    %3254 = vmatpush1.msra.mxu0 0.0
    %3255 = vmatprep.subr.mxu0 0.0
    %3256 = vmatpush1.msra.mxu0 0.0
    %3257 = vmatprep.subr.mxu0 0.0
    %3258 = vmatpush1.msra.mxu0 0.0
    %3259 = vmatprep.subr.mxu0 0.0
    %3260 = vmatpush1.msra.mxu0 0.0
    %3261 = vmatprep.subr.mxu0 0.0
    %3262 = vmatpush1.msra.mxu0 0.0
    %3263 = vmatprep.subr.mxu0 0.0
    %3264 = vmatpush1.msra.mxu0 0.0
    %3265 = vmatprep.subr.mxu0 0.0
    %3266 = vmatpush1.msra.mxu0 0.0
    %3267 = vmatprep.mubr.f32.mxu0 0.0
    %3268 = vmatmul.mubr.f32.gmra.mrb[0].mxu0 %v3201
    %v3269 = vpop.f32.mrb[0].mxu0
    %v3270 = vadd.f32 %v2934, %v3269
    %v3271 = vpop.f32.mrb[0].mxu0
    %3272 = vdwg.mxu0
    %v3274 = vrot.slane %v3270, 7
    %v3277 = vadd.f32 %v2826, %v3274
    %v3278 = vadd.f32 %v2831, %v3270
    %v3279 = vxor.u32 %v3277, 2147483648
    %v3280 = vxor.u32 %v3278, 2147483648
    %v3281 = vmul.f32 %v3279, 1.442695
    %v3282 = vpow.pop %v3281
    %v3283 = vmul.f32 %v3280, 1.442695
    %v3284 = vpow.pop %v3283
    %v3285 = vadd.f32 %v3282, 1.0
    %v3286 = vadd.f32 %v3284, 1.0
    %v3287 = vrcp.pop %v3285
    %v3288 = vmul.f32 1.0, %v3287
    %v3289 = vrcp.pop %v3286
    %v3290 = vmul.f32 1.0, %v3289
    %3291 = vrot.lane.b32.xlu0 %v3274, 96
    %v3292 = vpop.permute.xlu0 %3291
    %3293 = vrot.lane.b32.xlu0 %v3270, 96
    %v3294 = vpop.permute.xlu0 %3293
    %v3297 = vmul.f32 %v3288, %v3292
    %v3298 = vmul.f32 %v3290, %v3294
    %3301 = vrot.lane.b32.xlu0 %v3297, 32
    %v3302 = vpop.permute.xlu0 %3301
    %3303 = vrot.lane.b32.xlu0 %v3298, 32
    %v3304 = vpop.permute.xlu0 %3303
    %v3307 = vadd.f32 %v2826, %v3302
    %v3308 = vadd.f32 %v2831, %v3304
    %v3309 = vtanh.pop %v3307
    %v3310 = vtanh.pop %v3308
    %v3311 = vsub.f32 1.0, %v3288
    %v3312 = vsub.f32 1.0, %v3290
    %3315 = vrot.lane.b32.xlu0 %v3309, 112
    %v3316 = vpop.permute.xlu0 %3315
    %3317 = vrot.lane.b32.xlu0 %v3310, 112
    %v3318 = vpop.permute.xlu0 %3317
    %v3321 = vmul.f32 %v3311, %v3316
    %v3322 = vmul.f32 %v3312, %v3318
    %v3323 = vrot.slane %v3061, 7
    %v3326 = vmul.f32 %v3288, %v3323
    %v3327 = vmul.f32 %v3290, %v3196
    %v3328 = vadd.f32 %v3321, %v3326
    %v3329 = vadd.f32 %v3322, %v3327
    %v3332 = vrot.slane %v3192, 7
    %v3333 = vrot.slane %v3193, 6
    %v3334 = vsel %vm3197, %v3333, %v3332
    %3335 = vrot.lane.b32.xlu0 %v3334, 112
    %v3336 = vpop.permute.xlu0 %3335
    %v3337 = vsel %vm496, %v3336, 0
    %3339 = vmatprep.subr.mxu0 0.0
    %3340 = vmatpush1.msra.mxu0 %v2926
    %3341 = vmatprep.subr.mxu0 0.0
    %3342 = vmatpush1.msra.mxu0 %v2927
    %3343 = vmatprep.subr.mxu0 0.0
    %3344 = vmatpush1.msra.mxu0 0.0
    %3345 = vmatprep.subr.mxu0 0.0
    %3346 = vmatpush1.msra.mxu0 0.0
    %3347 = vmatprep.subr.mxu0 0.0
    %3348 = vmatpush1.msra.mxu0 0.0
    %3349 = vmatprep.subr.mxu0 0.0
    %3350 = vmatpush1.msra.mxu0 0.0
    %3351 = vmatprep.subr.mxu0 0.0
    %3352 = vmatpush1.msra.mxu0 0.0
    %3353 = vmatprep.subr.mxu0 0.0
    %3354 = vmatpush1.msra.mxu0 0.0
    %3355 = vmatprep.subr.mxu0 0.0
    %3356 = vmatpush1.msra.mxu0 0.0
    %3357 = vmatprep.subr.mxu0 0.0
    %3358 = vmatpush1.msra.mxu0 0.0
    %3359 = vmatprep.subr.mxu0 0.0
    %3360 = vmatpush1.msra.mxu0 0.0
    %3361 = vmatprep.subr.mxu0 0.0
    %3362 = vmatpush1.msra.mxu0 0.0
    %3363 = vmatprep.subr.mxu0 0.0
    %3364 = vmatpush1.msra.mxu0 0.0
    %3365 = vmatprep.subr.mxu0 0.0
    %3366 = vmatpush1.msra.mxu0 0.0
    %3367 = vmatprep.subr.mxu0 0.0
    %3368 = vmatpush1.msra.mxu0 0.0
    %3369 = vmatprep.subr.mxu0 0.0
    %3370 = vmatpush1.msra.mxu0 0.0
    %3371 = vmatprep.subr.mxu0 0.0
    %3372 = vmatpush1.msra.mxu0 0.0
    %3373 = vmatprep.subr.mxu0 0.0
    %3374 = vmatpush1.msra.mxu0 0.0
    %3375 = vmatprep.subr.mxu0 0.0
    %3376 = vmatpush1.msra.mxu0 0.0
    %3377 = vmatprep.subr.mxu0 0.0
    %3378 = vmatpush1.msra.mxu0 0.0
    %3379 = vmatprep.subr.mxu0 0.0
    %3380 = vmatpush1.msra.mxu0 0.0
    %3381 = vmatprep.subr.mxu0 0.0
    %3382 = vmatpush1.msra.mxu0 0.0
    %3383 = vmatprep.subr.mxu0 0.0
    %3384 = vmatpush1.msra.mxu0 0.0
    %3385 = vmatprep.subr.mxu0 0.0
    %3386 = vmatpush1.msra.mxu0 0.0
    %3387 = vmatprep.subr.mxu0 0.0
    %3388 = vmatpush1.msra.mxu0 0.0
    %3389 = vmatprep.subr.mxu0 0.0
    %3390 = vmatpush1.msra.mxu0 0.0
    %3391 = vmatprep.subr.mxu0 0.0
    %3392 = vmatpush1.msra.mxu0 0.0
    %3393 = vmatprep.subr.mxu0 0.0
    %3394 = vmatpush1.msra.mxu0 0.0
    %3395 = vmatprep.subr.mxu0 0.0
    %3396 = vmatpush1.msra.mxu0 0.0
    %3397 = vmatprep.subr.mxu0 0.0
    %3398 = vmatpush1.msra.mxu0 0.0
    %3399 = vmatprep.subr.mxu0 0.0
    %3400 = vmatpush1.msra.mxu0 0.0
    %3401 = vmatprep.subr.mxu0 0.0
    %3402 = vmatpush1.msra.mxu0 0.0
    %3403 = vmatprep.mubr.f32.mxu0 0.0
    %3404 = vmatmul.mubr.f32.gmra.mrb[0].mxu0 %v3337
    %v3405 = vpop.f32.mrb[0].mxu0
    %v3406 = vadd.f32 %v3067, %v3405
    %v3407 = vpop.f32.mrb[0].mxu0
    %3408 = vdwg.mxu0
    %v3410 = vrot.slane %v3406, 2
    %v3411 = vrot.slane %v3406, 3
    %v3414 = vadd.f32 %v2914, %v3410
    %v3415 = vadd.f32 %v2919, %v3411
    %v3416 = vxor.u32 %v3414, 2147483648
    %v3417 = vxor.u32 %v3415, 2147483648
    %v3418 = vmul.f32 %v3416, 1.442695
    %v3419 = vpow.pop %v3418
    %v3420 = vmul.f32 %v3417, 1.442695
    %v3421 = vpow.pop %v3420
    %v3422 = vadd.f32 %v3419, 1.0
    %v3423 = vadd.f32 %v3421, 1.0
    %v3424 = vrcp.pop %v3422
    %v3425 = vmul.f32 1.0, %v3424
    %v3426 = vrcp.pop %v3423
    %v3427 = vmul.f32 1.0, %v3426
    %3428 = vrot.lane.b32.xlu0 %v3410, 96
    %v3429 = vpop.permute.xlu0 %3428
    %3430 = vrot.lane.b32.xlu0 %v3411, 96
    %v3431 = vpop.permute.xlu0 %3430
    %v3434 = vmul.f32 %v3425, %v3429
    %v3435 = vmul.f32 %v3427, %v3431
    %3438 = vrot.lane.b32.xlu0 %v3434, 32
    %v3439 = vpop.permute.xlu0 %3438
    %3440 = vrot.lane.b32.xlu0 %v3435, 32
    %v3441 = vpop.permute.xlu0 %3440
    %v3444 = vadd.f32 %v2914, %v3439
    %v3445 = vadd.f32 %v2919, %v3441
    %v3446 = vtanh.pop %v3444
    %v3447 = vtanh.pop %v3445
    %v3448 = vsub.f32 1.0, %v3425
    %v3449 = vsub.f32 1.0, %v3427
    %3452 = vrot.lane.b32.xlu0 %v3446, 112
    %v3453 = vpop.permute.xlu0 %3452
    %3454 = vrot.lane.b32.xlu0 %v3447, 112
    %v3455 = vpop.permute.xlu0 %3454
    %v3458 = vmul.f32 %v3448, %v3453
    %v3459 = vmul.f32 %v3449, %v3455
    %v3460 = vrot.slane %v3192, 1
    %v3461 = vrot.slane %v3193, 1
    %v3464 = vmul.f32 %v3425, %v3460
    %v3465 = vmul.f32 %v3427, %v3461
    %v3466 = vadd.f32 %v3458, %v3464
    %v3467 = vadd.f32 %v3459, %v3465
    %v3470 = vrot.slane %v3328, 1
    %v3471 = vsel %vm3197, %v3329, %v3470
    %3472 = vrot.lane.b32.xlu0 %v3471, 112
    %v3473 = vpop.permute.xlu0 %3472
    %v3474 = vsel %vm496, %v3473, 0
    %3476 = vmatprep.subr.mxu0 0.0
    %3477 = vmatpush1.msra.mxu0 %v2922
    %3478 = vmatprep.subr.mxu0 0.0
    %3479 = vmatpush1.msra.mxu0 %v2923
    %3480 = vmatprep.subr.mxu0 0.0
    %3481 = vmatpush1.msra.mxu0 0.0
    %3482 = vmatprep.subr.mxu0 0.0
    %3483 = vmatpush1.msra.mxu0 0.0
    %3484 = vmatprep.subr.mxu0 0.0
    %3485 = vmatpush1.msra.mxu0 0.0
    %3486 = vmatprep.subr.mxu0 0.0
    %3487 = vmatpush1.msra.mxu0 0.0
    %3488 = vmatprep.subr.mxu0 0.0
    %3489 = vmatpush1.msra.mxu0 0.0
    %3490 = vmatprep.subr.mxu0 0.0
    %3491 = vmatpush1.msra.mxu0 0.0
    %3492 = vmatprep.subr.mxu0 0.0
    %3493 = vmatpush1.msra.mxu0 0.0
    %3494 = vmatprep.subr.mxu0 0.0
    %3495 = vmatpush1.msra.mxu0 0.0
    %3496 = vmatprep.subr.mxu0 0.0
    %3497 = vmatpush1.msra.mxu0 0.0
    %3498 = vmatprep.subr.mxu0 0.0
    %3499 = vmatpush1.msra.mxu0 0.0
    %3500 = vmatprep.subr.mxu0 0.0
    %3501 = vmatpush1.msra.mxu0 0.0
    %3502 = vmatprep.subr.mxu0 0.0
    %3503 = vmatpush1.msra.mxu0 0.0
    %3504 = vmatprep.subr.mxu0 0.0
    %3505 = vmatpush1.msra.mxu0 0.0
    %3506 = vmatprep.subr.mxu0 0.0
    %3507 = vmatpush1.msra.mxu0 0.0
    %3508 = vmatprep.subr.mxu0 0.0
    %3509 = vmatpush1.msra.mxu0 0.0
    %3510 = vmatprep.subr.mxu0 0.0
    %3511 = vmatpush1.msra.mxu0 0.0
    %3512 = vmatprep.subr.mxu0 0.0
    %3513 = vmatpush1.msra.mxu0 0.0
    %3514 = vmatprep.subr.mxu0 0.0
    %3515 = vmatpush1.msra.mxu0 0.0
    %3516 = vmatprep.subr.mxu0 0.0
    %3517 = vmatpush1.msra.mxu0 0.0
    %3518 = vmatprep.subr.mxu0 0.0
    %3519 = vmatpush1.msra.mxu0 0.0
    %3520 = vmatprep.subr.mxu0 0.0
    %3521 = vmatpush1.msra.mxu0 0.0
    %3522 = vmatprep.subr.mxu0 0.0
    %3523 = vmatpush1.msra.mxu0 0.0
    %3524 = vmatprep.subr.mxu0 0.0
    %3525 = vmatpush1.msra.mxu0 0.0
    %3526 = vmatprep.subr.mxu0 0.0
    %3527 = vmatpush1.msra.mxu0 0.0
    %3528 = vmatprep.subr.mxu0 0.0
    %3529 = vmatpush1.msra.mxu0 0.0
    %3530 = vmatprep.subr.mxu0 0.0
    %3531 = vmatpush1.msra.mxu0 0.0
    %3532 = vmatprep.subr.mxu0 0.0
    %3533 = vmatpush1.msra.mxu0 0.0
    %3534 = vmatprep.subr.mxu0 0.0
    %3535 = vmatpush1.msra.mxu0 0.0
    %3536 = vmatprep.subr.mxu0 0.0
    %3537 = vmatpush1.msra.mxu0 0.0
    %3538 = vmatprep.subr.mxu0 0.0
    %3539 = vmatpush1.msra.mxu0 0.0
    %3540 = vmatprep.mubr.f32.mxu0 0.0
    %3541 = vmatmul.mubr.f32.gmra.mrb[0].mxu0 %v3474
    %v3542 = vpop.f32.mrb[0].mxu0
    %v3543 = vadd.f32 %v2934, %v3542
    %v3544 = vpop.f32.mrb[0].mxu0
    %3545 = vdwg.mxu0
    %v3547 = vrot.slane %v3543, 6
    %v3548 = vrot.slane %v3543, 7
    %v3551 = vadd.f32 %v2826, %v3547
    %v3552 = vadd.f32 %v2831, %v3548
    %v3553 = vxor.u32 %v3551, 2147483648
    %v3554 = vxor.u32 %v3552, 2147483648
    %v3555 = vmul.f32 %v3553, 1.442695
    %v3556 = vpow.pop %v3555
    %v3557 = vmul.f32 %v3554, 1.442695
    %v3558 = vpow.pop %v3557
    %v3559 = vadd.f32 %v3556, 1.0
    %v3560 = vadd.f32 %v3558, 1.0
    %v3561 = vrcp.pop %v3559
    %v3562 = vmul.f32 1.0, %v3561
    %v3563 = vrcp.pop %v3560
    %v3564 = vmul.f32 1.0, %v3563
    %3565 = vrot.lane.b32.xlu0 %v3547, 96
    %v3566 = vpop.permute.xlu0 %3565
    %3567 = vrot.lane.b32.xlu0 %v3548, 96
    %v3568 = vpop.permute.xlu0 %3567
    %v3571 = vmul.f32 %v3562, %v3566
    %v3572 = vmul.f32 %v3564, %v3568
    %3575 = vrot.lane.b32.xlu0 %v3571, 32
    %v3576 = vpop.permute.xlu0 %3575
    %3577 = vrot.lane.b32.xlu0 %v3572, 32
    %v3578 = vpop.permute.xlu0 %3577
    %v3581 = vadd.f32 %v2826, %v3576
    %v3582 = vadd.f32 %v2831, %v3578
    %v3583 = vtanh.pop %v3581
    %v3584 = vtanh.pop %v3582
    %v3585 = vsub.f32 1.0, %v3562
    %v3586 = vsub.f32 1.0, %v3564
    %3589 = vrot.lane.b32.xlu0 %v3583, 112
    %v3590 = vpop.permute.xlu0 %3589
    %3591 = vrot.lane.b32.xlu0 %v3584, 112
    %v3592 = vpop.permute.xlu0 %3591
    %v3595 = vmul.f32 %v3585, %v3590
    %v3596 = vmul.f32 %v3586, %v3592
    %v3597 = vrot.slane %v3328, 7
    %v3598 = vrot.slane %v3329, 7
    %v3601 = vmul.f32 %v3562, %v3597
    %v3602 = vmul.f32 %v3564, %v3598
    %v3603 = vadd.f32 %v3595, %v3601
    %v3604 = vadd.f32 %v3596, %v3602
    %v3607 = vrot.slane %v3466, 6
    %v3608 = vrot.slane %v3467, 5
    %v3609 = vsel %vm3197, %v3608, %v3607
    %3610 = vrot.lane.b32.xlu0 %v3609, 112
    %v3611 = vpop.permute.xlu0 %3610
    %v3612 = vsel %vm496, %v3611, 0
    %3614 = vmatprep.subr.mxu0 0.0
    %3615 = vmatpush1.msra.mxu0 %v2926
    %3616 = vmatprep.subr.mxu0 0.0
    %3617 = vmatpush1.msra.mxu0 %v2927
    %3618 = vmatprep.subr.mxu0 0.0
    %3619 = vmatpush1.msra.mxu0 0.0
    %3620 = vmatprep.subr.mxu0 0.0
    %3621 = vmatpush1.msra.mxu0 0.0
    %3622 = vmatprep.subr.mxu0 0.0
    %3623 = vmatpush1.msra.mxu0 0.0
    %3624 = vmatprep.subr.mxu0 0.0
    %3625 = vmatpush1.msra.mxu0 0.0
    %3626 = vmatprep.subr.mxu0 0.0
    %3627 = vmatpush1.msra.mxu0 0.0
    %3628 = vmatprep.subr.mxu0 0.0
    %3629 = vmatpush1.msra.mxu0 0.0
    %3630 = vmatprep.subr.mxu0 0.0
    %3631 = vmatpush1.msra.mxu0 0.0
    %3632 = vmatprep.subr.mxu0 0.0
    %3633 = vmatpush1.msra.mxu0 0.0
    %3634 = vmatprep.subr.mxu0 0.0
    %3635 = vmatpush1.msra.mxu0 0.0
    %3636 = vmatprep.subr.mxu0 0.0
    %3637 = vmatpush1.msra.mxu0 0.0
    %3638 = vmatprep.subr.mxu0 0.0
    %3639 = vmatpush1.msra.mxu0 0.0
    %3640 = vmatprep.subr.mxu0 0.0
    %3641 = vmatpush1.msra.mxu0 0.0
    %3642 = vmatprep.subr.mxu0 0.0
    %3643 = vmatpush1.msra.mxu0 0.0
    %3644 = vmatprep.subr.mxu0 0.0
    %3645 = vmatpush1.msra.mxu0 0.0
    %3646 = vmatprep.subr.mxu0 0.0
    %3647 = vmatpush1.msra.mxu0 0.0
    %3648 = vmatprep.subr.mxu0 0.0
    %3649 = vmatpush1.msra.mxu0 0.0
    %3650 = vmatprep.subr.mxu0 0.0
    %3651 = vmatpush1.msra.mxu0 0.0
    %3652 = vmatprep.subr.mxu0 0.0
    %3653 = vmatpush1.msra.mxu0 0.0
    %3654 = vmatprep.subr.mxu0 0.0
    %3655 = vmatpush1.msra.mxu0 0.0
    %3656 = vmatprep.subr.mxu0 0.0
    %3657 = vmatpush1.msra.mxu0 0.0
    %3658 = vmatprep.subr.mxu0 0.0
    %3659 = vmatpush1.msra.mxu0 0.0
    %3660 = vmatprep.subr.mxu0 0.0
    %3661 = vmatpush1.msra.mxu0 0.0
    %3662 = vmatprep.subr.mxu0 0.0
    %3663 = vmatpush1.msra.mxu0 0.0
    %3664 = vmatprep.subr.mxu0 0.0
    %3665 = vmatpush1.msra.mxu0 0.0
    %3666 = vmatprep.subr.mxu0 0.0
    %3667 = vmatpush1.msra.mxu0 0.0
    %3668 = vmatprep.subr.mxu0 0.0
    %3669 = vmatpush1.msra.mxu0 0.0
    %3670 = vmatprep.subr.mxu0 0.0
    %3671 = vmatpush1.msra.mxu0 0.0
    %3672 = vmatprep.subr.mxu0 0.0
    %3673 = vmatpush1.msra.mxu0 0.0
    %3674 = vmatprep.subr.mxu0 0.0
    %3675 = vmatpush1.msra.mxu0 0.0
    %3676 = vmatprep.subr.mxu0 0.0
    %3677 = vmatpush1.msra.mxu0 0.0
    %3678 = vmatprep.mubr.f32.mxu0 0.0
    %3679 = vmatmul.mubr.f32.gmra.mrb[0].mxu0 %v3612
    %v3680 = vpop.f32.mrb[0].mxu0
    %v3681 = vadd.f32 %v3067, %v3680
    %v3682 = vpop.f32.mrb[0].mxu0
    %3683 = vdwg.mxu0
    %v3685 = vrot.slane %v3681, 3
    %v3686 = vrot.slane %v3681, 4
    %v3689 = vadd.f32 %v2914, %v3685
    %v3690 = vadd.f32 %v2919, %v3686
    %v3691 = vxor.u32 %v3689, 2147483648
    %v3692 = vxor.u32 %v3690, 2147483648
    %v3693 = vmul.f32 %v3691, 1.442695
    %v3694 = vpow.pop %v3693
    %v3695 = vmul.f32 %v3692, 1.442695
    %v3696 = vpow.pop %v3695
    %v3697 = vadd.f32 %v3694, 1.0
    %v3698 = vadd.f32 %v3696, 1.0
    %v3699 = vrcp.pop %v3697
    %v3700 = vmul.f32 1.0, %v3699
    %v3701 = vrcp.pop %v3698
    %v3702 = vmul.f32 1.0, %v3701
    %3703 = vrot.lane.b32.xlu0 %v3685, 96
    %v3704 = vpop.permute.xlu0 %3703
    %3705 = vrot.lane.b32.xlu0 %v3686, 96
    %v3706 = vpop.permute.xlu0 %3705
    %v3709 = vmul.f32 %v3700, %v3704
    %v3710 = vmul.f32 %v3702, %v3706
    %3713 = vrot.lane.b32.xlu0 %v3709, 32
    %v3714 = vpop.permute.xlu0 %3713
    %3715 = vrot.lane.b32.xlu0 %v3710, 32
    %v3716 = vpop.permute.xlu0 %3715
    %v3719 = vadd.f32 %v2914, %v3714
    %v3720 = vadd.f32 %v2919, %v3716
    %v3721 = vtanh.pop %v3719
    %v3722 = vtanh.pop %v3720
    %v3723 = vsub.f32 1.0, %v3700
    %v3724 = vsub.f32 1.0, %v3702
    %3727 = vrot.lane.b32.xlu0 %v3721, 112
    %v3728 = vpop.permute.xlu0 %3727
    %3729 = vrot.lane.b32.xlu0 %v3722, 112
    %v3730 = vpop.permute.xlu0 %3729
    %v3733 = vmul.f32 %v3723, %v3728
    %v3734 = vmul.f32 %v3724, %v3730
    %v3735 = vrot.slane %v3466, 1
    %v3736 = vrot.slane %v3467, 1
    %v3739 = vmul.f32 %v3700, %v3735
    %v3740 = vmul.f32 %v3702, %v3736
    %v3741 = vadd.f32 %v3733, %v3739
    %v3742 = vadd.f32 %v3734, %v3740
    %v3745 = vrot.slane %v3603, 2
    %v3746 = vrot.slane %v3604, 1
    %v3747 = vsel %vm3197, %v3746, %v3745
    %3748 = vrot.lane.b32.xlu0 %v3747, 112
    %v3749 = vpop.permute.xlu0 %3748
    %v3750 = vsel %vm496, %v3749, 0
    %3752 = vmatprep.subr.mxu0 0.0
    %3753 = vmatpush1.msra.mxu0 %v2922
    %3754 = vmatprep.subr.mxu0 0.0
    %3755 = vmatpush1.msra.mxu0 %v2923
    %3756 = vmatprep.subr.mxu0 0.0
    %3757 = vmatpush1.msra.mxu0 0.0
    %3758 = vmatprep.subr.mxu0 0.0
    %3759 = vmatpush1.msra.mxu0 0.0
    %3760 = vmatprep.subr.mxu0 0.0
    %3761 = vmatpush1.msra.mxu0 0.0
    %3762 = vmatprep.subr.mxu0 0.0
    %3763 = vmatpush1.msra.mxu0 0.0
    %3764 = vmatprep.subr.mxu0 0.0
    %3765 = vmatpush1.msra.mxu0 0.0
    %3766 = vmatprep.subr.mxu0 0.0
    %3767 = vmatpush1.msra.mxu0 0.0
    %3768 = vmatprep.subr.mxu0 0.0
    %3769 = vmatpush1.msra.mxu0 0.0
    %3770 = vmatprep.subr.mxu0 0.0
    %3771 = vmatpush1.msra.mxu0 0.0
    %3772 = vmatprep.subr.mxu0 0.0
    %3773 = vmatpush1.msra.mxu0 0.0
    %3774 = vmatprep.subr.mxu0 0.0
    %3775 = vmatpush1.msra.mxu0 0.0
    %3776 = vmatprep.subr.mxu0 0.0
    %3777 = vmatpush1.msra.mxu0 0.0
    %3778 = vmatprep.subr.mxu0 0.0
    %3779 = vmatpush1.msra.mxu0 0.0
    %3780 = vmatprep.subr.mxu0 0.0
    %3781 = vmatpush1.msra.mxu0 0.0
    %3782 = vmatprep.subr.mxu0 0.0
    %3783 = vmatpush1.msra.mxu0 0.0
    %3784 = vmatprep.subr.mxu0 0.0
    %3785 = vmatpush1.msra.mxu0 0.0
    %3786 = vmatprep.subr.mxu0 0.0
    %3787 = vmatpush1.msra.mxu0 0.0
    %3788 = vmatprep.subr.mxu0 0.0
    %3789 = vmatpush1.msra.mxu0 0.0
    %3790 = vmatprep.subr.mxu0 0.0
    %3791 = vmatpush1.msra.mxu0 0.0
    %3792 = vmatprep.subr.mxu0 0.0
    %3793 = vmatpush1.msra.mxu0 0.0
    %3794 = vmatprep.subr.mxu0 0.0
    %3795 = vmatpush1.msra.mxu0 0.0
    %3796 = vmatprep.subr.mxu0 0.0
    %3797 = vmatpush1.msra.mxu0 0.0
    %3798 = vmatprep.subr.mxu0 0.0
    %3799 = vmatpush1.msra.mxu0 0.0
    %3800 = vmatprep.subr.mxu0 0.0
    %3801 = vmatpush1.msra.mxu0 0.0
    %3802 = vmatprep.subr.mxu0 0.0
    %3803 = vmatpush1.msra.mxu0 0.0
    %3804 = vmatprep.subr.mxu0 0.0
    %3805 = vmatpush1.msra.mxu0 0.0
    %3806 = vmatprep.subr.mxu0 0.0
    %3807 = vmatpush1.msra.mxu0 0.0
    %3808 = vmatprep.subr.mxu0 0.0
    %3809 = vmatpush1.msra.mxu0 0.0
    %3810 = vmatprep.subr.mxu0 0.0
    %3811 = vmatpush1.msra.mxu0 0.0
    %3812 = vmatprep.subr.mxu0 0.0
    %3813 = vmatpush1.msra.mxu0 0.0
    %3814 = vmatprep.subr.mxu0 0.0
    %3815 = vmatpush1.msra.mxu0 0.0
    %3816 = vmatprep.mubr.f32.mxu0 0.0
    %3817 = vmatmul.mubr.f32.gmra.mrb[0].mxu0 %v3750
    %v3818 = vpop.f32.mrb[0].mxu0
    %v3819 = vadd.f32 %v2934, %v3818
    %v3820 = vpop.f32.mrb[0].mxu0
    %3821 = vdwg.mxu0
    %v3823 = vrot.slane %v3819, 5
    %v3824 = vrot.slane %v3819, 6
    %v3827 = vadd.f32 %v2826, %v3823
    %v3828 = vadd.f32 %v2831, %v3824
    %v3829 = vxor.u32 %v3827, 2147483648
    %v3830 = vxor.u32 %v3828, 2147483648
    %v3831 = vmul.f32 %v3829, 1.442695
    %v3832 = vpow.pop %v3831
    %v3833 = vmul.f32 %v3830, 1.442695
    %v3834 = vpow.pop %v3833
    %v3835 = vadd.f32 %v3832, 1.0
    %v3836 = vadd.f32 %v3834, 1.0
    %v3837 = vrcp.pop %v3835
    %v3838 = vmul.f32 1.0, %v3837
    %v3839 = vrcp.pop %v3836
    %v3840 = vmul.f32 1.0, %v3839
    %3841 = vrot.lane.b32.xlu0 %v3823, 96
    %v3842 = vpop.permute.xlu0 %3841
    %3843 = vrot.lane.b32.xlu0 %v3824, 96
    %v3844 = vpop.permute.xlu0 %3843
    %v3847 = vmul.f32 %v3838, %v3842
    %v3848 = vmul.f32 %v3840, %v3844
    %3851 = vrot.lane.b32.xlu0 %v3847, 32
    %v3852 = vpop.permute.xlu0 %3851
    %3853 = vrot.lane.b32.xlu0 %v3848, 32
    %v3854 = vpop.permute.xlu0 %3853
    %v3857 = vadd.f32 %v2826, %v3852
    %v3858 = vadd.f32 %v2831, %v3854
    %v3859 = vtanh.pop %v3857
    %v3860 = vtanh.pop %v3858
    %v3861 = vsub.f32 1.0, %v3838
    %v3862 = vsub.f32 1.0, %v3840
    %3865 = vrot.lane.b32.xlu0 %v3859, 112
    %v3866 = vpop.permute.xlu0 %3865
    %3867 = vrot.lane.b32.xlu0 %v3860, 112
    %v3868 = vpop.permute.xlu0 %3867
    %v3871 = vmul.f32 %v3861, %v3866
    %v3872 = vmul.f32 %v3862, %v3868
    %v3873 = vrot.slane %v3603, 7
    %v3874 = vrot.slane %v3604, 7
    %v3877 = vmul.f32 %v3838, %v3873
    %v3878 = vmul.f32 %v3840, %v3874
    %v3879 = vadd.f32 %v3871, %v3877
    %v3880 = vadd.f32 %v3872, %v3878
    %v3883 = vrot.slane %v3741, 5
    %v3884 = vrot.slane %v3742, 4
    %v3885 = vsel %vm3197, %v3884, %v3883
    %3886 = vrot.lane.b32.xlu0 %v3885, 112
    %v3887 = vpop.permute.xlu0 %3886
    %v3888 = vsel %vm496, %v3887, 0
    %3890 = vmatprep.subr.mxu0 0.0
    %3891 = vmatpush1.msra.mxu0 %v2926
    %3892 = vmatprep.subr.mxu0 0.0
    %3893 = vmatpush1.msra.mxu0 %v2927
    %3894 = vmatprep.subr.mxu0 0.0
    %3895 = vmatpush1.msra.mxu0 0.0
    %3896 = vmatprep.subr.mxu0 0.0
    %3897 = vmatpush1.msra.mxu0 0.0
    %3898 = vmatprep.subr.mxu0 0.0
    %3899 = vmatpush1.msra.mxu0 0.0
    %3900 = vmatprep.subr.mxu0 0.0
    %3901 = vmatpush1.msra.mxu0 0.0
    %3902 = vmatprep.subr.mxu0 0.0
    %3903 = vmatpush1.msra.mxu0 0.0
    %3904 = vmatprep.subr.mxu0 0.0
    %3905 = vmatpush1.msra.mxu0 0.0
    %3906 = vmatprep.subr.mxu0 0.0
    %3907 = vmatpush1.msra.mxu0 0.0
    %3908 = vmatprep.subr.mxu0 0.0
    %3909 = vmatpush1.msra.mxu0 0.0
    %3910 = vmatprep.subr.mxu0 0.0
    %3911 = vmatpush1.msra.mxu0 0.0
    %3912 = vmatprep.subr.mxu0 0.0
    %3913 = vmatpush1.msra.mxu0 0.0
    %3914 = vmatprep.subr.mxu0 0.0
    %3915 = vmatpush1.msra.mxu0 0.0
    %3916 = vmatprep.subr.mxu0 0.0
    %3917 = vmatpush1.msra.mxu0 0.0
    %3918 = vmatprep.subr.mxu0 0.0
    %3919 = vmatpush1.msra.mxu0 0.0
    %3920 = vmatprep.subr.mxu0 0.0
    %3921 = vmatpush1.msra.mxu0 0.0
    %3922 = vmatprep.subr.mxu0 0.0
    %3923 = vmatpush1.msra.mxu0 0.0
    %3924 = vmatprep.subr.mxu0 0.0
    %3925 = vmatpush1.msra.mxu0 0.0
    %3926 = vmatprep.subr.mxu0 0.0
    %3927 = vmatpush1.msra.mxu0 0.0
    %3928 = vmatprep.subr.mxu0 0.0
    %3929 = vmatpush1.msra.mxu0 0.0
    %3930 = vmatprep.subr.mxu0 0.0
    %3931 = vmatpush1.msra.mxu0 0.0
    %3932 = vmatprep.subr.mxu0 0.0
    %3933 = vmatpush1.msra.mxu0 0.0
    %3934 = vmatprep.subr.mxu0 0.0
    %3935 = vmatpush1.msra.mxu0 0.0
    %3936 = vmatprep.subr.mxu0 0.0
    %3937 = vmatpush1.msra.mxu0 0.0
    %3938 = vmatprep.subr.mxu0 0.0
    %3939 = vmatpush1.msra.mxu0 0.0
    %3940 = vmatprep.subr.mxu0 0.0
    %3941 = vmatpush1.msra.mxu0 0.0
    %3942 = vmatprep.subr.mxu0 0.0
    %3943 = vmatpush1.msra.mxu0 0.0
    %3944 = vmatprep.subr.mxu0 0.0
    %3945 = vmatpush1.msra.mxu0 0.0
    %3946 = vmatprep.subr.mxu0 0.0
    %3947 = vmatpush1.msra.mxu0 0.0
    %3948 = vmatprep.subr.mxu0 0.0
    %3949 = vmatpush1.msra.mxu0 0.0
    %3950 = vmatprep.subr.mxu0 0.0
    %3951 = vmatpush1.msra.mxu0 0.0
    %3952 = vmatprep.subr.mxu0 0.0
    %3953 = vmatpush1.msra.mxu0 0.0
    %3954 = vmatprep.mubr.f32.mxu0 0.0
    %3955 = vmatmul.mubr.f32.gmra.mrb[0].mxu0 %v3888
    %v3956 = vpop.f32.mrb[0].mxu0
    %v3957 = vadd.f32 %v3067, %v3956
    %v3958 = vpop.f32.mrb[0].mxu0
    %3959 = vdwg.mxu0
    %v3961 = vrot.slane %v3957, 4
    %v3962 = vrot.slane %v3957, 5
    %v3965 = vadd.f32 %v2914, %v3961
    %v3966 = vadd.f32 %v2919, %v3962
    %v3967 = vxor.u32 %v3965, 2147483648
    %v3968 = vxor.u32 %v3966, 2147483648
    %v3969 = vmul.f32 %v3967, 1.442695
    %v3970 = vpow.pop %v3969
    %v3971 = vmul.f32 %v3968, 1.442695
    %v3972 = vpow.pop %v3971
    %v3973 = vadd.f32 %v3970, 1.0
    %v3974 = vadd.f32 %v3972, 1.0
    %v3975 = vrcp.pop %v3973
    %v3976 = vmul.f32 1.0, %v3975
    %v3977 = vrcp.pop %v3974
    %v3978 = vmul.f32 1.0, %v3977
    %3979 = vrot.lane.b32.xlu0 %v3961, 96
    %v3980 = vpop.permute.xlu0 %3979
    %3981 = vrot.lane.b32.xlu0 %v3962, 96
    %v3982 = vpop.permute.xlu0 %3981
    %v3985 = vmul.f32 %v3976, %v3980
    %v3986 = vmul.f32 %v3978, %v3982
    %3989 = vrot.lane.b32.xlu0 %v3985, 32
    %v3990 = vpop.permute.xlu0 %3989
    %3991 = vrot.lane.b32.xlu0 %v3986, 32
    %v3992 = vpop.permute.xlu0 %3991
    %v3995 = vadd.f32 %v2914, %v3990
    %v3996 = vadd.f32 %v2919, %v3992
    %v3997 = vtanh.pop %v3995
    %v3998 = vtanh.pop %v3996
    %v3999 = vsub.f32 1.0, %v3976
    %v4000 = vsub.f32 1.0, %v3978
    %4003 = vrot.lane.b32.xlu0 %v3997, 112
    %v4004 = vpop.permute.xlu0 %4003
    %4005 = vrot.lane.b32.xlu0 %v3998, 112
    %v4006 = vpop.permute.xlu0 %4005
    %v4009 = vmul.f32 %v3999, %v4004
    %v4010 = vmul.f32 %v4000, %v4006
    %v4011 = vrot.slane %v3741, 1
    %v4012 = vrot.slane %v3742, 1
    %v4015 = vmul.f32 %v3976, %v4011
    %v4016 = vmul.f32 %v3978, %v4012
    %v4017 = vadd.f32 %v4009, %v4015
    %v4018 = vadd.f32 %v4010, %v4016
    %v4021 = vrot.slane %v3879, 3
    %v4022 = vrot.slane %v3880, 2
    %v4023 = vsel %vm3197, %v4022, %v4021
    %4024 = vrot.lane.b32.xlu0 %v4023, 112
    %v4025 = vpop.permute.xlu0 %4024
    %v4026 = vsel %vm496, %v4025, 0
    %4028 = vmatprep.subr.mxu0 0.0
    %4029 = vmatpush1.msra.mxu0 %v2922
    %4030 = vmatprep.subr.mxu0 0.0
    %4031 = vmatpush1.msra.mxu0 %v2923
    %4032 = vmatprep.subr.mxu0 0.0
    %4033 = vmatpush1.msra.mxu0 0.0
    %4034 = vmatprep.subr.mxu0 0.0
    %4035 = vmatpush1.msra.mxu0 0.0
    %4036 = vmatprep.subr.mxu0 0.0
    %4037 = vmatpush1.msra.mxu0 0.0
    %4038 = vmatprep.subr.mxu0 0.0
    %4039 = vmatpush1.msra.mxu0 0.0
    %4040 = vmatprep.subr.mxu0 0.0
    %4041 = vmatpush1.msra.mxu0 0.0
    %4042 = vmatprep.subr.mxu0 0.0
    %4043 = vmatpush1.msra.mxu0 0.0
    %4044 = vmatprep.subr.mxu0 0.0
    %4045 = vmatpush1.msra.mxu0 0.0
    %4046 = vmatprep.subr.mxu0 0.0
    %4047 = vmatpush1.msra.mxu0 0.0
    %4048 = vmatprep.subr.mxu0 0.0
    %4049 = vmatpush1.msra.mxu0 0.0
    %4050 = vmatprep.subr.mxu0 0.0
    %4051 = vmatpush1.msra.mxu0 0.0
    %4052 = vmatprep.subr.mxu0 0.0
    %4053 = vmatpush1.msra.mxu0 0.0
    %4054 = vmatprep.subr.mxu0 0.0
    %4055 = vmatpush1.msra.mxu0 0.0
    %4056 = vmatprep.subr.mxu0 0.0
    %4057 = vmatpush1.msra.mxu0 0.0
    %4058 = vmatprep.subr.mxu0 0.0
    %4059 = vmatpush1.msra.mxu0 0.0
    %4060 = vmatprep.subr.mxu0 0.0
    %4061 = vmatpush1.msra.mxu0 0.0
    %4062 = vmatprep.subr.mxu0 0.0
    %4063 = vmatpush1.msra.mxu0 0.0
    %4064 = vmatprep.subr.mxu0 0.0
    %4065 = vmatpush1.msra.mxu0 0.0
    %4066 = vmatprep.subr.mxu0 0.0
    %4067 = vmatpush1.msra.mxu0 0.0
    %4068 = vmatprep.subr.mxu0 0.0
    %4069 = vmatpush1.msra.mxu0 0.0
    %4070 = vmatprep.subr.mxu0 0.0
    %4071 = vmatpush1.msra.mxu0 0.0
    %4072 = vmatprep.subr.mxu0 0.0
    %4073 = vmatpush1.msra.mxu0 0.0
    %4074 = vmatprep.subr.mxu0 0.0
    %4075 = vmatpush1.msra.mxu0 0.0
    %4076 = vmatprep.subr.mxu0 0.0
    %4077 = vmatpush1.msra.mxu0 0.0
    %4078 = vmatprep.subr.mxu0 0.0
    %4079 = vmatpush1.msra.mxu0 0.0
    %4080 = vmatprep.subr.mxu0 0.0
    %4081 = vmatpush1.msra.mxu0 0.0
    %4082 = vmatprep.subr.mxu0 0.0
    %4083 = vmatpush1.msra.mxu0 0.0
    %4084 = vmatprep.subr.mxu0 0.0
    %4085 = vmatpush1.msra.mxu0 0.0
    %4086 = vmatprep.subr.mxu0 0.0
    %4087 = vmatpush1.msra.mxu0 0.0
    %4088 = vmatprep.subr.mxu0 0.0
    %4089 = vmatpush1.msra.mxu0 0.0
    %4090 = vmatprep.subr.mxu0 0.0
    %4091 = vmatpush1.msra.mxu0 0.0
    %4092 = vmatprep.mubr.f32.mxu0 0.0
    %4093 = vmatmul.mubr.f32.gmra.mrb[0].mxu0 %v4026
    %v4094 = vpop.f32.mrb[0].mxu0
    %v4095 = vadd.f32 %v2934, %v4094
    %v4096 = vpop.f32.mrb[0].mxu0
    %4097 = vdwg.mxu0
    %v4099 = vrot.slane %v4095, 4
    %v4100 = vrot.slane %v4095, 5
    %v4103 = vadd.f32 %v2826, %v4099
    %v4104 = vadd.f32 %v2831, %v4100
    %v4105 = vxor.u32 %v4103, 2147483648
    %v4106 = vxor.u32 %v4104, 2147483648
    %v4107 = vmul.f32 %v4105, 1.442695
    %v4108 = vpow.pop %v4107
    %v4109 = vmul.f32 %v4106, 1.442695
    %v4110 = vpow.pop %v4109
    %v4111 = vadd.f32 %v4108, 1.0
    %v4112 = vadd.f32 %v4110, 1.0
    %v4113 = vrcp.pop %v4111
    %v4114 = vmul.f32 1.0, %v4113
    %v4115 = vrcp.pop %v4112
    %v4116 = vmul.f32 1.0, %v4115
    %4117 = vrot.lane.b32.xlu0 %v4099, 96
    %v4118 = vpop.permute.xlu0 %4117
    %4119 = vrot.lane.b32.xlu0 %v4100, 96
    %v4120 = vpop.permute.xlu0 %4119
    %v4123 = vmul.f32 %v4114, %v4118
    %v4124 = vmul.f32 %v4116, %v4120
    %4127 = vrot.lane.b32.xlu0 %v4123, 32
    %v4128 = vpop.permute.xlu0 %4127
    %4129 = vrot.lane.b32.xlu0 %v4124, 32
    %v4130 = vpop.permute.xlu0 %4129
    %v4133 = vadd.f32 %v2826, %v4128
    %v4134 = vadd.f32 %v2831, %v4130
    %v4135 = vtanh.pop %v4133
    %v4136 = vtanh.pop %v4134
    %v4137 = vsub.f32 1.0, %v4114
    %v4138 = vsub.f32 1.0, %v4116
    %4141 = vrot.lane.b32.xlu0 %v4135, 112
    %v4142 = vpop.permute.xlu0 %4141
    %4143 = vrot.lane.b32.xlu0 %v4136, 112
    %v4144 = vpop.permute.xlu0 %4143
    %v4147 = vmul.f32 %v4137, %v4142
    %v4148 = vmul.f32 %v4138, %v4144
    %v4149 = vrot.slane %v3879, 7
    %v4150 = vrot.slane %v3880, 7
    %v4153 = vmul.f32 %v4114, %v4149
    %v4154 = vmul.f32 %v4116, %v4150
    %v4155 = vadd.f32 %v4147, %v4153
    %v4156 = vadd.f32 %v4148, %v4154
    %v4159 = vrot.slane %v4017, 4
    %v4160 = vrot.slane %v4018, 3
    %v4161 = vsel %vm3197, %v4160, %v4159
    %4162 = vrot.lane.b32.xlu0 %v4161, 112
    %v4163 = vpop.permute.xlu0 %4162
    %v4164 = vsel %vm496, %v4163, 0
    %4166 = vmatprep.subr.mxu0 0.0
    %4167 = vmatpush1.msra.mxu0 %v2926
    %4168 = vmatprep.subr.mxu0 0.0
    %4169 = vmatpush1.msra.mxu0 %v2927
    %4170 = vmatprep.subr.mxu0 0.0
    %4171 = vmatpush1.msra.mxu0 0.0
    %4172 = vmatprep.subr.mxu0 0.0
    %4173 = vmatpush1.msra.mxu0 0.0
    %4174 = vmatprep.subr.mxu0 0.0
    %4175 = vmatpush1.msra.mxu0 0.0
    %4176 = vmatprep.subr.mxu0 0.0
    %4177 = vmatpush1.msra.mxu0 0.0
    %4178 = vmatprep.subr.mxu0 0.0
    %4179 = vmatpush1.msra.mxu0 0.0
    %4180 = vmatprep.subr.mxu0 0.0
    %4181 = vmatpush1.msra.mxu0 0.0
    %4182 = vmatprep.subr.mxu0 0.0
    %4183 = vmatpush1.msra.mxu0 0.0
    %4184 = vmatprep.subr.mxu0 0.0
    %4185 = vmatpush1.msra.mxu0 0.0
    %4186 = vmatprep.subr.mxu0 0.0
    %4187 = vmatpush1.msra.mxu0 0.0
    %4188 = vmatprep.subr.mxu0 0.0
    %4189 = vmatpush1.msra.mxu0 0.0
    %4190 = vmatprep.subr.mxu0 0.0
    %4191 = vmatpush1.msra.mxu0 0.0
    %4192 = vmatprep.subr.mxu0 0.0
    %4193 = vmatpush1.msra.mxu0 0.0
    %4194 = vmatprep.subr.mxu0 0.0
    %4195 = vmatpush1.msra.mxu0 0.0
    %4196 = vmatprep.subr.mxu0 0.0
    %4197 = vmatpush1.msra.mxu0 0.0
    %4198 = vmatprep.subr.mxu0 0.0
    %4199 = vmatpush1.msra.mxu0 0.0
    %4200 = vmatprep.subr.mxu0 0.0
    %4201 = vmatpush1.msra.mxu0 0.0
    %4202 = vmatprep.subr.mxu0 0.0
    %4203 = vmatpush1.msra.mxu0 0.0
    %4204 = vmatprep.subr.mxu0 0.0
    %4205 = vmatpush1.msra.mxu0 0.0
    %4206 = vmatprep.subr.mxu0 0.0
    %4207 = vmatpush1.msra.mxu0 0.0
    %4208 = vmatprep.subr.mxu0 0.0
    %4209 = vmatpush1.msra.mxu0 0.0
    %4210 = vmatprep.subr.mxu0 0.0
    %4211 = vmatpush1.msra.mxu0 0.0
    %4212 = vmatprep.subr.mxu0 0.0
    %4213 = vmatpush1.msra.mxu0 0.0
    %4214 = vmatprep.subr.mxu0 0.0
    %4215 = vmatpush1.msra.mxu0 0.0
    %4216 = vmatprep.subr.mxu0 0.0
    %4217 = vmatpush1.msra.mxu0 0.0
    %4218 = vmatprep.subr.mxu0 0.0
    %4219 = vmatpush1.msra.mxu0 0.0
    %4220 = vmatprep.subr.mxu0 0.0
    %4221 = vmatpush1.msra.mxu0 0.0
    %4222 = vmatprep.subr.mxu0 0.0
    %4223 = vmatpush1.msra.mxu0 0.0
    %4224 = vmatprep.subr.mxu0 0.0
    %4225 = vmatpush1.msra.mxu0 0.0
    %4226 = vmatprep.subr.mxu0 0.0
    %4227 = vmatpush1.msra.mxu0 0.0
    %4228 = vmatprep.subr.mxu0 0.0
    %4229 = vmatpush1.msra.mxu0 0.0
    %4230 = vmatprep.mubr.f32.mxu0 0.0
    %4231 = vmatmul.mubr.f32.gmra.mrb[0].mxu0 %v4164
    %v4232 = vpop.f32.mrb[0].mxu0
    %v4233 = vadd.f32 %v3067, %v4232
    %v4234 = vpop.f32.mrb[0].mxu0
    %4235 = vdwg.mxu0
    %v4237 = vrot.slane %v4233, 5
    %v4238 = vrot.slane %v4233, 6
    %v4241 = vadd.f32 %v2914, %v4237
    %v4242 = vadd.f32 %v2919, %v4238
    %v4243 = vxor.u32 %v4241, 2147483648
    %v4244 = vxor.u32 %v4242, 2147483648
    %v4245 = vmul.f32 %v4243, 1.442695
    %v4246 = vpow.pop %v4245
    %v4247 = vmul.f32 %v4244, 1.442695
    %v4248 = vpow.pop %v4247
    %v4249 = vadd.f32 %v4246, 1.0
    %v4250 = vadd.f32 %v4248, 1.0
    %v4251 = vrcp.pop %v4249
    %v4252 = vmul.f32 1.0, %v4251
    %v4253 = vrcp.pop %v4250
    %v4254 = vmul.f32 1.0, %v4253
    %4255 = vrot.lane.b32.xlu0 %v4237, 96
    %v4256 = vpop.permute.xlu0 %4255
    %4257 = vrot.lane.b32.xlu0 %v4238, 96
    %v4258 = vpop.permute.xlu0 %4257
    %v4261 = vmul.f32 %v4252, %v4256
    %v4262 = vmul.f32 %v4254, %v4258
    %4265 = vrot.lane.b32.xlu0 %v4261, 32
    %v4266 = vpop.permute.xlu0 %4265
    %4267 = vrot.lane.b32.xlu0 %v4262, 32
    %v4268 = vpop.permute.xlu0 %4267
    %v4271 = vadd.f32 %v2914, %v4266
    %v4272 = vadd.f32 %v2919, %v4268
    %v4273 = vtanh.pop %v4271
    %v4274 = vtanh.pop %v4272
    %v4275 = vsub.f32 1.0, %v4252
    %v4276 = vsub.f32 1.0, %v4254
    %4279 = vrot.lane.b32.xlu0 %v4273, 112
    %v4280 = vpop.permute.xlu0 %4279
    %4281 = vrot.lane.b32.xlu0 %v4274, 112
    %v4282 = vpop.permute.xlu0 %4281
    %v4285 = vmul.f32 %v4275, %v4280
    %v4286 = vmul.f32 %v4276, %v4282
    %v4287 = vrot.slane %v4017, 1
    %v4288 = vrot.slane %v4018, 1
    %v4291 = vmul.f32 %v4252, %v4287
    %v4292 = vmul.f32 %v4254, %v4288
    %v4293 = vadd.f32 %v4285, %v4291
    %v4294 = vadd.f32 %v4286, %v4292
    %v4297 = vrot.slane %v4155, 4
    %v4298 = vrot.slane %v4156, 3
    %v4299 = vsel %vm3197, %v4298, %v4297
    %4300 = vrot.lane.b32.xlu0 %v4299, 112
    %v4301 = vpop.permute.xlu0 %4300
    %v4302 = vsel %vm496, %v4301, 0
    %4304 = vmatprep.subr.mxu0 0.0
    %4305 = vmatpush1.msra.mxu0 %v2922
    %4306 = vmatprep.subr.mxu0 0.0
    %4307 = vmatpush1.msra.mxu0 %v2923
    %4308 = vmatprep.subr.mxu0 0.0
    %4309 = vmatpush1.msra.mxu0 0.0
    %4310 = vmatprep.subr.mxu0 0.0
    %4311 = vmatpush1.msra.mxu0 0.0
    %4312 = vmatprep.subr.mxu0 0.0
    %4313 = vmatpush1.msra.mxu0 0.0
    %4314 = vmatprep.subr.mxu0 0.0
    %4315 = vmatpush1.msra.mxu0 0.0
    %4316 = vmatprep.subr.mxu0 0.0
    %4317 = vmatpush1.msra.mxu0 0.0
    %4318 = vmatprep.subr.mxu0 0.0
    %4319 = vmatpush1.msra.mxu0 0.0
    %4320 = vmatprep.subr.mxu0 0.0
    %4321 = vmatpush1.msra.mxu0 0.0
    %4322 = vmatprep.subr.mxu0 0.0
    %4323 = vmatpush1.msra.mxu0 0.0
    %4324 = vmatprep.subr.mxu0 0.0
    %4325 = vmatpush1.msra.mxu0 0.0
    %4326 = vmatprep.subr.mxu0 0.0
    %4327 = vmatpush1.msra.mxu0 0.0
    %4328 = vmatprep.subr.mxu0 0.0
    %4329 = vmatpush1.msra.mxu0 0.0
    %4330 = vmatprep.subr.mxu0 0.0
    %4331 = vmatpush1.msra.mxu0 0.0
    %4332 = vmatprep.subr.mxu0 0.0
    %4333 = vmatpush1.msra.mxu0 0.0
    %4334 = vmatprep.subr.mxu0 0.0
    %4335 = vmatpush1.msra.mxu0 0.0
    %4336 = vmatprep.subr.mxu0 0.0
    %4337 = vmatpush1.msra.mxu0 0.0
    %4338 = vmatprep.subr.mxu0 0.0
    %4339 = vmatpush1.msra.mxu0 0.0
    %4340 = vmatprep.subr.mxu0 0.0
    %4341 = vmatpush1.msra.mxu0 0.0
    %4342 = vmatprep.subr.mxu0 0.0
    %4343 = vmatpush1.msra.mxu0 0.0
    %4344 = vmatprep.subr.mxu0 0.0
    %4345 = vmatpush1.msra.mxu0 0.0
    %4346 = vmatprep.subr.mxu0 0.0
    %4347 = vmatpush1.msra.mxu0 0.0
    %4348 = vmatprep.subr.mxu0 0.0
    %4349 = vmatpush1.msra.mxu0 0.0
    %4350 = vmatprep.subr.mxu0 0.0
    %4351 = vmatpush1.msra.mxu0 0.0
    %4352 = vmatprep.subr.mxu0 0.0
    %4353 = vmatpush1.msra.mxu0 0.0
    %4354 = vmatprep.subr.mxu0 0.0
    %4355 = vmatpush1.msra.mxu0 0.0
    %4356 = vmatprep.subr.mxu0 0.0
    %4357 = vmatpush1.msra.mxu0 0.0
    %4358 = vmatprep.subr.mxu0 0.0
    %4359 = vmatpush1.msra.mxu0 0.0
    %4360 = vmatprep.subr.mxu0 0.0
    %4361 = vmatpush1.msra.mxu0 0.0
    %4362 = vmatprep.subr.mxu0 0.0
    %4363 = vmatpush1.msra.mxu0 0.0
    %4364 = vmatprep.subr.mxu0 0.0
    %4365 = vmatpush1.msra.mxu0 0.0
    %4366 = vmatprep.subr.mxu0 0.0
    %4367 = vmatpush1.msra.mxu0 0.0
    %4368 = vmatprep.mubr.f32.mxu0 0.0
    %4369 = vmatmul.mubr.f32.gmra.mrb[0].mxu0 %v4302
    %v4370 = vpop.f32.mrb[0].mxu0
    %v4371 = vadd.f32 %v2934, %v4370
    %v4372 = vpop.f32.mrb[0].mxu0
    %4373 = vdwg.mxu0
    %v4375 = vrot.slane %v4371, 3
    %v4376 = vrot.slane %v4371, 4
    %v4379 = vadd.f32 %v2826, %v4375
    %v4380 = vadd.f32 %v2831, %v4376
    %v4381 = vxor.u32 %v4379, 2147483648
    %v4382 = vxor.u32 %v4380, 2147483648
    %v4383 = vmul.f32 %v4381, 1.442695
    %v4384 = vpow.pop %v4383
    %v4385 = vmul.f32 %v4382, 1.442695
    %v4386 = vpow.pop %v4385
    %v4387 = vadd.f32 %v4384, 1.0
    %v4388 = vadd.f32 %v4386, 1.0
    %v4389 = vrcp.pop %v4387
    %v4390 = vmul.f32 1.0, %v4389
    %v4391 = vrcp.pop %v4388
    %v4392 = vmul.f32 1.0, %v4391
    %4393 = vrot.lane.b32.xlu0 %v4375, 96
    %v4394 = vpop.permute.xlu0 %4393
    %4395 = vrot.lane.b32.xlu0 %v4376, 96
    %v4396 = vpop.permute.xlu0 %4395
    %v4399 = vmul.f32 %v4390, %v4394
    %v4400 = vmul.f32 %v4392, %v4396
    %4403 = vrot.lane.b32.xlu0 %v4399, 32
    %v4404 = vpop.permute.xlu0 %4403
    %4405 = vrot.lane.b32.xlu0 %v4400, 32
    %v4406 = vpop.permute.xlu0 %4405
    %v4409 = vadd.f32 %v2826, %v4404
    %v4410 = vadd.f32 %v2831, %v4406
    %v4411 = vtanh.pop %v4409
    %v4412 = vtanh.pop %v4410
    %v4413 = vsub.f32 1.0, %v4390
    %v4414 = vsub.f32 1.0, %v4392
    %4417 = vrot.lane.b32.xlu0 %v4411, 112
    %v4418 = vpop.permute.xlu0 %4417
    %4419 = vrot.lane.b32.xlu0 %v4412, 112
    %v4420 = vpop.permute.xlu0 %4419
    %v4423 = vmul.f32 %v4413, %v4418
    %v4424 = vmul.f32 %v4414, %v4420
    %v4425 = vrot.slane %v4155, 7
    %v4426 = vrot.slane %v4156, 7
    %v4429 = vmul.f32 %v4390, %v4425
    %v4430 = vmul.f32 %v4392, %v4426
    %v4431 = vadd.f32 %v4423, %v4429
    %v4432 = vadd.f32 %v4424, %v4430
    %v4435 = vrot.slane %v4293, 3
    %v4436 = vrot.slane %v4294, 2
    %v4437 = vsel %vm3197, %v4436, %v4435
    %4438 = vrot.lane.b32.xlu0 %v4437, 112
    %v4439 = vpop.permute.xlu0 %4438
    %v4440 = vsel %vm496, %v4439, 0
    %4442 = vmatprep.subr.mxu0 0.0
    %4443 = vmatpush1.msra.mxu0 %v2926
    %4444 = vmatprep.subr.mxu0 0.0
    %4445 = vmatpush1.msra.mxu0 %v2927
    %4446 = vmatprep.subr.mxu0 0.0
    %4447 = vmatpush1.msra.mxu0 0.0
    %4448 = vmatprep.subr.mxu0 0.0
    %4449 = vmatpush1.msra.mxu0 0.0
    %4450 = vmatprep.subr.mxu0 0.0
    %4451 = vmatpush1.msra.mxu0 0.0
    %4452 = vmatprep.subr.mxu0 0.0
    %4453 = vmatpush1.msra.mxu0 0.0
    %4454 = vmatprep.subr.mxu0 0.0
    %4455 = vmatpush1.msra.mxu0 0.0
    %4456 = vmatprep.subr.mxu0 0.0
    %4457 = vmatpush1.msra.mxu0 0.0
    %4458 = vmatprep.subr.mxu0 0.0
    %4459 = vmatpush1.msra.mxu0 0.0
    %4460 = vmatprep.subr.mxu0 0.0
    %4461 = vmatpush1.msra.mxu0 0.0
    %4462 = vmatprep.subr.mxu0 0.0
    %4463 = vmatpush1.msra.mxu0 0.0
    %4464 = vmatprep.subr.mxu0 0.0
    %4465 = vmatpush1.msra.mxu0 0.0
    %4466 = vmatprep.subr.mxu0 0.0
    %4467 = vmatpush1.msra.mxu0 0.0
    %4468 = vmatprep.subr.mxu0 0.0
    %4469 = vmatpush1.msra.mxu0 0.0
    %4470 = vmatprep.subr.mxu0 0.0
    %4471 = vmatpush1.msra.mxu0 0.0
    %4472 = vmatprep.subr.mxu0 0.0
    %4473 = vmatpush1.msra.mxu0 0.0
    %4474 = vmatprep.subr.mxu0 0.0
    %4475 = vmatpush1.msra.mxu0 0.0
    %4476 = vmatprep.subr.mxu0 0.0
    %4477 = vmatpush1.msra.mxu0 0.0
    %4478 = vmatprep.subr.mxu0 0.0
    %4479 = vmatpush1.msra.mxu0 0.0
    %4480 = vmatprep.subr.mxu0 0.0
    %4481 = vmatpush1.msra.mxu0 0.0
    %4482 = vmatprep.subr.mxu0 0.0
    %4483 = vmatpush1.msra.mxu0 0.0
    %4484 = vmatprep.subr.mxu0 0.0
    %4485 = vmatpush1.msra.mxu0 0.0
    %4486 = vmatprep.subr.mxu0 0.0
    %4487 = vmatpush1.msra.mxu0 0.0
    %4488 = vmatprep.subr.mxu0 0.0
    %4489 = vmatpush1.msra.mxu0 0.0
    %4490 = vmatprep.subr.mxu0 0.0
    %4491 = vmatpush1.msra.mxu0 0.0
    %4492 = vmatprep.subr.mxu0 0.0
    %4493 = vmatpush1.msra.mxu0 0.0
    %4494 = vmatprep.subr.mxu0 0.0
    %4495 = vmatpush1.msra.mxu0 0.0
    %4496 = vmatprep.subr.mxu0 0.0
    %4497 = vmatpush1.msra.mxu0 0.0
    %4498 = vmatprep.subr.mxu0 0.0
    %4499 = vmatpush1.msra.mxu0 0.0
    %4500 = vmatprep.subr.mxu0 0.0
    %4501 = vmatpush1.msra.mxu0 0.0
    %4502 = vmatprep.subr.mxu0 0.0
    %4503 = vmatpush1.msra.mxu0 0.0
    %4504 = vmatprep.subr.mxu0 0.0
    %4505 = vmatpush1.msra.mxu0 0.0
    %4506 = vmatprep.mubr.f32.mxu0 0.0
    %4507 = vmatmul.mubr.f32.gmra.mrb[0].mxu0 %v4440
    %v4508 = vpop.f32.mrb[0].mxu0
    %v4509 = vadd.f32 %v3067, %v4508
    %v4510 = vpop.f32.mrb[0].mxu0
    %4511 = vdwg.mxu0
    %v4513 = vrot.slane %v4509, 6
    %v4514 = vrot.slane %v4509, 7
    %v4517 = vadd.f32 %v2914, %v4513
    %v4518 = vadd.f32 %v2919, %v4514
    %v4519 = vxor.u32 %v4517, 2147483648
    %v4520 = vxor.u32 %v4518, 2147483648
    %v4521 = vmul.f32 %v4519, 1.442695
    %v4522 = vpow.pop %v4521
    %v4523 = vmul.f32 %v4520, 1.442695
    %v4524 = vpow.pop %v4523
    %v4525 = vadd.f32 %v4522, 1.0
    %v4526 = vadd.f32 %v4524, 1.0
    %v4527 = vrcp.pop %v4525
    %v4528 = vmul.f32 1.0, %v4527
    %v4529 = vrcp.pop %v4526
    %v4530 = vmul.f32 1.0, %v4529
    %4531 = vrot.lane.b32.xlu0 %v4513, 96
    %v4532 = vpop.permute.xlu0 %4531
    %4533 = vrot.lane.b32.xlu0 %v4514, 96
    %v4534 = vpop.permute.xlu0 %4533
    %v4537 = vmul.f32 %v4528, %v4532
    %v4538 = vmul.f32 %v4530, %v4534
    %4541 = vrot.lane.b32.xlu0 %v4537, 32
    %v4542 = vpop.permute.xlu0 %4541
    %4543 = vrot.lane.b32.xlu0 %v4538, 32
    %v4544 = vpop.permute.xlu0 %4543
    %v4547 = vadd.f32 %v2914, %v4542
    %v4548 = vadd.f32 %v2919, %v4544
    %v4549 = vtanh.pop %v4547
    %v4550 = vtanh.pop %v4548
    %v4551 = vsub.f32 1.0, %v4528
    %v4552 = vsub.f32 1.0, %v4530
    %4555 = vrot.lane.b32.xlu0 %v4549, 112
    %v4556 = vpop.permute.xlu0 %4555
    %4557 = vrot.lane.b32.xlu0 %v4550, 112
    %v4558 = vpop.permute.xlu0 %4557
    %v4561 = vmul.f32 %v4551, %v4556
    %v4562 = vmul.f32 %v4552, %v4558
    %v4563 = vrot.slane %v4293, 1
    %v4564 = vrot.slane %v4294, 1
    %v4567 = vmul.f32 %v4528, %v4563
    %v4568 = vmul.f32 %v4530, %v4564
    %v4569 = vadd.f32 %v4561, %v4567
    %v4570 = vadd.f32 %v4562, %v4568
    %v4573 = vrot.slane %v4431, 5
    %v4574 = vrot.slane %v4432, 4
    %v4575 = vsel %vm3197, %v4574, %v4573
    %4576 = vrot.lane.b32.xlu0 %v4575, 112
    %v4577 = vpop.permute.xlu0 %4576
    %v4578 = vsel %vm496, %v4577, 0
    %4580 = vmatprep.subr.mxu0 0.0
    %4581 = vmatpush1.msra.mxu0 %v2922
    %4582 = vmatprep.subr.mxu0 0.0
    %4583 = vmatpush1.msra.mxu0 %v2923
    %4584 = vmatprep.subr.mxu0 0.0
    %4585 = vmatpush1.msra.mxu0 0.0
    %4586 = vmatprep.subr.mxu0 0.0
    %4587 = vmatpush1.msra.mxu0 0.0
    %4588 = vmatprep.subr.mxu0 0.0
    %4589 = vmatpush1.msra.mxu0 0.0
    %4590 = vmatprep.subr.mxu0 0.0
    %4591 = vmatpush1.msra.mxu0 0.0
    %4592 = vmatprep.subr.mxu0 0.0
    %4593 = vmatpush1.msra.mxu0 0.0
    %4594 = vmatprep.subr.mxu0 0.0
    %4595 = vmatpush1.msra.mxu0 0.0
    %4596 = vmatprep.subr.mxu0 0.0
    %4597 = vmatpush1.msra.mxu0 0.0
    %4598 = vmatprep.subr.mxu0 0.0
    %4599 = vmatpush1.msra.mxu0 0.0
    %4600 = vmatprep.subr.mxu0 0.0
    %4601 = vmatpush1.msra.mxu0 0.0
    %4602 = vmatprep.subr.mxu0 0.0
    %4603 = vmatpush1.msra.mxu0 0.0
    %4604 = vmatprep.subr.mxu0 0.0
    %4605 = vmatpush1.msra.mxu0 0.0
    %4606 = vmatprep.subr.mxu0 0.0
    %4607 = vmatpush1.msra.mxu0 0.0
    %4608 = vmatprep.subr.mxu0 0.0
    %4609 = vmatpush1.msra.mxu0 0.0
    %4610 = vmatprep.subr.mxu0 0.0
    %4611 = vmatpush1.msra.mxu0 0.0
    %4612 = vmatprep.subr.mxu0 0.0
    %4613 = vmatpush1.msra.mxu0 0.0
    %4614 = vmatprep.subr.mxu0 0.0
    %4615 = vmatpush1.msra.mxu0 0.0
    %4616 = vmatprep.subr.mxu0 0.0
    %4617 = vmatpush1.msra.mxu0 0.0
    %4618 = vmatprep.subr.mxu0 0.0
    %4619 = vmatpush1.msra.mxu0 0.0
    %4620 = vmatprep.subr.mxu0 0.0
    %4621 = vmatpush1.msra.mxu0 0.0
    %4622 = vmatprep.subr.mxu0 0.0
    %4623 = vmatpush1.msra.mxu0 0.0
    %4624 = vmatprep.subr.mxu0 0.0
    %4625 = vmatpush1.msra.mxu0 0.0
    %4626 = vmatprep.subr.mxu0 0.0
    %4627 = vmatpush1.msra.mxu0 0.0
    %4628 = vmatprep.subr.mxu0 0.0
    %4629 = vmatpush1.msra.mxu0 0.0
    %4630 = vmatprep.subr.mxu0 0.0
    %4631 = vmatpush1.msra.mxu0 0.0
    %4632 = vmatprep.subr.mxu0 0.0
    %4633 = vmatpush1.msra.mxu0 0.0
    %4634 = vmatprep.subr.mxu0 0.0
    %4635 = vmatpush1.msra.mxu0 0.0
    %4636 = vmatprep.subr.mxu0 0.0
    %4637 = vmatpush1.msra.mxu0 0.0
    %4638 = vmatprep.subr.mxu0 0.0
    %4639 = vmatpush1.msra.mxu0 0.0
    %4640 = vmatprep.subr.mxu0 0.0
    %4641 = vmatpush1.msra.mxu0 0.0
    %4642 = vmatprep.subr.mxu0 0.0
    %4643 = vmatpush1.msra.mxu0 0.0
    %4644 = vmatprep.mubr.f32.mxu0 0.0
    %4645 = vmatmul.mubr.f32.gmra.mrb[0].mxu0 %v4578
    %v4646 = vpop.f32.mrb[0].mxu0
    %v4647 = vadd.f32 %v2934, %v4646
    %v4648 = vpop.f32.mrb[0].mxu0
    %4649 = vdwg.mxu0
    %v4651 = vrot.slane %v4647, 2
    %v4652 = vrot.slane %v4647, 3
    %v4655 = vadd.f32 %v2826, %v4651
    %v4656 = vadd.f32 %v2831, %v4652
    %v4657 = vxor.u32 %v4655, 2147483648
    %v4658 = vxor.u32 %v4656, 2147483648
    %v4659 = vmul.f32 %v4657, 1.442695
    %v4660 = vpow.pop %v4659
    %v4661 = vmul.f32 %v4658, 1.442695
    %v4662 = vpow.pop %v4661
    %v4663 = vadd.f32 %v4660, 1.0
    %v4664 = vadd.f32 %v4662, 1.0
    %v4665 = vrcp.pop %v4663
    %v4666 = vmul.f32 1.0, %v4665
    %v4667 = vrcp.pop %v4664
    %v4668 = vmul.f32 1.0, %v4667
    %4669 = vrot.lane.b32.xlu0 %v4651, 96
    %v4670 = vpop.permute.xlu0 %4669
    %4671 = vrot.lane.b32.xlu0 %v4652, 96
    %v4672 = vpop.permute.xlu0 %4671
    %v4675 = vmul.f32 %v4666, %v4670
    %v4676 = vmul.f32 %v4668, %v4672
    %4679 = vrot.lane.b32.xlu0 %v4675, 32
    %v4680 = vpop.permute.xlu0 %4679
    %4681 = vrot.lane.b32.xlu0 %v4676, 32
    %v4682 = vpop.permute.xlu0 %4681
    %v4685 = vadd.f32 %v2826, %v4680
    %v4686 = vadd.f32 %v2831, %v4682
    %v4687 = vtanh.pop %v4685
    %v4688 = vtanh.pop %v4686
    %v4689 = vsub.f32 1.0, %v4666
    %v4690 = vsub.f32 1.0, %v4668
    %4693 = vrot.lane.b32.xlu0 %v4687, 112
    %v4694 = vpop.permute.xlu0 %4693
    %4695 = vrot.lane.b32.xlu0 %v4688, 112
    %v4696 = vpop.permute.xlu0 %4695
    %v4699 = vmul.f32 %v4689, %v4694
    %v4700 = vmul.f32 %v4690, %v4696
    %v4701 = vrot.slane %v4431, 7
    %v4702 = vrot.slane %v4432, 7
    %v4705 = vmul.f32 %v4666, %v4701
    %v4706 = vmul.f32 %v4668, %v4702
    %v4707 = vadd.f32 %v4699, %v4705
    %v4708 = vadd.f32 %v4700, %v4706
    %v4711 = vrot.slane %v4569, 2
    %v4712 = vrot.slane %v4570, 1
    %v4713 = vsel %vm3197, %v4712, %v4711
    %4714 = vrot.lane.b32.xlu0 %v4713, 112
    %v4715 = vpop.permute.xlu0 %4714
    %v4716 = vsel %vm496, %v4715, 0
    %4718 = vmatprep.subr.mxu0 0.0
    %4719 = vmatpush1.msra.mxu0 %v2926
    %4720 = vmatprep.subr.mxu0 0.0
    %4721 = vmatpush1.msra.mxu0 %v2927
    %4722 = vmatprep.subr.mxu0 0.0
    %4723 = vmatpush1.msra.mxu0 0.0
    %4724 = vmatprep.subr.mxu0 0.0
    %4725 = vmatpush1.msra.mxu0 0.0
    %4726 = vmatprep.subr.mxu0 0.0
    %4727 = vmatpush1.msra.mxu0 0.0
    %4728 = vmatprep.subr.mxu0 0.0
    %4729 = vmatpush1.msra.mxu0 0.0
    %4730 = vmatprep.subr.mxu0 0.0
    %4731 = vmatpush1.msra.mxu0 0.0
    %4732 = vmatprep.subr.mxu0 0.0
    %4733 = vmatpush1.msra.mxu0 0.0
    %4734 = vmatprep.subr.mxu0 0.0
    %4735 = vmatpush1.msra.mxu0 0.0
    %4736 = vmatprep.subr.mxu0 0.0
    %4737 = vmatpush1.msra.mxu0 0.0
    %4738 = vmatprep.subr.mxu0 0.0
    %4739 = vmatpush1.msra.mxu0 0.0
    %4740 = vmatprep.subr.mxu0 0.0
    %4741 = vmatpush1.msra.mxu0 0.0
    %4742 = vmatprep.subr.mxu0 0.0
    %4743 = vmatpush1.msra.mxu0 0.0
    %4744 = vmatprep.subr.mxu0 0.0
    %4745 = vmatpush1.msra.mxu0 0.0
    %4746 = vmatprep.subr.mxu0 0.0
    %4747 = vmatpush1.msra.mxu0 0.0
    %4748 = vmatprep.subr.mxu0 0.0
    %4749 = vmatpush1.msra.mxu0 0.0
    %4750 = vmatprep.subr.mxu0 0.0
    %4751 = vmatpush1.msra.mxu0 0.0
    %4752 = vmatprep.subr.mxu0 0.0
    %4753 = vmatpush1.msra.mxu0 0.0
    %4754 = vmatprep.subr.mxu0 0.0
    %4755 = vmatpush1.msra.mxu0 0.0
    %4756 = vmatprep.subr.mxu0 0.0
    %4757 = vmatpush1.msra.mxu0 0.0
    %4758 = vmatprep.subr.mxu0 0.0
    %4759 = vmatpush1.msra.mxu0 0.0
    %4760 = vmatprep.subr.mxu0 0.0
    %4761 = vmatpush1.msra.mxu0 0.0
    %4762 = vmatprep.subr.mxu0 0.0
    %4763 = vmatpush1.msra.mxu0 0.0
    %4764 = vmatprep.subr.mxu0 0.0
    %4765 = vmatpush1.msra.mxu0 0.0
    %4766 = vmatprep.subr.mxu0 0.0
    %4767 = vmatpush1.msra.mxu0 0.0
    %4768 = vmatprep.subr.mxu0 0.0
    %4769 = vmatpush1.msra.mxu0 0.0
    %4770 = vmatprep.subr.mxu0 0.0
    %4771 = vmatpush1.msra.mxu0 0.0
    %4772 = vmatprep.subr.mxu0 0.0
    %4773 = vmatpush1.msra.mxu0 0.0
    %4774 = vmatprep.subr.mxu0 0.0
    %4775 = vmatpush1.msra.mxu0 0.0
    %4776 = vmatprep.subr.mxu0 0.0
    %4777 = vmatpush1.msra.mxu0 0.0
    %4778 = vmatprep.subr.mxu0 0.0
    %4779 = vmatpush1.msra.mxu0 0.0
    %4780 = vmatprep.subr.mxu0 0.0
    %4781 = vmatpush1.msra.mxu0 0.0
    %4782 = vmatprep.mubr.f32.mxu0 0.0
    %4783 = vmatmul.mubr.f32.gmra.mrb[0].mxu0 %v4716
    %v4784 = vpop.f32.mrb[0].mxu0
    %v4785 = vadd.f32 %v3067, %v4784
    %v4786 = vpop.f32.mrb[0].mxu0
    %4787 = vdwg.mxu0
    %v4789 = vrot.slane %v4785, 7
    %v4792 = vadd.f32 %v2914, %v4789
    %v4793 = vadd.f32 %v2919, %v4785
    %v4794 = vxor.u32 %v4792, 2147483648
    %v4795 = vxor.u32 %v4793, 2147483648
    %v4796 = vmul.f32 %v4794, 1.442695
    %v4797 = vpow.pop %v4796
    %v4798 = vmul.f32 %v4795, 1.442695
    %v4799 = vpow.pop %v4798
    %v4800 = vadd.f32 %v4797, 1.0
    %v4801 = vadd.f32 %v4799, 1.0
    %v4802 = vrcp.pop %v4800
    %v4803 = vmul.f32 1.0, %v4802
    %v4804 = vrcp.pop %v4801
    %v4805 = vmul.f32 1.0, %v4804
    %4806 = vrot.lane.b32.xlu0 %v4789, 96
    %v4807 = vpop.permute.xlu0 %4806
    %4808 = vrot.lane.b32.xlu0 %v4785, 96
    %v4809 = vpop.permute.xlu0 %4808
    %v4812 = vmul.f32 %v4803, %v4807
    %v4813 = vmul.f32 %v4805, %v4809
    %4816 = vrot.lane.b32.xlu0 %v4812, 32
    %v4817 = vpop.permute.xlu0 %4816
    %4818 = vrot.lane.b32.xlu0 %v4813, 32
    %v4819 = vpop.permute.xlu0 %4818
    %v4822 = vadd.f32 %v2914, %v4817
    %v4823 = vadd.f32 %v2919, %v4819
    %v4824 = vtanh.pop %v4822
    %v4825 = vtanh.pop %v4823
    %v4826 = vsub.f32 1.0, %v4803
    %v4827 = vsub.f32 1.0, %v4805
    %4830 = vrot.lane.b32.xlu0 %v4824, 112
    %v4831 = vpop.permute.xlu0 %4830
    %4832 = vrot.lane.b32.xlu0 %v4825, 112
    %v4833 = vpop.permute.xlu0 %4832
    %v4836 = vmul.f32 %v4826, %v4831
    %v4837 = vmul.f32 %v4827, %v4833
    %v4838 = vrot.slane %v4569, 1
    %v4841 = vmul.f32 %v4803, %v4838
    %v4842 = vmul.f32 %v4805, %v4712
    %v4843 = vadd.f32 %v4836, %v4841
    %v4844 = vadd.f32 %v4837, %v4842
    %v4847 = vrot.slane %v4707, 6
    %v4848 = vrot.slane %v4708, 5
    %v4849 = vsel %vm3197, %v4848, %v4847
    %4850 = vrot.lane.b32.xlu0 %v4849, 112
    %v4851 = vpop.permute.xlu0 %4850
    %v4852 = vsel %vm496, %v4851, 0
    %4854 = vmatprep.subr.mxu0 0.0
    %4855 = vmatpush1.msra.mxu0 %v2922
    %4856 = vmatprep.subr.mxu0 0.0
    %4857 = vmatpush1.msra.mxu0 %v2923
    %4858 = vmatprep.subr.mxu0 0.0
    %4859 = vmatpush1.msra.mxu0 0.0
    %4860 = vmatprep.subr.mxu0 0.0
    %4861 = vmatpush1.msra.mxu0 0.0
    %4862 = vmatprep.subr.mxu0 0.0
    %4863 = vmatpush1.msra.mxu0 0.0
    %4864 = vmatprep.subr.mxu0 0.0
    %4865 = vmatpush1.msra.mxu0 0.0
    %4866 = vmatprep.subr.mxu0 0.0
    %4867 = vmatpush1.msra.mxu0 0.0
    %4868 = vmatprep.subr.mxu0 0.0
    %4869 = vmatpush1.msra.mxu0 0.0
    %4870 = vmatprep.subr.mxu0 0.0
    %4871 = vmatpush1.msra.mxu0 0.0
    %4872 = vmatprep.subr.mxu0 0.0
    %4873 = vmatpush1.msra.mxu0 0.0
    %4874 = vmatprep.subr.mxu0 0.0
    %4875 = vmatpush1.msra.mxu0 0.0
    %4876 = vmatprep.subr.mxu0 0.0
    %4877 = vmatpush1.msra.mxu0 0.0
    %4878 = vmatprep.subr.mxu0 0.0
    %4879 = vmatpush1.msra.mxu0 0.0
    %4880 = vmatprep.subr.mxu0 0.0
    %4881 = vmatpush1.msra.mxu0 0.0
    %4882 = vmatprep.subr.mxu0 0.0
    %4883 = vmatpush1.msra.mxu0 0.0
    %4884 = vmatprep.subr.mxu0 0.0
    %4885 = vmatpush1.msra.mxu0 0.0
    %4886 = vmatprep.subr.mxu0 0.0
    %4887 = vmatpush1.msra.mxu0 0.0
    %4888 = vmatprep.subr.mxu0 0.0
    %4889 = vmatpush1.msra.mxu0 0.0
    %4890 = vmatprep.subr.mxu0 0.0
    %4891 = vmatpush1.msra.mxu0 0.0
    %4892 = vmatprep.subr.mxu0 0.0
    %4893 = vmatpush1.msra.mxu0 0.0
    %4894 = vmatprep.subr.mxu0 0.0
    %4895 = vmatpush1.msra.mxu0 0.0
    %4896 = vmatprep.subr.mxu0 0.0
    %4897 = vmatpush1.msra.mxu0 0.0
    %4898 = vmatprep.subr.mxu0 0.0
    %4899 = vmatpush1.msra.mxu0 0.0
    %4900 = vmatprep.subr.mxu0 0.0
    %4901 = vmatpush1.msra.mxu0 0.0
    %4902 = vmatprep.subr.mxu0 0.0
    %4903 = vmatpush1.msra.mxu0 0.0
    %4904 = vmatprep.subr.mxu0 0.0
    %4905 = vmatpush1.msra.mxu0 0.0
    %4906 = vmatprep.subr.mxu0 0.0
    %4907 = vmatpush1.msra.mxu0 0.0
    %4908 = vmatprep.subr.mxu0 0.0
    %4909 = vmatpush1.msra.mxu0 0.0
    %4910 = vmatprep.subr.mxu0 0.0
    %4911 = vmatpush1.msra.mxu0 0.0
    %4912 = vmatprep.subr.mxu0 0.0
    %4913 = vmatpush1.msra.mxu0 0.0
    %4914 = vmatprep.subr.mxu0 0.0
    %4915 = vmatpush1.msra.mxu0 0.0
    %4916 = vmatprep.subr.mxu0 0.0
    %4917 = vmatpush1.msra.mxu0 0.0
    %4918 = vmatprep.mubr.f32.mxu0 0.0
    %4919 = vmatmul.mubr.f32.gmra.mrb[0].mxu0 %v4852
    %v4920 = vpop.f32.mrb[0].mxu0
    %v4921 = vadd.f32 %v2934, %v4920
    %v4922 = vpop.f32.mrb[0].mxu0
    %4923 = vdwg.mxu0
    %v4925 = vrot.slane %v4921, 1
    %v4926 = vrot.slane %v4921, 2
    %v4929 = vadd.f32 %v2826, %v4925
    %v4930 = vadd.f32 %v2831, %v4926
    %v4931 = vxor.u32 %v4929, 2147483648
    %v4932 = vxor.u32 %v4930, 2147483648
    %v4933 = vmul.f32 %v4931, 1.442695
    %v4934 = vpow.pop %v4933
    %v4935 = vmul.f32 %v4932, 1.442695
    %v4936 = vpow.pop %v4935
    %v4937 = vadd.f32 %v4934, 1.0
    %v4938 = vadd.f32 %v4936, 1.0
    %v4939 = vrcp.pop %v4937
    %v4940 = vmul.f32 1.0, %v4939
    %v4941 = vrcp.pop %v4938
    %v4942 = vmul.f32 1.0, %v4941
    %4943 = vrot.lane.b32.xlu0 %v4925, 96
    %v4944 = vpop.permute.xlu0 %4943
    %4945 = vrot.lane.b32.xlu0 %v4926, 96
    %v4946 = vpop.permute.xlu0 %4945
    %v4949 = vmul.f32 %v4940, %v4944
    %v4950 = vmul.f32 %v4942, %v4946
    %4953 = vrot.lane.b32.xlu0 %v4949, 32
    %v4954 = vpop.permute.xlu0 %4953
    %4955 = vrot.lane.b32.xlu0 %v4950, 32
    %v4956 = vpop.permute.xlu0 %4955
    %v4959 = vadd.f32 %v2826, %v4954
    %v4960 = vadd.f32 %v2831, %v4956
    %v4961 = vtanh.pop %v4959
    %v4962 = vtanh.pop %v4960
    %v4963 = vsub.f32 1.0, %v4940
    %v4964 = vsub.f32 1.0, %v4942
    %4967 = vrot.lane.b32.xlu0 %v4961, 112
    %v4968 = vpop.permute.xlu0 %4967
    %4969 = vrot.lane.b32.xlu0 %v4962, 112
    %v4970 = vpop.permute.xlu0 %4969
    %v4973 = vmul.f32 %v4963, %v4968
    %v4974 = vmul.f32 %v4964, %v4970
    %v4975 = vrot.slane %v4707, 7
    %v4976 = vrot.slane %v4708, 7
    %v4979 = vmul.f32 %v4940, %v4975
    %v4980 = vmul.f32 %v4942, %v4976
    %v4981 = vadd.f32 %v4973, %v4979
    %v4982 = vadd.f32 %v4974, %v4980
    %v4985 = vrot.slane %v4843, 1
    %v4986 = vsel %vm3197, %v4844, %v4985
    %4987 = vrot.lane.b32.xlu0 %v4986, 112
    %v4988 = vpop.permute.xlu0 %4987
    %v4989 = vsel %vm496, %v4988, 0
    %4991 = vmatprep.subr.mxu0 0.0
    %4992 = vmatpush1.msra.mxu0 %v2926
    %4993 = vmatprep.subr.mxu0 0.0
    %4994 = vmatpush1.msra.mxu0 %v2927
    %4995 = vmatprep.subr.mxu0 0.0
    %4996 = vmatpush1.msra.mxu0 0.0
    %4997 = vmatprep.subr.mxu0 0.0
    %4998 = vmatpush1.msra.mxu0 0.0
    %4999 = vmatprep.subr.mxu0 0.0
    %5000 = vmatpush1.msra.mxu0 0.0
    %5001 = vmatprep.subr.mxu0 0.0
    %5002 = vmatpush1.msra.mxu0 0.0
    %5003 = vmatprep.subr.mxu0 0.0
    %5004 = vmatpush1.msra.mxu0 0.0
    %5005 = vmatprep.subr.mxu0 0.0
    %5006 = vmatpush1.msra.mxu0 0.0
    %5007 = vmatprep.subr.mxu0 0.0
    %5008 = vmatpush1.msra.mxu0 0.0
    %5009 = vmatprep.subr.mxu0 0.0
    %5010 = vmatpush1.msra.mxu0 0.0
    %5011 = vmatprep.subr.mxu0 0.0
    %5012 = vmatpush1.msra.mxu0 0.0
    %5013 = vmatprep.subr.mxu0 0.0
    %5014 = vmatpush1.msra.mxu0 0.0
    %5015 = vmatprep.subr.mxu0 0.0
    %5016 = vmatpush1.msra.mxu0 0.0
    %5017 = vmatprep.subr.mxu0 0.0
    %5018 = vmatpush1.msra.mxu0 0.0
    %5019 = vmatprep.subr.mxu0 0.0
    %5020 = vmatpush1.msra.mxu0 0.0
    %5021 = vmatprep.subr.mxu0 0.0
    %5022 = vmatpush1.msra.mxu0 0.0
    %5023 = vmatprep.subr.mxu0 0.0
    %5024 = vmatpush1.msra.mxu0 0.0
    %5025 = vmatprep.subr.mxu0 0.0
    %5026 = vmatpush1.msra.mxu0 0.0
    %5027 = vmatprep.subr.mxu0 0.0
    %5028 = vmatpush1.msra.mxu0 0.0
    %5029 = vmatprep.subr.mxu0 0.0
    %5030 = vmatpush1.msra.mxu0 0.0
    %5031 = vmatprep.subr.mxu0 0.0
    %5032 = vmatpush1.msra.mxu0 0.0
    %5033 = vmatprep.subr.mxu0 0.0
    %5034 = vmatpush1.msra.mxu0 0.0
    %5035 = vmatprep.subr.mxu0 0.0
    %5036 = vmatpush1.msra.mxu0 0.0
    %5037 = vmatprep.subr.mxu0 0.0
    %5038 = vmatpush1.msra.mxu0 0.0
    %5039 = vmatprep.subr.mxu0 0.0
    %5040 = vmatpush1.msra.mxu0 0.0
    %5041 = vmatprep.subr.mxu0 0.0
    %5042 = vmatpush1.msra.mxu0 0.0
    %5043 = vmatprep.subr.mxu0 0.0
    %5044 = vmatpush1.msra.mxu0 0.0
    %5045 = vmatprep.subr.mxu0 0.0
    %5046 = vmatpush1.msra.mxu0 0.0
    %5047 = vmatprep.subr.mxu0 0.0
    %5048 = vmatpush1.msra.mxu0 0.0
    %5049 = vmatprep.subr.mxu0 0.0
    %5050 = vmatpush1.msra.mxu0 0.0
    %5051 = vmatprep.subr.mxu0 0.0
    %5052 = vmatpush1.msra.mxu0 0.0
    %5053 = vmatprep.subr.mxu0 0.0
    %5054 = vmatpush1.msra.mxu0 0.0
    %5055 = vmatprep.mubr.f32.mxu0 0.0
    %5056 = vmatmul.mubr.f32.gmra.mrb[0].mxu0 %v4989
    %v5057 = vpop.f32.mrb[0].mxu0
    %v5058 = vadd.f32 %v3067, %v5057
    %v5059 = vpop.f32.mrb[0].mxu0
    %5060 = vdwg.mxu0
    %v5062 = vrot.slane %v5058, 1
    %v5065 = vadd.f32 %v2914, %v5058
    %v5066 = vadd.f32 %v2919, %v5062
    %v5067 = vxor.u32 %v5065, 2147483648
    %v5068 = vxor.u32 %v5066, 2147483648
    %v5069 = vmul.f32 %v5067, 1.442695
    %v5070 = vpow.pop %v5069
    %v5071 = vmul.f32 %v5068, 1.442695
    %v5072 = vpow.pop %v5071
    %v5073 = vadd.f32 %v5070, 1.0
    %v5074 = vadd.f32 %v5072, 1.0
    %v5075 = vrcp.pop %v5073
    %v5076 = vmul.f32 1.0, %v5075
    %v5077 = vrcp.pop %v5074
    %v5078 = vmul.f32 1.0, %v5077
    %5079 = vrot.lane.b32.xlu0 %v5058, 96
    %v5080 = vpop.permute.xlu0 %5079
    %5081 = vrot.lane.b32.xlu0 %v5062, 96
    %v5082 = vpop.permute.xlu0 %5081
    %v5085 = vmul.f32 %v5076, %v5080
    %v5086 = vmul.f32 %v5078, %v5082
    %5089 = vrot.lane.b32.xlu0 %v5085, 32
    %v5090 = vpop.permute.xlu0 %5089
    %5091 = vrot.lane.b32.xlu0 %v5086, 32
    %v5092 = vpop.permute.xlu0 %5091
    %v5095 = vadd.f32 %v2914, %v5090
    %v5096 = vadd.f32 %v2919, %v5092
    %v5097 = vtanh.pop %v5095
    %v5098 = vtanh.pop %v5096
    %v5099 = vsub.f32 1.0, %v5076
    %v5100 = vsub.f32 1.0, %v5078
    %5103 = vrot.lane.b32.xlu0 %v5097, 112
    %v5104 = vpop.permute.xlu0 %5103
    %5105 = vrot.lane.b32.xlu0 %v5098, 112
    %v5106 = vpop.permute.xlu0 %5105
    %v5109 = vmul.f32 %v5099, %v5104
    %v5110 = vmul.f32 %v5100, %v5106
    %v5111 = vrot.slane %v4844, 1
    %v5114 = vmul.f32 %v5076, %v4985
    %v5115 = vmul.f32 %v5078, %v5111
    %v5116 = vadd.f32 %v5109, %v5114
    %v5117 = vadd.f32 %v5110, %v5115
    %v5119 = vrot.slane %v3329, 6
    %vm5120 = vcmask 1043459
    %v5121 = vsel %vm5120, %v5119, %v3597
    %v5123 = vrot.slane %v3603, 6
    %v5124 = vrot.slane %v3604, 5
    %vm5125 = vcmask 1045509
    %v5126 = vsel %vm5125, %v5124, %v5123
    %v5128 = vrot.slane %v3879, 5
    %v5129 = vrot.slane %v3880, 4
    %vm5130 = vcmask 1047559
    %v5131 = vsel %vm5130, %v5129, %v5128
    %v5134 = vrot.slane %v4431, 3
    %v5135 = vrot.slane %v4432, 2
    %v5136 = vsel %vm5120, %v5135, %v5134
    %v5138 = vrot.slane %v4707, 2
    %v5139 = vrot.slane %v4708, 1
    %v5140 = vsel %vm5125, %v5139, %v5138
    %v5144 = vrot.slane %v4981, 1
    %v5145 = vsel %vm5130, %v4982, %v5144
    %vm5147 = vcmask 1041408
    %v5148 = vsel %vm5147, %v3198, %v5121
    %v5149 = vsel %vm250, %v5148, %v5126
    %vm5150 = vcmask 1045504
    %v5151 = vsel %vm5150, %v5149, %v5131
    %v5152 = vsel %vm5147, %v4299, %v5136
    %v5153 = vsel %vm250, %v5152, %v5140
    %v5154 = vsel %vm5150, %v5153, %v5145
    %v5157 = vrot.slane %v5117, 7
    %v5158 = vsel %vm3197, %v5157, %v5116
    %v5160 = vrot.slane %v4843, 7
    %v5161 = vrot.slane %v4844, 6
    %v5162 = vsel %vm5120, %v5161, %v5160
    %v5164 = vrot.slane %v4569, 6
    %v5165 = vrot.slane %v4570, 5
    %v5166 = vsel %vm5125, %v5165, %v5164
    %v5168 = vrot.slane %v4293, 5
    %v5169 = vrot.slane %v4294, 4
    %v5170 = vsel %vm5130, %v5169, %v5168
    %v5173 = vrot.slane %v3741, 3
    %v5174 = vrot.slane %v3742, 2
    %v5175 = vsel %vm5120, %v5174, %v5173
    %v5177 = vrot.slane %v3466, 2
    %v5178 = vsel %vm5125, %v3736, %v5177
    %v5180 = vsel %vm5130, %v3193, %v3460
    %v5182 = vsel %vm5147, %v5158, %v5162
    %v5183 = vsel %vm250, %v5182, %v5166
    %v5184 = vsel %vm5150, %v5183, %v5170
    %v5185 = vsel %vm5147, %v4161, %v5175
    %v5186 = vsel %vm250, %v5185, %v5178
    %v5187 = vsel %vm5150, %v5186, %v5180
    %5190 = vrot.lane.b32.xlu0 %v5151, 112
    %v5191 = vpop.permute.xlu0 %5190
    %5192 = vrot.lane.b32.xlu0 %v5154, 112
    %v5193 = vpop.permute.xlu0 %5192
    %v5196 = vsel %vm496, %v5191, %v5184
    %v5197 = vsel %vm496, %v5193, %v5187
    %v5198 = vld [vmem:[%s22] sm:$0xff]
    %v5199 = vld [vmem:[%s22 + $0x8] sm:$0xff]
    %v5200 = vld [vmem:[%s22 + $0x10] sm:$0xff]
    %v5201 = vld [vmem:[%s22 + $0x18] sm:$0xff]
    %v5202 = vld [vmem:[%s23] sm:$0x1]
    %v5204 = vlaneseq
    %v5205 = vshrl.u32 %v5204, 7
    %v5206 = vsub.s32 0, %v5205
    %v5207 = vrot.slane %v5202, %v5206
    %v5210 = vsel %vm331, %v5196, 0
    %v5213 = vsel %vm331, %v5197, 0
    %5215 = vmatprep.subr.mxu0 0.0
    %5216 = vmatpush1.msra.mxu0 %v5198
    %5217 = vmatprep.subr.mxu0 0.0
    %5218 = vmatpush1.msra.mxu0 %v5199
    %5219 = vmatprep.subr.mxu0 0.0
    %5220 = vmatpush1.msra.mxu0 %v5200
    %5221 = vmatprep.subr.mxu0 0.0
    %5222 = vmatpush1.msra.mxu0 %v5201
    %5223 = vmatprep.subr.mxu0 0.0
    %5224 = vmatpush1.msra.mxu0 0.0
    %5225 = vmatprep.subr.mxu0 0.0
    %5226 = vmatpush1.msra.mxu0 0.0
    %5227 = vmatprep.subr.mxu0 0.0
    %5228 = vmatpush1.msra.mxu0 0.0
    %5229 = vmatprep.subr.mxu0 0.0
    %5230 = vmatpush1.msra.mxu0 0.0
    %5231 = vmatprep.subr.mxu0 0.0
    %5232 = vmatpush1.msra.mxu0 0.0
    %5233 = vmatprep.subr.mxu0 0.0
    %5234 = vmatpush1.msra.mxu0 0.0
    %5235 = vmatprep.subr.mxu0 0.0
    %5236 = vmatpush1.msra.mxu0 0.0
    %5237 = vmatprep.subr.mxu0 0.0
    %5238 = vmatpush1.msra.mxu0 0.0
    %5239 = vmatprep.subr.mxu0 0.0
    %5240 = vmatpush1.msra.mxu0 0.0
    %5241 = vmatprep.subr.mxu0 0.0
    %5242 = vmatpush1.msra.mxu0 0.0
    %5243 = vmatprep.subr.mxu0 0.0
    %5244 = vmatpush1.msra.mxu0 0.0
    %5245 = vmatprep.subr.mxu0 0.0
    %5246 = vmatpush1.msra.mxu0 0.0
    %5247 = vmatprep.subr.mxu0 0.0
    %5248 = vmatpush1.msra.mxu0 0.0
    %5249 = vmatprep.subr.mxu0 0.0
    %5250 = vmatpush1.msra.mxu0 0.0
    %5251 = vmatprep.subr.mxu0 0.0
    %5252 = vmatpush1.msra.mxu0 0.0
    %5253 = vmatprep.subr.mxu0 0.0
    %5254 = vmatpush1.msra.mxu0 0.0
    %5255 = vmatprep.subr.mxu0 0.0
    %5256 = vmatpush1.msra.mxu0 0.0
    %5257 = vmatprep.subr.mxu0 0.0
    %5258 = vmatpush1.msra.mxu0 0.0
    %5259 = vmatprep.subr.mxu0 0.0
    %5260 = vmatpush1.msra.mxu0 0.0
    %5261 = vmatprep.subr.mxu0 0.0
    %5262 = vmatpush1.msra.mxu0 0.0
    %5263 = vmatprep.subr.mxu0 0.0
    %5264 = vmatpush1.msra.mxu0 0.0
    %5265 = vmatprep.subr.mxu0 0.0
    %5266 = vmatpush1.msra.mxu0 0.0
    %5267 = vmatprep.subr.mxu0 0.0
    %5268 = vmatpush1.msra.mxu0 0.0
    %5269 = vmatprep.subr.mxu0 0.0
    %5270 = vmatpush1.msra.mxu0 0.0
    %5271 = vmatprep.subr.mxu0 0.0
    %5272 = vmatpush1.msra.mxu0 0.0
    %5273 = vmatprep.subr.mxu0 0.0
    %5274 = vmatpush1.msra.mxu0 0.0
    %5275 = vmatprep.subr.mxu0 0.0
    %5276 = vmatpush1.msra.mxu0 0.0
    %5277 = vmatprep.subr.mxu0 0.0
    %5278 = vmatpush1.msra.mxu0 0.0
    %5279 = vmatprep.mubr.f32.mxu0 0.0
    %5280 = vmatmul.mubr.f32.gmra.mrb[0].mxu0 %v5210
    %v5281 = vpop.f32.mrb[0].mxu0
    %v5282 = vadd.f32 %v5207, %v5281
    %v5283 = vpop.f32.mrb[0].mxu0
    %5284 = vmatprep.mubr.f32.mxu0 0.0
    %5285 = vmatmul.mubr.f32.gmra.mrb[0].mxu0 %v5213
    %v5286 = vpop.f32.mrb[0].mxu0
    %v5287 = vadd.f32 %v5207, %v5286
    %v5288 = vpop.f32.mrb[0].mxu0
    %5289 = vdwg.mxu0
    %s5290 = scalar_lea.vmem %s22, 32
    %v5291 = vld [vmem:[%s5290] sm:$0xff]
    %v5292 = vld [vmem:[%s5290 + $0x8] sm:$0xff]
    %v5293 = vld [vmem:[%s5290 + $0x10] sm:$0xff]
    %v5294 = vld [vmem:[%s5290 + $0x18] sm:$0xff]
    %s5295 = scalar_lea.vmem %s23, 1
    %v5296 = vld [vmem:[%s5295] sm:$0x1]
    %v5298 = vlaneseq
    %v5299 = vshrl.u32 %v5298, 7
    %v5300 = vsub.s32 0, %v5299
    %v5301 = vrot.slane %v5296, %v5300
    %5303 = vmatprep.subr.mxu0 0.0
    %5304 = vmatpush1.msra.mxu0 %v5291
    %5305 = vmatprep.subr.mxu0 0.0
    %5306 = vmatpush1.msra.mxu0 %v5292
    %5307 = vmatprep.subr.mxu0 0.0
    %5308 = vmatpush1.msra.mxu0 %v5293
    %5309 = vmatprep.subr.mxu0 0.0
    %5310 = vmatpush1.msra.mxu0 %v5294
    %5311 = vmatprep.subr.mxu0 0.0
    %5312 = vmatpush1.msra.mxu0 0.0
    %5313 = vmatprep.subr.mxu0 0.0
    %5314 = vmatpush1.msra.mxu0 0.0
    %5315 = vmatprep.subr.mxu0 0.0
    %5316 = vmatpush1.msra.mxu0 0.0
    %5317 = vmatprep.subr.mxu0 0.0
    %5318 = vmatpush1.msra.mxu0 0.0
    %5319 = vmatprep.subr.mxu0 0.0
    %5320 = vmatpush1.msra.mxu0 0.0
    %5321 = vmatprep.subr.mxu0 0.0
    %5322 = vmatpush1.msra.mxu0 0.0
    %5323 = vmatprep.subr.mxu0 0.0
    %5324 = vmatpush1.msra.mxu0 0.0
    %5325 = vmatprep.subr.mxu0 0.0
    %5326 = vmatpush1.msra.mxu0 0.0
    %5327 = vmatprep.subr.mxu0 0.0
    %5328 = vmatpush1.msra.mxu0 0.0
    %5329 = vmatprep.subr.mxu0 0.0
    %5330 = vmatpush1.msra.mxu0 0.0
    %5331 = vmatprep.subr.mxu0 0.0
    %5332 = vmatpush1.msra.mxu0 0.0
    %5333 = vmatprep.subr.mxu0 0.0
    %5334 = vmatpush1.msra.mxu0 0.0
    %5335 = vmatprep.subr.mxu0 0.0
    %5336 = vmatpush1.msra.mxu0 0.0
    %5337 = vmatprep.subr.mxu0 0.0
    %5338 = vmatpush1.msra.mxu0 0.0
    %5339 = vmatprep.subr.mxu0 0.0
    %5340 = vmatpush1.msra.mxu0 0.0
    %5341 = vmatprep.subr.mxu0 0.0
    %5342 = vmatpush1.msra.mxu0 0.0
    %5343 = vmatprep.subr.mxu0 0.0
    %5344 = vmatpush1.msra.mxu0 0.0
    %5345 = vmatprep.subr.mxu0 0.0
    %5346 = vmatpush1.msra.mxu0 0.0
    %5347 = vmatprep.subr.mxu0 0.0
    %5348 = vmatpush1.msra.mxu0 0.0
    %5349 = vmatprep.subr.mxu0 0.0
    %5350 = vmatpush1.msra.mxu0 0.0
    %5351 = vmatprep.subr.mxu0 0.0
    %5352 = vmatpush1.msra.mxu0 0.0
    %5353 = vmatprep.subr.mxu0 0.0
    %5354 = vmatpush1.msra.mxu0 0.0
    %5355 = vmatprep.subr.mxu0 0.0
    %5356 = vmatpush1.msra.mxu0 0.0
    %5357 = vmatprep.subr.mxu0 0.0
    %5358 = vmatpush1.msra.mxu0 0.0
    %5359 = vmatprep.subr.mxu0 0.0
    %5360 = vmatpush1.msra.mxu0 0.0
    %5361 = vmatprep.subr.mxu0 0.0
    %5362 = vmatpush1.msra.mxu0 0.0
    %5363 = vmatprep.subr.mxu0 0.0
    %5364 = vmatpush1.msra.mxu0 0.0
    %5365 = vmatprep.subr.mxu0 0.0
    %5366 = vmatpush1.msra.mxu0 0.0
    %5367 = vmatprep.mubr.f32.mxu0 0.0
    %5368 = vmatmul.mubr.f32.gmra.mrb[0].mxu0 %v5210
    %v5369 = vpop.f32.mrb[0].mxu0
    %v5370 = vadd.f32 %v5301, %v5369
    %v5371 = vpop.f32.mrb[0].mxu0
    %5372 = vmatprep.mubr.f32.mxu0 0.0
    %5373 = vmatmul.mubr.f32.gmra.mrb[0].mxu0 %v5213
    %v5374 = vpop.f32.mrb[0].mxu0
    %v5375 = vadd.f32 %v5301, %v5374
    %v5376 = vpop.f32.mrb[0].mxu0
    %5377 = vdwg.mxu0
    %v5378 = vld [vmem:[#allocation16] sm:$0xff]
    %v5379 = vld [vmem:[#allocation16 + $0x8] sm:$0xff]
    %v5380 = vld [vmem:[%s25] sm:$0x1]
    %s5381 = scalar_lea.vmem [#allocation16], 16
    %v5382 = vld [vmem:[%s5381] sm:$0xff]
    %v5383 = vld [vmem:[%s5381 + $0x8] sm:$0xff]
    %s5384 = scalar_lea.vmem %s25, 1
    %v5385 = vld [vmem:[%s5384] sm:$0x1]
    %v5387 = vlaneseq
    %v5388 = vshrl.u32 %v5387, 7
    %v5389 = vsub.s32 0, %v5388
    %v5390 = vrot.slane %v5380, %v5389
    %5392 = vmatprep.subr.mxu0 0.0
    %5393 = vmatpush1.msra.mxu0 %v5378
    %5394 = vmatprep.subr.mxu0 0.0
    %5395 = vmatpush1.msra.mxu0 %v5379
    %5396 = vmatprep.subr.mxu0 0.0
    %5397 = vmatpush1.msra.mxu0 0.0
    %5398 = vmatprep.subr.mxu0 0.0
    %5399 = vmatpush1.msra.mxu0 0.0
    %5400 = vmatprep.subr.mxu0 0.0
    %5401 = vmatpush1.msra.mxu0 0.0
    %5402 = vmatprep.subr.mxu0 0.0
    %5403 = vmatpush1.msra.mxu0 0.0
    %5404 = vmatprep.subr.mxu0 0.0
    %5405 = vmatpush1.msra.mxu0 0.0
    %5406 = vmatprep.subr.mxu0 0.0
    %5407 = vmatpush1.msra.mxu0 0.0
    %5408 = vmatprep.subr.mxu0 0.0
    %5409 = vmatpush1.msra.mxu0 0.0
    %5410 = vmatprep.subr.mxu0 0.0
    %5411 = vmatpush1.msra.mxu0 0.0
    %5412 = vmatprep.subr.mxu0 0.0
    %5413 = vmatpush1.msra.mxu0 0.0
    %5414 = vmatprep.subr.mxu0 0.0
    %5415 = vmatpush1.msra.mxu0 0.0
    %5416 = vmatprep.subr.mxu0 0.0
    %5417 = vmatpush1.msra.mxu0 0.0
    %5418 = vmatprep.subr.mxu0 0.0
    %5419 = vmatpush1.msra.mxu0 0.0
    %5420 = vmatprep.subr.mxu0 0.0
    %5421 = vmatpush1.msra.mxu0 0.0
    %5422 = vmatprep.subr.mxu0 0.0
    %5423 = vmatpush1.msra.mxu0 0.0
    %5424 = vmatprep.subr.mxu0 0.0
    %5425 = vmatpush1.msra.mxu0 0.0
    %5426 = vmatprep.subr.mxu0 0.0
    %5427 = vmatpush1.msra.mxu0 0.0
    %5428 = vmatprep.subr.mxu0 0.0
    %5429 = vmatpush1.msra.mxu0 0.0
    %5430 = vmatprep.subr.mxu0 0.0
    %5431 = vmatpush1.msra.mxu0 0.0
    %5432 = vmatprep.subr.mxu0 0.0
    %5433 = vmatpush1.msra.mxu0 0.0
    %5434 = vmatprep.subr.mxu0 0.0
    %5435 = vmatpush1.msra.mxu0 0.0
    %5436 = vmatprep.subr.mxu0 0.0
    %5437 = vmatpush1.msra.mxu0 0.0
    %5438 = vmatprep.subr.mxu0 0.0
    %5439 = vmatpush1.msra.mxu0 0.0
    %5440 = vmatprep.subr.mxu0 0.0
    %5441 = vmatpush1.msra.mxu0 0.0
    %5442 = vmatprep.subr.mxu0 0.0
    %5443 = vmatpush1.msra.mxu0 0.0
    %5444 = vmatprep.subr.mxu0 0.0
    %5445 = vmatpush1.msra.mxu0 0.0
    %5446 = vmatprep.subr.mxu0 0.0
    %5447 = vmatpush1.msra.mxu0 0.0
    %5448 = vmatprep.subr.mxu0 0.0
    %5449 = vmatpush1.msra.mxu0 0.0
    %5450 = vmatprep.subr.mxu0 0.0
    %5451 = vmatpush1.msra.mxu0 0.0
    %5452 = vmatprep.subr.mxu0 0.0
    %5453 = vmatpush1.msra.mxu0 0.0
    %5454 = vmatprep.subr.mxu0 0.0
    %5455 = vmatpush1.msra.mxu0 0.0
    %5456 = vmatprep.mubr.f32.mxu0 0.0
    %5457 = vmatmul.mubr.f32.gmra.mrb[0].mxu0 %v2937
    %v5458 = vpop.f32.mrb[0].mxu0
    %v5459 = vadd.f32 %v5390, %v5458
    %v5460 = vpop.f32.mrb[0].mxu0
    %5461 = vdwg.mxu0
    %v5462 = vadd.f32 %v5282, %v5459
    %v5463 = vxor.u32 %v5462, 2147483648
    %v5464 = vmul.f32 %v5463, 1.442695
    %v5465 = vpow.pop %v5464
    %v5466 = vadd.f32 %v5465, 1.0
    %v5467 = vrcp.pop %v5466
    %v5468 = vmul.f32 1.0, %v5467
    %5470 = vrot.lane.b32.xlu0 %v5459, 96
    %v5471 = vpop.permute.xlu0 %5470
    %v5473 = vmul.f32 %v5468, %v5471
    %5475 = vrot.lane.b32.xlu0 %v5473, 32
    %v5476 = vpop.permute.xlu0 %5475
    %v5478 = vadd.f32 %v5282, %v5476
    %v5479 = vtanh.pop %v5478
    %v5480 = vsub.f32 1.0, %v5468
    %5482 = vrot.lane.b32.xlu0 %v5479, 112
    %v5483 = vpop.permute.xlu0 %5482
    %v5485 = vmul.f32 %v5480, %v5483
    %v5486 = vmul.f32 %v5468, 0.0
    %v5487 = vadd.f32 %v5485, %v5486
    %v5489 = vlaneseq
    %v5490 = vshrl.u32 %v5489, 7
    %v5491 = vsub.s32 0, %v5490
    %v5492 = vrot.slane %v5385, %v5491
    %5494 = vmatprep.subr.mxu0 0.0
    %5495 = vmatpush1.msra.mxu0 %v5382
    %5496 = vmatprep.subr.mxu0 0.0
    %5497 = vmatpush1.msra.mxu0 %v5383
    %5498 = vmatprep.subr.mxu0 0.0
    %5499 = vmatpush1.msra.mxu0 0.0
    %5500 = vmatprep.subr.mxu0 0.0
    %5501 = vmatpush1.msra.mxu0 0.0
    %5502 = vmatprep.subr.mxu0 0.0
    %5503 = vmatpush1.msra.mxu0 0.0
    %5504 = vmatprep.subr.mxu0 0.0
    %5505 = vmatpush1.msra.mxu0 0.0
    %5506 = vmatprep.subr.mxu0 0.0
    %5507 = vmatpush1.msra.mxu0 0.0
    %5508 = vmatprep.subr.mxu0 0.0
    %5509 = vmatpush1.msra.mxu0 0.0
    %5510 = vmatprep.subr.mxu0 0.0
    %5511 = vmatpush1.msra.mxu0 0.0
    %5512 = vmatprep.subr.mxu0 0.0
    %5513 = vmatpush1.msra.mxu0 0.0
    %5514 = vmatprep.subr.mxu0 0.0
    %5515 = vmatpush1.msra.mxu0 0.0
    %5516 = vmatprep.subr.mxu0 0.0
    %5517 = vmatpush1.msra.mxu0 0.0
    %5518 = vmatprep.subr.mxu0 0.0
    %5519 = vmatpush1.msra.mxu0 0.0
    %5520 = vmatprep.subr.mxu0 0.0
    %5521 = vmatpush1.msra.mxu0 0.0
    %5522 = vmatprep.subr.mxu0 0.0
    %5523 = vmatpush1.msra.mxu0 0.0
    %5524 = vmatprep.subr.mxu0 0.0
    %5525 = vmatpush1.msra.mxu0 0.0
    %5526 = vmatprep.subr.mxu0 0.0
    %5527 = vmatpush1.msra.mxu0 0.0
    %5528 = vmatprep.subr.mxu0 0.0
    %5529 = vmatpush1.msra.mxu0 0.0
    %5530 = vmatprep.subr.mxu0 0.0
    %5531 = vmatpush1.msra.mxu0 0.0
    %5532 = vmatprep.subr.mxu0 0.0
    %5533 = vmatpush1.msra.mxu0 0.0
    %5534 = vmatprep.subr.mxu0 0.0
    %5535 = vmatpush1.msra.mxu0 0.0
    %5536 = vmatprep.subr.mxu0 0.0
    %5537 = vmatpush1.msra.mxu0 0.0
    %5538 = vmatprep.subr.mxu0 0.0
    %5539 = vmatpush1.msra.mxu0 0.0
    %5540 = vmatprep.subr.mxu0 0.0
    %5541 = vmatpush1.msra.mxu0 0.0
    %5542 = vmatprep.subr.mxu0 0.0
    %5543 = vmatpush1.msra.mxu0 0.0
    %5544 = vmatprep.subr.mxu0 0.0
    %5545 = vmatpush1.msra.mxu0 0.0
    %5546 = vmatprep.subr.mxu0 0.0
    %5547 = vmatpush1.msra.mxu0 0.0
    %5548 = vmatprep.subr.mxu0 0.0
    %5549 = vmatpush1.msra.mxu0 0.0
    %5550 = vmatprep.subr.mxu0 0.0
    %5551 = vmatpush1.msra.mxu0 0.0
    %5552 = vmatprep.subr.mxu0 0.0
    %5553 = vmatpush1.msra.mxu0 0.0
    %5554 = vmatprep.subr.mxu0 0.0
    %5555 = vmatpush1.msra.mxu0 0.0
    %5556 = vmatprep.subr.mxu0 0.0
    %5557 = vmatpush1.msra.mxu0 0.0
    %5558 = vmatprep.mubr.f32.mxu0 0.0
    %5559 = vmatmul.mubr.f32.gmra.mrb[0].mxu0 %v2937
    %v5560 = vpop.f32.mrb[0].mxu0
    %v5561 = vadd.f32 %v5492, %v5560
    %v5562 = vpop.f32.mrb[0].mxu0
    %5563 = vdwg.mxu0
    %v5565 = vrot.slane %v5561, 2
    %v5567 = vadd.f32 %v5375, %v5565
    %v5568 = vxor.u32 %v5567, 2147483648
    %v5569 = vmul.f32 %v5568, 1.442695
    %v5570 = vpow.pop %v5569
    %v5571 = vadd.f32 %v5570, 1.0
    %v5572 = vrcp.pop %v5571
    %v5573 = vmul.f32 1.0, %v5572
    %5574 = vrot.lane.b32.xlu0 %v5565, 96
    %v5575 = vpop.permute.xlu0 %5574
    %v5577 = vmul.f32 %v5573, %v5575
    %5579 = vrot.lane.b32.xlu0 %v5577, 32
    %v5580 = vpop.permute.xlu0 %5579
    %v5582 = vadd.f32 %v5375, %v5580
    %v5583 = vtanh.pop %v5582
    %v5584 = vsub.f32 1.0, %v5573
    %5586 = vrot.lane.b32.xlu0 %v5583, 112
    %v5587 = vpop.permute.xlu0 %5586
    %v5589 = vmul.f32 %v5584, %v5587
    %v5590 = vmul.f32 %v5573, 0.0
    %v5591 = vadd.f32 %v5589, %v5590
    %5593 = vrot.lane.b32.xlu0 %v5487, 112
    %v5594 = vpop.permute.xlu0 %5593
    %v5595 = vsel %vm496, %v5594, 0
    %5597 = vmatprep.subr.mxu0 0.0
    %5598 = vmatpush1.msra.mxu0 %v5378
    %5599 = vmatprep.subr.mxu0 0.0
    %5600 = vmatpush1.msra.mxu0 %v5379
    %5601 = vmatprep.subr.mxu0 0.0
    %5602 = vmatpush1.msra.mxu0 0.0
    %5603 = vmatprep.subr.mxu0 0.0
    %5604 = vmatpush1.msra.mxu0 0.0
    %5605 = vmatprep.subr.mxu0 0.0
    %5606 = vmatpush1.msra.mxu0 0.0
    %5607 = vmatprep.subr.mxu0 0.0
    %5608 = vmatpush1.msra.mxu0 0.0
    %5609 = vmatprep.subr.mxu0 0.0
    %5610 = vmatpush1.msra.mxu0 0.0
    %5611 = vmatprep.subr.mxu0 0.0
    %5612 = vmatpush1.msra.mxu0 0.0
    %5613 = vmatprep.subr.mxu0 0.0
    %5614 = vmatpush1.msra.mxu0 0.0
    %5615 = vmatprep.subr.mxu0 0.0
    %5616 = vmatpush1.msra.mxu0 0.0
    %5617 = vmatprep.subr.mxu0 0.0
    %5618 = vmatpush1.msra.mxu0 0.0
    %5619 = vmatprep.subr.mxu0 0.0
    %5620 = vmatpush1.msra.mxu0 0.0
    %5621 = vmatprep.subr.mxu0 0.0
    %5622 = vmatpush1.msra.mxu0 0.0
    %5623 = vmatprep.subr.mxu0 0.0
    %5624 = vmatpush1.msra.mxu0 0.0
    %5625 = vmatprep.subr.mxu0 0.0
    %5626 = vmatpush1.msra.mxu0 0.0
    %5627 = vmatprep.subr.mxu0 0.0
    %5628 = vmatpush1.msra.mxu0 0.0
    %5629 = vmatprep.subr.mxu0 0.0
    %5630 = vmatpush1.msra.mxu0 0.0
    %5631 = vmatprep.subr.mxu0 0.0
    %5632 = vmatpush1.msra.mxu0 0.0
    %5633 = vmatprep.subr.mxu0 0.0
    %5634 = vmatpush1.msra.mxu0 0.0
    %5635 = vmatprep.subr.mxu0 0.0
    %5636 = vmatpush1.msra.mxu0 0.0
    %5637 = vmatprep.subr.mxu0 0.0
    %5638 = vmatpush1.msra.mxu0 0.0
    %5639 = vmatprep.subr.mxu0 0.0
    %5640 = vmatpush1.msra.mxu0 0.0
    %5641 = vmatprep.subr.mxu0 0.0
    %5642 = vmatpush1.msra.mxu0 0.0
    %5643 = vmatprep.subr.mxu0 0.0
    %5644 = vmatpush1.msra.mxu0 0.0
    %5645 = vmatprep.subr.mxu0 0.0
    %5646 = vmatpush1.msra.mxu0 0.0
    %5647 = vmatprep.subr.mxu0 0.0
    %5648 = vmatpush1.msra.mxu0 0.0
    %5649 = vmatprep.subr.mxu0 0.0
    %5650 = vmatpush1.msra.mxu0 0.0
    %5651 = vmatprep.subr.mxu0 0.0
    %5652 = vmatpush1.msra.mxu0 0.0
    %5653 = vmatprep.subr.mxu0 0.0
    %5654 = vmatpush1.msra.mxu0 0.0
    %5655 = vmatprep.subr.mxu0 0.0
    %5656 = vmatpush1.msra.mxu0 0.0
    %5657 = vmatprep.subr.mxu0 0.0
    %5658 = vmatpush1.msra.mxu0 0.0
    %5659 = vmatprep.subr.mxu0 0.0
    %5660 = vmatpush1.msra.mxu0 0.0
    %5661 = vmatprep.mubr.f32.mxu0 0.0
    %5662 = vmatmul.mubr.f32.gmra.mrb[0].mxu0 %v5595
    %v5663 = vpop.f32.mrb[0].mxu0
    %v5664 = vadd.f32 %v5390, %v5663
    %v5665 = vpop.f32.mrb[0].mxu0
    %5666 = vdwg.mxu0
    %v5668 = vrot.slane %v5664, 6
    %v5670 = vadd.f32 %v5282, %v5668
    %v5671 = vxor.u32 %v5670, 2147483648
    %v5672 = vmul.f32 %v5671, 1.442695
    %v5673 = vpow.pop %v5672
    %v5674 = vadd.f32 %v5673, 1.0
    %v5675 = vrcp.pop %v5674
    %v5676 = vmul.f32 1.0, %v5675
    %5677 = vrot.lane.b32.xlu0 %v5668, 96
    %v5678 = vpop.permute.xlu0 %5677
    %v5680 = vmul.f32 %v5676, %v5678
    %5682 = vrot.lane.b32.xlu0 %v5680, 32
    %v5683 = vpop.permute.xlu0 %5682
    %v5685 = vadd.f32 %v5282, %v5683
    %v5686 = vtanh.pop %v5685
    %v5687 = vsub.f32 1.0, %v5676
    %5689 = vrot.lane.b32.xlu0 %v5686, 112
    %v5690 = vpop.permute.xlu0 %5689
    %v5692 = vmul.f32 %v5687, %v5690
    %v5693 = vrot.slane %v5487, 6
    %v5695 = vmul.f32 %v5676, %v5693
    %v5696 = vadd.f32 %v5692, %v5695
    %v5698 = vrot.slane %v5591, 6
    %5699 = vrot.lane.b32.xlu0 %v5698, 112
    %v5700 = vpop.permute.xlu0 %5699
    %v5701 = vsel %vm496, %v5700, 0
    %5703 = vmatprep.subr.mxu0 0.0
    %5704 = vmatpush1.msra.mxu0 %v5382
    %5705 = vmatprep.subr.mxu0 0.0
    %5706 = vmatpush1.msra.mxu0 %v5383
    %5707 = vmatprep.subr.mxu0 0.0
    %5708 = vmatpush1.msra.mxu0 0.0
    %5709 = vmatprep.subr.mxu0 0.0
    %5710 = vmatpush1.msra.mxu0 0.0
    %5711 = vmatprep.subr.mxu0 0.0
    %5712 = vmatpush1.msra.mxu0 0.0
    %5713 = vmatprep.subr.mxu0 0.0
    %5714 = vmatpush1.msra.mxu0 0.0
    %5715 = vmatprep.subr.mxu0 0.0
    %5716 = vmatpush1.msra.mxu0 0.0
    %5717 = vmatprep.subr.mxu0 0.0
    %5718 = vmatpush1.msra.mxu0 0.0
    %5719 = vmatprep.subr.mxu0 0.0
    %5720 = vmatpush1.msra.mxu0 0.0
    %5721 = vmatprep.subr.mxu0 0.0
    %5722 = vmatpush1.msra.mxu0 0.0
    %5723 = vmatprep.subr.mxu0 0.0
    %5724 = vmatpush1.msra.mxu0 0.0
    %5725 = vmatprep.subr.mxu0 0.0
    %5726 = vmatpush1.msra.mxu0 0.0
    %5727 = vmatprep.subr.mxu0 0.0
    %5728 = vmatpush1.msra.mxu0 0.0
    %5729 = vmatprep.subr.mxu0 0.0
    %5730 = vmatpush1.msra.mxu0 0.0
    %5731 = vmatprep.subr.mxu0 0.0
    %5732 = vmatpush1.msra.mxu0 0.0
    %5733 = vmatprep.subr.mxu0 0.0
    %5734 = vmatpush1.msra.mxu0 0.0
    %5735 = vmatprep.subr.mxu0 0.0
    %5736 = vmatpush1.msra.mxu0 0.0
    %5737 = vmatprep.subr.mxu0 0.0
    %5738 = vmatpush1.msra.mxu0 0.0
    %5739 = vmatprep.subr.mxu0 0.0
    %5740 = vmatpush1.msra.mxu0 0.0
    %5741 = vmatprep.subr.mxu0 0.0
    %5742 = vmatpush1.msra.mxu0 0.0
    %5743 = vmatprep.subr.mxu0 0.0
    %5744 = vmatpush1.msra.mxu0 0.0
    %5745 = vmatprep.subr.mxu0 0.0
    %5746 = vmatpush1.msra.mxu0 0.0
    %5747 = vmatprep.subr.mxu0 0.0
    %5748 = vmatpush1.msra.mxu0 0.0
    %5749 = vmatprep.subr.mxu0 0.0
    %5750 = vmatpush1.msra.mxu0 0.0
    %5751 = vmatprep.subr.mxu0 0.0
    %5752 = vmatpush1.msra.mxu0 0.0
    %5753 = vmatprep.subr.mxu0 0.0
    %5754 = vmatpush1.msra.mxu0 0.0
    %5755 = vmatprep.subr.mxu0 0.0
    %5756 = vmatpush1.msra.mxu0 0.0
    %5757 = vmatprep.subr.mxu0 0.0
    %5758 = vmatpush1.msra.mxu0 0.0
    %5759 = vmatprep.subr.mxu0 0.0
    %5760 = vmatpush1.msra.mxu0 0.0
    %5761 = vmatprep.subr.mxu0 0.0
    %5762 = vmatpush1.msra.mxu0 0.0
    %5763 = vmatprep.subr.mxu0 0.0
    %5764 = vmatpush1.msra.mxu0 0.0
    %5765 = vmatprep.subr.mxu0 0.0
    %5766 = vmatpush1.msra.mxu0 0.0
    %5767 = vmatprep.mubr.f32.mxu0 0.0
    %5768 = vmatmul.mubr.f32.gmra.mrb[0].mxu0 %v5701
    %v5769 = vpop.f32.mrb[0].mxu0
    %v5770 = vadd.f32 %v5492, %v5769
    %v5771 = vpop.f32.mrb[0].mxu0
    %5772 = vdwg.mxu0
    %v5774 = vrot.slane %v5770, 4
    %v5776 = vadd.f32 %v5375, %v5774
    %v5777 = vxor.u32 %v5776, 2147483648
    %v5778 = vmul.f32 %v5777, 1.442695
    %v5779 = vpow.pop %v5778
    %v5780 = vadd.f32 %v5779, 1.0
    %v5781 = vrcp.pop %v5780
    %v5782 = vmul.f32 1.0, %v5781
    %5783 = vrot.lane.b32.xlu0 %v5774, 96
    %v5784 = vpop.permute.xlu0 %5783
    %v5786 = vmul.f32 %v5782, %v5784
    %5788 = vrot.lane.b32.xlu0 %v5786, 32
    %v5789 = vpop.permute.xlu0 %5788
    %v5791 = vadd.f32 %v5375, %v5789
    %v5792 = vtanh.pop %v5791
    %v5793 = vsub.f32 1.0, %v5782
    %5795 = vrot.lane.b32.xlu0 %v5792, 112
    %v5796 = vpop.permute.xlu0 %5795
    %v5798 = vmul.f32 %v5793, %v5796
    %v5799 = vrot.slane %v5591, 2
    %v5801 = vmul.f32 %v5782, %v5799
    %v5802 = vadd.f32 %v5798, %v5801
    %v5804 = vrot.slane %v5696, 2
    %5805 = vrot.lane.b32.xlu0 %v5804, 112
    %v5806 = vpop.permute.xlu0 %5805
    %v5807 = vsel %vm496, %v5806, 0
    %5809 = vmatprep.subr.mxu0 0.0
    %5810 = vmatpush1.msra.mxu0 %v5378
    %5811 = vmatprep.subr.mxu0 0.0
    %5812 = vmatpush1.msra.mxu0 %v5379
    %5813 = vmatprep.subr.mxu0 0.0
    %5814 = vmatpush1.msra.mxu0 0.0
    %5815 = vmatprep.subr.mxu0 0.0
    %5816 = vmatpush1.msra.mxu0 0.0
    %5817 = vmatprep.subr.mxu0 0.0
    %5818 = vmatpush1.msra.mxu0 0.0
    %5819 = vmatprep.subr.mxu0 0.0
    %5820 = vmatpush1.msra.mxu0 0.0
    %5821 = vmatprep.subr.mxu0 0.0
    %5822 = vmatpush1.msra.mxu0 0.0
    %5823 = vmatprep.subr.mxu0 0.0
    %5824 = vmatpush1.msra.mxu0 0.0
    %5825 = vmatprep.subr.mxu0 0.0
    %5826 = vmatpush1.msra.mxu0 0.0
    %5827 = vmatprep.subr.mxu0 0.0
    %5828 = vmatpush1.msra.mxu0 0.0
    %5829 = vmatprep.subr.mxu0 0.0
    %5830 = vmatpush1.msra.mxu0 0.0
    %5831 = vmatprep.subr.mxu0 0.0
    %5832 = vmatpush1.msra.mxu0 0.0
    %5833 = vmatprep.subr.mxu0 0.0
    %5834 = vmatpush1.msra.mxu0 0.0
    %5835 = vmatprep.subr.mxu0 0.0
    %5836 = vmatpush1.msra.mxu0 0.0
    %5837 = vmatprep.subr.mxu0 0.0
    %5838 = vmatpush1.msra.mxu0 0.0
    %5839 = vmatprep.subr.mxu0 0.0
    %5840 = vmatpush1.msra.mxu0 0.0
    %5841 = vmatprep.subr.mxu0 0.0
    %5842 = vmatpush1.msra.mxu0 0.0
    %5843 = vmatprep.subr.mxu0 0.0
    %5844 = vmatpush1.msra.mxu0 0.0
    %5845 = vmatprep.subr.mxu0 0.0
    %5846 = vmatpush1.msra.mxu0 0.0
    %5847 = vmatprep.subr.mxu0 0.0
    %5848 = vmatpush1.msra.mxu0 0.0
    %5849 = vmatprep.subr.mxu0 0.0
    %5850 = vmatpush1.msra.mxu0 0.0
    %5851 = vmatprep.subr.mxu0 0.0
    %5852 = vmatpush1.msra.mxu0 0.0
    %5853 = vmatprep.subr.mxu0 0.0
    %5854 = vmatpush1.msra.mxu0 0.0
    %5855 = vmatprep.subr.mxu0 0.0
    %5856 = vmatpush1.msra.mxu0 0.0
    %5857 = vmatprep.subr.mxu0 0.0
    %5858 = vmatpush1.msra.mxu0 0.0
    %5859 = vmatprep.subr.mxu0 0.0
    %5860 = vmatpush1.msra.mxu0 0.0
    %5861 = vmatprep.subr.mxu0 0.0
    %5862 = vmatpush1.msra.mxu0 0.0
    %5863 = vmatprep.subr.mxu0 0.0
    %5864 = vmatpush1.msra.mxu0 0.0
    %5865 = vmatprep.subr.mxu0 0.0
    %5866 = vmatpush1.msra.mxu0 0.0
    %5867 = vmatprep.subr.mxu0 0.0
    %5868 = vmatpush1.msra.mxu0 0.0
    %5869 = vmatprep.subr.mxu0 0.0
    %5870 = vmatpush1.msra.mxu0 0.0
    %5871 = vmatprep.subr.mxu0 0.0
    %5872 = vmatpush1.msra.mxu0 0.0
    %5873 = vmatprep.mubr.f32.mxu0 0.0
    %5874 = vmatmul.mubr.f32.gmra.mrb[0].mxu0 %v5807
    %v5875 = vpop.f32.mrb[0].mxu0
    %v5876 = vadd.f32 %v5390, %v5875
    %v5877 = vpop.f32.mrb[0].mxu0
    %5878 = vdwg.mxu0
    %v5880 = vrot.slane %v5876, 4
    %v5882 = vadd.f32 %v5282, %v5880
    %v5883 = vxor.u32 %v5882, 2147483648
    %v5884 = vmul.f32 %v5883, 1.442695
    %v5885 = vpow.pop %v5884
    %v5886 = vadd.f32 %v5885, 1.0
    %v5887 = vrcp.pop %v5886
    %v5888 = vmul.f32 1.0, %v5887
    %5889 = vrot.lane.b32.xlu0 %v5880, 96
    %v5890 = vpop.permute.xlu0 %5889
    %v5892 = vmul.f32 %v5888, %v5890
    %5894 = vrot.lane.b32.xlu0 %v5892, 32
    %v5895 = vpop.permute.xlu0 %5894
    %v5897 = vadd.f32 %v5282, %v5895
    %v5898 = vtanh.pop %v5897
    %v5899 = vsub.f32 1.0, %v5888
    %5901 = vrot.lane.b32.xlu0 %v5898, 112
    %v5902 = vpop.permute.xlu0 %5901
    %v5904 = vmul.f32 %v5899, %v5902
    %v5905 = vrot.slane %v5696, 6
    %v5907 = vmul.f32 %v5888, %v5905
    %v5908 = vadd.f32 %v5904, %v5907
    %v5910 = vrot.slane %v5802, 4
    %5911 = vrot.lane.b32.xlu0 %v5910, 112
    %v5912 = vpop.permute.xlu0 %5911
    %v5913 = vsel %vm496, %v5912, 0
    %5915 = vmatprep.subr.mxu0 0.0
    %5916 = vmatpush1.msra.mxu0 %v5382
    %5917 = vmatprep.subr.mxu0 0.0
    %5918 = vmatpush1.msra.mxu0 %v5383
    %5919 = vmatprep.subr.mxu0 0.0
    %5920 = vmatpush1.msra.mxu0 0.0
    %5921 = vmatprep.subr.mxu0 0.0
    %5922 = vmatpush1.msra.mxu0 0.0
    %5923 = vmatprep.subr.mxu0 0.0
    %5924 = vmatpush1.msra.mxu0 0.0
    %5925 = vmatprep.subr.mxu0 0.0
    %5926 = vmatpush1.msra.mxu0 0.0
    %5927 = vmatprep.subr.mxu0 0.0
    %5928 = vmatpush1.msra.mxu0 0.0
    %5929 = vmatprep.subr.mxu0 0.0
    %5930 = vmatpush1.msra.mxu0 0.0
    %5931 = vmatprep.subr.mxu0 0.0
    %5932 = vmatpush1.msra.mxu0 0.0
    %5933 = vmatprep.subr.mxu0 0.0
    %5934 = vmatpush1.msra.mxu0 0.0
    %5935 = vmatprep.subr.mxu0 0.0
    %5936 = vmatpush1.msra.mxu0 0.0
    %5937 = vmatprep.subr.mxu0 0.0
    %5938 = vmatpush1.msra.mxu0 0.0
    %5939 = vmatprep.subr.mxu0 0.0
    %5940 = vmatpush1.msra.mxu0 0.0
    %5941 = vmatprep.subr.mxu0 0.0
    %5942 = vmatpush1.msra.mxu0 0.0
    %5943 = vmatprep.subr.mxu0 0.0
    %5944 = vmatpush1.msra.mxu0 0.0
    %5945 = vmatprep.subr.mxu0 0.0
    %5946 = vmatpush1.msra.mxu0 0.0
    %5947 = vmatprep.subr.mxu0 0.0
    %5948 = vmatpush1.msra.mxu0 0.0
    %5949 = vmatprep.subr.mxu0 0.0
    %5950 = vmatpush1.msra.mxu0 0.0
    %5951 = vmatprep.subr.mxu0 0.0
    %5952 = vmatpush1.msra.mxu0 0.0
    %5953 = vmatprep.subr.mxu0 0.0
    %5954 = vmatpush1.msra.mxu0 0.0
    %5955 = vmatprep.subr.mxu0 0.0
    %5956 = vmatpush1.msra.mxu0 0.0
    %5957 = vmatprep.subr.mxu0 0.0
    %5958 = vmatpush1.msra.mxu0 0.0
    %5959 = vmatprep.subr.mxu0 0.0
    %5960 = vmatpush1.msra.mxu0 0.0
    %5961 = vmatprep.subr.mxu0 0.0
    %5962 = vmatpush1.msra.mxu0 0.0
    %5963 = vmatprep.subr.mxu0 0.0
    %5964 = vmatpush1.msra.mxu0 0.0
    %5965 = vmatprep.subr.mxu0 0.0
    %5966 = vmatpush1.msra.mxu0 0.0
    %5967 = vmatprep.subr.mxu0 0.0
    %5968 = vmatpush1.msra.mxu0 0.0
    %5969 = vmatprep.subr.mxu0 0.0
    %5970 = vmatpush1.msra.mxu0 0.0
    %5971 = vmatprep.subr.mxu0 0.0
    %5972 = vmatpush1.msra.mxu0 0.0
    %5973 = vmatprep.subr.mxu0 0.0
    %5974 = vmatpush1.msra.mxu0 0.0
    %5975 = vmatprep.subr.mxu0 0.0
    %5976 = vmatpush1.msra.mxu0 0.0
    %5977 = vmatprep.subr.mxu0 0.0
    %5978 = vmatpush1.msra.mxu0 0.0
    %5979 = vmatprep.mubr.f32.mxu0 0.0
    %5980 = vmatmul.mubr.f32.gmra.mrb[0].mxu0 %v5913
    %v5981 = vpop.f32.mrb[0].mxu0
    %v5982 = vadd.f32 %v5492, %v5981
    %v5983 = vpop.f32.mrb[0].mxu0
    %5984 = vdwg.mxu0
    %v5986 = vrot.slane %v5982, 6
    %v5988 = vadd.f32 %v5375, %v5986
    %v5989 = vxor.u32 %v5988, 2147483648
    %v5990 = vmul.f32 %v5989, 1.442695
    %v5991 = vpow.pop %v5990
    %v5992 = vadd.f32 %v5991, 1.0
    %v5993 = vrcp.pop %v5992
    %v5994 = vmul.f32 1.0, %v5993
    %5995 = vrot.lane.b32.xlu0 %v5986, 96
    %v5996 = vpop.permute.xlu0 %5995
    %v5998 = vmul.f32 %v5994, %v5996
    %6000 = vrot.lane.b32.xlu0 %v5998, 32
    %v6001 = vpop.permute.xlu0 %6000
    %v6003 = vadd.f32 %v5375, %v6001
    %v6004 = vtanh.pop %v6003
    %v6005 = vsub.f32 1.0, %v5994
    %6007 = vrot.lane.b32.xlu0 %v6004, 112
    %v6008 = vpop.permute.xlu0 %6007
    %v6010 = vmul.f32 %v6005, %v6008
    %v6011 = vrot.slane %v5802, 2
    %v6013 = vmul.f32 %v5994, %v6011
    %v6014 = vadd.f32 %v6010, %v6013
    %v6016 = vrot.slane %v5908, 4
    %6017 = vrot.lane.b32.xlu0 %v6016, 112
    %v6018 = vpop.permute.xlu0 %6017
    %v6019 = vsel %vm496, %v6018, 0
    %6021 = vmatprep.subr.mxu0 0.0
    %6022 = vmatpush1.msra.mxu0 %v5378
    %6023 = vmatprep.subr.mxu0 0.0
    %6024 = vmatpush1.msra.mxu0 %v5379
    %6025 = vmatprep.subr.mxu0 0.0
    %6026 = vmatpush1.msra.mxu0 0.0
    %6027 = vmatprep.subr.mxu0 0.0
    %6028 = vmatpush1.msra.mxu0 0.0
    %6029 = vmatprep.subr.mxu0 0.0
    %6030 = vmatpush1.msra.mxu0 0.0
    %6031 = vmatprep.subr.mxu0 0.0
    %6032 = vmatpush1.msra.mxu0 0.0
    %6033 = vmatprep.subr.mxu0 0.0
    %6034 = vmatpush1.msra.mxu0 0.0
    %6035 = vmatprep.subr.mxu0 0.0
    %6036 = vmatpush1.msra.mxu0 0.0
    %6037 = vmatprep.subr.mxu0 0.0
    %6038 = vmatpush1.msra.mxu0 0.0
    %6039 = vmatprep.subr.mxu0 0.0
    %6040 = vmatpush1.msra.mxu0 0.0
    %6041 = vmatprep.subr.mxu0 0.0
    %6042 = vmatpush1.msra.mxu0 0.0
    %6043 = vmatprep.subr.mxu0 0.0
    %6044 = vmatpush1.msra.mxu0 0.0
    %6045 = vmatprep.subr.mxu0 0.0
    %6046 = vmatpush1.msra.mxu0 0.0
    %6047 = vmatprep.subr.mxu0 0.0
    %6048 = vmatpush1.msra.mxu0 0.0
    %6049 = vmatprep.subr.mxu0 0.0
    %6050 = vmatpush1.msra.mxu0 0.0
    %6051 = vmatprep.subr.mxu0 0.0
    %6052 = vmatpush1.msra.mxu0 0.0
    %6053 = vmatprep.subr.mxu0 0.0
    %6054 = vmatpush1.msra.mxu0 0.0
    %6055 = vmatprep.subr.mxu0 0.0
    %6056 = vmatpush1.msra.mxu0 0.0
    %6057 = vmatprep.subr.mxu0 0.0
    %6058 = vmatpush1.msra.mxu0 0.0
    %6059 = vmatprep.subr.mxu0 0.0
    %6060 = vmatpush1.msra.mxu0 0.0
    %6061 = vmatprep.subr.mxu0 0.0
    %6062 = vmatpush1.msra.mxu0 0.0
    %6063 = vmatprep.subr.mxu0 0.0
    %6064 = vmatpush1.msra.mxu0 0.0
    %6065 = vmatprep.subr.mxu0 0.0
    %6066 = vmatpush1.msra.mxu0 0.0
    %6067 = vmatprep.subr.mxu0 0.0
    %6068 = vmatpush1.msra.mxu0 0.0
    %6069 = vmatprep.subr.mxu0 0.0
    %6070 = vmatpush1.msra.mxu0 0.0
    %6071 = vmatprep.subr.mxu0 0.0
    %6072 = vmatpush1.msra.mxu0 0.0
    %6073 = vmatprep.subr.mxu0 0.0
    %6074 = vmatpush1.msra.mxu0 0.0
    %6075 = vmatprep.subr.mxu0 0.0
    %6076 = vmatpush1.msra.mxu0 0.0
    %6077 = vmatprep.subr.mxu0 0.0
    %6078 = vmatpush1.msra.mxu0 0.0
    %6079 = vmatprep.subr.mxu0 0.0
    %6080 = vmatpush1.msra.mxu0 0.0
    %6081 = vmatprep.subr.mxu0 0.0
    %6082 = vmatpush1.msra.mxu0 0.0
    %6083 = vmatprep.subr.mxu0 0.0
    %6084 = vmatpush1.msra.mxu0 0.0
    %6085 = vmatprep.mubr.f32.mxu0 0.0
    %6086 = vmatmul.mubr.f32.gmra.mrb[0].mxu0 %v6019
    %v6087 = vpop.f32.mrb[0].mxu0
    %v6088 = vadd.f32 %v5390, %v6087
    %v6089 = vpop.f32.mrb[0].mxu0
    %6090 = vdwg.mxu0
    %v6092 = vrot.slane %v6088, 2
    %v6094 = vadd.f32 %v5282, %v6092
    %v6095 = vxor.u32 %v6094, 2147483648
    %v6096 = vmul.f32 %v6095, 1.442695
    %v6097 = vpow.pop %v6096
    %v6098 = vadd.f32 %v6097, 1.0
    %v6099 = vrcp.pop %v6098
    %v6100 = vmul.f32 1.0, %v6099
    %6101 = vrot.lane.b32.xlu0 %v6092, 96
    %v6102 = vpop.permute.xlu0 %6101
    %v6104 = vmul.f32 %v6100, %v6102
    %6106 = vrot.lane.b32.xlu0 %v6104, 32
    %v6107 = vpop.permute.xlu0 %6106
    %v6109 = vadd.f32 %v5282, %v6107
    %v6110 = vtanh.pop %v6109
    %v6111 = vsub.f32 1.0, %v6100
    %6113 = vrot.lane.b32.xlu0 %v6110, 112
    %v6114 = vpop.permute.xlu0 %6113
    %v6116 = vmul.f32 %v6111, %v6114
    %v6117 = vrot.slane %v5908, 6
    %v6119 = vmul.f32 %v6100, %v6117
    %v6120 = vadd.f32 %v6116, %v6119
    %v6122 = vrot.slane %v6014, 2
    %6123 = vrot.lane.b32.xlu0 %v6122, 112
    %v6124 = vpop.permute.xlu0 %6123
    %v6125 = vsel %vm496, %v6124, 0
    %6127 = vmatprep.subr.mxu0 0.0
    %6128 = vmatpush1.msra.mxu0 %v5382
    %6129 = vmatprep.subr.mxu0 0.0
    %6130 = vmatpush1.msra.mxu0 %v5383
    %6131 = vmatprep.subr.mxu0 0.0
    %6132 = vmatpush1.msra.mxu0 0.0
    %6133 = vmatprep.subr.mxu0 0.0
    %6134 = vmatpush1.msra.mxu0 0.0
    %6135 = vmatprep.subr.mxu0 0.0
    %6136 = vmatpush1.msra.mxu0 0.0
    %6137 = vmatprep.subr.mxu0 0.0
    %6138 = vmatpush1.msra.mxu0 0.0
    %6139 = vmatprep.subr.mxu0 0.0
    %6140 = vmatpush1.msra.mxu0 0.0
    %6141 = vmatprep.subr.mxu0 0.0
    %6142 = vmatpush1.msra.mxu0 0.0
    %6143 = vmatprep.subr.mxu0 0.0
    %6144 = vmatpush1.msra.mxu0 0.0
    %6145 = vmatprep.subr.mxu0 0.0
    %6146 = vmatpush1.msra.mxu0 0.0
    %6147 = vmatprep.subr.mxu0 0.0
    %6148 = vmatpush1.msra.mxu0 0.0
    %6149 = vmatprep.subr.mxu0 0.0
    %6150 = vmatpush1.msra.mxu0 0.0
    %6151 = vmatprep.subr.mxu0 0.0
    %6152 = vmatpush1.msra.mxu0 0.0
    %6153 = vmatprep.subr.mxu0 0.0
    %6154 = vmatpush1.msra.mxu0 0.0
    %6155 = vmatprep.subr.mxu0 0.0
    %6156 = vmatpush1.msra.mxu0 0.0
    %6157 = vmatprep.subr.mxu0 0.0
    %6158 = vmatpush1.msra.mxu0 0.0
    %6159 = vmatprep.subr.mxu0 0.0
    %6160 = vmatpush1.msra.mxu0 0.0
    %6161 = vmatprep.subr.mxu0 0.0
    %6162 = vmatpush1.msra.mxu0 0.0
    %6163 = vmatprep.subr.mxu0 0.0
    %6164 = vmatpush1.msra.mxu0 0.0
    %6165 = vmatprep.subr.mxu0 0.0
    %6166 = vmatpush1.msra.mxu0 0.0
    %6167 = vmatprep.subr.mxu0 0.0
    %6168 = vmatpush1.msra.mxu0 0.0
    %6169 = vmatprep.subr.mxu0 0.0
    %6170 = vmatpush1.msra.mxu0 0.0
    %6171 = vmatprep.subr.mxu0 0.0
    %6172 = vmatpush1.msra.mxu0 0.0
    %6173 = vmatprep.subr.mxu0 0.0
    %6174 = vmatpush1.msra.mxu0 0.0
    %6175 = vmatprep.subr.mxu0 0.0
    %6176 = vmatpush1.msra.mxu0 0.0
    %6177 = vmatprep.subr.mxu0 0.0
    %6178 = vmatpush1.msra.mxu0 0.0
    %6179 = vmatprep.subr.mxu0 0.0
    %6180 = vmatpush1.msra.mxu0 0.0
    %6181 = vmatprep.subr.mxu0 0.0
    %6182 = vmatpush1.msra.mxu0 0.0
    %6183 = vmatprep.subr.mxu0 0.0
    %6184 = vmatpush1.msra.mxu0 0.0
    %6185 = vmatprep.subr.mxu0 0.0
    %6186 = vmatpush1.msra.mxu0 0.0
    %6187 = vmatprep.subr.mxu0 0.0
    %6188 = vmatpush1.msra.mxu0 0.0
    %6189 = vmatprep.subr.mxu0 0.0
    %6190 = vmatpush1.msra.mxu0 0.0
    %6191 = vmatprep.mubr.f32.mxu0 0.0
    %6192 = vmatmul.mubr.f32.gmra.mrb[0].mxu0 %v6125
    %v6193 = vpop.f32.mrb[0].mxu0
    %v6194 = vadd.f32 %v5492, %v6193
    %v6195 = vpop.f32.mrb[0].mxu0
    %6196 = vdwg.mxu0
    %v6197 = vadd.f32 %v5375, %v6194
    %v6198 = vxor.u32 %v6197, 2147483648
    %v6199 = vmul.f32 %v6198, 1.442695
    %v6200 = vpow.pop %v6199
    %v6201 = vadd.f32 %v6200, 1.0
    %v6202 = vrcp.pop %v6201
    %v6203 = vmul.f32 1.0, %v6202
    %6205 = vrot.lane.b32.xlu0 %v6194, 96
    %v6206 = vpop.permute.xlu0 %6205
    %v6208 = vmul.f32 %v6203, %v6206
    %6210 = vrot.lane.b32.xlu0 %v6208, 32
    %v6211 = vpop.permute.xlu0 %6210
    %v6213 = vadd.f32 %v5375, %v6211
    %v6214 = vtanh.pop %v6213
    %v6215 = vsub.f32 1.0, %v6203
    %6217 = vrot.lane.b32.xlu0 %v6214, 112
    %v6218 = vpop.permute.xlu0 %6217
    %v6220 = vmul.f32 %v6215, %v6218
    %v6222 = vmul.f32 %v6203, %v6122
    %v6223 = vadd.f32 %v6220, %v6222
    %v6225 = vrot.slane %v6120, 6
    %6226 = vrot.lane.b32.xlu0 %v6225, 112
    %v6227 = vpop.permute.xlu0 %6226
    %v6228 = vsel %vm496, %v6227, 0
    %6230 = vmatprep.subr.mxu0 0.0
    %6231 = vmatpush1.msra.mxu0 %v5378
    %6232 = vmatprep.subr.mxu0 0.0
    %6233 = vmatpush1.msra.mxu0 %v5379
    %6234 = vmatprep.subr.mxu0 0.0
    %6235 = vmatpush1.msra.mxu0 0.0
    %6236 = vmatprep.subr.mxu0 0.0
    %6237 = vmatpush1.msra.mxu0 0.0
    %6238 = vmatprep.subr.mxu0 0.0
    %6239 = vmatpush1.msra.mxu0 0.0
    %6240 = vmatprep.subr.mxu0 0.0
    %6241 = vmatpush1.msra.mxu0 0.0
    %6242 = vmatprep.subr.mxu0 0.0
    %6243 = vmatpush1.msra.mxu0 0.0
    %6244 = vmatprep.subr.mxu0 0.0
    %6245 = vmatpush1.msra.mxu0 0.0
    %6246 = vmatprep.subr.mxu0 0.0
    %6247 = vmatpush1.msra.mxu0 0.0
    %6248 = vmatprep.subr.mxu0 0.0
    %6249 = vmatpush1.msra.mxu0 0.0
    %6250 = vmatprep.subr.mxu0 0.0
    %6251 = vmatpush1.msra.mxu0 0.0
    %6252 = vmatprep.subr.mxu0 0.0
    %6253 = vmatpush1.msra.mxu0 0.0
    %6254 = vmatprep.subr.mxu0 0.0
    %6255 = vmatpush1.msra.mxu0 0.0
    %6256 = vmatprep.subr.mxu0 0.0
    %6257 = vmatpush1.msra.mxu0 0.0
    %6258 = vmatprep.subr.mxu0 0.0
    %6259 = vmatpush1.msra.mxu0 0.0
    %6260 = vmatprep.subr.mxu0 0.0
    %6261 = vmatpush1.msra.mxu0 0.0
    %6262 = vmatprep.subr.mxu0 0.0
    %6263 = vmatpush1.msra.mxu0 0.0
    %6264 = vmatprep.subr.mxu0 0.0
    %6265 = vmatpush1.msra.mxu0 0.0
    %6266 = vmatprep.subr.mxu0 0.0
    %6267 = vmatpush1.msra.mxu0 0.0
    %6268 = vmatprep.subr.mxu0 0.0
    %6269 = vmatpush1.msra.mxu0 0.0
    %6270 = vmatprep.subr.mxu0 0.0
    %6271 = vmatpush1.msra.mxu0 0.0
    %6272 = vmatprep.subr.mxu0 0.0
    %6273 = vmatpush1.msra.mxu0 0.0
    %6274 = vmatprep.subr.mxu0 0.0
    %6275 = vmatpush1.msra.mxu0 0.0
    %6276 = vmatprep.subr.mxu0 0.0
    %6277 = vmatpush1.msra.mxu0 0.0
    %6278 = vmatprep.subr.mxu0 0.0
    %6279 = vmatpush1.msra.mxu0 0.0
    %6280 = vmatprep.subr.mxu0 0.0
    %6281 = vmatpush1.msra.mxu0 0.0
    %6282 = vmatprep.subr.mxu0 0.0
    %6283 = vmatpush1.msra.mxu0 0.0
    %6284 = vmatprep.subr.mxu0 0.0
    %6285 = vmatpush1.msra.mxu0 0.0
    %6286 = vmatprep.subr.mxu0 0.0
    %6287 = vmatpush1.msra.mxu0 0.0
    %6288 = vmatprep.subr.mxu0 0.0
    %6289 = vmatpush1.msra.mxu0 0.0
    %6290 = vmatprep.subr.mxu0 0.0
    %6291 = vmatpush1.msra.mxu0 0.0
    %6292 = vmatprep.subr.mxu0 0.0
    %6293 = vmatpush1.msra.mxu0 0.0
    %6294 = vmatprep.mubr.f32.mxu0 0.0
    %6295 = vmatmul.mubr.f32.gmra.mrb[0].mxu0 %v6228
    %v6296 = vpop.f32.mrb[0].mxu0
    %v6297 = vadd.f32 %v5390, %v6296
    %v6298 = vpop.f32.mrb[0].mxu0
    %6299 = vdwg.mxu0
    %v6300 = vadd.f32 %v5287, %v6297
    %v6301 = vxor.u32 %v6300, 2147483648
    %v6302 = vmul.f32 %v6301, 1.442695
    %v6303 = vpow.pop %v6302
    %v6304 = vadd.f32 %v6303, 1.0
    %v6305 = vrcp.pop %v6304
    %v6306 = vmul.f32 1.0, %v6305
    %6308 = vrot.lane.b32.xlu0 %v6297, 96
    %v6309 = vpop.permute.xlu0 %6308
    %v6311 = vmul.f32 %v6306, %v6309
    %6313 = vrot.lane.b32.xlu0 %v6311, 32
    %v6314 = vpop.permute.xlu0 %6313
    %v6316 = vadd.f32 %v5287, %v6314
    %v6317 = vtanh.pop %v6316
    %v6318 = vsub.f32 1.0, %v6306
    %6320 = vrot.lane.b32.xlu0 %v6317, 112
    %v6321 = vpop.permute.xlu0 %6320
    %v6323 = vmul.f32 %v6318, %v6321
    %v6325 = vmul.f32 %v6306, %v6225
    %v6326 = vadd.f32 %v6323, %v6325
    %6328 = vrot.lane.b32.xlu0 %v6223, 112
    %v6329 = vpop.permute.xlu0 %6328
    %v6330 = vsel %vm496, %v6329, 0
    %6332 = vmatprep.subr.mxu0 0.0
    %6333 = vmatpush1.msra.mxu0 %v5382
    %6334 = vmatprep.subr.mxu0 0.0
    %6335 = vmatpush1.msra.mxu0 %v5383
    %6336 = vmatprep.subr.mxu0 0.0
    %6337 = vmatpush1.msra.mxu0 0.0
    %6338 = vmatprep.subr.mxu0 0.0
    %6339 = vmatpush1.msra.mxu0 0.0
    %6340 = vmatprep.subr.mxu0 0.0
    %6341 = vmatpush1.msra.mxu0 0.0
    %6342 = vmatprep.subr.mxu0 0.0
    %6343 = vmatpush1.msra.mxu0 0.0
    %6344 = vmatprep.subr.mxu0 0.0
    %6345 = vmatpush1.msra.mxu0 0.0
    %6346 = vmatprep.subr.mxu0 0.0
    %6347 = vmatpush1.msra.mxu0 0.0
    %6348 = vmatprep.subr.mxu0 0.0
    %6349 = vmatpush1.msra.mxu0 0.0
    %6350 = vmatprep.subr.mxu0 0.0
    %6351 = vmatpush1.msra.mxu0 0.0
    %6352 = vmatprep.subr.mxu0 0.0
    %6353 = vmatpush1.msra.mxu0 0.0
    %6354 = vmatprep.subr.mxu0 0.0
    %6355 = vmatpush1.msra.mxu0 0.0
    %6356 = vmatprep.subr.mxu0 0.0
    %6357 = vmatpush1.msra.mxu0 0.0
    %6358 = vmatprep.subr.mxu0 0.0
    %6359 = vmatpush1.msra.mxu0 0.0
    %6360 = vmatprep.subr.mxu0 0.0
    %6361 = vmatpush1.msra.mxu0 0.0
    %6362 = vmatprep.subr.mxu0 0.0
    %6363 = vmatpush1.msra.mxu0 0.0
    %6364 = vmatprep.subr.mxu0 0.0
    %6365 = vmatpush1.msra.mxu0 0.0
    %6366 = vmatprep.subr.mxu0 0.0
    %6367 = vmatpush1.msra.mxu0 0.0
    %6368 = vmatprep.subr.mxu0 0.0
    %6369 = vmatpush1.msra.mxu0 0.0
    %6370 = vmatprep.subr.mxu0 0.0
    %6371 = vmatpush1.msra.mxu0 0.0
    %6372 = vmatprep.subr.mxu0 0.0
    %6373 = vmatpush1.msra.mxu0 0.0
    %6374 = vmatprep.subr.mxu0 0.0
    %6375 = vmatpush1.msra.mxu0 0.0
    %6376 = vmatprep.subr.mxu0 0.0
    %6377 = vmatpush1.msra.mxu0 0.0
    %6378 = vmatprep.subr.mxu0 0.0
    %6379 = vmatpush1.msra.mxu0 0.0
    %6380 = vmatprep.subr.mxu0 0.0
    %6381 = vmatpush1.msra.mxu0 0.0
    %6382 = vmatprep.subr.mxu0 0.0
    %6383 = vmatpush1.msra.mxu0 0.0
    %6384 = vmatprep.subr.mxu0 0.0
    %6385 = vmatpush1.msra.mxu0 0.0
    %6386 = vmatprep.subr.mxu0 0.0
    %6387 = vmatpush1.msra.mxu0 0.0
    %6388 = vmatprep.subr.mxu0 0.0
    %6389 = vmatpush1.msra.mxu0 0.0
    %6390 = vmatprep.subr.mxu0 0.0
    %6391 = vmatpush1.msra.mxu0 0.0
    %6392 = vmatprep.subr.mxu0 0.0
    %6393 = vmatpush1.msra.mxu0 0.0
    %6394 = vmatprep.subr.mxu0 0.0
    %6395 = vmatpush1.msra.mxu0 0.0
    %6396 = vmatprep.mubr.f32.mxu0 0.0
    %6397 = vmatmul.mubr.f32.gmra.mrb[0].mxu0 %v6330
    %v6398 = vpop.f32.mrb[0].mxu0
    %v6399 = vadd.f32 %v5492, %v6398
    %v6400 = vpop.f32.mrb[0].mxu0
    %6401 = vdwg.mxu0
    %v6403 = vrot.slane %v6399, 2
    %v6405 = vadd.f32 %v5370, %v6403
    %v6406 = vxor.u32 %v6405, 2147483648
    %v6407 = vmul.f32 %v6406, 1.442695
    %v6408 = vpow.pop %v6407
    %v6409 = vadd.f32 %v6408, 1.0
    %v6410 = vrcp.pop %v6409
    %v6411 = vmul.f32 1.0, %v6410
    %6412 = vrot.lane.b32.xlu0 %v6403, 96
    %v6413 = vpop.permute.xlu0 %6412
    %v6415 = vmul.f32 %v6411, %v6413
    %6417 = vrot.lane.b32.xlu0 %v6415, 32
    %v6418 = vpop.permute.xlu0 %6417
    %v6420 = vadd.f32 %v5370, %v6418
    %v6421 = vtanh.pop %v6420
    %v6422 = vsub.f32 1.0, %v6411
    %6424 = vrot.lane.b32.xlu0 %v6421, 112
    %v6425 = vpop.permute.xlu0 %6424
    %v6427 = vmul.f32 %v6422, %v6425
    %v6428 = vrot.slane %v6223, 2
    %v6430 = vmul.f32 %v6411, %v6428
    %v6431 = vadd.f32 %v6427, %v6430
    %6433 = vrot.lane.b32.xlu0 %v6326, 112
    %v6434 = vpop.permute.xlu0 %6433
    %v6435 = vsel %vm496, %v6434, 0
    %6437 = vmatprep.subr.mxu0 0.0
    %6438 = vmatpush1.msra.mxu0 %v5378
    %6439 = vmatprep.subr.mxu0 0.0
    %6440 = vmatpush1.msra.mxu0 %v5379
    %6441 = vmatprep.subr.mxu0 0.0
    %6442 = vmatpush1.msra.mxu0 0.0
    %6443 = vmatprep.subr.mxu0 0.0
    %6444 = vmatpush1.msra.mxu0 0.0
    %6445 = vmatprep.subr.mxu0 0.0
    %6446 = vmatpush1.msra.mxu0 0.0
    %6447 = vmatprep.subr.mxu0 0.0
    %6448 = vmatpush1.msra.mxu0 0.0
    %6449 = vmatprep.subr.mxu0 0.0
    %6450 = vmatpush1.msra.mxu0 0.0
    %6451 = vmatprep.subr.mxu0 0.0
    %6452 = vmatpush1.msra.mxu0 0.0
    %6453 = vmatprep.subr.mxu0 0.0
    %6454 = vmatpush1.msra.mxu0 0.0
    %6455 = vmatprep.subr.mxu0 0.0
    %6456 = vmatpush1.msra.mxu0 0.0
    %6457 = vmatprep.subr.mxu0 0.0
    %6458 = vmatpush1.msra.mxu0 0.0
    %6459 = vmatprep.subr.mxu0 0.0
    %6460 = vmatpush1.msra.mxu0 0.0
    %6461 = vmatprep.subr.mxu0 0.0
    %6462 = vmatpush1.msra.mxu0 0.0
    %6463 = vmatprep.subr.mxu0 0.0
    %6464 = vmatpush1.msra.mxu0 0.0
    %6465 = vmatprep.subr.mxu0 0.0
    %6466 = vmatpush1.msra.mxu0 0.0
    %6467 = vmatprep.subr.mxu0 0.0
    %6468 = vmatpush1.msra.mxu0 0.0
    %6469 = vmatprep.subr.mxu0 0.0
    %6470 = vmatpush1.msra.mxu0 0.0
    %6471 = vmatprep.subr.mxu0 0.0
    %6472 = vmatpush1.msra.mxu0 0.0
    %6473 = vmatprep.subr.mxu0 0.0
    %6474 = vmatpush1.msra.mxu0 0.0
    %6475 = vmatprep.subr.mxu0 0.0
    %6476 = vmatpush1.msra.mxu0 0.0
    %6477 = vmatprep.subr.mxu0 0.0
    %6478 = vmatpush1.msra.mxu0 0.0
    %6479 = vmatprep.subr.mxu0 0.0
    %6480 = vmatpush1.msra.mxu0 0.0
    %6481 = vmatprep.subr.mxu0 0.0
    %6482 = vmatpush1.msra.mxu0 0.0
    %6483 = vmatprep.subr.mxu0 0.0
    %6484 = vmatpush1.msra.mxu0 0.0
    %6485 = vmatprep.subr.mxu0 0.0
    %6486 = vmatpush1.msra.mxu0 0.0
    %6487 = vmatprep.subr.mxu0 0.0
    %6488 = vmatpush1.msra.mxu0 0.0
    %6489 = vmatprep.subr.mxu0 0.0
    %6490 = vmatpush1.msra.mxu0 0.0
    %6491 = vmatprep.subr.mxu0 0.0
    %6492 = vmatpush1.msra.mxu0 0.0
    %6493 = vmatprep.subr.mxu0 0.0
    %6494 = vmatpush1.msra.mxu0 0.0
    %6495 = vmatprep.subr.mxu0 0.0
    %6496 = vmatpush1.msra.mxu0 0.0
    %6497 = vmatprep.subr.mxu0 0.0
    %6498 = vmatpush1.msra.mxu0 0.0
    %6499 = vmatprep.subr.mxu0 0.0
    %6500 = vmatpush1.msra.mxu0 0.0
    %6501 = vmatprep.mubr.f32.mxu0 0.0
    %6502 = vmatmul.mubr.f32.gmra.mrb[0].mxu0 %v6435
    %v6503 = vpop.f32.mrb[0].mxu0
    %v6504 = vadd.f32 %v5390, %v6503
    %v6505 = vpop.f32.mrb[0].mxu0
    %6506 = vdwg.mxu0
    %v6508 = vrot.slane %v6504, 6
    %v6510 = vadd.f32 %v5287, %v6508
    %v6511 = vxor.u32 %v6510, 2147483648
    %v6512 = vmul.f32 %v6511, 1.442695
    %v6513 = vpow.pop %v6512
    %v6514 = vadd.f32 %v6513, 1.0
    %v6515 = vrcp.pop %v6514
    %v6516 = vmul.f32 1.0, %v6515
    %6517 = vrot.lane.b32.xlu0 %v6508, 96
    %v6518 = vpop.permute.xlu0 %6517
    %v6520 = vmul.f32 %v6516, %v6518
    %6522 = vrot.lane.b32.xlu0 %v6520, 32
    %v6523 = vpop.permute.xlu0 %6522
    %v6525 = vadd.f32 %v5287, %v6523
    %v6526 = vtanh.pop %v6525
    %v6527 = vsub.f32 1.0, %v6516
    %6529 = vrot.lane.b32.xlu0 %v6526, 112
    %v6530 = vpop.permute.xlu0 %6529
    %v6532 = vmul.f32 %v6527, %v6530
    %v6533 = vrot.slane %v6326, 6
    %v6535 = vmul.f32 %v6516, %v6533
    %v6536 = vadd.f32 %v6532, %v6535
    %v6538 = vrot.slane %v6431, 6
    %6539 = vrot.lane.b32.xlu0 %v6538, 112
    %v6540 = vpop.permute.xlu0 %6539
    %v6541 = vsel %vm496, %v6540, 0
    %6543 = vmatprep.subr.mxu0 0.0
    %6544 = vmatpush1.msra.mxu0 %v5382
    %6545 = vmatprep.subr.mxu0 0.0
    %6546 = vmatpush1.msra.mxu0 %v5383
    %6547 = vmatprep.subr.mxu0 0.0
    %6548 = vmatpush1.msra.mxu0 0.0
    %6549 = vmatprep.subr.mxu0 0.0
    %6550 = vmatpush1.msra.mxu0 0.0
    %6551 = vmatprep.subr.mxu0 0.0
    %6552 = vmatpush1.msra.mxu0 0.0
    %6553 = vmatprep.subr.mxu0 0.0
    %6554 = vmatpush1.msra.mxu0 0.0
    %6555 = vmatprep.subr.mxu0 0.0
    %6556 = vmatpush1.msra.mxu0 0.0
    %6557 = vmatprep.subr.mxu0 0.0
    %6558 = vmatpush1.msra.mxu0 0.0
    %6559 = vmatprep.subr.mxu0 0.0
    %6560 = vmatpush1.msra.mxu0 0.0
    %6561 = vmatprep.subr.mxu0 0.0
    %6562 = vmatpush1.msra.mxu0 0.0
    %6563 = vmatprep.subr.mxu0 0.0
    %6564 = vmatpush1.msra.mxu0 0.0
    %6565 = vmatprep.subr.mxu0 0.0
    %6566 = vmatpush1.msra.mxu0 0.0
    %6567 = vmatprep.subr.mxu0 0.0
    %6568 = vmatpush1.msra.mxu0 0.0
    %6569 = vmatprep.subr.mxu0 0.0
    %6570 = vmatpush1.msra.mxu0 0.0
    %6571 = vmatprep.subr.mxu0 0.0
    %6572 = vmatpush1.msra.mxu0 0.0
    %6573 = vmatprep.subr.mxu0 0.0
    %6574 = vmatpush1.msra.mxu0 0.0
    %6575 = vmatprep.subr.mxu0 0.0
    %6576 = vmatpush1.msra.mxu0 0.0
    %6577 = vmatprep.subr.mxu0 0.0
    %6578 = vmatpush1.msra.mxu0 0.0
    %6579 = vmatprep.subr.mxu0 0.0
    %6580 = vmatpush1.msra.mxu0 0.0
    %6581 = vmatprep.subr.mxu0 0.0
    %6582 = vmatpush1.msra.mxu0 0.0
    %6583 = vmatprep.subr.mxu0 0.0
    %6584 = vmatpush1.msra.mxu0 0.0
    %6585 = vmatprep.subr.mxu0 0.0
    %6586 = vmatpush1.msra.mxu0 0.0
    %6587 = vmatprep.subr.mxu0 0.0
    %6588 = vmatpush1.msra.mxu0 0.0
    %6589 = vmatprep.subr.mxu0 0.0
    %6590 = vmatpush1.msra.mxu0 0.0
    %6591 = vmatprep.subr.mxu0 0.0
    %6592 = vmatpush1.msra.mxu0 0.0
    %6593 = vmatprep.subr.mxu0 0.0
    %6594 = vmatpush1.msra.mxu0 0.0
    %6595 = vmatprep.subr.mxu0 0.0
    %6596 = vmatpush1.msra.mxu0 0.0
    %6597 = vmatprep.subr.mxu0 0.0
    %6598 = vmatpush1.msra.mxu0 0.0
    %6599 = vmatprep.subr.mxu0 0.0
    %6600 = vmatpush1.msra.mxu0 0.0
    %6601 = vmatprep.subr.mxu0 0.0
    %6602 = vmatpush1.msra.mxu0 0.0
    %6603 = vmatprep.subr.mxu0 0.0
    %6604 = vmatpush1.msra.mxu0 0.0
    %6605 = vmatprep.subr.mxu0 0.0
    %6606 = vmatpush1.msra.mxu0 0.0
    %6607 = vmatprep.mubr.f32.mxu0 0.0
    %6608 = vmatmul.mubr.f32.gmra.mrb[0].mxu0 %v6541
    %v6609 = vpop.f32.mrb[0].mxu0
    %v6610 = vadd.f32 %v5492, %v6609
    %v6611 = vpop.f32.mrb[0].mxu0
    %6612 = vdwg.mxu0
    %v6614 = vrot.slane %v6610, 4
    %v6616 = vadd.f32 %v5370, %v6614
    %v6617 = vxor.u32 %v6616, 2147483648
    %v6618 = vmul.f32 %v6617, 1.442695
    %v6619 = vpow.pop %v6618
    %v6620 = vadd.f32 %v6619, 1.0
    %v6621 = vrcp.pop %v6620
    %v6622 = vmul.f32 1.0, %v6621
    %6623 = vrot.lane.b32.xlu0 %v6614, 96
    %v6624 = vpop.permute.xlu0 %6623
    %v6626 = vmul.f32 %v6622, %v6624
    %6628 = vrot.lane.b32.xlu0 %v6626, 32
    %v6629 = vpop.permute.xlu0 %6628
    %v6631 = vadd.f32 %v5370, %v6629
    %v6632 = vtanh.pop %v6631
    %v6633 = vsub.f32 1.0, %v6622
    %6635 = vrot.lane.b32.xlu0 %v6632, 112
    %v6636 = vpop.permute.xlu0 %6635
    %v6638 = vmul.f32 %v6633, %v6636
    %v6639 = vrot.slane %v6431, 2
    %v6641 = vmul.f32 %v6622, %v6639
    %v6642 = vadd.f32 %v6638, %v6641
    %v6644 = vrot.slane %v6536, 2
    %6645 = vrot.lane.b32.xlu0 %v6644, 112
    %v6646 = vpop.permute.xlu0 %6645
    %v6647 = vsel %vm496, %v6646, 0
    %6649 = vmatprep.subr.mxu0 0.0
    %6650 = vmatpush1.msra.mxu0 %v5378
    %6651 = vmatprep.subr.mxu0 0.0
    %6652 = vmatpush1.msra.mxu0 %v5379
    %6653 = vmatprep.subr.mxu0 0.0
    %6654 = vmatpush1.msra.mxu0 0.0
    %6655 = vmatprep.subr.mxu0 0.0
    %6656 = vmatpush1.msra.mxu0 0.0
    %6657 = vmatprep.subr.mxu0 0.0
    %6658 = vmatpush1.msra.mxu0 0.0
    %6659 = vmatprep.subr.mxu0 0.0
    %6660 = vmatpush1.msra.mxu0 0.0
    %6661 = vmatprep.subr.mxu0 0.0
    %6662 = vmatpush1.msra.mxu0 0.0
    %6663 = vmatprep.subr.mxu0 0.0
    %6664 = vmatpush1.msra.mxu0 0.0
    %6665 = vmatprep.subr.mxu0 0.0
    %6666 = vmatpush1.msra.mxu0 0.0
    %6667 = vmatprep.subr.mxu0 0.0
    %6668 = vmatpush1.msra.mxu0 0.0
    %6669 = vmatprep.subr.mxu0 0.0
    %6670 = vmatpush1.msra.mxu0 0.0
    %6671 = vmatprep.subr.mxu0 0.0
    %6672 = vmatpush1.msra.mxu0 0.0
    %6673 = vmatprep.subr.mxu0 0.0
    %6674 = vmatpush1.msra.mxu0 0.0
    %6675 = vmatprep.subr.mxu0 0.0
    %6676 = vmatpush1.msra.mxu0 0.0
    %6677 = vmatprep.subr.mxu0 0.0
    %6678 = vmatpush1.msra.mxu0 0.0
    %6679 = vmatprep.subr.mxu0 0.0
    %6680 = vmatpush1.msra.mxu0 0.0
    %6681 = vmatprep.subr.mxu0 0.0
    %6682 = vmatpush1.msra.mxu0 0.0
    %6683 = vmatprep.subr.mxu0 0.0
    %6684 = vmatpush1.msra.mxu0 0.0
    %6685 = vmatprep.subr.mxu0 0.0
    %6686 = vmatpush1.msra.mxu0 0.0
    %6687 = vmatprep.subr.mxu0 0.0
    %6688 = vmatpush1.msra.mxu0 0.0
    %6689 = vmatprep.subr.mxu0 0.0
    %6690 = vmatpush1.msra.mxu0 0.0
    %6691 = vmatprep.subr.mxu0 0.0
    %6692 = vmatpush1.msra.mxu0 0.0
    %6693 = vmatprep.subr.mxu0 0.0
    %6694 = vmatpush1.msra.mxu0 0.0
    %6695 = vmatprep.subr.mxu0 0.0
    %6696 = vmatpush1.msra.mxu0 0.0
    %6697 = vmatprep.subr.mxu0 0.0
    %6698 = vmatpush1.msra.mxu0 0.0
    %6699 = vmatprep.subr.mxu0 0.0
    %6700 = vmatpush1.msra.mxu0 0.0
    %6701 = vmatprep.subr.mxu0 0.0
    %6702 = vmatpush1.msra.mxu0 0.0
    %6703 = vmatprep.subr.mxu0 0.0
    %6704 = vmatpush1.msra.mxu0 0.0
    %6705 = vmatprep.subr.mxu0 0.0
    %6706 = vmatpush1.msra.mxu0 0.0
    %6707 = vmatprep.subr.mxu0 0.0
    %6708 = vmatpush1.msra.mxu0 0.0
    %6709 = vmatprep.subr.mxu0 0.0
    %6710 = vmatpush1.msra.mxu0 0.0
    %6711 = vmatprep.subr.mxu0 0.0
    %6712 = vmatpush1.msra.mxu0 0.0
    %6713 = vmatprep.mubr.f32.mxu0 0.0
    %6714 = vmatmul.mubr.f32.gmra.mrb[0].mxu0 %v6647
    %v6715 = vpop.f32.mrb[0].mxu0
    %v6716 = vadd.f32 %v5390, %v6715
    %v6717 = vpop.f32.mrb[0].mxu0
    %6718 = vdwg.mxu0
    %v6720 = vrot.slane %v6716, 4
    %v6722 = vadd.f32 %v5287, %v6720
    %v6723 = vxor.u32 %v6722, 2147483648
    %v6724 = vmul.f32 %v6723, 1.442695
    %v6725 = vpow.pop %v6724
    %v6726 = vadd.f32 %v6725, 1.0
    %v6727 = vrcp.pop %v6726
    %v6728 = vmul.f32 1.0, %v6727
    %6729 = vrot.lane.b32.xlu0 %v6720, 96
    %v6730 = vpop.permute.xlu0 %6729
    %v6732 = vmul.f32 %v6728, %v6730
    %6734 = vrot.lane.b32.xlu0 %v6732, 32
    %v6735 = vpop.permute.xlu0 %6734
    %v6737 = vadd.f32 %v5287, %v6735
    %v6738 = vtanh.pop %v6737
    %v6739 = vsub.f32 1.0, %v6728
    %6741 = vrot.lane.b32.xlu0 %v6738, 112
    %v6742 = vpop.permute.xlu0 %6741
    %v6744 = vmul.f32 %v6739, %v6742
    %v6745 = vrot.slane %v6536, 6
    %v6747 = vmul.f32 %v6728, %v6745
    %v6748 = vadd.f32 %v6744, %v6747
    %v6750 = vrot.slane %v6642, 4
    %6751 = vrot.lane.b32.xlu0 %v6750, 112
    %v6752 = vpop.permute.xlu0 %6751
    %v6753 = vsel %vm496, %v6752, 0
    %6755 = vmatprep.subr.mxu0 0.0
    %6756 = vmatpush1.msra.mxu0 %v5382
    %6757 = vmatprep.subr.mxu0 0.0
    %6758 = vmatpush1.msra.mxu0 %v5383
    %6759 = vmatprep.subr.mxu0 0.0
    %6760 = vmatpush1.msra.mxu0 0.0
    %6761 = vmatprep.subr.mxu0 0.0
    %6762 = vmatpush1.msra.mxu0 0.0
    %6763 = vmatprep.subr.mxu0 0.0
    %6764 = vmatpush1.msra.mxu0 0.0
    %6765 = vmatprep.subr.mxu0 0.0
    %6766 = vmatpush1.msra.mxu0 0.0
    %6767 = vmatprep.subr.mxu0 0.0
    %6768 = vmatpush1.msra.mxu0 0.0
    %6769 = vmatprep.subr.mxu0 0.0
    %6770 = vmatpush1.msra.mxu0 0.0
    %6771 = vmatprep.subr.mxu0 0.0
    %6772 = vmatpush1.msra.mxu0 0.0
    %6773 = vmatprep.subr.mxu0 0.0
    %6774 = vmatpush1.msra.mxu0 0.0
    %6775 = vmatprep.subr.mxu0 0.0
    %6776 = vmatpush1.msra.mxu0 0.0
    %6777 = vmatprep.subr.mxu0 0.0
    %6778 = vmatpush1.msra.mxu0 0.0
    %6779 = vmatprep.subr.mxu0 0.0
    %6780 = vmatpush1.msra.mxu0 0.0
    %6781 = vmatprep.subr.mxu0 0.0
    %6782 = vmatpush1.msra.mxu0 0.0
    %6783 = vmatprep.subr.mxu0 0.0
    %6784 = vmatpush1.msra.mxu0 0.0
    %6785 = vmatprep.subr.mxu0 0.0
    %6786 = vmatpush1.msra.mxu0 0.0
    %6787 = vmatprep.subr.mxu0 0.0
    %6788 = vmatpush1.msra.mxu0 0.0
    %6789 = vmatprep.subr.mxu0 0.0
    %6790 = vmatpush1.msra.mxu0 0.0
    %6791 = vmatprep.subr.mxu0 0.0
    %6792 = vmatpush1.msra.mxu0 0.0
    %6793 = vmatprep.subr.mxu0 0.0
    %6794 = vmatpush1.msra.mxu0 0.0
    %6795 = vmatprep.subr.mxu0 0.0
    %6796 = vmatpush1.msra.mxu0 0.0
    %6797 = vmatprep.subr.mxu0 0.0
    %6798 = vmatpush1.msra.mxu0 0.0
    %6799 = vmatprep.subr.mxu0 0.0
    %6800 = vmatpush1.msra.mxu0 0.0
    %6801 = vmatprep.subr.mxu0 0.0
    %6802 = vmatpush1.msra.mxu0 0.0
    %6803 = vmatprep.subr.mxu0 0.0
    %6804 = vmatpush1.msra.mxu0 0.0
    %6805 = vmatprep.subr.mxu0 0.0
    %6806 = vmatpush1.msra.mxu0 0.0
    %6807 = vmatprep.subr.mxu0 0.0
    %6808 = vmatpush1.msra.mxu0 0.0
    %6809 = vmatprep.subr.mxu0 0.0
    %6810 = vmatpush1.msra.mxu0 0.0
    %6811 = vmatprep.subr.mxu0 0.0
    %6812 = vmatpush1.msra.mxu0 0.0
    %6813 = vmatprep.subr.mxu0 0.0
    %6814 = vmatpush1.msra.mxu0 0.0
    %6815 = vmatprep.subr.mxu0 0.0
    %6816 = vmatpush1.msra.mxu0 0.0
    %6817 = vmatprep.subr.mxu0 0.0
    %6818 = vmatpush1.msra.mxu0 0.0
    %6819 = vmatprep.mubr.f32.mxu0 0.0
    %6820 = vmatmul.mubr.f32.gmra.mrb[0].mxu0 %v6753
    %v6821 = vpop.f32.mrb[0].mxu0
    %v6822 = vadd.f32 %v5492, %v6821
    %v6823 = vpop.f32.mrb[0].mxu0
    %6824 = vdwg.mxu0
    %v6826 = vrot.slane %v6822, 6
    %v6828 = vadd.f32 %v5370, %v6826
    %v6829 = vxor.u32 %v6828, 2147483648
    %v6830 = vmul.f32 %v6829, 1.442695
    %v6831 = vpow.pop %v6830
    %v6832 = vadd.f32 %v6831, 1.0
    %v6833 = vrcp.pop %v6832
    %v6834 = vmul.f32 1.0, %v6833
    %6835 = vrot.lane.b32.xlu0 %v6826, 96
    %v6836 = vpop.permute.xlu0 %6835
    %v6838 = vmul.f32 %v6834, %v6836
    %6840 = vrot.lane.b32.xlu0 %v6838, 32
    %v6841 = vpop.permute.xlu0 %6840
    %v6843 = vadd.f32 %v5370, %v6841
    %v6844 = vtanh.pop %v6843
    %v6845 = vsub.f32 1.0, %v6834
    %6847 = vrot.lane.b32.xlu0 %v6844, 112
    %v6848 = vpop.permute.xlu0 %6847
    %v6850 = vmul.f32 %v6845, %v6848
    %v6851 = vrot.slane %v6642, 2
    %v6853 = vmul.f32 %v6834, %v6851
    %v6854 = vadd.f32 %v6850, %v6853
    %v6856 = vrot.slane %v6748, 4
    %6857 = vrot.lane.b32.xlu0 %v6856, 112
    %v6858 = vpop.permute.xlu0 %6857
    %v6859 = vsel %vm496, %v6858, 0
    %6861 = vmatprep.subr.mxu0 0.0
    %6862 = vmatpush1.msra.mxu0 %v5378
    %6863 = vmatprep.subr.mxu0 0.0
    %6864 = vmatpush1.msra.mxu0 %v5379
    %6865 = vmatprep.subr.mxu0 0.0
    %6866 = vmatpush1.msra.mxu0 0.0
    %6867 = vmatprep.subr.mxu0 0.0
    %6868 = vmatpush1.msra.mxu0 0.0
    %6869 = vmatprep.subr.mxu0 0.0
    %6870 = vmatpush1.msra.mxu0 0.0
    %6871 = vmatprep.subr.mxu0 0.0
    %6872 = vmatpush1.msra.mxu0 0.0
    %6873 = vmatprep.subr.mxu0 0.0
    %6874 = vmatpush1.msra.mxu0 0.0
    %6875 = vmatprep.subr.mxu0 0.0
    %6876 = vmatpush1.msra.mxu0 0.0
    %6877 = vmatprep.subr.mxu0 0.0
    %6878 = vmatpush1.msra.mxu0 0.0
    %6879 = vmatprep.subr.mxu0 0.0
    %6880 = vmatpush1.msra.mxu0 0.0
    %6881 = vmatprep.subr.mxu0 0.0
    %6882 = vmatpush1.msra.mxu0 0.0
    %6883 = vmatprep.subr.mxu0 0.0
    %6884 = vmatpush1.msra.mxu0 0.0
    %6885 = vmatprep.subr.mxu0 0.0
    %6886 = vmatpush1.msra.mxu0 0.0
    %6887 = vmatprep.subr.mxu0 0.0
    %6888 = vmatpush1.msra.mxu0 0.0
    %6889 = vmatprep.subr.mxu0 0.0
    %6890 = vmatpush1.msra.mxu0 0.0
    %6891 = vmatprep.subr.mxu0 0.0
    %6892 = vmatpush1.msra.mxu0 0.0
    %6893 = vmatprep.subr.mxu0 0.0
    %6894 = vmatpush1.msra.mxu0 0.0
    %6895 = vmatprep.subr.mxu0 0.0
    %6896 = vmatpush1.msra.mxu0 0.0
    %6897 = vmatprep.subr.mxu0 0.0
    %6898 = vmatpush1.msra.mxu0 0.0
    %6899 = vmatprep.subr.mxu0 0.0
    %6900 = vmatpush1.msra.mxu0 0.0
    %6901 = vmatprep.subr.mxu0 0.0
    %6902 = vmatpush1.msra.mxu0 0.0
    %6903 = vmatprep.subr.mxu0 0.0
    %6904 = vmatpush1.msra.mxu0 0.0
    %6905 = vmatprep.subr.mxu0 0.0
    %6906 = vmatpush1.msra.mxu0 0.0
    %6907 = vmatprep.subr.mxu0 0.0
    %6908 = vmatpush1.msra.mxu0 0.0
    %6909 = vmatprep.subr.mxu0 0.0
    %6910 = vmatpush1.msra.mxu0 0.0
    %6911 = vmatprep.subr.mxu0 0.0
    %6912 = vmatpush1.msra.mxu0 0.0
    %6913 = vmatprep.subr.mxu0 0.0
    %6914 = vmatpush1.msra.mxu0 0.0
    %6915 = vmatprep.subr.mxu0 0.0
    %6916 = vmatpush1.msra.mxu0 0.0
    %6917 = vmatprep.subr.mxu0 0.0
    %6918 = vmatpush1.msra.mxu0 0.0
    %6919 = vmatprep.subr.mxu0 0.0
    %6920 = vmatpush1.msra.mxu0 0.0
    %6921 = vmatprep.subr.mxu0 0.0
    %6922 = vmatpush1.msra.mxu0 0.0
    %6923 = vmatprep.subr.mxu0 0.0
    %6924 = vmatpush1.msra.mxu0 0.0
    %6925 = vmatprep.mubr.f32.mxu0 0.0
    %6926 = vmatmul.mubr.f32.gmra.mrb[0].mxu0 %v6859
    %v6927 = vpop.f32.mrb[0].mxu0
    %v6928 = vadd.f32 %v5390, %v6927
    %v6929 = vpop.f32.mrb[0].mxu0
    %6930 = vdwg.mxu0
    %v6932 = vrot.slane %v6928, 2
    %v6934 = vadd.f32 %v5287, %v6932
    %v6935 = vxor.u32 %v6934, 2147483648
    %v6936 = vmul.f32 %v6935, 1.442695
    %v6937 = vpow.pop %v6936
    %v6938 = vadd.f32 %v6937, 1.0
    %v6939 = vrcp.pop %v6938
    %v6940 = vmul.f32 1.0, %v6939
    %6941 = vrot.lane.b32.xlu0 %v6932, 96
    %v6942 = vpop.permute.xlu0 %6941
    %v6944 = vmul.f32 %v6940, %v6942
    %6946 = vrot.lane.b32.xlu0 %v6944, 32
    %v6947 = vpop.permute.xlu0 %6946
    %v6949 = vadd.f32 %v5287, %v6947
    %v6950 = vtanh.pop %v6949
    %v6951 = vsub.f32 1.0, %v6940
    %6953 = vrot.lane.b32.xlu0 %v6950, 112
    %v6954 = vpop.permute.xlu0 %6953
    %v6956 = vmul.f32 %v6951, %v6954
    %v6957 = vrot.slane %v6748, 6
    %v6959 = vmul.f32 %v6940, %v6957
    %v6960 = vadd.f32 %v6956, %v6959
    %v6962 = vrot.slane %v6854, 2
    %6963 = vrot.lane.b32.xlu0 %v6962, 112
    %v6964 = vpop.permute.xlu0 %6963
    %v6965 = vsel %vm496, %v6964, 0
    %6967 = vmatprep.subr.mxu0 0.0
    %6968 = vmatpush1.msra.mxu0 %v5382
    %6969 = vmatprep.subr.mxu0 0.0
    %6970 = vmatpush1.msra.mxu0 %v5383
    %6971 = vmatprep.subr.mxu0 0.0
    %6972 = vmatpush1.msra.mxu0 0.0
    %6973 = vmatprep.subr.mxu0 0.0
    %6974 = vmatpush1.msra.mxu0 0.0
    %6975 = vmatprep.subr.mxu0 0.0
    %6976 = vmatpush1.msra.mxu0 0.0
    %6977 = vmatprep.subr.mxu0 0.0
    %6978 = vmatpush1.msra.mxu0 0.0
    %6979 = vmatprep.subr.mxu0 0.0
    %6980 = vmatpush1.msra.mxu0 0.0
    %6981 = vmatprep.subr.mxu0 0.0
    %6982 = vmatpush1.msra.mxu0 0.0
    %6983 = vmatprep.subr.mxu0 0.0
    %6984 = vmatpush1.msra.mxu0 0.0
    %6985 = vmatprep.subr.mxu0 0.0
    %6986 = vmatpush1.msra.mxu0 0.0
    %6987 = vmatprep.subr.mxu0 0.0
    %6988 = vmatpush1.msra.mxu0 0.0
    %6989 = vmatprep.subr.mxu0 0.0
    %6990 = vmatpush1.msra.mxu0 0.0
    %6991 = vmatprep.subr.mxu0 0.0
    %6992 = vmatpush1.msra.mxu0 0.0
    %6993 = vmatprep.subr.mxu0 0.0
    %6994 = vmatpush1.msra.mxu0 0.0
    %6995 = vmatprep.subr.mxu0 0.0
    %6996 = vmatpush1.msra.mxu0 0.0
    %6997 = vmatprep.subr.mxu0 0.0
    %6998 = vmatpush1.msra.mxu0 0.0
    %6999 = vmatprep.subr.mxu0 0.0
    %7000 = vmatpush1.msra.mxu0 0.0
    %7001 = vmatprep.subr.mxu0 0.0
    %7002 = vmatpush1.msra.mxu0 0.0
    %7003 = vmatprep.subr.mxu0 0.0
    %7004 = vmatpush1.msra.mxu0 0.0
    %7005 = vmatprep.subr.mxu0 0.0
    %7006 = vmatpush1.msra.mxu0 0.0
    %7007 = vmatprep.subr.mxu0 0.0
    %7008 = vmatpush1.msra.mxu0 0.0
    %7009 = vmatprep.subr.mxu0 0.0
    %7010 = vmatpush1.msra.mxu0 0.0
    %7011 = vmatprep.subr.mxu0 0.0
    %7012 = vmatpush1.msra.mxu0 0.0
    %7013 = vmatprep.subr.mxu0 0.0
    %7014 = vmatpush1.msra.mxu0 0.0
    %7015 = vmatprep.subr.mxu0 0.0
    %7016 = vmatpush1.msra.mxu0 0.0
    %7017 = vmatprep.subr.mxu0 0.0
    %7018 = vmatpush1.msra.mxu0 0.0
    %7019 = vmatprep.subr.mxu0 0.0
    %7020 = vmatpush1.msra.mxu0 0.0
    %7021 = vmatprep.subr.mxu0 0.0
    %7022 = vmatpush1.msra.mxu0 0.0
    %7023 = vmatprep.subr.mxu0 0.0
    %7024 = vmatpush1.msra.mxu0 0.0
    %7025 = vmatprep.subr.mxu0 0.0
    %7026 = vmatpush1.msra.mxu0 0.0
    %7027 = vmatprep.subr.mxu0 0.0
    %7028 = vmatpush1.msra.mxu0 0.0
    %7029 = vmatprep.subr.mxu0 0.0
    %7030 = vmatpush1.msra.mxu0 0.0
    %7031 = vmatprep.mubr.f32.mxu0 0.0
    %7032 = vmatmul.mubr.f32.gmra.mrb[0].mxu0 %v6965
    %v7033 = vpop.f32.mrb[0].mxu0
    %v7034 = vadd.f32 %v5492, %v7033
    %v7035 = vpop.f32.mrb[0].mxu0
    %7036 = vdwg.mxu0
    %v7037 = vadd.f32 %v5370, %v7034
    %v7038 = vxor.u32 %v7037, 2147483648
    %v7039 = vmul.f32 %v7038, 1.442695
    %v7040 = vpow.pop %v7039
    %v7041 = vadd.f32 %v7040, 1.0
    %v7042 = vrcp.pop %v7041
    %v7043 = vmul.f32 1.0, %v7042
    %7045 = vrot.lane.b32.xlu0 %v7034, 96
    %v7046 = vpop.permute.xlu0 %7045
    %v7048 = vmul.f32 %v7043, %v7046
    %7050 = vrot.lane.b32.xlu0 %v7048, 32
    %v7051 = vpop.permute.xlu0 %7050
    %v7053 = vadd.f32 %v5370, %v7051
    %v7054 = vtanh.pop %v7053
    %v7055 = vsub.f32 1.0, %v7043
    %7057 = vrot.lane.b32.xlu0 %v7054, 112
    %v7058 = vpop.permute.xlu0 %7057
    %v7060 = vmul.f32 %v7055, %v7058
    %v7062 = vmul.f32 %v7043, %v6962
    %v7063 = vadd.f32 %v7060, %v7062
    %7065 = vrot.lane.b32.xlu0 %v6960, 112
    %v7066 = vpop.permute.xlu0 %7065
    %v7069 = vrot.slane %v7063, 2
    %v7071 = vsel %vm496, %v7066, %v7069
    %v7072 = vld [vmem:[%s26] sm:$0xff]
    %v7073 = vld [vmem:[%s26 + $0x8] sm:$0xff]
    %v7074 = vld [vmem:[%s26 + $0x10] sm:$0xff]
    %v7075 = vld [vmem:[%s26 + $0x18] sm:$0xff]
    %v7076 = vld [vmem:[%s27] sm:$0x1]
    %v7078 = vlaneseq
    %v7079 = vshrl.u32 %v7078, 7
    %v7080 = vsub.s32 0, %v7079
    %v7081 = vrot.slane %v7076, %v7080
    %v7084 = vrot.slane %v7071, 6
    %v7085 = vsel %vm331, %v7084, 0
    %7087 = vmatprep.subr.mxu0 0.0
    %7088 = vmatpush1.msra.mxu0 %v7072
    %7089 = vmatprep.subr.mxu0 0.0
    %7090 = vmatpush1.msra.mxu0 %v7073
    %7091 = vmatprep.subr.mxu0 0.0
    %7092 = vmatpush1.msra.mxu0 %v7074
    %7093 = vmatprep.subr.mxu0 0.0
    %7094 = vmatpush1.msra.mxu0 %v7075
    %7095 = vmatprep.subr.mxu0 0.0
    %7096 = vmatpush1.msra.mxu0 0.0
    %7097 = vmatprep.subr.mxu0 0.0
    %7098 = vmatpush1.msra.mxu0 0.0
    %7099 = vmatprep.subr.mxu0 0.0
    %7100 = vmatpush1.msra.mxu0 0.0
    %7101 = vmatprep.subr.mxu0 0.0
    %7102 = vmatpush1.msra.mxu0 0.0
    %7103 = vmatprep.subr.mxu0 0.0
    %7104 = vmatpush1.msra.mxu0 0.0
    %7105 = vmatprep.subr.mxu0 0.0
    %7106 = vmatpush1.msra.mxu0 0.0
    %7107 = vmatprep.subr.mxu0 0.0
    %7108 = vmatpush1.msra.mxu0 0.0
    %7109 = vmatprep.subr.mxu0 0.0
    %7110 = vmatpush1.msra.mxu0 0.0
    %7111 = vmatprep.subr.mxu0 0.0
    %7112 = vmatpush1.msra.mxu0 0.0
    %7113 = vmatprep.subr.mxu0 0.0
    %7114 = vmatpush1.msra.mxu0 0.0
    %7115 = vmatprep.subr.mxu0 0.0
    %7116 = vmatpush1.msra.mxu0 0.0
    %7117 = vmatprep.subr.mxu0 0.0
    %7118 = vmatpush1.msra.mxu0 0.0
    %7119 = vmatprep.subr.mxu0 0.0
    %7120 = vmatpush1.msra.mxu0 0.0
    %7121 = vmatprep.subr.mxu0 0.0
    %7122 = vmatpush1.msra.mxu0 0.0
    %7123 = vmatprep.subr.mxu0 0.0
    %7124 = vmatpush1.msra.mxu0 0.0
    %7125 = vmatprep.subr.mxu0 0.0
    %7126 = vmatpush1.msra.mxu0 0.0
    %7127 = vmatprep.subr.mxu0 0.0
    %7128 = vmatpush1.msra.mxu0 0.0
    %7129 = vmatprep.subr.mxu0 0.0
    %7130 = vmatpush1.msra.mxu0 0.0
    %7131 = vmatprep.subr.mxu0 0.0
    %7132 = vmatpush1.msra.mxu0 0.0
    %7133 = vmatprep.subr.mxu0 0.0
    %7134 = vmatpush1.msra.mxu0 0.0
    %7135 = vmatprep.subr.mxu0 0.0
    %7136 = vmatpush1.msra.mxu0 0.0
    %7137 = vmatprep.subr.mxu0 0.0
    %7138 = vmatpush1.msra.mxu0 0.0
    %7139 = vmatprep.subr.mxu0 0.0
    %7140 = vmatpush1.msra.mxu0 0.0
    %7141 = vmatprep.subr.mxu0 0.0
    %7142 = vmatpush1.msra.mxu0 0.0
    %7143 = vmatprep.subr.mxu0 0.0
    %7144 = vmatpush1.msra.mxu0 0.0
    %7145 = vmatprep.subr.mxu0 0.0
    %7146 = vmatpush1.msra.mxu0 0.0
    %7147 = vmatprep.subr.mxu0 0.0
    %7148 = vmatpush1.msra.mxu0 0.0
    %7149 = vmatprep.subr.mxu0 0.0
    %7150 = vmatpush1.msra.mxu0 0.0
    %7151 = vmatprep.mubr.f32.mxu0 0.0
    %7152 = vmatmul.mubr.f32.gmra.mrb[0].mxu0 %v7085
    %v7153 = vpop.f32.mrb[0].mxu0
    %v7154 = vadd.f32 %v7081, %v7153
    %v7155 = vpop.f32.mrb[0].mxu0
    %7156 = vdwg.mxu0
    %vm7157 = vcmask 17408
    %7158 = vst.msk [vmem:[#allocation17] sm:$0x3] %vm7157, %v7154
    // Predicated region
    $region150: #{bert_classifier_forward.1} parent=1 // pred_check
      _
    $region151: #{bert_classifier_forward.1} parent=1 // pred_check_branch
      %7160 = sbr.rel (0) target = $region153
    $region152: #{bert_classifier_forward.1} parent=1 // pred_region
      %s7162 = ssub.s32 32, 32
      %7163 = vsyncadd [#allocation4], %s7162
      %s7165 = sshll.u32 [#allocation17], 4
      %s7166 = int_to_ptr.vmem [resolvable:$true] %s7165
      %7168 = dma.vmem_to_hbm [thread:$0]  %s7166, 32, %s28, [#allocation4]
    $region153: #{bert_classifier_forward.1} parent=1 // pred_fallthru
      _
    // Predicated region
    $region154: #{bert_classifier_forward.1} parent=1 // pred_check
      _
    $region155: #{bert_classifier_forward.1} parent=1 // pred_check_branch
      %7170 = sbr.rel (0) target = $region157
    $region156: #{bert_classifier_forward.1} parent=1 // pred_region
      %7171 = dma.done [#allocation4], 32
    $region157: #{bert_classifier_forward.1} parent=1 // pred_fallthru
      _
    %7172 = vsyncpa [#allocation3], 1
    %7173 = vsyncpa [#allocation6], 1
    %7174 = vsyncpa [#allocation9], 1
    %7175 = vsyncpa [#allocation12], 1
    %7176 = vsyncpa [#allocation15], 1
    %7177 = vsyncpa [#allocation4], 1

</llo_original>
